<compile_context>
chip_gen: v7x
topology: tpu7x:2x2x1
jax: 0.10.0
libtpu: 0.0.40
codegen_flags: <defaults>
</compile_context>

<pallas_src>
import functools

import numpy as np

import jax
import jax.numpy as jnp
from jax.experimental import pallas as pl
from jax.experimental.pallas import tpu as pltpu


def _pirl_fused_kernel(
    # scalar prefetch (SMEM)
    y_ref,              # (bsz,) int32 : positive row indices
    # inputs
    idx_ref,            # (bsz, K+1) int32 : sampled bank rows (col 0 == y)
    xall_ref,           # (2*bsz, n_dim) f32 : rows [0:bsz)=x, [bsz:2bsz)=x_jig
    mem_hbm,            # (n_data, n_dim) f32, HBM (pl.ANY)
    # outputs
    loss_ref,           # (1, 1) f32 : scalar loss
    mem_out_hbm,        # (n_data, n_dim) f32, HBM, aliased with mem_hbm
    # scratch
    bank_vmem,          # (n_data, n_dim) f32 : resident copy of the bank
    upd_vmem,           # (bsz, n_dim) f32 : updated (normalized) rows
    load_sem,           # DMA semaphore (bulk bank load)
    scatter_sem,        # DMA semaphore (row scatter)
    *, k1, bsz, n_data, temperature, momentum):
  # ---- 1. one bulk DMA: whole bank HBM -> VMEM (latency hidden by step 2) ---
  bank_cp = pltpu.make_async_copy(mem_hbm, bank_vmem, load_sem)
  bank_cp.start()

  # ---- 2. multiplicity counts of sampled columns + positive one-hot --------
  # cnt[b, n] = #{k : idx[b, k] == n}   (duplicates counted, exactly as torch)
  idx_v = idx_ref[...]                                          # (bsz, k1) i32
  col_ids3 = jax.lax.broadcasted_iota(jnp.int32, (bsz, n_data, k1), 1)
  hits = (col_ids3 == idx_v[:, None, :]).astype(jnp.float32)    # (bsz,nd,k1)
  cnt = jnp.sum(hits, axis=-1)                                  # (bsz, n_data)
  col_ids = jax.lax.broadcasted_iota(jnp.int32, (bsz, n_data), 1)
  oh_pos = (col_ids == idx_v[:, 0:1]).astype(jnp.float32)       # (bsz, n_data)

  bank_cp.wait()

  # ---- 3. similarities on the MXU: S = [x; x_jig] @ bank^T / T -------------
  bank = bank_vmem[...]                                         # (n_data,n_dim)
  xall = xall_ref[...]                                          # (2*bsz,n_dim)
  s = jax.lax.dot_general(xall, bank, (((1,), (1,)), ((), ())),
                          preferred_element_type=jnp.float32)
  s = s * jnp.float32(1.0 / temperature)                        # (2*bsz,n_data)

  # ---- 4. CE with label 0 over the K+1 sampled columns (stable logsumexp) --
  def _ce(rows):                                                # (bsz, n_data)
    mx = jnp.max(rows, axis=-1, keepdims=True)                  # >= selected max
    sel = cnt * jnp.exp(rows - mx)                              # selected terms
    lse = mx + jnp.log(jnp.sum(sel, axis=-1, keepdims=True))
    pos = jnp.sum(oh_pos * rows, axis=-1, keepdims=True)        # rows[:, y]
    return lse - pos                                            # (bsz, 1)

  per_sample = _ce(s[:bsz]) + _ce(s[bsz:])                      # (bsz, 1)

  # ---- 5. momentum memory update (torch.no_grad path); bank is pre-update --
  w_pos = jnp.dot(oh_pos, bank, preferred_element_type=jnp.float32)  # memory[y]
  blended = (w_pos * jnp.float32(momentum)
             + xall[:bsz] * jnp.float32(1.0 - momentum))
  sq = jnp.sum(blended * blended, axis=-1, keepdims=True)
  upd_vmem[...] = blended * jax.lax.rsqrt(jnp.maximum(sq, 1e-24))

  # ---- 6. scatter the bsz updated rows into the aliased HBM bank -----------
  copies = []
  for b in range(bsz):
    cp = pltpu.make_async_copy(upd_vmem.at[pl.ds(b, 1)],
                               mem_out_hbm.at[pl.ds(y_ref[b], 1)],
                               scatter_sem)
    cp.start()
    copies.append(cp)

  # loss = 0.5 * mean(ce_x) + 0.5 * mean(ce_xjig)  (store overlaps scatters)
  loss_ref[...] = jnp.sum(per_sample, keepdims=True) * jnp.float32(0.5 / bsz)

  for cp in copies:
    cp.wait()


def _pirl_forward(memory, x, x_jig, y, rng, *, K, T, m, n_data):
  """Fused forward: returns (scalar loss, updated memory bank)."""
  bsz, n_dim = x.shape
  k1 = K + 1
  y = y.astype(jnp.int32)

  # TODO(synk): AliasMethod.draw over uniform weights == uniform sampling; done
  # with jax.random (negatives may collide with the positive, as in torch).
  idx = jax.random.randint(rng, (bsz, k1), 0, n_data, dtype=jnp.int32)
  idx = idx.at[:, 0].set(y)                      # idx.select(1, 0).copy_(y)

  xall = jnp.concatenate([x, x_jig], axis=0)     # (2*bsz, n_dim)

  kernel = functools.partial(_pirl_fused_kernel, k1=k1, bsz=bsz, n_data=n_data,
                             temperature=T, momentum=m)
  grid_spec = pltpu.PrefetchScalarGridSpec(
      num_scalar_prefetch=1,                     # y -> SMEM
      grid=(1,),                                 # whole batch in one step
      in_specs=[
          pl.BlockSpec((bsz, k1), lambda i, yy: (0, 0)),          # idx
          pl.BlockSpec((2 * bsz, n_dim), lambda i, yy: (0, 0)),   # [x; x_jig]
          pl.BlockSpec(memory_space=pl.ANY),                      # memory (HBM)
      ],
      out_specs=(
          pl.BlockSpec((1, 1), lambda i, yy: (0, 0)),             # scalar loss
          pl.BlockSpec(memory_space=pl.ANY),                      # updated bank
      ),
      scratch_shapes=[
          pltpu.VMEM((n_data, n_dim), jnp.float32),   # resident bank copy
          pltpu.VMEM((bsz, n_dim), jnp.float32),      # updated rows
          pltpu.SemaphoreType.DMA,                    # bank-load sem
          pltpu.SemaphoreType.DMA,                    # scatter sem
      ],
  )
  loss11, new_memory = pl.pallas_call(
      kernel,
      grid_spec=grid_spec,
      out_shape=(jax.ShapeDtypeStruct((1, 1), jnp.float32),
                 jax.ShapeDtypeStruct(memory.shape, memory.dtype)),
      # operand order: y(0), idx(1), xall(2), memory(3) -> alias memory to
      # output 1 so the bank is updated in place (only bsz rows are written).
      input_output_aliases={3: 1},
      compiler_params=pltpu.CompilerParams(
          dimension_semantics=("arbitrary",)),
  )(y, idx, xall, memory)
  return loss11[0, 0], new_memory


class ContrastPIRL:
  """JAX/Pallas port of contrast_PIRL (memory bank + NCE-style CE loss)."""

  def __init__(self, n_dim, n_data, K=127, T=0.07, m=0.5, seed=0):
    self.K, self.T, self.m = K, T, m
    self.n_data, self.n_dim = n_data, n_dim
    # register_buffer('memory', randn(n_data, n_dim)); memory = F.normalize(memory)
    mem = jax.random.normal(jax.random.PRNGKey(seed), (n_data, n_dim),
                            dtype=jnp.float32)
    mem = mem / jnp.maximum(
        jnp.sqrt(jnp.sum(mem * mem, axis=-1, keepdims=True)), 1e-12)
    self.memory = mem
    # donate the bank so the aliased in-kernel scatter really is in place
    self._fwd = jax.jit(
        functools.partial(_pirl_forward, K=K, T=T, m=m, n_data=n_data),
        donate_argnums=(0,))

  def forward(self, x, y, x_jig, rng):
    loss, new_memory = self._fwd(self.memory, x, x_jig, y, rng)
    self.memory = new_memory   # state threaded functionally (jit-safe)
    return loss


if __name__ == "__main__":
  bsz, n_dim, n_data, K = 8, 128, 256, 127     # K+1 = 128 (positive + negatives)

  key = jax.random.PRNGKey(0)
  kx, kj, ky, kidx = jax.random.split(key, 4)
  x = jax.random.normal(kx, (bsz, n_dim), dtype=jnp.float32)
  x_jig = jax.random.normal(kj, (bsz, n_dim), dtype=jnp.float32)
  y = jax.random.randint(ky, (bsz,), 0, n_data, dtype=jnp.int32)

  module = ContrastPIRL(n_dim=n_dim, n_data=n_data, K=K, T=0.07, m=0.5, seed=0)

  mem0 = np.asarray(module.memory)             # host snapshot (device buf donated)
  loss = module.forward(x, y, x_jig, rng=kidx)
  loss = jax.block_until_ready(loss)
  new_mem = np.asarray(jax.block_until_ready(module.memory))

  # ---- lightweight numpy reference (same idx: jax PRNG is deterministic) ----
  idx = np.array(jax.random.randint(kidx, (bsz, K + 1), 0, n_data,
                                    dtype=jnp.int32))
  yn = np.asarray(y)
  idx[:, 0] = yn
  w_ref = mem0[idx.reshape(-1)].reshape(bsz, K + 1, n_dim)
  xn, xjn = np.asarray(x), np.asarray(x_jig)

  def _ce_ref(feat):
    lg = np.einsum("bkd,bd->bk", w_ref, feat, dtype=np.float32) / 0.07
    mx = lg.max(-1, keepdims=True)
    lse = mx[:, 0] + np.log(np.exp(lg - mx).sum(-1))
    return float((lse - lg[:, 0]).mean())

  ref_loss = 0.5 * _ce_ref(xn) + 0.5 * _ce_ref(xjn)
  assert abs(float(loss) - ref_loss) < 0.05 + 0.02 * abs(ref_loss), (float(loss),
                                                                     ref_loss)

  untouched = np.setdiff1d(np.arange(n_data), yn)
  assert np.allclose(new_mem[untouched], mem0[untouched])

  if len(np.unique(yn)) == bsz:   # skip the duplicate-label last-writer ambiguity
    blended = 0.5 * mem0[yn] + 0.5 * xn
    ref_rows = blended / np.maximum(
        np.sqrt((blended * blended).sum(-1, keepdims=True)), 1e-12)
    assert np.allclose(new_mem[yn], ref_rows, atol=1e-4, rtol=1e-4)

  assert loss.shape == () and np.isfinite(float(loss))
  print("KERNEL_OK")
</pallas_src>

<mosaic_0001>
module attributes {stable_mosaic.version = 11 : i64} {
  func.func @_pirl_fused_kernel(%arg0: i32, %arg1: memref<8xi32, #tpu.memory_space<smem>>, %arg2: memref<8x128xi32, #tpu.memory_space<vmem>>, %arg3: memref<16x128xf32, #tpu.memory_space<vmem>>, %arg4: memref<256x128xf32, #tpu.memory_space<any>>, %arg5: memref<1x1xf32, #tpu.memory_space<vmem>>, %arg6: memref<256x128xf32, #tpu.memory_space<any>>, %arg7: memref<256x128xf32, #tpu.memory_space<vmem>>, %arg8: memref<8x128xf32, #tpu.memory_space<vmem>>, %arg9: memref<!tpu.dma_semaphore, #tpu.memory_space<semaphore_mem>>, %arg10: memref<!tpu.dma_semaphore, #tpu.memory_space<semaphore_mem>>) attributes {dimension_semantics = [#tpu.dimension_semantics<arbitrary>], iteration_bounds = array<i64: 1>, scalar_prefetch = 1 : i64, scratch_operands = 4 : i64, tpu.core_type = #tpu.core_type<tc>, window_params = [{pipeline_mode = #tpu.pipeline_mode<synchronous>, transform_indices = @transform_0, window_bounds = array<i64: 8, 128>}, {pipeline_mode = #tpu.pipeline_mode<synchronous>, transform_indices = @transform_1, window_bounds = array<i64: 16, 128>}, {}, {pipeline_mode = #tpu.pipeline_mode<synchronous>, transform_indices = @transform_3, window_bounds = array<i64: 1, 1>}, {}]} {
    tpu.enqueue_dma source(%arg4 : memref<256x128xf32, #tpu.memory_space<any>>) target(%arg7 : memref<256x128xf32, #tpu.memory_space<vmem>>) target_semaphore(%arg9 : memref<!tpu.dma_semaphore, #tpu.memory_space<semaphore_mem>>)
    %c0 = arith.constant 0 : index
    %c0_0 = arith.constant 0 : index
    %0 = vector.load %arg2[%c0, %c0_0] : memref<8x128xi32, #tpu.memory_space<vmem>>, vector<8x128xi32>
    %1 = tpu.iota {dimensions = array<i32: 1>} : vector<8x256x128xi32>
    %2 = vector.shape_cast %0 : vector<8x128xi32> to vector<8x1x128xi32>
    %3 = vector.broadcast %2 : vector<8x1x128xi32> to vector<8x256x128xi32>
    %4 = arith.cmpi eq, %1, %3 : vector<8x256x128xi32>
    %5 = arith.extui %4 : vector<8x256x128xi1> to vector<8x256x128xi32>
    %6 = arith.sitofp %5 : vector<8x256x128xi32> to vector<8x256x128xf32>
    %cst = arith.constant dense<0.000000e+00> : vector<8x256xf32>
    %7 = vector.multi_reduction <add>, %6, %cst [2] : vector<8x256x128xf32> to vector<8x256xf32>
    %8 = tpu.iota {dimensions = array<i32: 1>} : vector<8x256xi32>
    %9 = vector.extract_strided_slice %0 {offsets = [0, 0], sizes = [8, 1], strides = [1, 1]} : vector<8x128xi32> to vector<8x1xi32>
    %10 = vector.broadcast %9 : vector<8x1xi32> to vector<8x256xi32>
    %11 = arith.cmpi eq, %8, %10 : vector<8x256xi32>
    %12 = arith.extui %11 : vector<8x256xi1> to vector<8x256xi32>
    %13 = arith.sitofp %12 : vector<8x256xi32> to vector<8x256xf32>
    tpu.wait_dma2 semaphore(%arg9 : memref<!tpu.dma_semaphore, #tpu.memory_space<semaphore_mem>>) src(%arg4 : memref<256x128xf32, #tpu.memory_space<any>>) dst(%arg7 : memref<256x128xf32, #tpu.memory_space<vmem>>)
    %c0_1 = arith.constant 0 : index
    %c0_2 = arith.constant 0 : index
    %14 = vector.load %arg7[%c0_1, %c0_2] : memref<256x128xf32, #tpu.memory_space<vmem>>, vector<256x128xf32>
    %c0_3 = arith.constant 0 : index
    %c0_4 = arith.constant 0 : index
    %15 = vector.load %arg3[%c0_3, %c0_4] : memref<16x128xf32, #tpu.memory_space<vmem>>, vector<16x128xf32>
    %cst_5 = arith.constant dense<0.000000e+00> : vector<16x256xf32>
    %16 = tpu.matmul %15, %14, %cst_5 {dimension_numbers = #tpu.dot_dimension_numbers<[1], [1], [0], [0], [0, 0, 1, 0], [], []>} : vector<16x128xf32>, vector<256x128xf32>, vector<16x256xf32> -> vector<16x256xf32>
    %cst_6 = arith.constant 14.2857141 : f32
    %17 = vector.broadcast %cst_6 : f32 to vector<16x256xf32>
    %18 = arith.mulf %16, %17 : vector<16x256xf32>
    %19 = vector.extract_strided_slice %18 {offsets = [0, 0], sizes = [8, 256], strides = [1, 1]} : vector<16x256xf32> to vector<8x256xf32>
    %cst_7 = arith.constant dense<0xFF800000> : vector<8xf32>
    %20 = vector.multi_reduction <maximumf>, %19, %cst_7 [1] : vector<8x256xf32> to vector<8xf32>
    %21 = vector.shape_cast %20 : vector<8xf32> to vector<8x1xf32>
    %22 = vector.broadcast %21 : vector<8x1xf32> to vector<8x256xf32>
    %23 = arith.subf %19, %22 : vector<8x256xf32>
    %24 = math.exp %23 : vector<8x256xf32>
    %25 = arith.mulf %7, %24 : vector<8x256xf32>
    %cst_8 = arith.constant dense<0.000000e+00> : vector<8xf32>
    %26 = vector.multi_reduction <add>, %25, %cst_8 [1] : vector<8x256xf32> to vector<8xf32>
    %27 = vector.shape_cast %26 : vector<8xf32> to vector<8x1xf32>
    %28 = math.log %27 : vector<8x1xf32>
    %29 = arith.addf %21, %28 : vector<8x1xf32>
    %30 = arith.mulf %13, %19 : vector<8x256xf32>
    %cst_9 = arith.constant dense<0.000000e+00> : vector<8xf32>
    %31 = vector.multi_reduction <add>, %30, %cst_9 [1] : vector<8x256xf32> to vector<8xf32>
    %32 = vector.shape_cast %31 : vector<8xf32> to vector<8x1xf32>
    %33 = arith.subf %29, %32 : vector<8x1xf32>
    %34 = vector.extract_strided_slice %18 {offsets = [8, 0], sizes = [8, 256], strides = [1, 1]} : vector<16x256xf32> to vector<8x256xf32>
    %cst_10 = arith.constant dense<0xFF800000> : vector<8xf32>
    %35 = vector.multi_reduction <maximumf>, %34, %cst_10 [1] : vector<8x256xf32> to vector<8xf32>
    %36 = vector.shape_cast %35 : vector<8xf32> to vector<8x1xf32>
    %37 = vector.broadcast %36 : vector<8x1xf32> to vector<8x256xf32>
    %38 = arith.subf %34, %37 : vector<8x256xf32>
    %39 = math.exp %38 : vector<8x256xf32>
    %40 = arith.mulf %7, %39 : vector<8x256xf32>
    %cst_11 = arith.constant dense<0.000000e+00> : vector<8xf32>
    %41 = vector.multi_reduction <add>, %40, %cst_11 [1] : vector<8x256xf32> to vector<8xf32>
    %42 = vector.shape_cast %41 : vector<8xf32> to vector<8x1xf32>
    %43 = math.log %42 : vector<8x1xf32>
    %44 = arith.addf %36, %43 : vector<8x1xf32>
    %45 = arith.mulf %13, %34 : vector<8x256xf32>
    %cst_12 = arith.constant dense<0.000000e+00> : vector<8xf32>
    %46 = vector.multi_reduction <add>, %45, %cst_12 [1] : vector<8x256xf32> to vector<8xf32>
    %47 = vector.shape_cast %46 : vector<8xf32> to vector<8x1xf32>
    %48 = arith.subf %44, %47 : vector<8x1xf32>
    %49 = arith.addf %33, %48 : vector<8x1xf32>
    %cst_13 = arith.constant dense<0.000000e+00> : vector<8x128xf32>
    %50 = tpu.matmul %13, %14, %cst_13 {dimension_numbers = #tpu.dot_dimension_numbers<[1], [0], [0], [1], [0, 0, 1, 1], [], []>} : vector<8x256xf32>, vector<256x128xf32>, vector<8x128xf32> -> vector<8x128xf32>
    %cst_14 = arith.constant 5.000000e-01 : f32
    %51 = vector.broadcast %cst_14 : f32 to vector<8x128xf32>
    %52 = arith.mulf %50, %51 : vector<8x128xf32>
    %53 = vector.extract_strided_slice %15 {offsets = [0, 0], sizes = [8, 128], strides = [1, 1]} : vector<16x128xf32> to vector<8x128xf32>
    %cst_15 = arith.constant 5.000000e-01 : f32
    %54 = vector.broadcast %cst_15 : f32 to vector<8x128xf32>
    %55 = arith.mulf %53, %54 : vector<8x128xf32>
    %56 = arith.addf %52, %55 : vector<8x128xf32>
    %57 = arith.mulf %56, %56 : vector<8x128xf32>
    %cst_16 = arith.constant dense<0.000000e+00> : vector<8xf32>
    %58 = vector.multi_reduction <add>, %57, %cst_16 [1] : vector<8x128xf32> to vector<8xf32>
    %59 = vector.shape_cast %58 : vector<8xf32> to vector<8x1xf32>
    %cst_17 = arith.constant 1.000000e-24 : f32
    %60 = vector.broadcast %cst_17 : f32 to vector<8x1xf32>
    %61 = arith.maximumf %59, %60 : vector<8x1xf32>
    %62 = math.rsqrt %61 : vector<8x1xf32>
    %63 = vector.broadcast %62 : vector<8x1xf32> to vector<8x128xf32>
    %64 = arith.mulf %56, %63 : vector<8x128xf32>
    %c0_18 = arith.constant 0 : index
    %c0_19 = arith.constant 0 : index
    %65 = vector.load %arg8[%c0_18, %c0_19] : memref<8x128xf32, #tpu.memory_space<vmem>>, vector<8x128xf32>
    tpu.vector_store %arg8[%c0_18, %c0_19], %64 {strides = array<i32>} : memref<8x128xf32, #tpu.memory_space<vmem>>, vector<8x128xf32>,
    %c0_20 = arith.constant 0 : index
    %66 = memref.load %arg1[%c0_20] : memref<8xi32, #tpu.memory_space<smem>>
    %c0_i32 = arith.constant 0 : i32
    %c0_i32_21 = arith.constant 0 : i32
    %67 = tpu.memref_slice %arg8[%c0_i32, %c0_i32_21] : memref<8x128xf32, #tpu.memory_space<vmem>> -> memref<1x128xf32, #tpu.memory_space<vmem>>
    %c0_i32_22 = arith.constant 0 : i32
    %68 = tpu.memref_slice %arg6[%66, %c0_i32_22] : memref<256x128xf32, #tpu.memory_space<any>> -> memref<1x128xf32, #tpu.memory_space<any>>
    tpu.enqueue_dma source(%67 : memref<1x128xf32, #tpu.memory_space<vmem>>) target(%68 : memref<1x128xf32, #tpu.memory_space<any>>) target_semaphore(%arg10 : memref<!tpu.dma_semaphore, #tpu.memory_space<semaphore_mem>>)
    %c1 = arith.constant 1 : index
    %69 = memref.load %arg1[%c1] : memref<8xi32, #tpu.memory_space<smem>>
    %c1_i32 = arith.constant 1 : i32
    %c0_i32_23 = arith.constant 0 : i32
    %70 = tpu.memref_slice %arg8[%c1_i32, %c0_i32_23] : memref<8x128xf32, #tpu.memory_space<vmem>> -> memref<1x128xf32, #tpu.memory_space<vmem>>
    %c0_i32_24 = arith.constant 0 : i32
    %71 = tpu.memref_slice %arg6[%69, %c0_i32_24] : memref<256x128xf32, #tpu.memory_space<any>> -> memref<1x128xf32, #tpu.memory_space<any>>
    tpu.enqueue_dma source(%70 : memref<1x128xf32, #tpu.memory_space<vmem>>) target(%71 : memref<1x128xf32, #tpu.memory_space<any>>) target_semaphore(%arg10 : memref<!tpu.dma_semaphore, #tpu.memory_space<semaphore_mem>>)
    %c2 = arith.constant 2 : index
    %72 = memref.load %arg1[%c2] : memref<8xi32, #tpu.memory_space<smem>>
    %c2_i32 = arith.constant 2 : i32
    %c0_i32_25 = arith.constant 0 : i32
    %73 = tpu.memref_slice %arg8[%c2_i32, %c0_i32_25] : memref<8x128xf32, #tpu.memory_space<vmem>> -> memref<1x128xf32, #tpu.memory_space<vmem>>
    %c0_i32_26 = arith.constant 0 : i32
    %74 = tpu.memref_slice %arg6[%72, %c0_i32_26] : memref<256x128xf32, #tpu.memory_space<any>> -> memref<1x128xf32, #tpu.memory_space<any>>
    tpu.enqueue_dma source(%73 : memref<1x128xf32, #tpu.memory_space<vmem>>) target(%74 : memref<1x128xf32, #tpu.memory_space<any>>) target_semaphore(%arg10 : memref<!tpu.dma_semaphore, #tpu.memory_space<semaphore_mem>>)
    %c3 = arith.constant 3 : index
    %75 = memref.load %arg1[%c3] : memref<8xi32, #tpu.memory_space<smem>>
    %c3_i32 = arith.constant 3 : i32
    %c0_i32_27 = arith.constant 0 : i32
    %76 = tpu.memref_slice %arg8[%c3_i32, %c0_i32_27] : memref<8x128xf32, #tpu.memory_space<vmem>> -> memref<1x128xf32, #tpu.memory_space<vmem>>
    %c0_i32_28 = arith.constant 0 : i32
    %77 = tpu.memref_slice %arg6[%75, %c0_i32_28] : memref<256x128xf32, #tpu.memory_space<any>> -> memref<1x128xf32, #tpu.memory_space<any>>
    tpu.enqueue_dma source(%76 : memref<1x128xf32, #tpu.memory_space<vmem>>) target(%77 : memref<1x128xf32, #tpu.memory_space<any>>) target_semaphore(%arg10 : memref<!tpu.dma_semaphore, #tpu.memory_space<semaphore_mem>>)
    %c4 = arith.constant 4 : index
    %78 = memref.load %arg1[%c4] : memref<8xi32, #tpu.memory_space<smem>>
    %c4_i32 = arith.constant 4 : i32
    %c0_i32_29 = arith.constant 0 : i32
    %79 = tpu.memref_slice %arg8[%c4_i32, %c0_i32_29] : memref<8x128xf32, #tpu.memory_space<vmem>> -> memref<1x128xf32, #tpu.memory_space<vmem>>
    %c0_i32_30 = arith.constant 0 : i32
    %80 = tpu.memref_slice %arg6[%78, %c0_i32_30] : memref<256x128xf32, #tpu.memory_space<any>> -> memref<1x128xf32, #tpu.memory_space<any>>
    tpu.enqueue_dma source(%79 : memref<1x128xf32, #tpu.memory_space<vmem>>) target(%80 : memref<1x128xf32, #tpu.memory_space<any>>) target_semaphore(%arg10 : memref<!tpu.dma_semaphore, #tpu.memory_space<semaphore_mem>>)
    %c5 = arith.constant 5 : index
    %81 = memref.load %arg1[%c5] : memref<8xi32, #tpu.memory_space<smem>>
    %c5_i32 = arith.constant 5 : i32
    %c0_i32_31 = arith.constant 0 : i32
    %82 = tpu.memref_slice %arg8[%c5_i32, %c0_i32_31] : memref<8x128xf32, #tpu.memory_space<vmem>> -> memref<1x128xf32, #tpu.memory_space<vmem>>
    %c0_i32_32 = arith.constant 0 : i32
    %83 = tpu.memref_slice %arg6[%81, %c0_i32_32] : memref<256x128xf32, #tpu.memory_space<any>> -> memref<1x128xf32, #tpu.memory_space<any>>
    tpu.enqueue_dma source(%82 : memref<1x128xf32, #tpu.memory_space<vmem>>) target(%83 : memref<1x128xf32, #tpu.memory_space<any>>) target_semaphore(%arg10 : memref<!tpu.dma_semaphore, #tpu.memory_space<semaphore_mem>>)
    %c6 = arith.constant 6 : index
    %84 = memref.load %arg1[%c6] : memref<8xi32, #tpu.memory_space<smem>>
    %c6_i32 = arith.constant 6 : i32
    %c0_i32_33 = arith.constant 0 : i32
    %85 = tpu.memref_slice %arg8[%c6_i32, %c0_i32_33] : memref<8x128xf32, #tpu.memory_space<vmem>> -> memref<1x128xf32, #tpu.memory_space<vmem>>
    %c0_i32_34 = arith.constant 0 : i32
    %86 = tpu.memref_slice %arg6[%84, %c0_i32_34] : memref<256x128xf32, #tpu.memory_space<any>> -> memref<1x128xf32, #tpu.memory_space<any>>
    tpu.enqueue_dma source(%85 : memref<1x128xf32, #tpu.memory_space<vmem>>) target(%86 : memref<1x128xf32, #tpu.memory_space<any>>) target_semaphore(%arg10 : memref<!tpu.dma_semaphore, #tpu.memory_space<semaphore_mem>>)
    %c7 = arith.constant 7 : index
    %87 = memref.load %arg1[%c7] : memref<8xi32, #tpu.memory_space<smem>>
    %c7_i32 = arith.constant 7 : i32
    %c0_i32_35 = arith.constant 0 : i32
    %88 = tpu.memref_slice %arg8[%c7_i32, %c0_i32_35] : memref<8x128xf32, #tpu.memory_space<vmem>> -> memref<1x128xf32, #tpu.memory_space<vmem>>
    %c0_i32_36 = arith.constant 0 : i32
    %89 = tpu.memref_slice %arg6[%87, %c0_i32_36] : memref<256x128xf32, #tpu.memory_space<any>> -> memref<1x128xf32, #tpu.memory_space<any>>
    tpu.enqueue_dma source(%88 : memref<1x128xf32, #tpu.memory_space<vmem>>) target(%89 : memref<1x128xf32, #tpu.memory_space<any>>) target_semaphore(%arg10 : memref<!tpu.dma_semaphore, #tpu.memory_space<semaphore_mem>>)
    %90 = vector.shape_cast %49 : vector<8x1xf32> to vector<1x8x1xf32>
    %cst_37 = arith.constant dense<0.000000e+00> : vector<1xf32>
    %91 = vector.multi_reduction <add>, %90, %cst_37 [1, 2] : vector<1x8x1xf32> to vector<1xf32>
    %92 = vector.shape_cast %91 : vector<1xf32> to vector<1x1x1xf32>
    %93 = vector.extract %92[0, 0, 0] : f32 from vector<1x1x1xf32>
    %94 = vector.broadcast %93 : f32 to vector<1x1xf32>
    %cst_38 = arith.constant 6.250000e-02 : f32
    %95 = vector.broadcast %cst_38 : f32 to vector<1x1xf32>
    %96 = arith.mulf %94, %95 : vector<1x1xf32>
    %c0_39 = arith.constant 0 : index
    %c0_40 = arith.constant 0 : index
    %97 = vector.load %arg5[%c0_39, %c0_40] : memref<1x1xf32, #tpu.memory_space<vmem>>, vector<1x1xf32>
    tpu.vector_store %arg5[%c0_39, %c0_40], %96 {strides = array<i32>} : memref<1x1xf32, #tpu.memory_space<vmem>>, vector<1x1xf32>,
    %c0_i32_41 = arith.constant 0 : i32
    %c0_i32_42 = arith.constant 0 : i32
    %98 = tpu.memref_slice %arg8[%c0_i32_41, %c0_i32_42] : memref<8x128xf32, #tpu.memory_space<vmem>> -> memref<1x128xf32, #tpu.memory_space<vmem>>
    %c0_i32_43 = arith.constant 0 : i32
    %99 = tpu.memref_slice %arg6[%66, %c0_i32_43] : memref<256x128xf32, #tpu.memory_space<any>> -> memref<1x128xf32, #tpu.memory_space<any>>
    tpu.wait_dma2 semaphore(%arg10 : memref<!tpu.dma_semaphore, #tpu.memory_space<semaphore_mem>>) src(%98 : memref<1x128xf32, #tpu.memory_space<vmem>>) dst(%99 : memref<1x128xf32, #tpu.memory_space<any>>)
    %c1_i32_44 = arith.constant 1 : i32
    %c0_i32_45 = arith.constant 0 : i32
    %100 = tpu.memref_slice %arg8[%c1_i32_44, %c0_i32_45] : memref<8x128xf32, #tpu.memory_space<vmem>> -> memref<1x128xf32, #tpu.memory_space<vmem>>
    %c0_i32_46 = arith.constant 0 : i32
    %101 = tpu.memref_slice %arg6[%69, %c0_i32_46] : memref<256x128xf32, #tpu.memory_space<any>> -> memref<1x128xf32, #tpu.memory_space<any>>
    tpu.wait_dma2 semaphore(%arg10 : memref<!tpu.dma_semaphore, #tpu.memory_space<semaphore_mem>>) src(%100 : memref<1x128xf32, #tpu.memory_space<vmem>>) dst(%101 : memref<1x128xf32, #tpu.memory_space<any>>)
    %c2_i32_47 = arith.constant 2 : i32
    %c0_i32_48 = arith.constant 0 : i32
    %102 = tpu.memref_slice %arg8[%c2_i32_47, %c0_i32_48] : memref<8x128xf32, #tpu.memory_space<vmem>> -> memref<1x128xf32, #tpu.memory_space<vmem>>
    %c0_i32_49 = arith.constant 0 : i32
    %103 = tpu.memref_slice %arg6[%72, %c0_i32_49] : memref<256x128xf32, #tpu.memory_space<any>> -> memref<1x128xf32, #tpu.memory_space<any>>
    tpu.wait_dma2 semaphore(%arg10 : memref<!tpu.dma_semaphore, #tpu.memory_space<semaphore_mem>>) src(%102 : memref<1x128xf32, #tpu.memory_space<vmem>>) dst(%103 : memref<1x128xf32, #tpu.memory_space<any>>)
    %c3_i32_50 = arith.constant 3 : i32
    %c0_i32_51 = arith.constant 0 : i32
    %104 = tpu.memref_slice %arg8[%c3_i32_50, %c0_i32_51] : memref<8x128xf32, #tpu.memory_space<vmem>> -> memref<1x128xf32, #tpu.memory_space<vmem>>
    %c0_i32_52 = arith.constant 0 : i32
    %105 = tpu.memref_slice %arg6[%75, %c0_i32_52] : memref<256x128xf32, #tpu.memory_space<any>> -> memref<1x128xf32, #tpu.memory_space<any>>
    tpu.wait_dma2 semaphore(%arg10 : memref<!tpu.dma_semaphore, #tpu.memory_space<semaphore_mem>>) src(%104 : memref<1x128xf32, #tpu.memory_space<vmem>>) dst(%105 : memref<1x128xf32, #tpu.memory_space<any>>)
    %c4_i32_53 = arith.constant 4 : i32
    %c0_i32_54 = arith.constant 0 : i32
    %106 = tpu.memref_slice %arg8[%c4_i32_53, %c0_i32_54] : memref<8x128xf32, #tpu.memory_space<vmem>> -> memref<1x128xf32, #tpu.memory_space<vmem>>
    %c0_i32_55 = arith.constant 0 : i32
    %107 = tpu.memref_slice %arg6[%78, %c0_i32_55] : memref<256x128xf32, #tpu.memory_space<any>> -> memref<1x128xf32, #tpu.memory_space<any>>
    tpu.wait_dma2 semaphore(%arg10 : memref<!tpu.dma_semaphore, #tpu.memory_space<semaphore_mem>>) src(%106 : memref<1x128xf32, #tpu.memory_space<vmem>>) dst(%107 : memref<1x128xf32, #tpu.memory_space<any>>)
    %c5_i32_56 = arith.constant 5 : i32
    %c0_i32_57 = arith.constant 0 : i32
    %108 = tpu.memref_slice %arg8[%c5_i32_56, %c0_i32_57] : memref<8x128xf32, #tpu.memory_space<vmem>> -> memref<1x128xf32, #tpu.memory_space<vmem>>
    %c0_i32_58 = arith.constant 0 : i32
    %109 = tpu.memref_slice %arg6[%81, %c0_i32_58] : memref<256x128xf32, #tpu.memory_space<any>> -> memref<1x128xf32, #tpu.memory_space<any>>
    tpu.wait_dma2 semaphore(%arg10 : memref<!tpu.dma_semaphore, #tpu.memory_space<semaphore_mem>>) src(%108 : memref<1x128xf32, #tpu.memory_space<vmem>>) dst(%109 : memref<1x128xf32, #tpu.memory_space<any>>)
    %c6_i32_59 = arith.constant 6 : i32
    %c0_i32_60 = arith.constant 0 : i32
    %110 = tpu.memref_slice %arg8[%c6_i32_59, %c0_i32_60] : memref<8x128xf32, #tpu.memory_space<vmem>> -> memref<1x128xf32, #tpu.memory_space<vmem>>
    %c0_i32_61 = arith.constant 0 : i32
    %111 = tpu.memref_slice %arg6[%84, %c0_i32_61] : memref<256x128xf32, #tpu.memory_space<any>> -> memref<1x128xf32, #tpu.memory_space<any>>
    tpu.wait_dma2 semaphore(%arg10 : memref<!tpu.dma_semaphore, #tpu.memory_space<semaphore_mem>>) src(%110 : memref<1x128xf32, #tpu.memory_space<vmem>>) dst(%111 : memref<1x128xf32, #tpu.memory_space<any>>)
    %c7_i32_62 = arith.constant 7 : i32
    %c0_i32_63 = arith.constant 0 : i32
    %112 = tpu.memref_slice %arg8[%c7_i32_62, %c0_i32_63] : memref<8x128xf32, #tpu.memory_space<vmem>> -> memref<1x128xf32, #tpu.memory_space<vmem>>
    %c0_i32_64 = arith.constant 0 : i32
    %113 = tpu.memref_slice %arg6[%87, %c0_i32_64] : memref<256x128xf32, #tpu.memory_space<any>> -> memref<1x128xf32, #tpu.memory_space<any>>
    tpu.wait_dma2 semaphore(%arg10 : memref<!tpu.dma_semaphore, #tpu.memory_space<semaphore_mem>>) src(%112 : memref<1x128xf32, #tpu.memory_space<vmem>>) dst(%113 : memref<1x128xf32, #tpu.memory_space<any>>)
    return
  }
  func.func @transform_0(%arg0: i32, %arg1: memref<8xi32, #tpu.memory_space<smem>>) -> (i32, i32) {
    %c0_i32 = arith.constant 0 : i32
    %c0_i32_0 = arith.constant 0 : i32
    %c0_i32_1 = arith.constant 0 : i32
    return %c0_i32, %c0_i32_0 : i32, i32
  }
  func.func @transform_1(%arg0: i32, %arg1: memref<8xi32, #tpu.memory_space<smem>>) -> (i32, i32) {
    %c0_i32 = arith.constant 0 : i32
    %c0_i32_0 = arith.constant 0 : i32
    %c0_i32_1 = arith.constant 0 : i32
    return %c0_i32, %c0_i32_0 : i32, i32
  }
  func.func @transform_3(%arg0: i32, %arg1: memref<8xi32, #tpu.memory_space<smem>>) -> (i32, i32) {
    %c0_i32 = arith.constant 0 : i32
    %c0_i32_0 = arith.constant 0 : i32
    %c0_i32_1 = arith.constant 0 : i32
    return %c0_i32, %c0_i32_0 : i32, i32
  }
}

</mosaic_0001>

<llo_original>
// kernel: _pirl_forward.1
$region0: #{_pirl_forward.1}
  #allocation0 [shape = 'u32[]', space=smem, size = 0x4, offset = 0x4, fixed_abs, tag = 'smem constant byte address 0x4 - core index']
  #allocation1 [shape = 'u32[144,128]{1,0:T(1,128)}', space=vmem, size = 0x12000, scoped, tag = 'internal scratch']
  #allocation2 [shape = 'f32[256,128]{1,0:T(8,128)}', space=vmem, size = 0x20000, scoped, tag = 'scratch operand']
  #allocation3 [shape = 'f32[8,128]{1,0:T(8,128)}', space=vmem, size = 0x1000, scoped, tag = 'scratch operand']
  #allocation4 [shape = 's32[1]{0}', space=sflag, size = 0x4, scoped, tag = 'scratch operand']
  #allocation5 [shape = 's32[1]{0}', space=sflag, size = 0x4, scoped, tag = 'scratch operand']
  #allocation6 [shape = 's32[1]{0}', space=sflag, size = 0x4, scoped, tag = 'scoped memory for _pirl_forward.1']
  #allocation7 [shape = 'u8[512]{0}', space=smem, size = 0x200, scoped, tag = 'prefetched SMEM operand 0']
  #allocation10 [shape = 's32[]', space=sflag, size = 0x4, offset = 0, fixed_abs, tag = 'sflag constant byte address 0x0 - dummy sync flag']
  #allocation11 [shape = 's32[]', space=sflag, size = 0x4, offset = 0, fixed_abs, tag = 'sflag constant byte address 0x0 - dummy sync flag']
  #allocation12 [shape = 'u32[]', space=smem, size = 0x4, offset = 0x44, fixed_abs, tag = 'smem constant byte address 0x44 - assertion arg 0']
  #allocation13 [shape = 'u32[]', space=smem, size = 0x4, offset = 0x48, fixed_abs, tag = 'smem constant byte address 0x48 - assertion arg 1']
  #allocation14 [shape = 's32[]', space=sflag, size = 0x4, offset = 0, fixed_abs, tag = 'sflag constant byte address 0x0 - dummy sync flag']
  #allocation15 [shape = 's32[]', space=sflag, size = 0x4, offset = 0, fixed_abs, tag = 'sflag constant byte address 0x0 - dummy sync flag']
  #allocation16 [shape = 's32[]', space=sflag, size = 0x4, offset = 0, fixed_abs, tag = 'sflag constant byte address 0x0 - dummy sync flag']
  #allocation17 [shape = 's32[]', space=sflag, size = 0x4, offset = 0, fixed_abs, tag = 'sflag constant byte address 0x0 - dummy sync flag']
  #allocation18 [shape = 's32[]', space=sflag, size = 0x4, offset = 0, fixed_abs, tag = 'sflag constant byte address 0x0 - dummy sync flag']
  #allocation19 [shape = 's32[]', space=sflag, size = 0x4, offset = 0, fixed_abs, tag = 'sflag constant byte address 0x0 - dummy sync flag']
  #allocation20 [shape = 's32[]', space=sflag, size = 0x4, offset = 0, fixed_abs, tag = 'sflag constant byte address 0x0 - dummy sync flag']
  #allocation21 [shape = 's32[]', space=sflag, size = 0x4, offset = 0, fixed_abs, tag = 'sflag constant byte address 0x0 - dummy sync flag']
  #allocation22 [shape = 's32[]', space=sflag, size = 0x4, offset = 0, fixed_abs, tag = 'sflag constant byte address 0x0 - dummy sync flag']
  #allocation23 [shape = 's32[]', space=sflag, size = 0x4, offset = 0, fixed_abs, tag = 'sflag constant byte address 0x0 - dummy sync flag']
  #allocation24 [shape = 's32[]', space=sflag, size = 0x4, offset = 0, fixed_abs, tag = 'sflag constant byte address 0x0 - dummy sync flag']
  #allocation25 [shape = 's32[]', space=sflag, size = 0x4, offset = 0, fixed_abs, tag = 'sflag constant byte address 0x0 - dummy sync flag']
  #allocation26 [shape = 's32[]', space=sflag, size = 0x4, offset = 0, fixed_abs, tag = 'sflag constant byte address 0x0 - dummy sync flag']
  #allocation27 [shape = 's32[]', space=sflag, size = 0x4, offset = 0, fixed_abs, tag = 'sflag constant byte address 0x0 - dummy sync flag']
  #allocation28 [shape = 's32[]', space=sflag, size = 0x4, offset = 0, fixed_abs, tag = 'sflag constant byte address 0x0 - dummy sync flag']
  #allocation29 [shape = 's32[]', space=sflag, size = 0x4, offset = 0, fixed_abs, tag = 'sflag constant byte address 0x0 - dummy sync flag']
  %s0 = inlined_call_operand.vmem [shape: s32[8], index: 0, kind: input, shape index: {}]
  %s1 = inlined_call_operand.vmem [shape: s32[8,128], index: 1, kind: input, shape index: {}]
  %s2 = inlined_call_operand.vmem [shape: f32[16,128], index: 2, kind: input, shape index: {}]
  %s3 = inlined_call_operand.hbm [shape: f32[256,128], index: 3, kind: input, shape index: {}, may-alias: {3,5}]
  %s4 = inlined_call_operand.hbm [shape: f32[1,1], index: 4, kind: output, shape index: {0}]
  %s5 = inlined_call_operand.hbm [shape: f32[256,128], index: 5, kind: output, shape index: {1}, may-alias: {3,5}]
  %6 = xla_tuple %s4, %s5
  %s7 = sld [smem:[#allocation0]]
  $region54: #{_pirl_forward.1} parent=0
    _
  %s9 = ssub.s32 1, %s7
  %s10 = scalar_select 0, %s9, %s7
  %s11 = sshll.u32 %s0, 4
  %s12 = int_to_ptr.vmem [resolvable:$true] %s11
  %14 = dma.vmem_to_smem %s12, 16, [#allocation7], [#allocation6]
  %15 = dma.done [#allocation6], 16
  %16 = sfence
  $region1: #{_pirl_forward.1} parent=0
    #allocation8 [shape = 'u8[512]{0}', space=vmem, size = 0x400, scoped, tag = 'output window, operand 0, single buffered']
    #allocation9 [shape = 's32[1]{0}', space=sflag, size = 0x4, scoped, tag = 'scoped memory for _pirl_forward.1']
    %17 = vsyncpa [#allocation9], 0
    // Predicated region
    $region2: #{_pirl_forward.1} parent=1 // pred_check
      _
    $region3: #{_pirl_forward.1} parent=1 // pred_check_branch
      %19 = sbr.rel (0) target = $region5
    $region4: #{_pirl_forward.1} parent=1 // pred_region
      _
    $region5: #{_pirl_forward.1} parent=1 // pred_fallthru
      _
    // Predicated region
    $region6: #{_pirl_forward.1} parent=1 // pred_check
      _
    $region7: #{_pirl_forward.1} parent=1 // pred_check_branch
      %21 = sbr.rel (0) target = $region9
    $region8: #{_pirl_forward.1} parent=1 // pred_region
      _
    $region9: #{_pirl_forward.1} parent=1 // pred_fallthru
      _
    // Predicated region
    $region10: #{_pirl_forward.1} parent=1 // pred_check
      _
    $region11: #{_pirl_forward.1} parent=1 // pred_check_branch
      %23 = sbr.rel target = $region13
    $region12: #{_pirl_forward.1} parent=1 // pred_region
      %24 = sst [smem:[#allocation12]] [#allocation11]
      %25 = sst [smem:[#allocation13]] [#allocation10]
    $region13: #{_pirl_forward.1} parent=1 // pred_fallthru
      _
    %27 = shalt.err (0)
    %s29 = sshll.u32 [#allocation2], 4
    %s30 = int_to_ptr.vmem [resolvable:$true] %s29
    %32 = dma.hbm_to_vmem [thread:$0]  %s3, 4096, %s30, [#allocation4]
    %v33 = vld [vmem:[%s1] sm:$0xff]
    %v34 = vlaneseq
    %v35 = vshrl.u32 %v34, 7
    %v36 = vadd.s32 %v35, 8
    %v37 = vadd.s32 %v35, 16
    %v38 = vadd.s32 %v35, 24
    %v39 = vadd.s32 %v35, 32
    %v40 = vadd.s32 %v35, 40
    %v41 = vadd.s32 %v35, 48
    %v42 = vadd.s32 %v35, 56
    %v43 = vadd.s32 %v35, 64
    %v44 = vadd.s32 %v35, 72
    %v45 = vadd.s32 %v35, 80
    %v46 = vadd.s32 %v35, 88
    %v47 = vadd.s32 %v35, 96
    %v48 = vadd.s32 %v35, 104
    %v49 = vadd.s32 %v35, 112
    %v50 = vadd.s32 %v35, 120
    %v51 = vadd.s32 %v35, 128
    %v52 = vadd.s32 %v35, 136
    %v53 = vadd.s32 %v35, 144
    %v54 = vadd.s32 %v35, 152
    %v55 = vadd.s32 %v35, 160
    %v56 = vadd.s32 %v35, 168
    %v57 = vadd.s32 %v35, 176
    %v58 = vadd.s32 %v35, 184
    %v59 = vadd.s32 %v35, 192
    %v60 = vadd.s32 %v35, 200
    %v61 = vadd.s32 %v35, 208
    %v62 = vadd.s32 %v35, 216
    %v63 = vadd.s32 %v35, 224
    %v64 = vadd.s32 %v35, 232
    %v65 = vadd.s32 %v35, 240
    %v66 = vadd.s32 %v35, 248
    %v67 = vcombine.high %v33, %v33
    %v69 = vunpack.c.l.s4 1966171168
    %v70 = vunpack.c.0.s8 %v69
    %v71 = vlaneseq
    %v72 = vshrl.u32 %v71, 7
    %v73 = vsub.s32 %v70, %v72
    %v74 = vrot.slane %v33, %v73
    %v76 = vunpack.c.l.s4 1966171168
    %v77 = vunpack.c.0.s8 %v76
    %v78 = vlaneseq
    %v79 = vshrl.u32 %v78, 7
    %v80 = vsub.s32 %v77, %v79
    %v81 = vrot.slane %v67, %v80
    %v82 = vcombine.high %v74, %v74
    %v83 = vcombine.high %v81, %v81
    %v85 = vunpack.c.l.s4 1966171168
    %v86 = vunpack.c.0.s8 %v85
    %v87 = vlaneseq
    %v88 = vshrl.u32 %v87, 7
    %v89 = vsub.s32 %v86, %v88
    %v90 = vrot.slane %v74, %v89
    %v92 = vunpack.c.l.s4 1966171168
    %v93 = vunpack.c.0.s8 %v92
    %v94 = vlaneseq
    %v95 = vshrl.u32 %v94, 7
    %v96 = vsub.s32 %v93, %v95
    %v97 = vrot.slane %v81, %v96
    %v99 = vunpack.c.l.s4 1966171168
    %v100 = vunpack.c.0.s8 %v99
    %v101 = vlaneseq
    %v102 = vshrl.u32 %v101, 7
    %v103 = vsub.s32 %v100, %v102
    %v104 = vrot.slane %v82, %v103
    %v106 = vunpack.c.l.s4 1966171168
    %v107 = vunpack.c.0.s8 %v106
    %v108 = vlaneseq
    %v109 = vshrl.u32 %v108, 7
    %v110 = vsub.s32 %v107, %v109
    %v111 = vrot.slane %v83, %v110
    %v112 = vcombine.high %v90, %v90
    %v113 = vcombine.high %v97, %v97
    %v114 = vcombine.high %v104, %v104
    %v115 = vcombine.high %v111, %v111
    %v116 = vlaneseq
    %v117 = vshrl.u32 %v116, 7
    %v118 = vsub.s32 0, %v117
    %v119 = vrot.slane %v90, %v118
    %v120 = vlaneseq
    %v121 = vshrl.u32 %v120, 7
    %v122 = vsub.s32 0, %v121
    %v123 = vrot.slane %v104, %v122
    %v124 = vlaneseq
    %v125 = vshrl.u32 %v124, 7
    %v126 = vsub.s32 0, %v125
    %v127 = vrot.slane %v112, %v126
    %v128 = vlaneseq
    %v129 = vshrl.u32 %v128, 7
    %v130 = vsub.s32 0, %v129
    %v131 = vrot.slane %v114, %v130
    %v132 = vlaneseq
    %v133 = vshrl.u32 %v132, 7
    %v134 = vsub.s32 0, %v133
    %v135 = vrot.slane %v97, %v134
    %v136 = vlaneseq
    %v137 = vshrl.u32 %v136, 7
    %v138 = vsub.s32 0, %v137
    %v139 = vrot.slane %v111, %v138
    %v140 = vlaneseq
    %v141 = vshrl.u32 %v140, 7
    %v142 = vsub.s32 0, %v141
    %v143 = vrot.slane %v113, %v142
    %v144 = vlaneseq
    %v145 = vshrl.u32 %v144, 7
    %v146 = vsub.s32 0, %v145
    %v147 = vrot.slane %v115, %v146
    %vm148 = vcmp.eq.s32.totalorder %v35, %v119
    %vm149 = vcmp.eq.s32.totalorder %v36, %v119
    %vm150 = vcmp.eq.s32.totalorder %v37, %v119
    %vm151 = vcmp.eq.s32.totalorder %v38, %v119
    %vm152 = vcmp.eq.s32.totalorder %v39, %v119
    %vm153 = vcmp.eq.s32.totalorder %v40, %v119
    %vm154 = vcmp.eq.s32.totalorder %v41, %v119
    %vm155 = vcmp.eq.s32.totalorder %v42, %v119
    %vm156 = vcmp.eq.s32.totalorder %v43, %v119
    %vm157 = vcmp.eq.s32.totalorder %v44, %v119
    %vm158 = vcmp.eq.s32.totalorder %v45, %v119
    %vm159 = vcmp.eq.s32.totalorder %v46, %v119
    %vm160 = vcmp.eq.s32.totalorder %v47, %v119
    %vm161 = vcmp.eq.s32.totalorder %v48, %v119
    %vm162 = vcmp.eq.s32.totalorder %v49, %v119
    %vm163 = vcmp.eq.s32.totalorder %v50, %v119
    %vm164 = vcmp.eq.s32.totalorder %v51, %v119
    %vm165 = vcmp.eq.s32.totalorder %v52, %v119
    %vm166 = vcmp.eq.s32.totalorder %v53, %v119
    %vm167 = vcmp.eq.s32.totalorder %v54, %v119
    %vm168 = vcmp.eq.s32.totalorder %v55, %v119
    %vm169 = vcmp.eq.s32.totalorder %v56, %v119
    %vm170 = vcmp.eq.s32.totalorder %v57, %v119
    %vm171 = vcmp.eq.s32.totalorder %v58, %v119
    %vm172 = vcmp.eq.s32.totalorder %v59, %v119
    %vm173 = vcmp.eq.s32.totalorder %v60, %v119
    %vm174 = vcmp.eq.s32.totalorder %v61, %v119
    %vm175 = vcmp.eq.s32.totalorder %v62, %v119
    %vm176 = vcmp.eq.s32.totalorder %v63, %v119
    %vm177 = vcmp.eq.s32.totalorder %v64, %v119
    %vm178 = vcmp.eq.s32.totalorder %v65, %v119
    %vm179 = vcmp.eq.s32.totalorder %v66, %v119
    %vm180 = vcmp.eq.s32.totalorder %v35, %v123
    %vm181 = vcmp.eq.s32.totalorder %v36, %v123
    %vm182 = vcmp.eq.s32.totalorder %v37, %v123
    %vm183 = vcmp.eq.s32.totalorder %v38, %v123
    %vm184 = vcmp.eq.s32.totalorder %v39, %v123
    %vm185 = vcmp.eq.s32.totalorder %v40, %v123
    %vm186 = vcmp.eq.s32.totalorder %v41, %v123
    %vm187 = vcmp.eq.s32.totalorder %v42, %v123
    %vm188 = vcmp.eq.s32.totalorder %v43, %v123
    %vm189 = vcmp.eq.s32.totalorder %v44, %v123
    %vm190 = vcmp.eq.s32.totalorder %v45, %v123
    %vm191 = vcmp.eq.s32.totalorder %v46, %v123
    %vm192 = vcmp.eq.s32.totalorder %v47, %v123
    %vm193 = vcmp.eq.s32.totalorder %v48, %v123
    %vm194 = vcmp.eq.s32.totalorder %v49, %v123
    %vm195 = vcmp.eq.s32.totalorder %v50, %v123
    %vm196 = vcmp.eq.s32.totalorder %v51, %v123
    %vm197 = vcmp.eq.s32.totalorder %v52, %v123
    %vm198 = vcmp.eq.s32.totalorder %v53, %v123
    %vm199 = vcmp.eq.s32.totalorder %v54, %v123
    %vm200 = vcmp.eq.s32.totalorder %v55, %v123
    %vm201 = vcmp.eq.s32.totalorder %v56, %v123
    %vm202 = vcmp.eq.s32.totalorder %v57, %v123
    %vm203 = vcmp.eq.s32.totalorder %v58, %v123
    %vm204 = vcmp.eq.s32.totalorder %v59, %v123
    %vm205 = vcmp.eq.s32.totalorder %v60, %v123
    %vm206 = vcmp.eq.s32.totalorder %v61, %v123
    %vm207 = vcmp.eq.s32.totalorder %v62, %v123
    %vm208 = vcmp.eq.s32.totalorder %v63, %v123
    %vm209 = vcmp.eq.s32.totalorder %v64, %v123
    %vm210 = vcmp.eq.s32.totalorder %v65, %v123
    %vm211 = vcmp.eq.s32.totalorder %v66, %v123
    %vm212 = vcmp.eq.s32.totalorder %v35, %v127
    %vm213 = vcmp.eq.s32.totalorder %v36, %v127
    %vm214 = vcmp.eq.s32.totalorder %v37, %v127
    %vm215 = vcmp.eq.s32.totalorder %v38, %v127
    %vm216 = vcmp.eq.s32.totalorder %v39, %v127
    %vm217 = vcmp.eq.s32.totalorder %v40, %v127
    %vm218 = vcmp.eq.s32.totalorder %v41, %v127
    %vm219 = vcmp.eq.s32.totalorder %v42, %v127
    %vm220 = vcmp.eq.s32.totalorder %v43, %v127
    %vm221 = vcmp.eq.s32.totalorder %v44, %v127
    %vm222 = vcmp.eq.s32.totalorder %v45, %v127
    %vm223 = vcmp.eq.s32.totalorder %v46, %v127
    %vm224 = vcmp.eq.s32.totalorder %v47, %v127
    %vm225 = vcmp.eq.s32.totalorder %v48, %v127
    %vm226 = vcmp.eq.s32.totalorder %v49, %v127
    %vm227 = vcmp.eq.s32.totalorder %v50, %v127
    %vm228 = vcmp.eq.s32.totalorder %v51, %v127
    %vm229 = vcmp.eq.s32.totalorder %v52, %v127
    %vm230 = vcmp.eq.s32.totalorder %v53, %v127
    %vm231 = vcmp.eq.s32.totalorder %v54, %v127
    %vm232 = vcmp.eq.s32.totalorder %v55, %v127
    %vm233 = vcmp.eq.s32.totalorder %v56, %v127
    %vm234 = vcmp.eq.s32.totalorder %v57, %v127
    %vm235 = vcmp.eq.s32.totalorder %v58, %v127
    %vm236 = vcmp.eq.s32.totalorder %v59, %v127
    %vm237 = vcmp.eq.s32.totalorder %v60, %v127
    %vm238 = vcmp.eq.s32.totalorder %v61, %v127
    %vm239 = vcmp.eq.s32.totalorder %v62, %v127
    %vm240 = vcmp.eq.s32.totalorder %v63, %v127
    %vm241 = vcmp.eq.s32.totalorder %v64, %v127
    %vm242 = vcmp.eq.s32.totalorder %v65, %v127
    %vm243 = vcmp.eq.s32.totalorder %v66, %v127
    %vm244 = vcmp.eq.s32.totalorder %v35, %v131
    %vm245 = vcmp.eq.s32.totalorder %v36, %v131
    %vm246 = vcmp.eq.s32.totalorder %v37, %v131
    %vm247 = vcmp.eq.s32.totalorder %v38, %v131
    %vm248 = vcmp.eq.s32.totalorder %v39, %v131
    %vm249 = vcmp.eq.s32.totalorder %v40, %v131
    %vm250 = vcmp.eq.s32.totalorder %v41, %v131
    %vm251 = vcmp.eq.s32.totalorder %v42, %v131
    %vm252 = vcmp.eq.s32.totalorder %v43, %v131
    %vm253 = vcmp.eq.s32.totalorder %v44, %v131
    %vm254 = vcmp.eq.s32.totalorder %v45, %v131
    %vm255 = vcmp.eq.s32.totalorder %v46, %v131
    %vm256 = vcmp.eq.s32.totalorder %v47, %v131
    %vm257 = vcmp.eq.s32.totalorder %v48, %v131
    %vm258 = vcmp.eq.s32.totalorder %v49, %v131
    %vm259 = vcmp.eq.s32.totalorder %v50, %v131
    %vm260 = vcmp.eq.s32.totalorder %v51, %v131
    %vm261 = vcmp.eq.s32.totalorder %v52, %v131
    %vm262 = vcmp.eq.s32.totalorder %v53, %v131
    %vm263 = vcmp.eq.s32.totalorder %v54, %v131
    %vm264 = vcmp.eq.s32.totalorder %v55, %v131
    %vm265 = vcmp.eq.s32.totalorder %v56, %v131
    %vm266 = vcmp.eq.s32.totalorder %v57, %v131
    %vm267 = vcmp.eq.s32.totalorder %v58, %v131
    %vm268 = vcmp.eq.s32.totalorder %v59, %v131
    %vm269 = vcmp.eq.s32.totalorder %v60, %v131
    %vm270 = vcmp.eq.s32.totalorder %v61, %v131
    %vm271 = vcmp.eq.s32.totalorder %v62, %v131
    %vm272 = vcmp.eq.s32.totalorder %v63, %v131
    %vm273 = vcmp.eq.s32.totalorder %v64, %v131
    %vm274 = vcmp.eq.s32.totalorder %v65, %v131
    %vm275 = vcmp.eq.s32.totalorder %v66, %v131
    %vm276 = vcmp.eq.s32.totalorder %v35, %v135
    %vm277 = vcmp.eq.s32.totalorder %v36, %v135
    %vm278 = vcmp.eq.s32.totalorder %v37, %v135
    %vm279 = vcmp.eq.s32.totalorder %v38, %v135
    %vm280 = vcmp.eq.s32.totalorder %v39, %v135
    %vm281 = vcmp.eq.s32.totalorder %v40, %v135
    %vm282 = vcmp.eq.s32.totalorder %v41, %v135
    %vm283 = vcmp.eq.s32.totalorder %v42, %v135
    %vm284 = vcmp.eq.s32.totalorder %v43, %v135
    %vm285 = vcmp.eq.s32.totalorder %v44, %v135
    %vm286 = vcmp.eq.s32.totalorder %v45, %v135
    %vm287 = vcmp.eq.s32.totalorder %v46, %v135
    %vm288 = vcmp.eq.s32.totalorder %v47, %v135
    %vm289 = vcmp.eq.s32.totalorder %v48, %v135
    %vm290 = vcmp.eq.s32.totalorder %v49, %v135
    %vm291 = vcmp.eq.s32.totalorder %v50, %v135
    %vm292 = vcmp.eq.s32.totalorder %v51, %v135
    %vm293 = vcmp.eq.s32.totalorder %v52, %v135
    %vm294 = vcmp.eq.s32.totalorder %v53, %v135
    %vm295 = vcmp.eq.s32.totalorder %v54, %v135
    %vm296 = vcmp.eq.s32.totalorder %v55, %v135
    %vm297 = vcmp.eq.s32.totalorder %v56, %v135
    %vm298 = vcmp.eq.s32.totalorder %v57, %v135
    %vm299 = vcmp.eq.s32.totalorder %v58, %v135
    %vm300 = vcmp.eq.s32.totalorder %v59, %v135
    %vm301 = vcmp.eq.s32.totalorder %v60, %v135
    %vm302 = vcmp.eq.s32.totalorder %v61, %v135
    %vm303 = vcmp.eq.s32.totalorder %v62, %v135
    %vm304 = vcmp.eq.s32.totalorder %v63, %v135
    %vm305 = vcmp.eq.s32.totalorder %v64, %v135
    %vm306 = vcmp.eq.s32.totalorder %v65, %v135
    %vm307 = vcmp.eq.s32.totalorder %v66, %v135
    %vm308 = vcmp.eq.s32.totalorder %v35, %v139
    %vm309 = vcmp.eq.s32.totalorder %v36, %v139
    %vm310 = vcmp.eq.s32.totalorder %v37, %v139
    %vm311 = vcmp.eq.s32.totalorder %v38, %v139
    %vm312 = vcmp.eq.s32.totalorder %v39, %v139
    %vm313 = vcmp.eq.s32.totalorder %v40, %v139
    %vm314 = vcmp.eq.s32.totalorder %v41, %v139
    %vm315 = vcmp.eq.s32.totalorder %v42, %v139
    %vm316 = vcmp.eq.s32.totalorder %v43, %v139
    %vm317 = vcmp.eq.s32.totalorder %v44, %v139
    %vm318 = vcmp.eq.s32.totalorder %v45, %v139
    %vm319 = vcmp.eq.s32.totalorder %v46, %v139
    %vm320 = vcmp.eq.s32.totalorder %v47, %v139
    %vm321 = vcmp.eq.s32.totalorder %v48, %v139
    %vm322 = vcmp.eq.s32.totalorder %v49, %v139
    %vm323 = vcmp.eq.s32.totalorder %v50, %v139
    %vm324 = vcmp.eq.s32.totalorder %v51, %v139
    %vm325 = vcmp.eq.s32.totalorder %v52, %v139
    %vm326 = vcmp.eq.s32.totalorder %v53, %v139
    %vm327 = vcmp.eq.s32.totalorder %v54, %v139
    %vm328 = vcmp.eq.s32.totalorder %v55, %v139
    %vm329 = vcmp.eq.s32.totalorder %v56, %v139
    %vm330 = vcmp.eq.s32.totalorder %v57, %v139
    %vm331 = vcmp.eq.s32.totalorder %v58, %v139
    %vm332 = vcmp.eq.s32.totalorder %v59, %v139
    %vm333 = vcmp.eq.s32.totalorder %v60, %v139
    %vm334 = vcmp.eq.s32.totalorder %v61, %v139
    %vm335 = vcmp.eq.s32.totalorder %v62, %v139
    %vm336 = vcmp.eq.s32.totalorder %v63, %v139
    %vm337 = vcmp.eq.s32.totalorder %v64, %v139
    %vm338 = vcmp.eq.s32.totalorder %v65, %v139
    %vm339 = vcmp.eq.s32.totalorder %v66, %v139
    %vm340 = vcmp.eq.s32.totalorder %v35, %v143
    %vm341 = vcmp.eq.s32.totalorder %v36, %v143
    %vm342 = vcmp.eq.s32.totalorder %v37, %v143
    %vm343 = vcmp.eq.s32.totalorder %v38, %v143
    %vm344 = vcmp.eq.s32.totalorder %v39, %v143
    %vm345 = vcmp.eq.s32.totalorder %v40, %v143
    %vm346 = vcmp.eq.s32.totalorder %v41, %v143
    %vm347 = vcmp.eq.s32.totalorder %v42, %v143
    %vm348 = vcmp.eq.s32.totalorder %v43, %v143
    %vm349 = vcmp.eq.s32.totalorder %v44, %v143
    %vm350 = vcmp.eq.s32.totalorder %v45, %v143
    %vm351 = vcmp.eq.s32.totalorder %v46, %v143
    %vm352 = vcmp.eq.s32.totalorder %v47, %v143
    %vm353 = vcmp.eq.s32.totalorder %v48, %v143
    %vm354 = vcmp.eq.s32.totalorder %v49, %v143
    %vm355 = vcmp.eq.s32.totalorder %v50, %v143
    %vm356 = vcmp.eq.s32.totalorder %v51, %v143
    %vm357 = vcmp.eq.s32.totalorder %v52, %v143
    %vm358 = vcmp.eq.s32.totalorder %v53, %v143
    %vm359 = vcmp.eq.s32.totalorder %v54, %v143
    %vm360 = vcmp.eq.s32.totalorder %v55, %v143
    %vm361 = vcmp.eq.s32.totalorder %v56, %v143
    %vm362 = vcmp.eq.s32.totalorder %v57, %v143
    %vm363 = vcmp.eq.s32.totalorder %v58, %v143
    %vm364 = vcmp.eq.s32.totalorder %v59, %v143
    %vm365 = vcmp.eq.s32.totalorder %v60, %v143
    %vm366 = vcmp.eq.s32.totalorder %v61, %v143
    %vm367 = vcmp.eq.s32.totalorder %v62, %v143
    %vm368 = vcmp.eq.s32.totalorder %v63, %v143
    %vm369 = vcmp.eq.s32.totalorder %v64, %v143
    %vm370 = vcmp.eq.s32.totalorder %v65, %v143
    %vm371 = vcmp.eq.s32.totalorder %v66, %v143
    %vm372 = vcmp.eq.s32.totalorder %v35, %v147
    %vm373 = vcmp.eq.s32.totalorder %v36, %v147
    %vm374 = vcmp.eq.s32.totalorder %v37, %v147
    %vm375 = vcmp.eq.s32.totalorder %v38, %v147
    %vm376 = vcmp.eq.s32.totalorder %v39, %v147
    %vm377 = vcmp.eq.s32.totalorder %v40, %v147
    %vm378 = vcmp.eq.s32.totalorder %v41, %v147
    %vm379 = vcmp.eq.s32.totalorder %v42, %v147
    %vm380 = vcmp.eq.s32.totalorder %v43, %v147
    %vm381 = vcmp.eq.s32.totalorder %v44, %v147
    %vm382 = vcmp.eq.s32.totalorder %v45, %v147
    %vm383 = vcmp.eq.s32.totalorder %v46, %v147
    %vm384 = vcmp.eq.s32.totalorder %v47, %v147
    %vm385 = vcmp.eq.s32.totalorder %v48, %v147
    %vm386 = vcmp.eq.s32.totalorder %v49, %v147
    %vm387 = vcmp.eq.s32.totalorder %v50, %v147
    %vm388 = vcmp.eq.s32.totalorder %v51, %v147
    %vm389 = vcmp.eq.s32.totalorder %v52, %v147
    %vm390 = vcmp.eq.s32.totalorder %v53, %v147
    %vm391 = vcmp.eq.s32.totalorder %v54, %v147
    %vm392 = vcmp.eq.s32.totalorder %v55, %v147
    %vm393 = vcmp.eq.s32.totalorder %v56, %v147
    %vm394 = vcmp.eq.s32.totalorder %v57, %v147
    %vm395 = vcmp.eq.s32.totalorder %v58, %v147
    %vm396 = vcmp.eq.s32.totalorder %v59, %v147
    %vm397 = vcmp.eq.s32.totalorder %v60, %v147
    %vm398 = vcmp.eq.s32.totalorder %v61, %v147
    %vm399 = vcmp.eq.s32.totalorder %v62, %v147
    %vm400 = vcmp.eq.s32.totalorder %v63, %v147
    %vm401 = vcmp.eq.s32.totalorder %v64, %v147
    %vm402 = vcmp.eq.s32.totalorder %v65, %v147
    %vm403 = vcmp.eq.s32.totalorder %v66, %v147
    %v404 = vsel %vm148, 1, 0
    %v405 = vsel %vm149, 1, 0
    %v406 = vsel %vm150, 1, 0
    %v407 = vsel %vm151, 1, 0
    %v408 = vsel %vm152, 1, 0
    %v409 = vsel %vm153, 1, 0
    %v410 = vsel %vm154, 1, 0
    %v411 = vsel %vm155, 1, 0
    %v412 = vsel %vm156, 1, 0
    %v413 = vsel %vm157, 1, 0
    %v414 = vsel %vm158, 1, 0
    %v415 = vsel %vm159, 1, 0
    %v416 = vsel %vm160, 1, 0
    %v417 = vsel %vm161, 1, 0
    %v418 = vsel %vm162, 1, 0
    %v419 = vsel %vm163, 1, 0
    %v420 = vsel %vm164, 1, 0
    %v421 = vsel %vm165, 1, 0
    %v422 = vsel %vm166, 1, 0
    %v423 = vsel %vm167, 1, 0
    %v424 = vsel %vm168, 1, 0
    %v425 = vsel %vm169, 1, 0
    %v426 = vsel %vm170, 1, 0
    %v427 = vsel %vm171, 1, 0
    %v428 = vsel %vm172, 1, 0
    %v429 = vsel %vm173, 1, 0
    %v430 = vsel %vm174, 1, 0
    %v431 = vsel %vm175, 1, 0
    %v432 = vsel %vm176, 1, 0
    %v433 = vsel %vm177, 1, 0
    %v434 = vsel %vm178, 1, 0
    %v435 = vsel %vm179, 1, 0
    %v436 = vsel %vm180, 1, 0
    %v437 = vsel %vm181, 1, 0
    %v438 = vsel %vm182, 1, 0
    %v439 = vsel %vm183, 1, 0
    %v440 = vsel %vm184, 1, 0
    %v441 = vsel %vm185, 1, 0
    %v442 = vsel %vm186, 1, 0
    %v443 = vsel %vm187, 1, 0
    %v444 = vsel %vm188, 1, 0
    %v445 = vsel %vm189, 1, 0
    %v446 = vsel %vm190, 1, 0
    %v447 = vsel %vm191, 1, 0
    %v448 = vsel %vm192, 1, 0
    %v449 = vsel %vm193, 1, 0
    %v450 = vsel %vm194, 1, 0
    %v451 = vsel %vm195, 1, 0
    %v452 = vsel %vm196, 1, 0
    %v453 = vsel %vm197, 1, 0
    %v454 = vsel %vm198, 1, 0
    %v455 = vsel %vm199, 1, 0
    %v456 = vsel %vm200, 1, 0
    %v457 = vsel %vm201, 1, 0
    %v458 = vsel %vm202, 1, 0
    %v459 = vsel %vm203, 1, 0
    %v460 = vsel %vm204, 1, 0
    %v461 = vsel %vm205, 1, 0
    %v462 = vsel %vm206, 1, 0
    %v463 = vsel %vm207, 1, 0
    %v464 = vsel %vm208, 1, 0
    %v465 = vsel %vm209, 1, 0
    %v466 = vsel %vm210, 1, 0
    %v467 = vsel %vm211, 1, 0
    %v468 = vsel %vm212, 1, 0
    %v469 = vsel %vm213, 1, 0
    %v470 = vsel %vm214, 1, 0
    %v471 = vsel %vm215, 1, 0
    %v472 = vsel %vm216, 1, 0
    %v473 = vsel %vm217, 1, 0
    %v474 = vsel %vm218, 1, 0
    %v475 = vsel %vm219, 1, 0
    %v476 = vsel %vm220, 1, 0
    %v477 = vsel %vm221, 1, 0
    %v478 = vsel %vm222, 1, 0
    %v479 = vsel %vm223, 1, 0
    %v480 = vsel %vm224, 1, 0
    %v481 = vsel %vm225, 1, 0
    %v482 = vsel %vm226, 1, 0
    %v483 = vsel %vm227, 1, 0
    %v484 = vsel %vm228, 1, 0
    %v485 = vsel %vm229, 1, 0
    %v486 = vsel %vm230, 1, 0
    %v487 = vsel %vm231, 1, 0
    %v488 = vsel %vm232, 1, 0
    %v489 = vsel %vm233, 1, 0
    %v490 = vsel %vm234, 1, 0
    %v491 = vsel %vm235, 1, 0
    %v492 = vsel %vm236, 1, 0
    %v493 = vsel %vm237, 1, 0
    %v494 = vsel %vm238, 1, 0
    %v495 = vsel %vm239, 1, 0
    %v496 = vsel %vm240, 1, 0
    %v497 = vsel %vm241, 1, 0
    %v498 = vsel %vm242, 1, 0
    %v499 = vsel %vm243, 1, 0
    %v500 = vsel %vm244, 1, 0
    %v501 = vsel %vm245, 1, 0
    %v502 = vsel %vm246, 1, 0
    %v503 = vsel %vm247, 1, 0
    %v504 = vsel %vm248, 1, 0
    %v505 = vsel %vm249, 1, 0
    %v506 = vsel %vm250, 1, 0
    %v507 = vsel %vm251, 1, 0
    %v508 = vsel %vm252, 1, 0
    %v509 = vsel %vm253, 1, 0
    %v510 = vsel %vm254, 1, 0
    %v511 = vsel %vm255, 1, 0
    %v512 = vsel %vm256, 1, 0
    %v513 = vsel %vm257, 1, 0
    %v514 = vsel %vm258, 1, 0
    %v515 = vsel %vm259, 1, 0
    %v516 = vsel %vm260, 1, 0
    %v517 = vsel %vm261, 1, 0
    %v518 = vsel %vm262, 1, 0
    %v519 = vsel %vm263, 1, 0
    %v520 = vsel %vm264, 1, 0
    %v521 = vsel %vm265, 1, 0
    %v522 = vsel %vm266, 1, 0
    %v523 = vsel %vm267, 1, 0
    %v524 = vsel %vm268, 1, 0
    %v525 = vsel %vm269, 1, 0
    %v526 = vsel %vm270, 1, 0
    %v527 = vsel %vm271, 1, 0
    %v528 = vsel %vm272, 1, 0
    %v529 = vsel %vm273, 1, 0
    %v530 = vsel %vm274, 1, 0
    %v531 = vsel %vm275, 1, 0
    %v532 = vsel %vm276, 1, 0
    %v533 = vsel %vm277, 1, 0
    %v534 = vsel %vm278, 1, 0
    %v535 = vsel %vm279, 1, 0
    %v536 = vsel %vm280, 1, 0
    %v537 = vsel %vm281, 1, 0
    %v538 = vsel %vm282, 1, 0
    %v539 = vsel %vm283, 1, 0
    %v540 = vsel %vm284, 1, 0
    %v541 = vsel %vm285, 1, 0
    %v542 = vsel %vm286, 1, 0
    %v543 = vsel %vm287, 1, 0
    %v544 = vsel %vm288, 1, 0
    %v545 = vsel %vm289, 1, 0
    %v546 = vsel %vm290, 1, 0
    %v547 = vsel %vm291, 1, 0
    %v548 = vsel %vm292, 1, 0
    %v549 = vsel %vm293, 1, 0
    %v550 = vsel %vm294, 1, 0
    %v551 = vsel %vm295, 1, 0
    %v552 = vsel %vm296, 1, 0
    %v553 = vsel %vm297, 1, 0
    %v554 = vsel %vm298, 1, 0
    %v555 = vsel %vm299, 1, 0
    %v556 = vsel %vm300, 1, 0
    %v557 = vsel %vm301, 1, 0
    %v558 = vsel %vm302, 1, 0
    %v559 = vsel %vm303, 1, 0
    %v560 = vsel %vm304, 1, 0
    %v561 = vsel %vm305, 1, 0
    %v562 = vsel %vm306, 1, 0
    %v563 = vsel %vm307, 1, 0
    %v564 = vsel %vm308, 1, 0
    %v565 = vsel %vm309, 1, 0
    %v566 = vsel %vm310, 1, 0
    %v567 = vsel %vm311, 1, 0
    %v568 = vsel %vm312, 1, 0
    %v569 = vsel %vm313, 1, 0
    %v570 = vsel %vm314, 1, 0
    %v571 = vsel %vm315, 1, 0
    %v572 = vsel %vm316, 1, 0
    %v573 = vsel %vm317, 1, 0
    %v574 = vsel %vm318, 1, 0
    %v575 = vsel %vm319, 1, 0
    %v576 = vsel %vm320, 1, 0
    %v577 = vsel %vm321, 1, 0
    %v578 = vsel %vm322, 1, 0
    %v579 = vsel %vm323, 1, 0
    %v580 = vsel %vm324, 1, 0
    %v581 = vsel %vm325, 1, 0
    %v582 = vsel %vm326, 1, 0
    %v583 = vsel %vm327, 1, 0
    %v584 = vsel %vm328, 1, 0
    %v585 = vsel %vm329, 1, 0
    %v586 = vsel %vm330, 1, 0
    %v587 = vsel %vm331, 1, 0
    %v588 = vsel %vm332, 1, 0
    %v589 = vsel %vm333, 1, 0
    %v590 = vsel %vm334, 1, 0
    %v591 = vsel %vm335, 1, 0
    %v592 = vsel %vm336, 1, 0
    %v593 = vsel %vm337, 1, 0
    %v594 = vsel %vm338, 1, 0
    %v595 = vsel %vm339, 1, 0
    %v596 = vsel %vm340, 1, 0
    %v597 = vsel %vm341, 1, 0
    %v598 = vsel %vm342, 1, 0
    %v599 = vsel %vm343, 1, 0
    %v600 = vsel %vm344, 1, 0
    %v601 = vsel %vm345, 1, 0
    %v602 = vsel %vm346, 1, 0
    %v603 = vsel %vm347, 1, 0
    %v604 = vsel %vm348, 1, 0
    %v605 = vsel %vm349, 1, 0
    %v606 = vsel %vm350, 1, 0
    %v607 = vsel %vm351, 1, 0
    %v608 = vsel %vm352, 1, 0
    %v609 = vsel %vm353, 1, 0
    %v610 = vsel %vm354, 1, 0
    %v611 = vsel %vm355, 1, 0
    %v612 = vsel %vm356, 1, 0
    %v613 = vsel %vm357, 1, 0
    %v614 = vsel %vm358, 1, 0
    %v615 = vsel %vm359, 1, 0
    %v616 = vsel %vm360, 1, 0
    %v617 = vsel %vm361, 1, 0
    %v618 = vsel %vm362, 1, 0
    %v619 = vsel %vm363, 1, 0
    %v620 = vsel %vm364, 1, 0
    %v621 = vsel %vm365, 1, 0
    %v622 = vsel %vm366, 1, 0
    %v623 = vsel %vm367, 1, 0
    %v624 = vsel %vm368, 1, 0
    %v625 = vsel %vm369, 1, 0
    %v626 = vsel %vm370, 1, 0
    %v627 = vsel %vm371, 1, 0
    %v628 = vsel %vm372, 1, 0
    %v629 = vsel %vm373, 1, 0
    %v630 = vsel %vm374, 1, 0
    %v631 = vsel %vm375, 1, 0
    %v632 = vsel %vm376, 1, 0
    %v633 = vsel %vm377, 1, 0
    %v634 = vsel %vm378, 1, 0
    %v635 = vsel %vm379, 1, 0
    %v636 = vsel %vm380, 1, 0
    %v637 = vsel %vm381, 1, 0
    %v638 = vsel %vm382, 1, 0
    %v639 = vsel %vm383, 1, 0
    %v640 = vsel %vm384, 1, 0
    %v641 = vsel %vm385, 1, 0
    %v642 = vsel %vm386, 1, 0
    %v643 = vsel %vm387, 1, 0
    %v644 = vsel %vm388, 1, 0
    %v645 = vsel %vm389, 1, 0
    %v646 = vsel %vm390, 1, 0
    %v647 = vsel %vm391, 1, 0
    %v648 = vsel %vm392, 1, 0
    %v649 = vsel %vm393, 1, 0
    %v650 = vsel %vm394, 1, 0
    %v651 = vsel %vm395, 1, 0
    %v652 = vsel %vm396, 1, 0
    %v653 = vsel %vm397, 1, 0
    %v654 = vsel %vm398, 1, 0
    %v655 = vsel %vm399, 1, 0
    %v656 = vsel %vm400, 1, 0
    %v657 = vsel %vm401, 1, 0
    %v658 = vsel %vm402, 1, 0
    %v659 = vsel %vm403, 1, 0
    %v660 = vcvt.s32.f32 %v404
    %v661 = vcvt.s32.f32 %v405
    %v662 = vcvt.s32.f32 %v406
    %v663 = vcvt.s32.f32 %v407
    %v664 = vcvt.s32.f32 %v408
    %v665 = vcvt.s32.f32 %v409
    %v666 = vcvt.s32.f32 %v410
    %v667 = vcvt.s32.f32 %v411
    %v668 = vcvt.s32.f32 %v412
    %v669 = vcvt.s32.f32 %v413
    %v670 = vcvt.s32.f32 %v414
    %v671 = vcvt.s32.f32 %v415
    %v672 = vcvt.s32.f32 %v416
    %v673 = vcvt.s32.f32 %v417
    %v674 = vcvt.s32.f32 %v418
    %v675 = vcvt.s32.f32 %v419
    %v676 = vcvt.s32.f32 %v420
    %v677 = vcvt.s32.f32 %v421
    %v678 = vcvt.s32.f32 %v422
    %v679 = vcvt.s32.f32 %v423
    %v680 = vcvt.s32.f32 %v424
    %v681 = vcvt.s32.f32 %v425
    %v682 = vcvt.s32.f32 %v426
    %v683 = vcvt.s32.f32 %v427
    %v684 = vcvt.s32.f32 %v428
    %v685 = vcvt.s32.f32 %v429
    %v686 = vcvt.s32.f32 %v430
    %v687 = vcvt.s32.f32 %v431
    %v688 = vcvt.s32.f32 %v432
    %v689 = vcvt.s32.f32 %v433
    %v690 = vcvt.s32.f32 %v434
    %v691 = vcvt.s32.f32 %v435
    %v692 = vcvt.s32.f32 %v436
    %v693 = vcvt.s32.f32 %v437
    %v694 = vcvt.s32.f32 %v438
    %v695 = vcvt.s32.f32 %v439
    %v696 = vcvt.s32.f32 %v440
    %v697 = vcvt.s32.f32 %v441
    %v698 = vcvt.s32.f32 %v442
    %v699 = vcvt.s32.f32 %v443
    %v700 = vcvt.s32.f32 %v444
    %v701 = vcvt.s32.f32 %v445
    %v702 = vcvt.s32.f32 %v446
    %v703 = vcvt.s32.f32 %v447
    %v704 = vcvt.s32.f32 %v448
    %v705 = vcvt.s32.f32 %v449
    %v706 = vcvt.s32.f32 %v450
    %v707 = vcvt.s32.f32 %v451
    %v708 = vcvt.s32.f32 %v452
    %v709 = vcvt.s32.f32 %v453
    %v710 = vcvt.s32.f32 %v454
    %v711 = vcvt.s32.f32 %v455
    %v712 = vcvt.s32.f32 %v456
    %v713 = vcvt.s32.f32 %v457
    %v714 = vcvt.s32.f32 %v458
    %v715 = vcvt.s32.f32 %v459
    %v716 = vcvt.s32.f32 %v460
    %v717 = vcvt.s32.f32 %v461
    %v718 = vcvt.s32.f32 %v462
    %v719 = vcvt.s32.f32 %v463
    %v720 = vcvt.s32.f32 %v464
    %v721 = vcvt.s32.f32 %v465
    %v722 = vcvt.s32.f32 %v466
    %v723 = vcvt.s32.f32 %v467
    %v724 = vcvt.s32.f32 %v468
    %v725 = vcvt.s32.f32 %v469
    %v726 = vcvt.s32.f32 %v470
    %v727 = vcvt.s32.f32 %v471
    %v728 = vcvt.s32.f32 %v472
    %v729 = vcvt.s32.f32 %v473
    %v730 = vcvt.s32.f32 %v474
    %v731 = vcvt.s32.f32 %v475
    %v732 = vcvt.s32.f32 %v476
    %v733 = vcvt.s32.f32 %v477
    %v734 = vcvt.s32.f32 %v478
    %v735 = vcvt.s32.f32 %v479
    %v736 = vcvt.s32.f32 %v480
    %v737 = vcvt.s32.f32 %v481
    %v738 = vcvt.s32.f32 %v482
    %v739 = vcvt.s32.f32 %v483
    %v740 = vcvt.s32.f32 %v484
    %v741 = vcvt.s32.f32 %v485
    %v742 = vcvt.s32.f32 %v486
    %v743 = vcvt.s32.f32 %v487
    %v744 = vcvt.s32.f32 %v488
    %v745 = vcvt.s32.f32 %v489
    %v746 = vcvt.s32.f32 %v490
    %v747 = vcvt.s32.f32 %v491
    %v748 = vcvt.s32.f32 %v492
    %v749 = vcvt.s32.f32 %v493
    %v750 = vcvt.s32.f32 %v494
    %v751 = vcvt.s32.f32 %v495
    %v752 = vcvt.s32.f32 %v496
    %v753 = vcvt.s32.f32 %v497
    %v754 = vcvt.s32.f32 %v498
    %v755 = vcvt.s32.f32 %v499
    %v756 = vcvt.s32.f32 %v500
    %v757 = vcvt.s32.f32 %v501
    %v758 = vcvt.s32.f32 %v502
    %v759 = vcvt.s32.f32 %v503
    %v760 = vcvt.s32.f32 %v504
    %v761 = vcvt.s32.f32 %v505
    %v762 = vcvt.s32.f32 %v506
    %v763 = vcvt.s32.f32 %v507
    %v764 = vcvt.s32.f32 %v508
    %v765 = vcvt.s32.f32 %v509
    %v766 = vcvt.s32.f32 %v510
    %v767 = vcvt.s32.f32 %v511
    %v768 = vcvt.s32.f32 %v512
    %v769 = vcvt.s32.f32 %v513
    %v770 = vcvt.s32.f32 %v514
    %v771 = vcvt.s32.f32 %v515
    %v772 = vcvt.s32.f32 %v516
    %v773 = vcvt.s32.f32 %v517
    %v774 = vcvt.s32.f32 %v518
    %v775 = vcvt.s32.f32 %v519
    %v776 = vcvt.s32.f32 %v520
    %v777 = vcvt.s32.f32 %v521
    %v778 = vcvt.s32.f32 %v522
    %v779 = vcvt.s32.f32 %v523
    %v780 = vcvt.s32.f32 %v524
    %v781 = vcvt.s32.f32 %v525
    %v782 = vcvt.s32.f32 %v526
    %v783 = vcvt.s32.f32 %v527
    %v784 = vcvt.s32.f32 %v528
    %v785 = vcvt.s32.f32 %v529
    %v786 = vcvt.s32.f32 %v530
    %v787 = vcvt.s32.f32 %v531
    %v788 = vcvt.s32.f32 %v532
    %v789 = vcvt.s32.f32 %v533
    %v790 = vcvt.s32.f32 %v534
    %v791 = vcvt.s32.f32 %v535
    %v792 = vcvt.s32.f32 %v536
    %v793 = vcvt.s32.f32 %v537
    %v794 = vcvt.s32.f32 %v538
    %v795 = vcvt.s32.f32 %v539
    %v796 = vcvt.s32.f32 %v540
    %v797 = vcvt.s32.f32 %v541
    %v798 = vcvt.s32.f32 %v542
    %v799 = vcvt.s32.f32 %v543
    %v800 = vcvt.s32.f32 %v544
    %v801 = vcvt.s32.f32 %v545
    %v802 = vcvt.s32.f32 %v546
    %v803 = vcvt.s32.f32 %v547
    %v804 = vcvt.s32.f32 %v548
    %v805 = vcvt.s32.f32 %v549
    %v806 = vcvt.s32.f32 %v550
    %v807 = vcvt.s32.f32 %v551
    %v808 = vcvt.s32.f32 %v552
    %v809 = vcvt.s32.f32 %v553
    %v810 = vcvt.s32.f32 %v554
    %v811 = vcvt.s32.f32 %v555
    %v812 = vcvt.s32.f32 %v556
    %v813 = vcvt.s32.f32 %v557
    %v814 = vcvt.s32.f32 %v558
    %v815 = vcvt.s32.f32 %v559
    %v816 = vcvt.s32.f32 %v560
    %v817 = vcvt.s32.f32 %v561
    %v818 = vcvt.s32.f32 %v562
    %v819 = vcvt.s32.f32 %v563
    %v820 = vcvt.s32.f32 %v564
    %v821 = vcvt.s32.f32 %v565
    %v822 = vcvt.s32.f32 %v566
    %v823 = vcvt.s32.f32 %v567
    %v824 = vcvt.s32.f32 %v568
    %v825 = vcvt.s32.f32 %v569
    %v826 = vcvt.s32.f32 %v570
    %v827 = vcvt.s32.f32 %v571
    %v828 = vcvt.s32.f32 %v572
    %v829 = vcvt.s32.f32 %v573
    %v830 = vcvt.s32.f32 %v574
    %v831 = vcvt.s32.f32 %v575
    %v832 = vcvt.s32.f32 %v576
    %v833 = vcvt.s32.f32 %v577
    %v834 = vcvt.s32.f32 %v578
    %v835 = vcvt.s32.f32 %v579
    %v836 = vcvt.s32.f32 %v580
    %v837 = vcvt.s32.f32 %v581
    %v838 = vcvt.s32.f32 %v582
    %v839 = vcvt.s32.f32 %v583
    %v840 = vcvt.s32.f32 %v584
    %v841 = vcvt.s32.f32 %v585
    %v842 = vcvt.s32.f32 %v586
    %v843 = vcvt.s32.f32 %v587
    %v844 = vcvt.s32.f32 %v588
    %v845 = vcvt.s32.f32 %v589
    %v846 = vcvt.s32.f32 %v590
    %v847 = vcvt.s32.f32 %v591
    %v848 = vcvt.s32.f32 %v592
    %v849 = vcvt.s32.f32 %v593
    %v850 = vcvt.s32.f32 %v594
    %v851 = vcvt.s32.f32 %v595
    %v852 = vcvt.s32.f32 %v596
    %v853 = vcvt.s32.f32 %v597
    %v854 = vcvt.s32.f32 %v598
    %v855 = vcvt.s32.f32 %v599
    %v856 = vcvt.s32.f32 %v600
    %v857 = vcvt.s32.f32 %v601
    %v858 = vcvt.s32.f32 %v602
    %v859 = vcvt.s32.f32 %v603
    %v860 = vcvt.s32.f32 %v604
    %v861 = vcvt.s32.f32 %v605
    %v862 = vcvt.s32.f32 %v606
    %v863 = vcvt.s32.f32 %v607
    %v864 = vcvt.s32.f32 %v608
    %v865 = vcvt.s32.f32 %v609
    %v866 = vcvt.s32.f32 %v610
    %v867 = vcvt.s32.f32 %v611
    %v868 = vcvt.s32.f32 %v612
    %v869 = vcvt.s32.f32 %v613
    %v870 = vcvt.s32.f32 %v614
    %v871 = vcvt.s32.f32 %v615
    %v872 = vcvt.s32.f32 %v616
    %v873 = vcvt.s32.f32 %v617
    %v874 = vcvt.s32.f32 %v618
    %v875 = vcvt.s32.f32 %v619
    %v876 = vcvt.s32.f32 %v620
    %v877 = vcvt.s32.f32 %v621
    %v878 = vcvt.s32.f32 %v622
    %v879 = vcvt.s32.f32 %v623
    %v880 = vcvt.s32.f32 %v624
    %v881 = vcvt.s32.f32 %v625
    %v882 = vcvt.s32.f32 %v626
    %v883 = vcvt.s32.f32 %v627
    %v884 = vcvt.s32.f32 %v628
    %v885 = vcvt.s32.f32 %v629
    %v886 = vcvt.s32.f32 %v630
    %v887 = vcvt.s32.f32 %v631
    %v888 = vcvt.s32.f32 %v632
    %v889 = vcvt.s32.f32 %v633
    %v890 = vcvt.s32.f32 %v634
    %v891 = vcvt.s32.f32 %v635
    %v892 = vcvt.s32.f32 %v636
    %v893 = vcvt.s32.f32 %v637
    %v894 = vcvt.s32.f32 %v638
    %v895 = vcvt.s32.f32 %v639
    %v896 = vcvt.s32.f32 %v640
    %v897 = vcvt.s32.f32 %v641
    %v898 = vcvt.s32.f32 %v642
    %v899 = vcvt.s32.f32 %v643
    %v900 = vcvt.s32.f32 %v644
    %v901 = vcvt.s32.f32 %v645
    %v902 = vcvt.s32.f32 %v646
    %v903 = vcvt.s32.f32 %v647
    %v904 = vcvt.s32.f32 %v648
    %v905 = vcvt.s32.f32 %v649
    %v906 = vcvt.s32.f32 %v650
    %v907 = vcvt.s32.f32 %v651
    %v908 = vcvt.s32.f32 %v652
    %v909 = vcvt.s32.f32 %v653
    %v910 = vcvt.s32.f32 %v654
    %v911 = vcvt.s32.f32 %v655
    %v912 = vcvt.s32.f32 %v656
    %v913 = vcvt.s32.f32 %v657
    %v914 = vcvt.s32.f32 %v658
    %v915 = vcvt.s32.f32 %v659
    %916 = vadd.xlane.f32.xlu0 %v660
    %v917 = vpop.xlane.xlu0 %916
    %918 = vadd.xlane.f32.xlu0 %v661
    %v919 = vpop.xlane.xlu0 %918
    %920 = vadd.xlane.f32.xlu0 %v662
    %v921 = vpop.xlane.xlu0 %920
    %922 = vadd.xlane.f32.xlu0 %v663
    %v923 = vpop.xlane.xlu0 %922
    %924 = vadd.xlane.f32.xlu0 %v664
    %v925 = vpop.xlane.xlu0 %924
    %926 = vadd.xlane.f32.xlu0 %v665
    %v927 = vpop.xlane.xlu0 %926
    %928 = vadd.xlane.f32.xlu0 %v666
    %v929 = vpop.xlane.xlu0 %928
    %930 = vadd.xlane.f32.xlu0 %v667
    %v931 = vpop.xlane.xlu0 %930
    %932 = vadd.xlane.f32.xlu0 %v668
    %v933 = vpop.xlane.xlu0 %932
    %934 = vadd.xlane.f32.xlu0 %v669
    %v935 = vpop.xlane.xlu0 %934
    %936 = vadd.xlane.f32.xlu0 %v670
    %v937 = vpop.xlane.xlu0 %936
    %938 = vadd.xlane.f32.xlu0 %v671
    %v939 = vpop.xlane.xlu0 %938
    %940 = vadd.xlane.f32.xlu0 %v672
    %v941 = vpop.xlane.xlu0 %940
    %942 = vadd.xlane.f32.xlu0 %v673
    %v943 = vpop.xlane.xlu0 %942
    %944 = vadd.xlane.f32.xlu0 %v674
    %v945 = vpop.xlane.xlu0 %944
    %946 = vadd.xlane.f32.xlu0 %v675
    %v947 = vpop.xlane.xlu0 %946
    %948 = vadd.xlane.f32.xlu0 %v676
    %v949 = vpop.xlane.xlu0 %948
    %950 = vadd.xlane.f32.xlu0 %v677
    %v951 = vpop.xlane.xlu0 %950
    %952 = vadd.xlane.f32.xlu0 %v678
    %v953 = vpop.xlane.xlu0 %952
    %954 = vadd.xlane.f32.xlu0 %v679
    %v955 = vpop.xlane.xlu0 %954
    %956 = vadd.xlane.f32.xlu0 %v680
    %v957 = vpop.xlane.xlu0 %956
    %958 = vadd.xlane.f32.xlu0 %v681
    %v959 = vpop.xlane.xlu0 %958
    %960 = vadd.xlane.f32.xlu0 %v682
    %v961 = vpop.xlane.xlu0 %960
    %962 = vadd.xlane.f32.xlu0 %v683
    %v963 = vpop.xlane.xlu0 %962
    %964 = vadd.xlane.f32.xlu0 %v684
    %v965 = vpop.xlane.xlu0 %964
    %966 = vadd.xlane.f32.xlu0 %v685
    %v967 = vpop.xlane.xlu0 %966
    %968 = vadd.xlane.f32.xlu0 %v686
    %v969 = vpop.xlane.xlu0 %968
    %970 = vadd.xlane.f32.xlu0 %v687
    %v971 = vpop.xlane.xlu0 %970
    %972 = vadd.xlane.f32.xlu0 %v688
    %v973 = vpop.xlane.xlu0 %972
    %974 = vadd.xlane.f32.xlu0 %v689
    %v975 = vpop.xlane.xlu0 %974
    %976 = vadd.xlane.f32.xlu0 %v690
    %v977 = vpop.xlane.xlu0 %976
    %978 = vadd.xlane.f32.xlu0 %v691
    %v979 = vpop.xlane.xlu0 %978
    %980 = vadd.xlane.f32.xlu0 %v692
    %v981 = vpop.xlane.xlu0 %980
    %982 = vadd.xlane.f32.xlu0 %v693
    %v983 = vpop.xlane.xlu0 %982
    %984 = vadd.xlane.f32.xlu0 %v694
    %v985 = vpop.xlane.xlu0 %984
    %986 = vadd.xlane.f32.xlu0 %v695
    %v987 = vpop.xlane.xlu0 %986
    %988 = vadd.xlane.f32.xlu0 %v696
    %v989 = vpop.xlane.xlu0 %988
    %990 = vadd.xlane.f32.xlu0 %v697
    %v991 = vpop.xlane.xlu0 %990
    %992 = vadd.xlane.f32.xlu0 %v698
    %v993 = vpop.xlane.xlu0 %992
    %994 = vadd.xlane.f32.xlu0 %v699
    %v995 = vpop.xlane.xlu0 %994
    %996 = vadd.xlane.f32.xlu0 %v700
    %v997 = vpop.xlane.xlu0 %996
    %998 = vadd.xlane.f32.xlu0 %v701
    %v999 = vpop.xlane.xlu0 %998
    %1000 = vadd.xlane.f32.xlu0 %v702
    %v1001 = vpop.xlane.xlu0 %1000
    %1002 = vadd.xlane.f32.xlu0 %v703
    %v1003 = vpop.xlane.xlu0 %1002
    %1004 = vadd.xlane.f32.xlu0 %v704
    %v1005 = vpop.xlane.xlu0 %1004
    %1006 = vadd.xlane.f32.xlu0 %v705
    %v1007 = vpop.xlane.xlu0 %1006
    %1008 = vadd.xlane.f32.xlu0 %v706
    %v1009 = vpop.xlane.xlu0 %1008
    %1010 = vadd.xlane.f32.xlu0 %v707
    %v1011 = vpop.xlane.xlu0 %1010
    %1012 = vadd.xlane.f32.xlu0 %v708
    %v1013 = vpop.xlane.xlu0 %1012
    %1014 = vadd.xlane.f32.xlu0 %v709
    %v1015 = vpop.xlane.xlu0 %1014
    %1016 = vadd.xlane.f32.xlu0 %v710
    %v1017 = vpop.xlane.xlu0 %1016
    %1018 = vadd.xlane.f32.xlu0 %v711
    %v1019 = vpop.xlane.xlu0 %1018
    %1020 = vadd.xlane.f32.xlu0 %v712
    %v1021 = vpop.xlane.xlu0 %1020
    %1022 = vadd.xlane.f32.xlu0 %v713
    %v1023 = vpop.xlane.xlu0 %1022
    %1024 = vadd.xlane.f32.xlu0 %v714
    %v1025 = vpop.xlane.xlu0 %1024
    %1026 = vadd.xlane.f32.xlu0 %v715
    %v1027 = vpop.xlane.xlu0 %1026
    %1028 = vadd.xlane.f32.xlu0 %v716
    %v1029 = vpop.xlane.xlu0 %1028
    %1030 = vadd.xlane.f32.xlu0 %v717
    %v1031 = vpop.xlane.xlu0 %1030
    %1032 = vadd.xlane.f32.xlu0 %v718
    %v1033 = vpop.xlane.xlu0 %1032
    %1034 = vadd.xlane.f32.xlu0 %v719
    %v1035 = vpop.xlane.xlu0 %1034
    %1036 = vadd.xlane.f32.xlu0 %v720
    %v1037 = vpop.xlane.xlu0 %1036
    %1038 = vadd.xlane.f32.xlu0 %v721
    %v1039 = vpop.xlane.xlu0 %1038
    %1040 = vadd.xlane.f32.xlu0 %v722
    %v1041 = vpop.xlane.xlu0 %1040
    %1042 = vadd.xlane.f32.xlu0 %v723
    %v1043 = vpop.xlane.xlu0 %1042
    %1044 = vadd.xlane.f32.xlu0 %v724
    %v1045 = vpop.xlane.xlu0 %1044
    %1046 = vadd.xlane.f32.xlu0 %v725
    %v1047 = vpop.xlane.xlu0 %1046
    %1048 = vadd.xlane.f32.xlu0 %v726
    %v1049 = vpop.xlane.xlu0 %1048
    %1050 = vadd.xlane.f32.xlu0 %v727
    %v1051 = vpop.xlane.xlu0 %1050
    %1052 = vadd.xlane.f32.xlu0 %v728
    %v1053 = vpop.xlane.xlu0 %1052
    %1054 = vadd.xlane.f32.xlu0 %v729
    %v1055 = vpop.xlane.xlu0 %1054
    %1056 = vadd.xlane.f32.xlu0 %v730
    %v1057 = vpop.xlane.xlu0 %1056
    %1058 = vadd.xlane.f32.xlu0 %v731
    %v1059 = vpop.xlane.xlu0 %1058
    %1060 = vadd.xlane.f32.xlu0 %v732
    %v1061 = vpop.xlane.xlu0 %1060
    %1062 = vadd.xlane.f32.xlu0 %v733
    %v1063 = vpop.xlane.xlu0 %1062
    %1064 = vadd.xlane.f32.xlu0 %v734
    %v1065 = vpop.xlane.xlu0 %1064
    %1066 = vadd.xlane.f32.xlu0 %v735
    %v1067 = vpop.xlane.xlu0 %1066
    %1068 = vadd.xlane.f32.xlu0 %v736
    %v1069 = vpop.xlane.xlu0 %1068
    %1070 = vadd.xlane.f32.xlu0 %v737
    %v1071 = vpop.xlane.xlu0 %1070
    %1072 = vadd.xlane.f32.xlu0 %v738
    %v1073 = vpop.xlane.xlu0 %1072
    %1074 = vadd.xlane.f32.xlu0 %v739
    %v1075 = vpop.xlane.xlu0 %1074
    %1076 = vadd.xlane.f32.xlu0 %v740
    %v1077 = vpop.xlane.xlu0 %1076
    %1078 = vadd.xlane.f32.xlu0 %v741
    %v1079 = vpop.xlane.xlu0 %1078
    %1080 = vadd.xlane.f32.xlu0 %v742
    %v1081 = vpop.xlane.xlu0 %1080
    %1082 = vadd.xlane.f32.xlu0 %v743
    %v1083 = vpop.xlane.xlu0 %1082
    %1084 = vadd.xlane.f32.xlu0 %v744
    %v1085 = vpop.xlane.xlu0 %1084
    %1086 = vadd.xlane.f32.xlu0 %v745
    %v1087 = vpop.xlane.xlu0 %1086
    %1088 = vadd.xlane.f32.xlu0 %v746
    %v1089 = vpop.xlane.xlu0 %1088
    %1090 = vadd.xlane.f32.xlu0 %v747
    %v1091 = vpop.xlane.xlu0 %1090
    %1092 = vadd.xlane.f32.xlu0 %v748
    %v1093 = vpop.xlane.xlu0 %1092
    %1094 = vadd.xlane.f32.xlu0 %v749
    %v1095 = vpop.xlane.xlu0 %1094
    %1096 = vadd.xlane.f32.xlu0 %v750
    %v1097 = vpop.xlane.xlu0 %1096
    %1098 = vadd.xlane.f32.xlu0 %v751
    %v1099 = vpop.xlane.xlu0 %1098
    %1100 = vadd.xlane.f32.xlu0 %v752
    %v1101 = vpop.xlane.xlu0 %1100
    %1102 = vadd.xlane.f32.xlu0 %v753
    %v1103 = vpop.xlane.xlu0 %1102
    %1104 = vadd.xlane.f32.xlu0 %v754
    %v1105 = vpop.xlane.xlu0 %1104
    %1106 = vadd.xlane.f32.xlu0 %v755
    %v1107 = vpop.xlane.xlu0 %1106
    %1108 = vadd.xlane.f32.xlu0 %v756
    %v1109 = vpop.xlane.xlu0 %1108
    %1110 = vadd.xlane.f32.xlu0 %v757
    %v1111 = vpop.xlane.xlu0 %1110
    %1112 = vadd.xlane.f32.xlu0 %v758
    %v1113 = vpop.xlane.xlu0 %1112
    %1114 = vadd.xlane.f32.xlu0 %v759
    %v1115 = vpop.xlane.xlu0 %1114
    %1116 = vadd.xlane.f32.xlu0 %v760
    %v1117 = vpop.xlane.xlu0 %1116
    %1118 = vadd.xlane.f32.xlu0 %v761
    %v1119 = vpop.xlane.xlu0 %1118
    %1120 = vadd.xlane.f32.xlu0 %v762
    %v1121 = vpop.xlane.xlu0 %1120
    %1122 = vadd.xlane.f32.xlu0 %v763
    %v1123 = vpop.xlane.xlu0 %1122
    %1124 = vadd.xlane.f32.xlu0 %v764
    %v1125 = vpop.xlane.xlu0 %1124
    %1126 = vadd.xlane.f32.xlu0 %v765
    %v1127 = vpop.xlane.xlu0 %1126
    %1128 = vadd.xlane.f32.xlu0 %v766
    %v1129 = vpop.xlane.xlu0 %1128
    %1130 = vadd.xlane.f32.xlu0 %v767
    %v1131 = vpop.xlane.xlu0 %1130
    %1132 = vadd.xlane.f32.xlu0 %v768
    %v1133 = vpop.xlane.xlu0 %1132
    %1134 = vadd.xlane.f32.xlu0 %v769
    %v1135 = vpop.xlane.xlu0 %1134
    %1136 = vadd.xlane.f32.xlu0 %v770
    %v1137 = vpop.xlane.xlu0 %1136
    %1138 = vadd.xlane.f32.xlu0 %v771
    %v1139 = vpop.xlane.xlu0 %1138
    %1140 = vadd.xlane.f32.xlu0 %v772
    %v1141 = vpop.xlane.xlu0 %1140
    %1142 = vadd.xlane.f32.xlu0 %v773
    %v1143 = vpop.xlane.xlu0 %1142
    %1144 = vadd.xlane.f32.xlu0 %v774
    %v1145 = vpop.xlane.xlu0 %1144
    %1146 = vadd.xlane.f32.xlu0 %v775
    %v1147 = vpop.xlane.xlu0 %1146
    %1148 = vadd.xlane.f32.xlu0 %v776
    %v1149 = vpop.xlane.xlu0 %1148
    %1150 = vadd.xlane.f32.xlu0 %v777
    %v1151 = vpop.xlane.xlu0 %1150
    %1152 = vadd.xlane.f32.xlu0 %v778
    %v1153 = vpop.xlane.xlu0 %1152
    %1154 = vadd.xlane.f32.xlu0 %v779
    %v1155 = vpop.xlane.xlu0 %1154
    %1156 = vadd.xlane.f32.xlu0 %v780
    %v1157 = vpop.xlane.xlu0 %1156
    %1158 = vadd.xlane.f32.xlu0 %v781
    %v1159 = vpop.xlane.xlu0 %1158
    %1160 = vadd.xlane.f32.xlu0 %v782
    %v1161 = vpop.xlane.xlu0 %1160
    %1162 = vadd.xlane.f32.xlu0 %v783
    %v1163 = vpop.xlane.xlu0 %1162
    %1164 = vadd.xlane.f32.xlu0 %v784
    %v1165 = vpop.xlane.xlu0 %1164
    %1166 = vadd.xlane.f32.xlu0 %v785
    %v1167 = vpop.xlane.xlu0 %1166
    %1168 = vadd.xlane.f32.xlu0 %v786
    %v1169 = vpop.xlane.xlu0 %1168
    %1170 = vadd.xlane.f32.xlu0 %v787
    %v1171 = vpop.xlane.xlu0 %1170
    %1172 = vadd.xlane.f32.xlu0 %v788
    %v1173 = vpop.xlane.xlu0 %1172
    %1174 = vadd.xlane.f32.xlu0 %v789
    %v1175 = vpop.xlane.xlu0 %1174
    %1176 = vadd.xlane.f32.xlu0 %v790
    %v1177 = vpop.xlane.xlu0 %1176
    %1178 = vadd.xlane.f32.xlu0 %v791
    %v1179 = vpop.xlane.xlu0 %1178
    %1180 = vadd.xlane.f32.xlu0 %v792
    %v1181 = vpop.xlane.xlu0 %1180
    %1182 = vadd.xlane.f32.xlu0 %v793
    %v1183 = vpop.xlane.xlu0 %1182
    %1184 = vadd.xlane.f32.xlu0 %v794
    %v1185 = vpop.xlane.xlu0 %1184
    %1186 = vadd.xlane.f32.xlu0 %v795
    %v1187 = vpop.xlane.xlu0 %1186
    %1188 = vadd.xlane.f32.xlu0 %v796
    %v1189 = vpop.xlane.xlu0 %1188
    %1190 = vadd.xlane.f32.xlu0 %v797
    %v1191 = vpop.xlane.xlu0 %1190
    %1192 = vadd.xlane.f32.xlu0 %v798
    %v1193 = vpop.xlane.xlu0 %1192
    %1194 = vadd.xlane.f32.xlu0 %v799
    %v1195 = vpop.xlane.xlu0 %1194
    %1196 = vadd.xlane.f32.xlu0 %v800
    %v1197 = vpop.xlane.xlu0 %1196
    %1198 = vadd.xlane.f32.xlu0 %v801
    %v1199 = vpop.xlane.xlu0 %1198
    %1200 = vadd.xlane.f32.xlu0 %v802
    %v1201 = vpop.xlane.xlu0 %1200
    %1202 = vadd.xlane.f32.xlu0 %v803
    %v1203 = vpop.xlane.xlu0 %1202
    %1204 = vadd.xlane.f32.xlu0 %v804
    %v1205 = vpop.xlane.xlu0 %1204
    %1206 = vadd.xlane.f32.xlu0 %v805
    %v1207 = vpop.xlane.xlu0 %1206
    %1208 = vadd.xlane.f32.xlu0 %v806
    %v1209 = vpop.xlane.xlu0 %1208
    %1210 = vadd.xlane.f32.xlu0 %v807
    %v1211 = vpop.xlane.xlu0 %1210
    %1212 = vadd.xlane.f32.xlu0 %v808
    %v1213 = vpop.xlane.xlu0 %1212
    %1214 = vadd.xlane.f32.xlu0 %v809
    %v1215 = vpop.xlane.xlu0 %1214
    %1216 = vadd.xlane.f32.xlu0 %v810
    %v1217 = vpop.xlane.xlu0 %1216
    %1218 = vadd.xlane.f32.xlu0 %v811
    %v1219 = vpop.xlane.xlu0 %1218
    %1220 = vadd.xlane.f32.xlu0 %v812
    %v1221 = vpop.xlane.xlu0 %1220
    %1222 = vadd.xlane.f32.xlu0 %v813
    %v1223 = vpop.xlane.xlu0 %1222
    %1224 = vadd.xlane.f32.xlu0 %v814
    %v1225 = vpop.xlane.xlu0 %1224
    %1226 = vadd.xlane.f32.xlu0 %v815
    %v1227 = vpop.xlane.xlu0 %1226
    %1228 = vadd.xlane.f32.xlu0 %v816
    %v1229 = vpop.xlane.xlu0 %1228
    %1230 = vadd.xlane.f32.xlu0 %v817
    %v1231 = vpop.xlane.xlu0 %1230
    %1232 = vadd.xlane.f32.xlu0 %v818
    %v1233 = vpop.xlane.xlu0 %1232
    %1234 = vadd.xlane.f32.xlu0 %v819
    %v1235 = vpop.xlane.xlu0 %1234
    %1236 = vadd.xlane.f32.xlu0 %v820
    %v1237 = vpop.xlane.xlu0 %1236
    %1238 = vadd.xlane.f32.xlu0 %v821
    %v1239 = vpop.xlane.xlu0 %1238
    %1240 = vadd.xlane.f32.xlu0 %v822
    %v1241 = vpop.xlane.xlu0 %1240
    %1242 = vadd.xlane.f32.xlu0 %v823
    %v1243 = vpop.xlane.xlu0 %1242
    %1244 = vadd.xlane.f32.xlu0 %v824
    %v1245 = vpop.xlane.xlu0 %1244
    %1246 = vadd.xlane.f32.xlu0 %v825
    %v1247 = vpop.xlane.xlu0 %1246
    %1248 = vadd.xlane.f32.xlu0 %v826
    %v1249 = vpop.xlane.xlu0 %1248
    %1250 = vadd.xlane.f32.xlu0 %v827
    %v1251 = vpop.xlane.xlu0 %1250
    %1252 = vadd.xlane.f32.xlu0 %v828
    %v1253 = vpop.xlane.xlu0 %1252
    %1254 = vadd.xlane.f32.xlu0 %v829
    %v1255 = vpop.xlane.xlu0 %1254
    %1256 = vadd.xlane.f32.xlu0 %v830
    %v1257 = vpop.xlane.xlu0 %1256
    %1258 = vadd.xlane.f32.xlu0 %v831
    %v1259 = vpop.xlane.xlu0 %1258
    %1260 = vadd.xlane.f32.xlu0 %v832
    %v1261 = vpop.xlane.xlu0 %1260
    %1262 = vadd.xlane.f32.xlu0 %v833
    %v1263 = vpop.xlane.xlu0 %1262
    %1264 = vadd.xlane.f32.xlu0 %v834
    %v1265 = vpop.xlane.xlu0 %1264
    %1266 = vadd.xlane.f32.xlu0 %v835
    %v1267 = vpop.xlane.xlu0 %1266
    %1268 = vadd.xlane.f32.xlu0 %v836
    %v1269 = vpop.xlane.xlu0 %1268
    %1270 = vadd.xlane.f32.xlu0 %v837
    %v1271 = vpop.xlane.xlu0 %1270
    %1272 = vadd.xlane.f32.xlu0 %v838
    %v1273 = vpop.xlane.xlu0 %1272
    %1274 = vadd.xlane.f32.xlu0 %v839
    %v1275 = vpop.xlane.xlu0 %1274
    %1276 = vadd.xlane.f32.xlu0 %v840
    %v1277 = vpop.xlane.xlu0 %1276
    %1278 = vadd.xlane.f32.xlu0 %v841
    %v1279 = vpop.xlane.xlu0 %1278
    %1280 = vadd.xlane.f32.xlu0 %v842
    %v1281 = vpop.xlane.xlu0 %1280
    %1282 = vadd.xlane.f32.xlu0 %v843
    %v1283 = vpop.xlane.xlu0 %1282
    %1284 = vadd.xlane.f32.xlu0 %v844
    %v1285 = vpop.xlane.xlu0 %1284
    %1286 = vadd.xlane.f32.xlu0 %v845
    %v1287 = vpop.xlane.xlu0 %1286
    %1288 = vadd.xlane.f32.xlu0 %v846
    %v1289 = vpop.xlane.xlu0 %1288
    %1290 = vadd.xlane.f32.xlu0 %v847
    %v1291 = vpop.xlane.xlu0 %1290
    %1292 = vadd.xlane.f32.xlu0 %v848
    %v1293 = vpop.xlane.xlu0 %1292
    %1294 = vadd.xlane.f32.xlu0 %v849
    %v1295 = vpop.xlane.xlu0 %1294
    %1296 = vadd.xlane.f32.xlu0 %v850
    %v1297 = vpop.xlane.xlu0 %1296
    %1298 = vadd.xlane.f32.xlu0 %v851
    %v1299 = vpop.xlane.xlu0 %1298
    %1300 = vadd.xlane.f32.xlu0 %v852
    %v1301 = vpop.xlane.xlu0 %1300
    %1302 = vadd.xlane.f32.xlu0 %v853
    %v1303 = vpop.xlane.xlu0 %1302
    %1304 = vadd.xlane.f32.xlu0 %v854
    %v1305 = vpop.xlane.xlu0 %1304
    %1306 = vadd.xlane.f32.xlu0 %v855
    %v1307 = vpop.xlane.xlu0 %1306
    %1308 = vadd.xlane.f32.xlu0 %v856
    %v1309 = vpop.xlane.xlu0 %1308
    %1310 = vadd.xlane.f32.xlu0 %v857
    %v1311 = vpop.xlane.xlu0 %1310
    %1312 = vadd.xlane.f32.xlu0 %v858
    %v1313 = vpop.xlane.xlu0 %1312
    %1314 = vadd.xlane.f32.xlu0 %v859
    %v1315 = vpop.xlane.xlu0 %1314
    %1316 = vadd.xlane.f32.xlu0 %v860
    %v1317 = vpop.xlane.xlu0 %1316
    %1318 = vadd.xlane.f32.xlu0 %v861
    %v1319 = vpop.xlane.xlu0 %1318
    %1320 = vadd.xlane.f32.xlu0 %v862
    %v1321 = vpop.xlane.xlu0 %1320
    %1322 = vadd.xlane.f32.xlu0 %v863
    %v1323 = vpop.xlane.xlu0 %1322
    %1324 = vadd.xlane.f32.xlu0 %v864
    %v1325 = vpop.xlane.xlu0 %1324
    %1326 = vadd.xlane.f32.xlu0 %v865
    %v1327 = vpop.xlane.xlu0 %1326
    %1328 = vadd.xlane.f32.xlu0 %v866
    %v1329 = vpop.xlane.xlu0 %1328
    %1330 = vadd.xlane.f32.xlu0 %v867
    %v1331 = vpop.xlane.xlu0 %1330
    %1332 = vadd.xlane.f32.xlu0 %v868
    %v1333 = vpop.xlane.xlu0 %1332
    %1334 = vadd.xlane.f32.xlu0 %v869
    %v1335 = vpop.xlane.xlu0 %1334
    %1336 = vadd.xlane.f32.xlu0 %v870
    %v1337 = vpop.xlane.xlu0 %1336
    %1338 = vadd.xlane.f32.xlu0 %v871
    %v1339 = vpop.xlane.xlu0 %1338
    %1340 = vadd.xlane.f32.xlu0 %v872
    %v1341 = vpop.xlane.xlu0 %1340
    %1342 = vadd.xlane.f32.xlu0 %v873
    %v1343 = vpop.xlane.xlu0 %1342
    %1344 = vadd.xlane.f32.xlu0 %v874
    %v1345 = vpop.xlane.xlu0 %1344
    %1346 = vadd.xlane.f32.xlu0 %v875
    %v1347 = vpop.xlane.xlu0 %1346
    %1348 = vadd.xlane.f32.xlu0 %v876
    %v1349 = vpop.xlane.xlu0 %1348
    %1350 = vadd.xlane.f32.xlu0 %v877
    %v1351 = vpop.xlane.xlu0 %1350
    %1352 = vadd.xlane.f32.xlu0 %v878
    %v1353 = vpop.xlane.xlu0 %1352
    %1354 = vadd.xlane.f32.xlu0 %v879
    %v1355 = vpop.xlane.xlu0 %1354
    %1356 = vadd.xlane.f32.xlu0 %v880
    %v1357 = vpop.xlane.xlu0 %1356
    %1358 = vadd.xlane.f32.xlu0 %v881
    %v1359 = vpop.xlane.xlu0 %1358
    %1360 = vadd.xlane.f32.xlu0 %v882
    %v1361 = vpop.xlane.xlu0 %1360
    %1362 = vadd.xlane.f32.xlu0 %v883
    %v1363 = vpop.xlane.xlu0 %1362
    %1364 = vadd.xlane.f32.xlu0 %v884
    %v1365 = vpop.xlane.xlu0 %1364
    %1366 = vadd.xlane.f32.xlu0 %v885
    %v1367 = vpop.xlane.xlu0 %1366
    %1368 = vadd.xlane.f32.xlu0 %v886
    %v1369 = vpop.xlane.xlu0 %1368
    %1370 = vadd.xlane.f32.xlu0 %v887
    %v1371 = vpop.xlane.xlu0 %1370
    %1372 = vadd.xlane.f32.xlu0 %v888
    %v1373 = vpop.xlane.xlu0 %1372
    %1374 = vadd.xlane.f32.xlu0 %v889
    %v1375 = vpop.xlane.xlu0 %1374
    %1376 = vadd.xlane.f32.xlu0 %v890
    %v1377 = vpop.xlane.xlu0 %1376
    %1378 = vadd.xlane.f32.xlu0 %v891
    %v1379 = vpop.xlane.xlu0 %1378
    %1380 = vadd.xlane.f32.xlu0 %v892
    %v1381 = vpop.xlane.xlu0 %1380
    %1382 = vadd.xlane.f32.xlu0 %v893
    %v1383 = vpop.xlane.xlu0 %1382
    %1384 = vadd.xlane.f32.xlu0 %v894
    %v1385 = vpop.xlane.xlu0 %1384
    %1386 = vadd.xlane.f32.xlu0 %v895
    %v1387 = vpop.xlane.xlu0 %1386
    %1388 = vadd.xlane.f32.xlu0 %v896
    %v1389 = vpop.xlane.xlu0 %1388
    %1390 = vadd.xlane.f32.xlu0 %v897
    %v1391 = vpop.xlane.xlu0 %1390
    %1392 = vadd.xlane.f32.xlu0 %v898
    %v1393 = vpop.xlane.xlu0 %1392
    %1394 = vadd.xlane.f32.xlu0 %v899
    %v1395 = vpop.xlane.xlu0 %1394
    %1396 = vadd.xlane.f32.xlu0 %v900
    %v1397 = vpop.xlane.xlu0 %1396
    %1398 = vadd.xlane.f32.xlu0 %v901
    %v1399 = vpop.xlane.xlu0 %1398
    %1400 = vadd.xlane.f32.xlu0 %v902
    %v1401 = vpop.xlane.xlu0 %1400
    %1402 = vadd.xlane.f32.xlu0 %v903
    %v1403 = vpop.xlane.xlu0 %1402
    %1404 = vadd.xlane.f32.xlu0 %v904
    %v1405 = vpop.xlane.xlu0 %1404
    %1406 = vadd.xlane.f32.xlu0 %v905
    %v1407 = vpop.xlane.xlu0 %1406
    %1408 = vadd.xlane.f32.xlu0 %v906
    %v1409 = vpop.xlane.xlu0 %1408
    %1410 = vadd.xlane.f32.xlu0 %v907
    %v1411 = vpop.xlane.xlu0 %1410
    %1412 = vadd.xlane.f32.xlu0 %v908
    %v1413 = vpop.xlane.xlu0 %1412
    %1414 = vadd.xlane.f32.xlu0 %v909
    %v1415 = vpop.xlane.xlu0 %1414
    %1416 = vadd.xlane.f32.xlu0 %v910
    %v1417 = vpop.xlane.xlu0 %1416
    %1418 = vadd.xlane.f32.xlu0 %v911
    %v1419 = vpop.xlane.xlu0 %1418
    %1420 = vadd.xlane.f32.xlu0 %v912
    %v1421 = vpop.xlane.xlu0 %1420
    %1422 = vadd.xlane.f32.xlu0 %v913
    %v1423 = vpop.xlane.xlu0 %1422
    %1424 = vadd.xlane.f32.xlu0 %v914
    %v1425 = vpop.xlane.xlu0 %1424
    %1426 = vadd.xlane.f32.xlu0 %v915
    %v1427 = vpop.xlane.xlu0 %1426
    %v1428 = vlaneseq
    %v1429 = vand.u32 %v1428, 127
    %v1430 = vadd.s32 %v1429, 128
    %1431 = vset.pattern.permute.xlu0 0
    %1432 = vperm.xlu0 %1431, %v33
    %v1433 = vpop.permute.xlu0 %1432
    %vm1434 = vcmp.eq.s32.totalorder %v1429, %v1433
    %vm1435 = vcmp.eq.s32.totalorder %v1430, %v1433
    %v1436 = vsel %vm1434, 1, 0
    %v1437 = vsel %vm1435, 1, 0
    %v1438 = vcvt.s32.f32 %v1436
    %v1439 = vcvt.s32.f32 %v1437
    %s1440 = smul.u32 256, 1
    %s1441 = sshll.u32 %s1440, 4
    %1442 = dma.done [#allocation4], %s1441
    %v1443 = vld [vmem:[#allocation2] sm:$0xff]
    %v1444 = vld [vmem:[#allocation2 + $0x8] sm:$0xff]
    %v1445 = vld [vmem:[#allocation2 + $0x10] sm:$0xff]
    %v1446 = vld [vmem:[#allocation2 + $0x18] sm:$0xff]
    %v1447 = vld [vmem:[#allocation2 + $0x20] sm:$0xff]
    %v1448 = vld [vmem:[#allocation2 + $0x28] sm:$0xff]
    %v1449 = vld [vmem:[#allocation2 + $0x30] sm:$0xff]
    %v1450 = vld [vmem:[#allocation2 + $0x38] sm:$0xff]
    %v1451 = vld [vmem:[#allocation2 + $0x40] sm:$0xff]
    %v1452 = vld [vmem:[#allocation2 + $0x48] sm:$0xff]
    %v1453 = vld [vmem:[#allocation2 + $0x50] sm:$0xff]
    %v1454 = vld [vmem:[#allocation2 + $0x58] sm:$0xff]
    %v1455 = vld [vmem:[#allocation2 + $0x60] sm:$0xff]
    %v1456 = vld [vmem:[#allocation2 + $0x68] sm:$0xff]
    %v1457 = vld [vmem:[#allocation2 + $0x70] sm:$0xff]
    %v1458 = vld [vmem:[#allocation2 + $0x78] sm:$0xff]
    %v1459 = vld [vmem:[#allocation2 + $0x80] sm:$0xff]
    %v1460 = vld [vmem:[#allocation2 + $0x88] sm:$0xff]
    %v1461 = vld [vmem:[#allocation2 + $0x90] sm:$0xff]
    %v1462 = vld [vmem:[#allocation2 + $0x98] sm:$0xff]
    %v1463 = vld [vmem:[#allocation2 + $0xa0] sm:$0xff]
    %v1464 = vld [vmem:[#allocation2 + $0xa8] sm:$0xff]
    %v1465 = vld [vmem:[#allocation2 + $0xb0] sm:$0xff]
    %v1466 = vld [vmem:[#allocation2 + $0xb8] sm:$0xff]
    %v1467 = vld [vmem:[#allocation2 + $0xc0] sm:$0xff]
    %v1468 = vld [vmem:[#allocation2 + $0xc8] sm:$0xff]
    %v1469 = vld [vmem:[#allocation2 + $0xd0] sm:$0xff]
    %v1470 = vld [vmem:[#allocation2 + $0xd8] sm:$0xff]
    %v1471 = vld [vmem:[#allocation2 + $0xe0] sm:$0xff]
    %v1472 = vld [vmem:[#allocation2 + $0xe8] sm:$0xff]
    %v1473 = vld [vmem:[#allocation2 + $0xf0] sm:$0xff]
    %v1474 = vld [vmem:[#allocation2 + $0xf8] sm:$0xff]
    %v1475 = vld [vmem:[%s2] sm:$0xff]
    %v1476 = vld [vmem:[%s2 + $0x8] sm:$0xff]
    %1477 = vmatprep.subr.mxu0 0.0
    %1478 = vmatpush1.xpose.msra.mxu0 %v1443
    %1479 = vmatprep.subr.mxu0 0.0
    %1480 = vmatpush1.xpose.msra.mxu0 %v1444
    %1481 = vmatprep.subr.mxu0 0.0
    %1482 = vmatpush1.xpose.msra.mxu0 %v1445
    %1483 = vmatprep.subr.mxu0 0.0
    %1484 = vmatpush1.xpose.msra.mxu0 %v1446
    %1485 = vmatprep.subr.mxu0 0.0
    %1486 = vmatpush1.xpose.msra.mxu0 %v1447
    %1487 = vmatprep.subr.mxu0 0.0
    %1488 = vmatpush1.xpose.msra.mxu0 %v1448
    %1489 = vmatprep.subr.mxu0 0.0
    %1490 = vmatpush1.xpose.msra.mxu0 %v1449
    %1491 = vmatprep.subr.mxu0 0.0
    %1492 = vmatpush1.xpose.msra.mxu0 %v1450
    %1493 = vmatprep.subr.mxu0 0.0
    %1494 = vmatpush1.xpose.msra.mxu0 %v1451
    %1495 = vmatprep.subr.mxu0 0.0
    %1496 = vmatpush1.xpose.msra.mxu0 %v1452
    %1497 = vmatprep.subr.mxu0 0.0
    %1498 = vmatpush1.xpose.msra.mxu0 %v1453
    %1499 = vmatprep.subr.mxu0 0.0
    %1500 = vmatpush1.xpose.msra.mxu0 %v1454
    %1501 = vmatprep.subr.mxu0 0.0
    %1502 = vmatpush1.xpose.msra.mxu0 %v1455
    %1503 = vmatprep.subr.mxu0 0.0
    %1504 = vmatpush1.xpose.msra.mxu0 %v1456
    %1505 = vmatprep.subr.mxu0 0.0
    %1506 = vmatpush1.xpose.msra.mxu0 %v1457
    %1507 = vmatprep.subr.mxu0 0.0
    %1508 = vmatpush1.xpose.msra.mxu0 %v1458
    %1509 = vmatprep.subr.mxu0 0.0
    %1510 = vmatpush1.xpose.msra.mxu0 %v1459
    %1511 = vmatprep.subr.mxu0 0.0
    %1512 = vmatpush1.xpose.msra.mxu0 %v1460
    %1513 = vmatprep.subr.mxu0 0.0
    %1514 = vmatpush1.xpose.msra.mxu0 %v1461
    %1515 = vmatprep.subr.mxu0 0.0
    %1516 = vmatpush1.xpose.msra.mxu0 %v1462
    %1517 = vmatprep.subr.mxu0 0.0
    %1518 = vmatpush1.xpose.msra.mxu0 %v1463
    %1519 = vmatprep.subr.mxu0 0.0
    %1520 = vmatpush1.xpose.msra.mxu0 %v1464
    %1521 = vmatprep.subr.mxu0 0.0
    %1522 = vmatpush1.xpose.msra.mxu0 %v1465
    %1523 = vmatprep.subr.mxu0 0.0
    %1524 = vmatpush1.xpose.msra.mxu0 %v1466
    %1525 = vmatprep.subr.mxu0 0.0
    %1526 = vmatpush1.xpose.msra.mxu0 %v1467
    %1527 = vmatprep.subr.mxu0 0.0
    %1528 = vmatpush1.xpose.msra.mxu0 %v1468
    %1529 = vmatprep.subr.mxu0 0.0
    %1530 = vmatpush1.xpose.msra.mxu0 %v1469
    %1531 = vmatprep.subr.mxu0 0.0
    %1532 = vmatpush1.xpose.msra.mxu0 %v1470
    %1533 = vmatprep.subr.mxu0 0.0
    %1534 = vmatpush1.xpose.msra.mxu0 %v1471
    %1535 = vmatprep.subr.mxu0 0.0
    %1536 = vmatpush1.xpose.msra.mxu0 %v1472
    %1537 = vmatprep.subr.mxu0 0.0
    %1538 = vmatpush1.xpose.msra.mxu0 %v1473
    %1539 = vmatprep.subr.mxu0 0.0
    %1540 = vmatpush1.xpose.msra.mxu0 %v1474
    %1541 = vmatprep.mubr.f32.mxu0 0.0
    %1542 = vmatmul.mubr.f32.gmra.mrb[0].mxu0 %v1475
    %v1543 = vpop.f32.mrb[0].mxu0
    %v1544 = vadd.f32 0.0, %v1543
    %v1545 = vpop.f32.mrb[0].mxu0
    %v1546 = vadd.f32 0.0, %v1545
    %1547 = vmatprep.mubr.f32.mxu0 0.0
    %1548 = vmatmul.mubr.f32.gmra.mrb[0].mxu0 %v1476
    %v1549 = vpop.f32.mrb[0].mxu0
    %v1550 = vadd.f32 0.0, %v1549
    %v1551 = vpop.f32.mrb[0].mxu0
    %v1552 = vadd.f32 0.0, %v1551
    %1553 = vdwg.mxu0
    %v1554 = vmul.f32 %v1544, 14.285714
    %v1555 = vmul.f32 %v1546, 14.285714
    %v1556 = vmul.f32 %v1550, 14.285714
    %v1557 = vmul.f32 %v1552, 14.285714
    %v1558 = vmax.f32 %v1554, %v1555
    %1559 = vmax.xlane.f32.xlu0 %v1558
    %v1560 = vpop.xlane.xlu0 %1559
    %v1561 = vsub.f32 %v1554, %v1560
    %v1562 = vsub.f32 %v1555, %v1560
    %v1563 = vmul.f32 %v1561, 1.442695
    %v1564 = vpow.pop %v1563
    %v1565 = vmul.f32 %v1562, 1.442695
    %v1566 = vpow.pop %v1565
    %v1569 = vlaneseq
    %v1570 = vshrl.u32 %v1569, 7
    %v1571 = vsub.s32 0, %v1570
    %v1572 = vrot.slane %v1564, %v1571
    %1574 = vbcast.lane.b32.xlu0 %v1572, 256
    %v1575 = vpop.permute.xlu0 %1574
    %s1577 = sor.u32 256, 8
    %1578 = vbcast.lane.b32.xlu0 %v1572, %s1577
    %v1579 = vpop.permute.xlu0 %1578
    %s1581 = sor.u32 256, 16
    %1582 = vbcast.lane.b32.xlu0 %v1572, %s1581
    %v1583 = vpop.permute.xlu0 %1582
    %s1585 = sor.u32 256, 24
    %1586 = vbcast.lane.b32.xlu0 %v1572, %s1585
    %v1587 = vpop.permute.xlu0 %1586
    %s1589 = sor.u32 256, 32
    %1590 = vbcast.lane.b32.xlu0 %v1572, %s1589
    %v1591 = vpop.permute.xlu0 %1590
    %s1593 = sor.u32 256, 40
    %1594 = vbcast.lane.b32.xlu0 %v1572, %s1593
    %v1595 = vpop.permute.xlu0 %1594
    %s1597 = sor.u32 256, 48
    %1598 = vbcast.lane.b32.xlu0 %v1572, %s1597
    %v1599 = vpop.permute.xlu0 %1598
    %s1601 = sor.u32 256, 56
    %1602 = vbcast.lane.b32.xlu0 %v1572, %s1601
    %v1603 = vpop.permute.xlu0 %1602
    %s1605 = sor.u32 256, 64
    %1606 = vbcast.lane.b32.xlu0 %v1572, %s1605
    %v1607 = vpop.permute.xlu0 %1606
    %s1609 = sor.u32 256, 72
    %1610 = vbcast.lane.b32.xlu0 %v1572, %s1609
    %v1611 = vpop.permute.xlu0 %1610
    %s1613 = sor.u32 256, 80
    %1614 = vbcast.lane.b32.xlu0 %v1572, %s1613
    %v1615 = vpop.permute.xlu0 %1614
    %s1617 = sor.u32 256, 88
    %1618 = vbcast.lane.b32.xlu0 %v1572, %s1617
    %v1619 = vpop.permute.xlu0 %1618
    %s1621 = sor.u32 256, 96
    %1622 = vbcast.lane.b32.xlu0 %v1572, %s1621
    %v1623 = vpop.permute.xlu0 %1622
    %s1625 = sor.u32 256, 104
    %1626 = vbcast.lane.b32.xlu0 %v1572, %s1625
    %v1627 = vpop.permute.xlu0 %1626
    %s1629 = sor.u32 256, 112
    %1630 = vbcast.lane.b32.xlu0 %v1572, %s1629
    %v1631 = vpop.permute.xlu0 %1630
    %s1633 = sor.u32 256, 120
    %1634 = vbcast.lane.b32.xlu0 %v1572, %s1633
    %v1635 = vpop.permute.xlu0 %1634
    %v1636 = vlaneseq
    %v1637 = vshrl.u32 %v1636, 7
    %v1638 = vsub.s32 0, %v1637
    %v1639 = vrot.slane %v1566, %v1638
    %1641 = vbcast.lane.b32.xlu0 %v1639, 256
    %v1642 = vpop.permute.xlu0 %1641
    %s1644 = sor.u32 256, 8
    %1645 = vbcast.lane.b32.xlu0 %v1639, %s1644
    %v1646 = vpop.permute.xlu0 %1645
    %s1648 = sor.u32 256, 16
    %1649 = vbcast.lane.b32.xlu0 %v1639, %s1648
    %v1650 = vpop.permute.xlu0 %1649
    %s1652 = sor.u32 256, 24
    %1653 = vbcast.lane.b32.xlu0 %v1639, %s1652
    %v1654 = vpop.permute.xlu0 %1653
    %s1656 = sor.u32 256, 32
    %1657 = vbcast.lane.b32.xlu0 %v1639, %s1656
    %v1658 = vpop.permute.xlu0 %1657
    %s1660 = sor.u32 256, 40
    %1661 = vbcast.lane.b32.xlu0 %v1639, %s1660
    %v1662 = vpop.permute.xlu0 %1661
    %s1664 = sor.u32 256, 48
    %1665 = vbcast.lane.b32.xlu0 %v1639, %s1664
    %v1666 = vpop.permute.xlu0 %1665
    %s1668 = sor.u32 256, 56
    %1669 = vbcast.lane.b32.xlu0 %v1639, %s1668
    %v1670 = vpop.permute.xlu0 %1669
    %s1672 = sor.u32 256, 64
    %1673 = vbcast.lane.b32.xlu0 %v1639, %s1672
    %v1674 = vpop.permute.xlu0 %1673
    %s1676 = sor.u32 256, 72
    %1677 = vbcast.lane.b32.xlu0 %v1639, %s1676
    %v1678 = vpop.permute.xlu0 %1677
    %s1680 = sor.u32 256, 80
    %1681 = vbcast.lane.b32.xlu0 %v1639, %s1680
    %v1682 = vpop.permute.xlu0 %1681
    %s1684 = sor.u32 256, 88
    %1685 = vbcast.lane.b32.xlu0 %v1639, %s1684
    %v1686 = vpop.permute.xlu0 %1685
    %s1688 = sor.u32 256, 96
    %1689 = vbcast.lane.b32.xlu0 %v1639, %s1688
    %v1690 = vpop.permute.xlu0 %1689
    %s1692 = sor.u32 256, 104
    %1693 = vbcast.lane.b32.xlu0 %v1639, %s1692
    %v1694 = vpop.permute.xlu0 %1693
    %s1696 = sor.u32 256, 112
    %1697 = vbcast.lane.b32.xlu0 %v1639, %s1696
    %v1698 = vpop.permute.xlu0 %1697
    %s1700 = sor.u32 256, 120
    %1701 = vbcast.lane.b32.xlu0 %v1639, %s1700
    %v1702 = vpop.permute.xlu0 %1701
    %v1703 = vlaneseq
    %v1704 = vshrl.u32 %v1703, 7
    %v1705 = vsub.s32 1, %v1704
    %v1706 = vrot.slane %v1564, %v1705
    %1708 = vbcast.lane.b32.xlu0 %v1706, 256
    %v1709 = vpop.permute.xlu0 %1708
    %s1711 = sor.u32 256, 8
    %1712 = vbcast.lane.b32.xlu0 %v1706, %s1711
    %v1713 = vpop.permute.xlu0 %1712
    %s1715 = sor.u32 256, 16
    %1716 = vbcast.lane.b32.xlu0 %v1706, %s1715
    %v1717 = vpop.permute.xlu0 %1716
    %s1719 = sor.u32 256, 24
    %1720 = vbcast.lane.b32.xlu0 %v1706, %s1719
    %v1721 = vpop.permute.xlu0 %1720
    %s1723 = sor.u32 256, 32
    %1724 = vbcast.lane.b32.xlu0 %v1706, %s1723
    %v1725 = vpop.permute.xlu0 %1724
    %s1727 = sor.u32 256, 40
    %1728 = vbcast.lane.b32.xlu0 %v1706, %s1727
    %v1729 = vpop.permute.xlu0 %1728
    %s1731 = sor.u32 256, 48
    %1732 = vbcast.lane.b32.xlu0 %v1706, %s1731
    %v1733 = vpop.permute.xlu0 %1732
    %s1735 = sor.u32 256, 56
    %1736 = vbcast.lane.b32.xlu0 %v1706, %s1735
    %v1737 = vpop.permute.xlu0 %1736
    %s1739 = sor.u32 256, 64
    %1740 = vbcast.lane.b32.xlu0 %v1706, %s1739
    %v1741 = vpop.permute.xlu0 %1740
    %s1743 = sor.u32 256, 72
    %1744 = vbcast.lane.b32.xlu0 %v1706, %s1743
    %v1745 = vpop.permute.xlu0 %1744
    %s1747 = sor.u32 256, 80
    %1748 = vbcast.lane.b32.xlu0 %v1706, %s1747
    %v1749 = vpop.permute.xlu0 %1748
    %s1751 = sor.u32 256, 88
    %1752 = vbcast.lane.b32.xlu0 %v1706, %s1751
    %v1753 = vpop.permute.xlu0 %1752
    %s1755 = sor.u32 256, 96
    %1756 = vbcast.lane.b32.xlu0 %v1706, %s1755
    %v1757 = vpop.permute.xlu0 %1756
    %s1759 = sor.u32 256, 104
    %1760 = vbcast.lane.b32.xlu0 %v1706, %s1759
    %v1761 = vpop.permute.xlu0 %1760
    %s1763 = sor.u32 256, 112
    %1764 = vbcast.lane.b32.xlu0 %v1706, %s1763
    %v1765 = vpop.permute.xlu0 %1764
    %s1767 = sor.u32 256, 120
    %1768 = vbcast.lane.b32.xlu0 %v1706, %s1767
    %v1769 = vpop.permute.xlu0 %1768
    %v1770 = vlaneseq
    %v1771 = vshrl.u32 %v1770, 7
    %v1772 = vsub.s32 1, %v1771
    %v1773 = vrot.slane %v1566, %v1772
    %1775 = vbcast.lane.b32.xlu0 %v1773, 256
    %v1776 = vpop.permute.xlu0 %1775
    %s1778 = sor.u32 256, 8
    %1779 = vbcast.lane.b32.xlu0 %v1773, %s1778
    %v1780 = vpop.permute.xlu0 %1779
    %s1782 = sor.u32 256, 16
    %1783 = vbcast.lane.b32.xlu0 %v1773, %s1782
    %v1784 = vpop.permute.xlu0 %1783
    %s1786 = sor.u32 256, 24
    %1787 = vbcast.lane.b32.xlu0 %v1773, %s1786
    %v1788 = vpop.permute.xlu0 %1787
    %s1790 = sor.u32 256, 32
    %1791 = vbcast.lane.b32.xlu0 %v1773, %s1790
    %v1792 = vpop.permute.xlu0 %1791
    %s1794 = sor.u32 256, 40
    %1795 = vbcast.lane.b32.xlu0 %v1773, %s1794
    %v1796 = vpop.permute.xlu0 %1795
    %s1798 = sor.u32 256, 48
    %1799 = vbcast.lane.b32.xlu0 %v1773, %s1798
    %v1800 = vpop.permute.xlu0 %1799
    %s1802 = sor.u32 256, 56
    %1803 = vbcast.lane.b32.xlu0 %v1773, %s1802
    %v1804 = vpop.permute.xlu0 %1803
    %s1806 = sor.u32 256, 64
    %1807 = vbcast.lane.b32.xlu0 %v1773, %s1806
    %v1808 = vpop.permute.xlu0 %1807
    %s1810 = sor.u32 256, 72
    %1811 = vbcast.lane.b32.xlu0 %v1773, %s1810
    %v1812 = vpop.permute.xlu0 %1811
    %s1814 = sor.u32 256, 80
    %1815 = vbcast.lane.b32.xlu0 %v1773, %s1814
    %v1816 = vpop.permute.xlu0 %1815
    %s1818 = sor.u32 256, 88
    %1819 = vbcast.lane.b32.xlu0 %v1773, %s1818
    %v1820 = vpop.permute.xlu0 %1819
    %s1822 = sor.u32 256, 96
    %1823 = vbcast.lane.b32.xlu0 %v1773, %s1822
    %v1824 = vpop.permute.xlu0 %1823
    %s1826 = sor.u32 256, 104
    %1827 = vbcast.lane.b32.xlu0 %v1773, %s1826
    %v1828 = vpop.permute.xlu0 %1827
    %s1830 = sor.u32 256, 112
    %1831 = vbcast.lane.b32.xlu0 %v1773, %s1830
    %v1832 = vpop.permute.xlu0 %1831
    %s1834 = sor.u32 256, 120
    %1835 = vbcast.lane.b32.xlu0 %v1773, %s1834
    %v1836 = vpop.permute.xlu0 %1835
    %v1837 = vlaneseq
    %v1838 = vshrl.u32 %v1837, 7
    %v1839 = vsub.s32 2, %v1838
    %v1840 = vrot.slane %v1564, %v1839
    %1842 = vbcast.lane.b32.xlu0 %v1840, 256
    %v1843 = vpop.permute.xlu0 %1842
    %s1845 = sor.u32 256, 8
    %1846 = vbcast.lane.b32.xlu0 %v1840, %s1845
    %v1847 = vpop.permute.xlu0 %1846
    %s1849 = sor.u32 256, 16
    %1850 = vbcast.lane.b32.xlu0 %v1840, %s1849
    %v1851 = vpop.permute.xlu0 %1850
    %s1853 = sor.u32 256, 24
    %1854 = vbcast.lane.b32.xlu0 %v1840, %s1853
    %v1855 = vpop.permute.xlu0 %1854
    %s1857 = sor.u32 256, 32
    %1858 = vbcast.lane.b32.xlu0 %v1840, %s1857
    %v1859 = vpop.permute.xlu0 %1858
    %s1861 = sor.u32 256, 40
    %1862 = vbcast.lane.b32.xlu0 %v1840, %s1861
    %v1863 = vpop.permute.xlu0 %1862
    %s1865 = sor.u32 256, 48
    %1866 = vbcast.lane.b32.xlu0 %v1840, %s1865
    %v1867 = vpop.permute.xlu0 %1866
    %s1869 = sor.u32 256, 56
    %1870 = vbcast.lane.b32.xlu0 %v1840, %s1869
    %v1871 = vpop.permute.xlu0 %1870
    %s1873 = sor.u32 256, 64
    %1874 = vbcast.lane.b32.xlu0 %v1840, %s1873
    %v1875 = vpop.permute.xlu0 %1874
    %s1877 = sor.u32 256, 72
    %1878 = vbcast.lane.b32.xlu0 %v1840, %s1877
    %v1879 = vpop.permute.xlu0 %1878
    %s1881 = sor.u32 256, 80
    %1882 = vbcast.lane.b32.xlu0 %v1840, %s1881
    %v1883 = vpop.permute.xlu0 %1882
    %s1885 = sor.u32 256, 88
    %1886 = vbcast.lane.b32.xlu0 %v1840, %s1885
    %v1887 = vpop.permute.xlu0 %1886
    %s1889 = sor.u32 256, 96
    %1890 = vbcast.lane.b32.xlu0 %v1840, %s1889
    %v1891 = vpop.permute.xlu0 %1890
    %s1893 = sor.u32 256, 104
    %1894 = vbcast.lane.b32.xlu0 %v1840, %s1893
    %v1895 = vpop.permute.xlu0 %1894
    %s1897 = sor.u32 256, 112
    %1898 = vbcast.lane.b32.xlu0 %v1840, %s1897
    %v1899 = vpop.permute.xlu0 %1898
    %s1901 = sor.u32 256, 120
    %1902 = vbcast.lane.b32.xlu0 %v1840, %s1901
    %v1903 = vpop.permute.xlu0 %1902
    %v1904 = vlaneseq
    %v1905 = vshrl.u32 %v1904, 7
    %v1906 = vsub.s32 2, %v1905
    %v1907 = vrot.slane %v1566, %v1906
    %1909 = vbcast.lane.b32.xlu0 %v1907, 256
    %v1910 = vpop.permute.xlu0 %1909
    %s1912 = sor.u32 256, 8
    %1913 = vbcast.lane.b32.xlu0 %v1907, %s1912
    %v1914 = vpop.permute.xlu0 %1913
    %s1916 = sor.u32 256, 16
    %1917 = vbcast.lane.b32.xlu0 %v1907, %s1916
    %v1918 = vpop.permute.xlu0 %1917
    %s1920 = sor.u32 256, 24
    %1921 = vbcast.lane.b32.xlu0 %v1907, %s1920
    %v1922 = vpop.permute.xlu0 %1921
    %s1924 = sor.u32 256, 32
    %1925 = vbcast.lane.b32.xlu0 %v1907, %s1924
    %v1926 = vpop.permute.xlu0 %1925
    %s1928 = sor.u32 256, 40
    %1929 = vbcast.lane.b32.xlu0 %v1907, %s1928
    %v1930 = vpop.permute.xlu0 %1929
    %s1932 = sor.u32 256, 48
    %1933 = vbcast.lane.b32.xlu0 %v1907, %s1932
    %v1934 = vpop.permute.xlu0 %1933
    %s1936 = sor.u32 256, 56
    %1937 = vbcast.lane.b32.xlu0 %v1907, %s1936
    %v1938 = vpop.permute.xlu0 %1937
    %s1940 = sor.u32 256, 64
    %1941 = vbcast.lane.b32.xlu0 %v1907, %s1940
    %v1942 = vpop.permute.xlu0 %1941
    %s1944 = sor.u32 256, 72
    %1945 = vbcast.lane.b32.xlu0 %v1907, %s1944
    %v1946 = vpop.permute.xlu0 %1945
    %s1948 = sor.u32 256, 80
    %1949 = vbcast.lane.b32.xlu0 %v1907, %s1948
    %v1950 = vpop.permute.xlu0 %1949
    %s1952 = sor.u32 256, 88
    %1953 = vbcast.lane.b32.xlu0 %v1907, %s1952
    %v1954 = vpop.permute.xlu0 %1953
    %s1956 = sor.u32 256, 96
    %1957 = vbcast.lane.b32.xlu0 %v1907, %s1956
    %v1958 = vpop.permute.xlu0 %1957
    %s1960 = sor.u32 256, 104
    %1961 = vbcast.lane.b32.xlu0 %v1907, %s1960
    %v1962 = vpop.permute.xlu0 %1961
    %s1964 = sor.u32 256, 112
    %1965 = vbcast.lane.b32.xlu0 %v1907, %s1964
    %v1966 = vpop.permute.xlu0 %1965
    %s1968 = sor.u32 256, 120
    %1969 = vbcast.lane.b32.xlu0 %v1907, %s1968
    %v1970 = vpop.permute.xlu0 %1969
    %v1971 = vlaneseq
    %v1972 = vshrl.u32 %v1971, 7
    %v1973 = vsub.s32 3, %v1972
    %v1974 = vrot.slane %v1564, %v1973
    %1976 = vbcast.lane.b32.xlu0 %v1974, 256
    %v1977 = vpop.permute.xlu0 %1976
    %s1979 = sor.u32 256, 8
    %1980 = vbcast.lane.b32.xlu0 %v1974, %s1979
    %v1981 = vpop.permute.xlu0 %1980
    %s1983 = sor.u32 256, 16
    %1984 = vbcast.lane.b32.xlu0 %v1974, %s1983
    %v1985 = vpop.permute.xlu0 %1984
    %s1987 = sor.u32 256, 24
    %1988 = vbcast.lane.b32.xlu0 %v1974, %s1987
    %v1989 = vpop.permute.xlu0 %1988
    %s1991 = sor.u32 256, 32
    %1992 = vbcast.lane.b32.xlu0 %v1974, %s1991
    %v1993 = vpop.permute.xlu0 %1992
    %s1995 = sor.u32 256, 40
    %1996 = vbcast.lane.b32.xlu0 %v1974, %s1995
    %v1997 = vpop.permute.xlu0 %1996
    %s1999 = sor.u32 256, 48
    %2000 = vbcast.lane.b32.xlu0 %v1974, %s1999
    %v2001 = vpop.permute.xlu0 %2000
    %s2003 = sor.u32 256, 56
    %2004 = vbcast.lane.b32.xlu0 %v1974, %s2003
    %v2005 = vpop.permute.xlu0 %2004
    %s2007 = sor.u32 256, 64
    %2008 = vbcast.lane.b32.xlu0 %v1974, %s2007
    %v2009 = vpop.permute.xlu0 %2008
    %s2011 = sor.u32 256, 72
    %2012 = vbcast.lane.b32.xlu0 %v1974, %s2011
    %v2013 = vpop.permute.xlu0 %2012
    %s2015 = sor.u32 256, 80
    %2016 = vbcast.lane.b32.xlu0 %v1974, %s2015
    %v2017 = vpop.permute.xlu0 %2016
    %s2019 = sor.u32 256, 88
    %2020 = vbcast.lane.b32.xlu0 %v1974, %s2019
    %v2021 = vpop.permute.xlu0 %2020
    %s2023 = sor.u32 256, 96
    %2024 = vbcast.lane.b32.xlu0 %v1974, %s2023
    %v2025 = vpop.permute.xlu0 %2024
    %s2027 = sor.u32 256, 104
    %2028 = vbcast.lane.b32.xlu0 %v1974, %s2027
    %v2029 = vpop.permute.xlu0 %2028
    %s2031 = sor.u32 256, 112
    %2032 = vbcast.lane.b32.xlu0 %v1974, %s2031
    %v2033 = vpop.permute.xlu0 %2032
    %s2035 = sor.u32 256, 120
    %2036 = vbcast.lane.b32.xlu0 %v1974, %s2035
    %v2037 = vpop.permute.xlu0 %2036
    %v2038 = vlaneseq
    %v2039 = vshrl.u32 %v2038, 7
    %v2040 = vsub.s32 3, %v2039
    %v2041 = vrot.slane %v1566, %v2040
    %2043 = vbcast.lane.b32.xlu0 %v2041, 256
    %v2044 = vpop.permute.xlu0 %2043
    %s2046 = sor.u32 256, 8
    %2047 = vbcast.lane.b32.xlu0 %v2041, %s2046
    %v2048 = vpop.permute.xlu0 %2047
    %s2050 = sor.u32 256, 16
    %2051 = vbcast.lane.b32.xlu0 %v2041, %s2050
    %v2052 = vpop.permute.xlu0 %2051
    %s2054 = sor.u32 256, 24
    %2055 = vbcast.lane.b32.xlu0 %v2041, %s2054
    %v2056 = vpop.permute.xlu0 %2055
    %s2058 = sor.u32 256, 32
    %2059 = vbcast.lane.b32.xlu0 %v2041, %s2058
    %v2060 = vpop.permute.xlu0 %2059
    %s2062 = sor.u32 256, 40
    %2063 = vbcast.lane.b32.xlu0 %v2041, %s2062
    %v2064 = vpop.permute.xlu0 %2063
    %s2066 = sor.u32 256, 48
    %2067 = vbcast.lane.b32.xlu0 %v2041, %s2066
    %v2068 = vpop.permute.xlu0 %2067
    %s2070 = sor.u32 256, 56
    %2071 = vbcast.lane.b32.xlu0 %v2041, %s2070
    %v2072 = vpop.permute.xlu0 %2071
    %s2074 = sor.u32 256, 64
    %2075 = vbcast.lane.b32.xlu0 %v2041, %s2074
    %v2076 = vpop.permute.xlu0 %2075
    %s2078 = sor.u32 256, 72
    %2079 = vbcast.lane.b32.xlu0 %v2041, %s2078
    %v2080 = vpop.permute.xlu0 %2079
    %s2082 = sor.u32 256, 80
    %2083 = vbcast.lane.b32.xlu0 %v2041, %s2082
    %v2084 = vpop.permute.xlu0 %2083
    %s2086 = sor.u32 256, 88
    %2087 = vbcast.lane.b32.xlu0 %v2041, %s2086
    %v2088 = vpop.permute.xlu0 %2087
    %s2090 = sor.u32 256, 96
    %2091 = vbcast.lane.b32.xlu0 %v2041, %s2090
    %v2092 = vpop.permute.xlu0 %2091
    %s2094 = sor.u32 256, 104
    %2095 = vbcast.lane.b32.xlu0 %v2041, %s2094
    %v2096 = vpop.permute.xlu0 %2095
    %s2098 = sor.u32 256, 112
    %2099 = vbcast.lane.b32.xlu0 %v2041, %s2098
    %v2100 = vpop.permute.xlu0 %2099
    %s2102 = sor.u32 256, 120
    %2103 = vbcast.lane.b32.xlu0 %v2041, %s2102
    %v2104 = vpop.permute.xlu0 %2103
    %v2105 = vlaneseq
    %v2106 = vshrl.u32 %v2105, 7
    %v2107 = vsub.s32 4, %v2106
    %v2108 = vrot.slane %v1564, %v2107
    %2110 = vbcast.lane.b32.xlu0 %v2108, 256
    %v2111 = vpop.permute.xlu0 %2110
    %s2113 = sor.u32 256, 8
    %2114 = vbcast.lane.b32.xlu0 %v2108, %s2113
    %v2115 = vpop.permute.xlu0 %2114
    %s2117 = sor.u32 256, 16
    %2118 = vbcast.lane.b32.xlu0 %v2108, %s2117
    %v2119 = vpop.permute.xlu0 %2118
    %s2121 = sor.u32 256, 24
    %2122 = vbcast.lane.b32.xlu0 %v2108, %s2121
    %v2123 = vpop.permute.xlu0 %2122
    %s2125 = sor.u32 256, 32
    %2126 = vbcast.lane.b32.xlu0 %v2108, %s2125
    %v2127 = vpop.permute.xlu0 %2126
    %s2129 = sor.u32 256, 40
    %2130 = vbcast.lane.b32.xlu0 %v2108, %s2129
    %v2131 = vpop.permute.xlu0 %2130
    %s2133 = sor.u32 256, 48
    %2134 = vbcast.lane.b32.xlu0 %v2108, %s2133
    %v2135 = vpop.permute.xlu0 %2134
    %s2137 = sor.u32 256, 56
    %2138 = vbcast.lane.b32.xlu0 %v2108, %s2137
    %v2139 = vpop.permute.xlu0 %2138
    %s2141 = sor.u32 256, 64
    %2142 = vbcast.lane.b32.xlu0 %v2108, %s2141
    %v2143 = vpop.permute.xlu0 %2142
    %s2145 = sor.u32 256, 72
    %2146 = vbcast.lane.b32.xlu0 %v2108, %s2145
    %v2147 = vpop.permute.xlu0 %2146
    %s2149 = sor.u32 256, 80
    %2150 = vbcast.lane.b32.xlu0 %v2108, %s2149
    %v2151 = vpop.permute.xlu0 %2150
    %s2153 = sor.u32 256, 88
    %2154 = vbcast.lane.b32.xlu0 %v2108, %s2153
    %v2155 = vpop.permute.xlu0 %2154
    %s2157 = sor.u32 256, 96
    %2158 = vbcast.lane.b32.xlu0 %v2108, %s2157
    %v2159 = vpop.permute.xlu0 %2158
    %s2161 = sor.u32 256, 104
    %2162 = vbcast.lane.b32.xlu0 %v2108, %s2161
    %v2163 = vpop.permute.xlu0 %2162
    %s2165 = sor.u32 256, 112
    %2166 = vbcast.lane.b32.xlu0 %v2108, %s2165
    %v2167 = vpop.permute.xlu0 %2166
    %s2169 = sor.u32 256, 120
    %2170 = vbcast.lane.b32.xlu0 %v2108, %s2169
    %v2171 = vpop.permute.xlu0 %2170
    %v2172 = vlaneseq
    %v2173 = vshrl.u32 %v2172, 7
    %v2174 = vsub.s32 4, %v2173
    %v2175 = vrot.slane %v1566, %v2174
    %2177 = vbcast.lane.b32.xlu0 %v2175, 256
    %v2178 = vpop.permute.xlu0 %2177
    %s2180 = sor.u32 256, 8
    %2181 = vbcast.lane.b32.xlu0 %v2175, %s2180
    %v2182 = vpop.permute.xlu0 %2181
    %s2184 = sor.u32 256, 16
    %2185 = vbcast.lane.b32.xlu0 %v2175, %s2184
    %v2186 = vpop.permute.xlu0 %2185
    %s2188 = sor.u32 256, 24
    %2189 = vbcast.lane.b32.xlu0 %v2175, %s2188
    %v2190 = vpop.permute.xlu0 %2189
    %s2192 = sor.u32 256, 32
    %2193 = vbcast.lane.b32.xlu0 %v2175, %s2192
    %v2194 = vpop.permute.xlu0 %2193
    %s2196 = sor.u32 256, 40
    %2197 = vbcast.lane.b32.xlu0 %v2175, %s2196
    %v2198 = vpop.permute.xlu0 %2197
    %s2200 = sor.u32 256, 48
    %2201 = vbcast.lane.b32.xlu0 %v2175, %s2200
    %v2202 = vpop.permute.xlu0 %2201
    %s2204 = sor.u32 256, 56
    %2205 = vbcast.lane.b32.xlu0 %v2175, %s2204
    %v2206 = vpop.permute.xlu0 %2205
    %s2208 = sor.u32 256, 64
    %2209 = vbcast.lane.b32.xlu0 %v2175, %s2208
    %v2210 = vpop.permute.xlu0 %2209
    %s2212 = sor.u32 256, 72
    %2213 = vbcast.lane.b32.xlu0 %v2175, %s2212
    %v2214 = vpop.permute.xlu0 %2213
    %s2216 = sor.u32 256, 80
    %2217 = vbcast.lane.b32.xlu0 %v2175, %s2216
    %v2218 = vpop.permute.xlu0 %2217
    %s2220 = sor.u32 256, 88
    %2221 = vbcast.lane.b32.xlu0 %v2175, %s2220
    %v2222 = vpop.permute.xlu0 %2221
    %s2224 = sor.u32 256, 96
    %2225 = vbcast.lane.b32.xlu0 %v2175, %s2224
    %v2226 = vpop.permute.xlu0 %2225
    %s2228 = sor.u32 256, 104
    %2229 = vbcast.lane.b32.xlu0 %v2175, %s2228
    %v2230 = vpop.permute.xlu0 %2229
    %s2232 = sor.u32 256, 112
    %2233 = vbcast.lane.b32.xlu0 %v2175, %s2232
    %v2234 = vpop.permute.xlu0 %2233
    %s2236 = sor.u32 256, 120
    %2237 = vbcast.lane.b32.xlu0 %v2175, %s2236
    %v2238 = vpop.permute.xlu0 %2237
    %v2239 = vlaneseq
    %v2240 = vshrl.u32 %v2239, 7
    %v2241 = vsub.s32 5, %v2240
    %v2242 = vrot.slane %v1564, %v2241
    %2244 = vbcast.lane.b32.xlu0 %v2242, 256
    %v2245 = vpop.permute.xlu0 %2244
    %s2247 = sor.u32 256, 8
    %2248 = vbcast.lane.b32.xlu0 %v2242, %s2247
    %v2249 = vpop.permute.xlu0 %2248
    %s2251 = sor.u32 256, 16
    %2252 = vbcast.lane.b32.xlu0 %v2242, %s2251
    %v2253 = vpop.permute.xlu0 %2252
    %s2255 = sor.u32 256, 24
    %2256 = vbcast.lane.b32.xlu0 %v2242, %s2255
    %v2257 = vpop.permute.xlu0 %2256
    %s2259 = sor.u32 256, 32
    %2260 = vbcast.lane.b32.xlu0 %v2242, %s2259
    %v2261 = vpop.permute.xlu0 %2260
    %s2263 = sor.u32 256, 40
    %2264 = vbcast.lane.b32.xlu0 %v2242, %s2263
    %v2265 = vpop.permute.xlu0 %2264
    %s2267 = sor.u32 256, 48
    %2268 = vbcast.lane.b32.xlu0 %v2242, %s2267
    %v2269 = vpop.permute.xlu0 %2268
    %s2271 = sor.u32 256, 56
    %2272 = vbcast.lane.b32.xlu0 %v2242, %s2271
    %v2273 = vpop.permute.xlu0 %2272
    %s2275 = sor.u32 256, 64
    %2276 = vbcast.lane.b32.xlu0 %v2242, %s2275
    %v2277 = vpop.permute.xlu0 %2276
    %s2279 = sor.u32 256, 72
    %2280 = vbcast.lane.b32.xlu0 %v2242, %s2279
    %v2281 = vpop.permute.xlu0 %2280
    %s2283 = sor.u32 256, 80
    %2284 = vbcast.lane.b32.xlu0 %v2242, %s2283
    %v2285 = vpop.permute.xlu0 %2284
    %s2287 = sor.u32 256, 88
    %2288 = vbcast.lane.b32.xlu0 %v2242, %s2287
    %v2289 = vpop.permute.xlu0 %2288
    %s2291 = sor.u32 256, 96
    %2292 = vbcast.lane.b32.xlu0 %v2242, %s2291
    %v2293 = vpop.permute.xlu0 %2292
    %s2295 = sor.u32 256, 104
    %2296 = vbcast.lane.b32.xlu0 %v2242, %s2295
    %v2297 = vpop.permute.xlu0 %2296
    %s2299 = sor.u32 256, 112
    %2300 = vbcast.lane.b32.xlu0 %v2242, %s2299
    %v2301 = vpop.permute.xlu0 %2300
    %s2303 = sor.u32 256, 120
    %2304 = vbcast.lane.b32.xlu0 %v2242, %s2303
    %v2305 = vpop.permute.xlu0 %2304
    %v2306 = vlaneseq
    %v2307 = vshrl.u32 %v2306, 7
    %v2308 = vsub.s32 5, %v2307
    %v2309 = vrot.slane %v1566, %v2308
    %2311 = vbcast.lane.b32.xlu0 %v2309, 256
    %v2312 = vpop.permute.xlu0 %2311
    %s2314 = sor.u32 256, 8
    %2315 = vbcast.lane.b32.xlu0 %v2309, %s2314
    %v2316 = vpop.permute.xlu0 %2315
    %s2318 = sor.u32 256, 16
    %2319 = vbcast.lane.b32.xlu0 %v2309, %s2318
    %v2320 = vpop.permute.xlu0 %2319
    %s2322 = sor.u32 256, 24
    %2323 = vbcast.lane.b32.xlu0 %v2309, %s2322
    %v2324 = vpop.permute.xlu0 %2323
    %s2326 = sor.u32 256, 32
    %2327 = vbcast.lane.b32.xlu0 %v2309, %s2326
    %v2328 = vpop.permute.xlu0 %2327
    %s2330 = sor.u32 256, 40
    %2331 = vbcast.lane.b32.xlu0 %v2309, %s2330
    %v2332 = vpop.permute.xlu0 %2331
    %s2334 = sor.u32 256, 48
    %2335 = vbcast.lane.b32.xlu0 %v2309, %s2334
    %v2336 = vpop.permute.xlu0 %2335
    %s2338 = sor.u32 256, 56
    %2339 = vbcast.lane.b32.xlu0 %v2309, %s2338
    %v2340 = vpop.permute.xlu0 %2339
    %s2342 = sor.u32 256, 64
    %2343 = vbcast.lane.b32.xlu0 %v2309, %s2342
    %v2344 = vpop.permute.xlu0 %2343
    %s2346 = sor.u32 256, 72
    %2347 = vbcast.lane.b32.xlu0 %v2309, %s2346
    %v2348 = vpop.permute.xlu0 %2347
    %s2350 = sor.u32 256, 80
    %2351 = vbcast.lane.b32.xlu0 %v2309, %s2350
    %v2352 = vpop.permute.xlu0 %2351
    %s2354 = sor.u32 256, 88
    %2355 = vbcast.lane.b32.xlu0 %v2309, %s2354
    %v2356 = vpop.permute.xlu0 %2355
    %s2358 = sor.u32 256, 96
    %2359 = vbcast.lane.b32.xlu0 %v2309, %s2358
    %v2360 = vpop.permute.xlu0 %2359
    %s2362 = sor.u32 256, 104
    %2363 = vbcast.lane.b32.xlu0 %v2309, %s2362
    %v2364 = vpop.permute.xlu0 %2363
    %s2366 = sor.u32 256, 112
    %2367 = vbcast.lane.b32.xlu0 %v2309, %s2366
    %v2368 = vpop.permute.xlu0 %2367
    %s2370 = sor.u32 256, 120
    %2371 = vbcast.lane.b32.xlu0 %v2309, %s2370
    %v2372 = vpop.permute.xlu0 %2371
    %v2373 = vlaneseq
    %v2374 = vshrl.u32 %v2373, 7
    %v2375 = vsub.s32 6, %v2374
    %v2376 = vrot.slane %v1564, %v2375
    %2378 = vbcast.lane.b32.xlu0 %v2376, 256
    %v2379 = vpop.permute.xlu0 %2378
    %s2381 = sor.u32 256, 8
    %2382 = vbcast.lane.b32.xlu0 %v2376, %s2381
    %v2383 = vpop.permute.xlu0 %2382
    %s2385 = sor.u32 256, 16
    %2386 = vbcast.lane.b32.xlu0 %v2376, %s2385
    %v2387 = vpop.permute.xlu0 %2386
    %s2389 = sor.u32 256, 24
    %2390 = vbcast.lane.b32.xlu0 %v2376, %s2389
    %v2391 = vpop.permute.xlu0 %2390
    %s2393 = sor.u32 256, 32
    %2394 = vbcast.lane.b32.xlu0 %v2376, %s2393
    %v2395 = vpop.permute.xlu0 %2394
    %s2397 = sor.u32 256, 40
    %2398 = vbcast.lane.b32.xlu0 %v2376, %s2397
    %v2399 = vpop.permute.xlu0 %2398
    %s2401 = sor.u32 256, 48
    %2402 = vbcast.lane.b32.xlu0 %v2376, %s2401
    %v2403 = vpop.permute.xlu0 %2402
    %s2405 = sor.u32 256, 56
    %2406 = vbcast.lane.b32.xlu0 %v2376, %s2405
    %v2407 = vpop.permute.xlu0 %2406
    %s2409 = sor.u32 256, 64
    %2410 = vbcast.lane.b32.xlu0 %v2376, %s2409
    %v2411 = vpop.permute.xlu0 %2410
    %s2413 = sor.u32 256, 72
    %2414 = vbcast.lane.b32.xlu0 %v2376, %s2413
    %v2415 = vpop.permute.xlu0 %2414
    %s2417 = sor.u32 256, 80
    %2418 = vbcast.lane.b32.xlu0 %v2376, %s2417
    %v2419 = vpop.permute.xlu0 %2418
    %s2421 = sor.u32 256, 88
    %2422 = vbcast.lane.b32.xlu0 %v2376, %s2421
    %v2423 = vpop.permute.xlu0 %2422
    %s2425 = sor.u32 256, 96
    %2426 = vbcast.lane.b32.xlu0 %v2376, %s2425
    %v2427 = vpop.permute.xlu0 %2426
    %s2429 = sor.u32 256, 104
    %2430 = vbcast.lane.b32.xlu0 %v2376, %s2429
    %v2431 = vpop.permute.xlu0 %2430
    %s2433 = sor.u32 256, 112
    %2434 = vbcast.lane.b32.xlu0 %v2376, %s2433
    %v2435 = vpop.permute.xlu0 %2434
    %s2437 = sor.u32 256, 120
    %2438 = vbcast.lane.b32.xlu0 %v2376, %s2437
    %v2439 = vpop.permute.xlu0 %2438
    %v2440 = vlaneseq
    %v2441 = vshrl.u32 %v2440, 7
    %v2442 = vsub.s32 6, %v2441
    %v2443 = vrot.slane %v1566, %v2442
    %2445 = vbcast.lane.b32.xlu0 %v2443, 256
    %v2446 = vpop.permute.xlu0 %2445
    %s2448 = sor.u32 256, 8
    %2449 = vbcast.lane.b32.xlu0 %v2443, %s2448
    %v2450 = vpop.permute.xlu0 %2449
    %s2452 = sor.u32 256, 16
    %2453 = vbcast.lane.b32.xlu0 %v2443, %s2452
    %v2454 = vpop.permute.xlu0 %2453
    %s2456 = sor.u32 256, 24
    %2457 = vbcast.lane.b32.xlu0 %v2443, %s2456
    %v2458 = vpop.permute.xlu0 %2457
    %s2460 = sor.u32 256, 32
    %2461 = vbcast.lane.b32.xlu0 %v2443, %s2460
    %v2462 = vpop.permute.xlu0 %2461
    %s2464 = sor.u32 256, 40
    %2465 = vbcast.lane.b32.xlu0 %v2443, %s2464
    %v2466 = vpop.permute.xlu0 %2465
    %s2468 = sor.u32 256, 48
    %2469 = vbcast.lane.b32.xlu0 %v2443, %s2468
    %v2470 = vpop.permute.xlu0 %2469
    %s2472 = sor.u32 256, 56
    %2473 = vbcast.lane.b32.xlu0 %v2443, %s2472
    %v2474 = vpop.permute.xlu0 %2473
    %s2476 = sor.u32 256, 64
    %2477 = vbcast.lane.b32.xlu0 %v2443, %s2476
    %v2478 = vpop.permute.xlu0 %2477
    %s2480 = sor.u32 256, 72
    %2481 = vbcast.lane.b32.xlu0 %v2443, %s2480
    %v2482 = vpop.permute.xlu0 %2481
    %s2484 = sor.u32 256, 80
    %2485 = vbcast.lane.b32.xlu0 %v2443, %s2484
    %v2486 = vpop.permute.xlu0 %2485
    %s2488 = sor.u32 256, 88
    %2489 = vbcast.lane.b32.xlu0 %v2443, %s2488
    %v2490 = vpop.permute.xlu0 %2489
    %s2492 = sor.u32 256, 96
    %2493 = vbcast.lane.b32.xlu0 %v2443, %s2492
    %v2494 = vpop.permute.xlu0 %2493
    %s2496 = sor.u32 256, 104
    %2497 = vbcast.lane.b32.xlu0 %v2443, %s2496
    %v2498 = vpop.permute.xlu0 %2497
    %s2500 = sor.u32 256, 112
    %2501 = vbcast.lane.b32.xlu0 %v2443, %s2500
    %v2502 = vpop.permute.xlu0 %2501
    %s2504 = sor.u32 256, 120
    %2505 = vbcast.lane.b32.xlu0 %v2443, %s2504
    %v2506 = vpop.permute.xlu0 %2505
    %v2507 = vlaneseq
    %v2508 = vshrl.u32 %v2507, 7
    %v2509 = vsub.s32 7, %v2508
    %v2510 = vrot.slane %v1564, %v2509
    %2512 = vbcast.lane.b32.xlu0 %v2510, 256
    %v2513 = vpop.permute.xlu0 %2512
    %s2515 = sor.u32 256, 8
    %2516 = vbcast.lane.b32.xlu0 %v2510, %s2515
    %v2517 = vpop.permute.xlu0 %2516
    %s2519 = sor.u32 256, 16
    %2520 = vbcast.lane.b32.xlu0 %v2510, %s2519
    %v2521 = vpop.permute.xlu0 %2520
    %s2523 = sor.u32 256, 24
    %2524 = vbcast.lane.b32.xlu0 %v2510, %s2523
    %v2525 = vpop.permute.xlu0 %2524
    %s2527 = sor.u32 256, 32
    %2528 = vbcast.lane.b32.xlu0 %v2510, %s2527
    %v2529 = vpop.permute.xlu0 %2528
    %s2531 = sor.u32 256, 40
    %2532 = vbcast.lane.b32.xlu0 %v2510, %s2531
    %v2533 = vpop.permute.xlu0 %2532
    %s2535 = sor.u32 256, 48
    %2536 = vbcast.lane.b32.xlu0 %v2510, %s2535
    %v2537 = vpop.permute.xlu0 %2536
    %s2539 = sor.u32 256, 56
    %2540 = vbcast.lane.b32.xlu0 %v2510, %s2539
    %v2541 = vpop.permute.xlu0 %2540
    %s2543 = sor.u32 256, 64
    %2544 = vbcast.lane.b32.xlu0 %v2510, %s2543
    %v2545 = vpop.permute.xlu0 %2544
    %s2547 = sor.u32 256, 72
    %2548 = vbcast.lane.b32.xlu0 %v2510, %s2547
    %v2549 = vpop.permute.xlu0 %2548
    %s2551 = sor.u32 256, 80
    %2552 = vbcast.lane.b32.xlu0 %v2510, %s2551
    %v2553 = vpop.permute.xlu0 %2552
    %s2555 = sor.u32 256, 88
    %2556 = vbcast.lane.b32.xlu0 %v2510, %s2555
    %v2557 = vpop.permute.xlu0 %2556
    %s2559 = sor.u32 256, 96
    %2560 = vbcast.lane.b32.xlu0 %v2510, %s2559
    %v2561 = vpop.permute.xlu0 %2560
    %s2563 = sor.u32 256, 104
    %2564 = vbcast.lane.b32.xlu0 %v2510, %s2563
    %v2565 = vpop.permute.xlu0 %2564
    %s2567 = sor.u32 256, 112
    %2568 = vbcast.lane.b32.xlu0 %v2510, %s2567
    %v2569 = vpop.permute.xlu0 %2568
    %s2571 = sor.u32 256, 120
    %2572 = vbcast.lane.b32.xlu0 %v2510, %s2571
    %v2573 = vpop.permute.xlu0 %2572
    %v2574 = vlaneseq
    %v2575 = vshrl.u32 %v2574, 7
    %v2576 = vsub.s32 7, %v2575
    %v2577 = vrot.slane %v1566, %v2576
    %2579 = vbcast.lane.b32.xlu0 %v2577, 256
    %v2580 = vpop.permute.xlu0 %2579
    %s2582 = sor.u32 256, 8
    %2583 = vbcast.lane.b32.xlu0 %v2577, %s2582
    %v2584 = vpop.permute.xlu0 %2583
    %s2586 = sor.u32 256, 16
    %2587 = vbcast.lane.b32.xlu0 %v2577, %s2586
    %v2588 = vpop.permute.xlu0 %2587
    %s2590 = sor.u32 256, 24
    %2591 = vbcast.lane.b32.xlu0 %v2577, %s2590
    %v2592 = vpop.permute.xlu0 %2591
    %s2594 = sor.u32 256, 32
    %2595 = vbcast.lane.b32.xlu0 %v2577, %s2594
    %v2596 = vpop.permute.xlu0 %2595
    %s2598 = sor.u32 256, 40
    %2599 = vbcast.lane.b32.xlu0 %v2577, %s2598
    %v2600 = vpop.permute.xlu0 %2599
    %s2602 = sor.u32 256, 48
    %2603 = vbcast.lane.b32.xlu0 %v2577, %s2602
    %v2604 = vpop.permute.xlu0 %2603
    %s2606 = sor.u32 256, 56
    %2607 = vbcast.lane.b32.xlu0 %v2577, %s2606
    %v2608 = vpop.permute.xlu0 %2607
    %s2610 = sor.u32 256, 64
    %2611 = vbcast.lane.b32.xlu0 %v2577, %s2610
    %v2612 = vpop.permute.xlu0 %2611
    %s2614 = sor.u32 256, 72
    %2615 = vbcast.lane.b32.xlu0 %v2577, %s2614
    %v2616 = vpop.permute.xlu0 %2615
    %s2618 = sor.u32 256, 80
    %2619 = vbcast.lane.b32.xlu0 %v2577, %s2618
    %v2620 = vpop.permute.xlu0 %2619
    %s2622 = sor.u32 256, 88
    %2623 = vbcast.lane.b32.xlu0 %v2577, %s2622
    %v2624 = vpop.permute.xlu0 %2623
    %s2626 = sor.u32 256, 96
    %2627 = vbcast.lane.b32.xlu0 %v2577, %s2626
    %v2628 = vpop.permute.xlu0 %2627
    %s2630 = sor.u32 256, 104
    %2631 = vbcast.lane.b32.xlu0 %v2577, %s2630
    %v2632 = vpop.permute.xlu0 %2631
    %s2634 = sor.u32 256, 112
    %2635 = vbcast.lane.b32.xlu0 %v2577, %s2634
    %v2636 = vpop.permute.xlu0 %2635
    %s2638 = sor.u32 256, 120
    %2639 = vbcast.lane.b32.xlu0 %v2577, %s2638
    %v2640 = vpop.permute.xlu0 %2639
    %v2897 = vmul.f32 %v917, %v1575
    %v2898 = vmul.f32 %v919, %v1579
    %v2899 = vmul.f32 %v921, %v1583
    %v2900 = vmul.f32 %v923, %v1587
    %v2901 = vmul.f32 %v925, %v1591
    %v2902 = vmul.f32 %v927, %v1595
    %v2903 = vmul.f32 %v929, %v1599
    %v2904 = vmul.f32 %v931, %v1603
    %v2905 = vmul.f32 %v933, %v1607
    %v2906 = vmul.f32 %v935, %v1611
    %v2907 = vmul.f32 %v937, %v1615
    %v2908 = vmul.f32 %v939, %v1619
    %v2909 = vmul.f32 %v941, %v1623
    %v2910 = vmul.f32 %v943, %v1627
    %v2911 = vmul.f32 %v945, %v1631
    %v2912 = vmul.f32 %v947, %v1635
    %v2913 = vmul.f32 %v949, %v1642
    %v2914 = vmul.f32 %v951, %v1646
    %v2915 = vmul.f32 %v953, %v1650
    %v2916 = vmul.f32 %v955, %v1654
    %v2917 = vmul.f32 %v957, %v1658
    %v2918 = vmul.f32 %v959, %v1662
    %v2919 = vmul.f32 %v961, %v1666
    %v2920 = vmul.f32 %v963, %v1670
    %v2921 = vmul.f32 %v965, %v1674
    %v2922 = vmul.f32 %v967, %v1678
    %v2923 = vmul.f32 %v969, %v1682
    %v2924 = vmul.f32 %v971, %v1686
    %v2925 = vmul.f32 %v973, %v1690
    %v2926 = vmul.f32 %v975, %v1694
    %v2927 = vmul.f32 %v977, %v1698
    %v2928 = vmul.f32 %v979, %v1702
    %v2929 = vmul.f32 %v981, %v1709
    %v2930 = vmul.f32 %v983, %v1713
    %v2931 = vmul.f32 %v985, %v1717
    %v2932 = vmul.f32 %v987, %v1721
    %v2933 = vmul.f32 %v989, %v1725
    %v2934 = vmul.f32 %v991, %v1729
    %v2935 = vmul.f32 %v993, %v1733
    %v2936 = vmul.f32 %v995, %v1737
    %v2937 = vmul.f32 %v997, %v1741
    %v2938 = vmul.f32 %v999, %v1745
    %v2939 = vmul.f32 %v1001, %v1749
    %v2940 = vmul.f32 %v1003, %v1753
    %v2941 = vmul.f32 %v1005, %v1757
    %v2942 = vmul.f32 %v1007, %v1761
    %v2943 = vmul.f32 %v1009, %v1765
    %v2944 = vmul.f32 %v1011, %v1769
    %v2945 = vmul.f32 %v1013, %v1776
    %v2946 = vmul.f32 %v1015, %v1780
    %v2947 = vmul.f32 %v1017, %v1784
    %v2948 = vmul.f32 %v1019, %v1788
    %v2949 = vmul.f32 %v1021, %v1792
    %v2950 = vmul.f32 %v1023, %v1796
    %v2951 = vmul.f32 %v1025, %v1800
    %v2952 = vmul.f32 %v1027, %v1804
    %v2953 = vmul.f32 %v1029, %v1808
    %v2954 = vmul.f32 %v1031, %v1812
    %v2955 = vmul.f32 %v1033, %v1816
    %v2956 = vmul.f32 %v1035, %v1820
    %v2957 = vmul.f32 %v1037, %v1824
    %v2958 = vmul.f32 %v1039, %v1828
    %v2959 = vmul.f32 %v1041, %v1832
    %v2960 = vmul.f32 %v1043, %v1836
    %v2961 = vmul.f32 %v1045, %v1843
    %v2962 = vmul.f32 %v1047, %v1847
    %v2963 = vmul.f32 %v1049, %v1851
    %v2964 = vmul.f32 %v1051, %v1855
    %v2965 = vmul.f32 %v1053, %v1859
    %v2966 = vmul.f32 %v1055, %v1863
    %v2967 = vmul.f32 %v1057, %v1867
    %v2968 = vmul.f32 %v1059, %v1871
    %v2969 = vmul.f32 %v1061, %v1875
    %v2970 = vmul.f32 %v1063, %v1879
    %v2971 = vmul.f32 %v1065, %v1883
    %v2972 = vmul.f32 %v1067, %v1887
    %v2973 = vmul.f32 %v1069, %v1891
    %v2974 = vmul.f32 %v1071, %v1895
    %v2975 = vmul.f32 %v1073, %v1899
    %v2976 = vmul.f32 %v1075, %v1903
    %v2977 = vmul.f32 %v1077, %v1910
    %v2978 = vmul.f32 %v1079, %v1914
    %v2979 = vmul.f32 %v1081, %v1918
    %v2980 = vmul.f32 %v1083, %v1922
    %v2981 = vmul.f32 %v1085, %v1926
    %v2982 = vmul.f32 %v1087, %v1930
    %v2983 = vmul.f32 %v1089, %v1934
    %v2984 = vmul.f32 %v1091, %v1938
    %v2985 = vmul.f32 %v1093, %v1942
    %v2986 = vmul.f32 %v1095, %v1946
    %v2987 = vmul.f32 %v1097, %v1950
    %v2988 = vmul.f32 %v1099, %v1954
    %v2989 = vmul.f32 %v1101, %v1958
    %v2990 = vmul.f32 %v1103, %v1962
    %v2991 = vmul.f32 %v1105, %v1966
    %v2992 = vmul.f32 %v1107, %v1970
    %v2993 = vmul.f32 %v1109, %v1977
    %v2994 = vmul.f32 %v1111, %v1981
    %v2995 = vmul.f32 %v1113, %v1985
    %v2996 = vmul.f32 %v1115, %v1989
    %v2997 = vmul.f32 %v1117, %v1993
    %v2998 = vmul.f32 %v1119, %v1997
    %v2999 = vmul.f32 %v1121, %v2001
    %v3000 = vmul.f32 %v1123, %v2005
    %v3001 = vmul.f32 %v1125, %v2009
    %v3002 = vmul.f32 %v1127, %v2013
    %v3003 = vmul.f32 %v1129, %v2017
    %v3004 = vmul.f32 %v1131, %v2021
    %v3005 = vmul.f32 %v1133, %v2025
    %v3006 = vmul.f32 %v1135, %v2029
    %v3007 = vmul.f32 %v1137, %v2033
    %v3008 = vmul.f32 %v1139, %v2037
    %v3009 = vmul.f32 %v1141, %v2044
    %v3010 = vmul.f32 %v1143, %v2048
    %v3011 = vmul.f32 %v1145, %v2052
    %v3012 = vmul.f32 %v1147, %v2056
    %v3013 = vmul.f32 %v1149, %v2060
    %v3014 = vmul.f32 %v1151, %v2064
    %v3015 = vmul.f32 %v1153, %v2068
    %v3016 = vmul.f32 %v1155, %v2072
    %v3017 = vmul.f32 %v1157, %v2076
    %v3018 = vmul.f32 %v1159, %v2080
    %v3019 = vmul.f32 %v1161, %v2084
    %v3020 = vmul.f32 %v1163, %v2088
    %v3021 = vmul.f32 %v1165, %v2092
    %v3022 = vmul.f32 %v1167, %v2096
    %v3023 = vmul.f32 %v1169, %v2100
    %v3024 = vmul.f32 %v1171, %v2104
    %v3025 = vmul.f32 %v1173, %v2111
    %v3026 = vmul.f32 %v1175, %v2115
    %v3027 = vmul.f32 %v1177, %v2119
    %v3028 = vmul.f32 %v1179, %v2123
    %v3029 = vmul.f32 %v1181, %v2127
    %v3030 = vmul.f32 %v1183, %v2131
    %v3031 = vmul.f32 %v1185, %v2135
    %v3032 = vmul.f32 %v1187, %v2139
    %v3033 = vmul.f32 %v1189, %v2143
    %v3034 = vmul.f32 %v1191, %v2147
    %v3035 = vmul.f32 %v1193, %v2151
    %v3036 = vmul.f32 %v1195, %v2155
    %v3037 = vmul.f32 %v1197, %v2159
    %v3038 = vmul.f32 %v1199, %v2163
    %v3039 = vmul.f32 %v1201, %v2167
    %v3040 = vmul.f32 %v1203, %v2171
    %v3041 = vmul.f32 %v1205, %v2178
    %v3042 = vmul.f32 %v1207, %v2182
    %v3043 = vmul.f32 %v1209, %v2186
    %v3044 = vmul.f32 %v1211, %v2190
    %v3045 = vmul.f32 %v1213, %v2194
    %v3046 = vmul.f32 %v1215, %v2198
    %v3047 = vmul.f32 %v1217, %v2202
    %v3048 = vmul.f32 %v1219, %v2206
    %v3049 = vmul.f32 %v1221, %v2210
    %v3050 = vmul.f32 %v1223, %v2214
    %v3051 = vmul.f32 %v1225, %v2218
    %v3052 = vmul.f32 %v1227, %v2222
    %v3053 = vmul.f32 %v1229, %v2226
    %v3054 = vmul.f32 %v1231, %v2230
    %v3055 = vmul.f32 %v1233, %v2234
    %v3056 = vmul.f32 %v1235, %v2238
    %v3057 = vmul.f32 %v1237, %v2245
    %v3058 = vmul.f32 %v1239, %v2249
    %v3059 = vmul.f32 %v1241, %v2253
    %v3060 = vmul.f32 %v1243, %v2257
    %v3061 = vmul.f32 %v1245, %v2261
    %v3062 = vmul.f32 %v1247, %v2265
    %v3063 = vmul.f32 %v1249, %v2269
    %v3064 = vmul.f32 %v1251, %v2273
    %v3065 = vmul.f32 %v1253, %v2277
    %v3066 = vmul.f32 %v1255, %v2281
    %v3067 = vmul.f32 %v1257, %v2285
    %v3068 = vmul.f32 %v1259, %v2289
    %v3069 = vmul.f32 %v1261, %v2293
    %v3070 = vmul.f32 %v1263, %v2297
    %v3071 = vmul.f32 %v1265, %v2301
    %v3072 = vmul.f32 %v1267, %v2305
    %v3073 = vmul.f32 %v1269, %v2312
    %v3074 = vmul.f32 %v1271, %v2316
    %v3075 = vmul.f32 %v1273, %v2320
    %v3076 = vmul.f32 %v1275, %v2324
    %v3077 = vmul.f32 %v1277, %v2328
    %v3078 = vmul.f32 %v1279, %v2332
    %v3079 = vmul.f32 %v1281, %v2336
    %v3080 = vmul.f32 %v1283, %v2340
    %v3081 = vmul.f32 %v1285, %v2344
    %v3082 = vmul.f32 %v1287, %v2348
    %v3083 = vmul.f32 %v1289, %v2352
    %v3084 = vmul.f32 %v1291, %v2356
    %v3085 = vmul.f32 %v1293, %v2360
    %v3086 = vmul.f32 %v1295, %v2364
    %v3087 = vmul.f32 %v1297, %v2368
    %v3088 = vmul.f32 %v1299, %v2372
    %v3089 = vmul.f32 %v1301, %v2379
    %v3090 = vmul.f32 %v1303, %v2383
    %v3091 = vmul.f32 %v1305, %v2387
    %v3092 = vmul.f32 %v1307, %v2391
    %v3093 = vmul.f32 %v1309, %v2395
    %v3094 = vmul.f32 %v1311, %v2399
    %v3095 = vmul.f32 %v1313, %v2403
    %v3096 = vmul.f32 %v1315, %v2407
    %v3097 = vmul.f32 %v1317, %v2411
    %v3098 = vmul.f32 %v1319, %v2415
    %v3099 = vmul.f32 %v1321, %v2419
    %v3100 = vmul.f32 %v1323, %v2423
    %v3101 = vmul.f32 %v1325, %v2427
    %v3102 = vmul.f32 %v1327, %v2431
    %v3103 = vmul.f32 %v1329, %v2435
    %v3104 = vmul.f32 %v1331, %v2439
    %v3105 = vmul.f32 %v1333, %v2446
    %v3106 = vmul.f32 %v1335, %v2450
    %v3107 = vmul.f32 %v1337, %v2454
    %v3108 = vmul.f32 %v1339, %v2458
    %v3109 = vmul.f32 %v1341, %v2462
    %v3110 = vmul.f32 %v1343, %v2466
    %v3111 = vmul.f32 %v1345, %v2470
    %v3112 = vmul.f32 %v1347, %v2474
    %v3113 = vmul.f32 %v1349, %v2478
    %v3114 = vmul.f32 %v1351, %v2482
    %v3115 = vmul.f32 %v1353, %v2486
    %v3116 = vmul.f32 %v1355, %v2490
    %v3117 = vmul.f32 %v1357, %v2494
    %v3118 = vmul.f32 %v1359, %v2498
    %v3119 = vmul.f32 %v1361, %v2502
    %v3120 = vmul.f32 %v1363, %v2506
    %v3121 = vmul.f32 %v1365, %v2513
    %v3122 = vmul.f32 %v1367, %v2517
    %v3123 = vmul.f32 %v1369, %v2521
    %v3124 = vmul.f32 %v1371, %v2525
    %v3125 = vmul.f32 %v1373, %v2529
    %v3126 = vmul.f32 %v1375, %v2533
    %v3127 = vmul.f32 %v1377, %v2537
    %v3128 = vmul.f32 %v1379, %v2541
    %v3129 = vmul.f32 %v1381, %v2545
    %v3130 = vmul.f32 %v1383, %v2549
    %v3131 = vmul.f32 %v1385, %v2553
    %v3132 = vmul.f32 %v1387, %v2557
    %v3133 = vmul.f32 %v1389, %v2561
    %v3134 = vmul.f32 %v1391, %v2565
    %v3135 = vmul.f32 %v1393, %v2569
    %v3136 = vmul.f32 %v1395, %v2573
    %v3137 = vmul.f32 %v1397, %v2580
    %v3138 = vmul.f32 %v1399, %v2584
    %v3139 = vmul.f32 %v1401, %v2588
    %v3140 = vmul.f32 %v1403, %v2592
    %v3141 = vmul.f32 %v1405, %v2596
    %v3142 = vmul.f32 %v1407, %v2600
    %v3143 = vmul.f32 %v1409, %v2604
    %v3144 = vmul.f32 %v1411, %v2608
    %v3145 = vmul.f32 %v1413, %v2612
    %v3146 = vmul.f32 %v1415, %v2616
    %v3147 = vmul.f32 %v1417, %v2620
    %v3148 = vmul.f32 %v1419, %v2624
    %v3149 = vmul.f32 %v1421, %v2628
    %v3150 = vmul.f32 %v1423, %v2632
    %v3151 = vmul.f32 %v1425, %v2636
    %v3152 = vmul.f32 %v1427, %v2640
    %3409 = vset.pattern.permute.xlu0 0
    %3410 = vperm.xlu0 %3409, %v2897
    %v3411 = vpop.permute.xlu0 %3410
    %3412 = vset.pattern.permute.xlu0 0
    %3413 = vperm.xlu0 %3412, %v2898
    %v3414 = vpop.permute.xlu0 %3413
    %3415 = vset.pattern.permute.xlu0 0
    %3416 = vperm.xlu0 %3415, %v2899
    %v3417 = vpop.permute.xlu0 %3416
    %3418 = vset.pattern.permute.xlu0 0
    %3419 = vperm.xlu0 %3418, %v2900
    %v3420 = vpop.permute.xlu0 %3419
    %3421 = vset.pattern.permute.xlu0 0
    %3422 = vperm.xlu0 %3421, %v2901
    %v3423 = vpop.permute.xlu0 %3422
    %3424 = vset.pattern.permute.xlu0 0
    %3425 = vperm.xlu0 %3424, %v2902
    %v3426 = vpop.permute.xlu0 %3425
    %3427 = vset.pattern.permute.xlu0 0
    %3428 = vperm.xlu0 %3427, %v2903
    %v3429 = vpop.permute.xlu0 %3428
    %3430 = vset.pattern.permute.xlu0 0
    %3431 = vperm.xlu0 %3430, %v2904
    %v3432 = vpop.permute.xlu0 %3431
    %3433 = vset.pattern.permute.xlu0 0
    %3434 = vperm.xlu0 %3433, %v2905
    %v3435 = vpop.permute.xlu0 %3434
    %3436 = vset.pattern.permute.xlu0 0
    %3437 = vperm.xlu0 %3436, %v2906
    %v3438 = vpop.permute.xlu0 %3437
    %3439 = vset.pattern.permute.xlu0 0
    %3440 = vperm.xlu0 %3439, %v2907
    %v3441 = vpop.permute.xlu0 %3440
    %3442 = vset.pattern.permute.xlu0 0
    %3443 = vperm.xlu0 %3442, %v2908
    %v3444 = vpop.permute.xlu0 %3443
    %3445 = vset.pattern.permute.xlu0 0
    %3446 = vperm.xlu0 %3445, %v2909
    %v3447 = vpop.permute.xlu0 %3446
    %3448 = vset.pattern.permute.xlu0 0
    %3449 = vperm.xlu0 %3448, %v2910
    %v3450 = vpop.permute.xlu0 %3449
    %3451 = vset.pattern.permute.xlu0 0
    %3452 = vperm.xlu0 %3451, %v2911
    %v3453 = vpop.permute.xlu0 %3452
    %3454 = vset.pattern.permute.xlu0 0
    %3455 = vperm.xlu0 %3454, %v2912
    %v3456 = vpop.permute.xlu0 %3455
    %3457 = vset.pattern.permute.xlu0 0
    %3458 = vperm.xlu0 %3457, %v2913
    %v3459 = vpop.permute.xlu0 %3458
    %3460 = vset.pattern.permute.xlu0 0
    %3461 = vperm.xlu0 %3460, %v2914
    %v3462 = vpop.permute.xlu0 %3461
    %3463 = vset.pattern.permute.xlu0 0
    %3464 = vperm.xlu0 %3463, %v2915
    %v3465 = vpop.permute.xlu0 %3464
    %3466 = vset.pattern.permute.xlu0 0
    %3467 = vperm.xlu0 %3466, %v2916
    %v3468 = vpop.permute.xlu0 %3467
    %3469 = vset.pattern.permute.xlu0 0
    %3470 = vperm.xlu0 %3469, %v2917
    %v3471 = vpop.permute.xlu0 %3470
    %3472 = vset.pattern.permute.xlu0 0
    %3473 = vperm.xlu0 %3472, %v2918
    %v3474 = vpop.permute.xlu0 %3473
    %3475 = vset.pattern.permute.xlu0 0
    %3476 = vperm.xlu0 %3475, %v2919
    %v3477 = vpop.permute.xlu0 %3476
    %3478 = vset.pattern.permute.xlu0 0
    %3479 = vperm.xlu0 %3478, %v2920
    %v3480 = vpop.permute.xlu0 %3479
    %3481 = vset.pattern.permute.xlu0 0
    %3482 = vperm.xlu0 %3481, %v2921
    %v3483 = vpop.permute.xlu0 %3482
    %3484 = vset.pattern.permute.xlu0 0
    %3485 = vperm.xlu0 %3484, %v2922
    %v3486 = vpop.permute.xlu0 %3485
    %3487 = vset.pattern.permute.xlu0 0
    %3488 = vperm.xlu0 %3487, %v2923
    %v3489 = vpop.permute.xlu0 %3488
    %3490 = vset.pattern.permute.xlu0 0
    %3491 = vperm.xlu0 %3490, %v2924
    %v3492 = vpop.permute.xlu0 %3491
    %3493 = vset.pattern.permute.xlu0 0
    %3494 = vperm.xlu0 %3493, %v2925
    %v3495 = vpop.permute.xlu0 %3494
    %3496 = vset.pattern.permute.xlu0 0
    %3497 = vperm.xlu0 %3496, %v2926
    %v3498 = vpop.permute.xlu0 %3497
    %3499 = vset.pattern.permute.xlu0 0
    %3500 = vperm.xlu0 %3499, %v2927
    %v3501 = vpop.permute.xlu0 %3500
    %3502 = vset.pattern.permute.xlu0 0
    %3503 = vperm.xlu0 %3502, %v2928
    %v3504 = vpop.permute.xlu0 %3503
    %3505 = vset.pattern.permute.xlu0 0
    %3506 = vperm.xlu0 %3505, %v2929
    %v3507 = vpop.permute.xlu0 %3506
    %3508 = vset.pattern.permute.xlu0 0
    %3509 = vperm.xlu0 %3508, %v2930
    %v3510 = vpop.permute.xlu0 %3509
    %3511 = vset.pattern.permute.xlu0 0
    %3512 = vperm.xlu0 %3511, %v2931
    %v3513 = vpop.permute.xlu0 %3512
    %3514 = vset.pattern.permute.xlu0 0
    %3515 = vperm.xlu0 %3514, %v2932
    %v3516 = vpop.permute.xlu0 %3515
    %3517 = vset.pattern.permute.xlu0 0
    %3518 = vperm.xlu0 %3517, %v2933
    %v3519 = vpop.permute.xlu0 %3518
    %3520 = vset.pattern.permute.xlu0 0
    %3521 = vperm.xlu0 %3520, %v2934
    %v3522 = vpop.permute.xlu0 %3521
    %3523 = vset.pattern.permute.xlu0 0
    %3524 = vperm.xlu0 %3523, %v2935
    %v3525 = vpop.permute.xlu0 %3524
    %3526 = vset.pattern.permute.xlu0 0
    %3527 = vperm.xlu0 %3526, %v2936
    %v3528 = vpop.permute.xlu0 %3527
    %3529 = vset.pattern.permute.xlu0 0
    %3530 = vperm.xlu0 %3529, %v2937
    %v3531 = vpop.permute.xlu0 %3530
    %3532 = vset.pattern.permute.xlu0 0
    %3533 = vperm.xlu0 %3532, %v2938
    %v3534 = vpop.permute.xlu0 %3533
    %3535 = vset.pattern.permute.xlu0 0
    %3536 = vperm.xlu0 %3535, %v2939
    %v3537 = vpop.permute.xlu0 %3536
    %3538 = vset.pattern.permute.xlu0 0
    %3539 = vperm.xlu0 %3538, %v2940
    %v3540 = vpop.permute.xlu0 %3539
    %3541 = vset.pattern.permute.xlu0 0
    %3542 = vperm.xlu0 %3541, %v2941
    %v3543 = vpop.permute.xlu0 %3542
    %3544 = vset.pattern.permute.xlu0 0
    %3545 = vperm.xlu0 %3544, %v2942
    %v3546 = vpop.permute.xlu0 %3545
    %3547 = vset.pattern.permute.xlu0 0
    %3548 = vperm.xlu0 %3547, %v2943
    %v3549 = vpop.permute.xlu0 %3548
    %3550 = vset.pattern.permute.xlu0 0
    %3551 = vperm.xlu0 %3550, %v2944
    %v3552 = vpop.permute.xlu0 %3551
    %3553 = vset.pattern.permute.xlu0 0
    %3554 = vperm.xlu0 %3553, %v2945
    %v3555 = vpop.permute.xlu0 %3554
    %3556 = vset.pattern.permute.xlu0 0
    %3557 = vperm.xlu0 %3556, %v2946
    %v3558 = vpop.permute.xlu0 %3557
    %3559 = vset.pattern.permute.xlu0 0
    %3560 = vperm.xlu0 %3559, %v2947
    %v3561 = vpop.permute.xlu0 %3560
    %3562 = vset.pattern.permute.xlu0 0
    %3563 = vperm.xlu0 %3562, %v2948
    %v3564 = vpop.permute.xlu0 %3563
    %3565 = vset.pattern.permute.xlu0 0
    %3566 = vperm.xlu0 %3565, %v2949
    %v3567 = vpop.permute.xlu0 %3566
    %3568 = vset.pattern.permute.xlu0 0
    %3569 = vperm.xlu0 %3568, %v2950
    %v3570 = vpop.permute.xlu0 %3569
    %3571 = vset.pattern.permute.xlu0 0
    %3572 = vperm.xlu0 %3571, %v2951
    %v3573 = vpop.permute.xlu0 %3572
    %3574 = vset.pattern.permute.xlu0 0
    %3575 = vperm.xlu0 %3574, %v2952
    %v3576 = vpop.permute.xlu0 %3575
    %3577 = vset.pattern.permute.xlu0 0
    %3578 = vperm.xlu0 %3577, %v2953
    %v3579 = vpop.permute.xlu0 %3578
    %3580 = vset.pattern.permute.xlu0 0
    %3581 = vperm.xlu0 %3580, %v2954
    %v3582 = vpop.permute.xlu0 %3581
    %3583 = vset.pattern.permute.xlu0 0
    %3584 = vperm.xlu0 %3583, %v2955
    %v3585 = vpop.permute.xlu0 %3584
    %3586 = vset.pattern.permute.xlu0 0
    %3587 = vperm.xlu0 %3586, %v2956
    %v3588 = vpop.permute.xlu0 %3587
    %3589 = vset.pattern.permute.xlu0 0
    %3590 = vperm.xlu0 %3589, %v2957
    %v3591 = vpop.permute.xlu0 %3590
    %3592 = vset.pattern.permute.xlu0 0
    %3593 = vperm.xlu0 %3592, %v2958
    %v3594 = vpop.permute.xlu0 %3593
    %3595 = vset.pattern.permute.xlu0 0
    %3596 = vperm.xlu0 %3595, %v2959
    %v3597 = vpop.permute.xlu0 %3596
    %3598 = vset.pattern.permute.xlu0 0
    %3599 = vperm.xlu0 %3598, %v2960
    %v3600 = vpop.permute.xlu0 %3599
    %3601 = vset.pattern.permute.xlu0 0
    %3602 = vperm.xlu0 %3601, %v2961
    %v3603 = vpop.permute.xlu0 %3602
    %3604 = vset.pattern.permute.xlu0 0
    %3605 = vperm.xlu0 %3604, %v2962
    %v3606 = vpop.permute.xlu0 %3605
    %3607 = vset.pattern.permute.xlu0 0
    %3608 = vperm.xlu0 %3607, %v2963
    %v3609 = vpop.permute.xlu0 %3608
    %3610 = vset.pattern.permute.xlu0 0
    %3611 = vperm.xlu0 %3610, %v2964
    %v3612 = vpop.permute.xlu0 %3611
    %3613 = vset.pattern.permute.xlu0 0
    %3614 = vperm.xlu0 %3613, %v2965
    %v3615 = vpop.permute.xlu0 %3614
    %3616 = vset.pattern.permute.xlu0 0
    %3617 = vperm.xlu0 %3616, %v2966
    %v3618 = vpop.permute.xlu0 %3617
    %3619 = vset.pattern.permute.xlu0 0
    %3620 = vperm.xlu0 %3619, %v2967
    %v3621 = vpop.permute.xlu0 %3620
    %3622 = vset.pattern.permute.xlu0 0
    %3623 = vperm.xlu0 %3622, %v2968
    %v3624 = vpop.permute.xlu0 %3623
    %3625 = vset.pattern.permute.xlu0 0
    %3626 = vperm.xlu0 %3625, %v2969
    %v3627 = vpop.permute.xlu0 %3626
    %3628 = vset.pattern.permute.xlu0 0
    %3629 = vperm.xlu0 %3628, %v2970
    %v3630 = vpop.permute.xlu0 %3629
    %3631 = vset.pattern.permute.xlu0 0
    %3632 = vperm.xlu0 %3631, %v2971
    %v3633 = vpop.permute.xlu0 %3632
    %3634 = vset.pattern.permute.xlu0 0
    %3635 = vperm.xlu0 %3634, %v2972
    %v3636 = vpop.permute.xlu0 %3635
    %3637 = vset.pattern.permute.xlu0 0
    %3638 = vperm.xlu0 %3637, %v2973
    %v3639 = vpop.permute.xlu0 %3638
    %3640 = vset.pattern.permute.xlu0 0
    %3641 = vperm.xlu0 %3640, %v2974
    %v3642 = vpop.permute.xlu0 %3641
    %3643 = vset.pattern.permute.xlu0 0
    %3644 = vperm.xlu0 %3643, %v2975
    %v3645 = vpop.permute.xlu0 %3644
    %3646 = vset.pattern.permute.xlu0 0
    %3647 = vperm.xlu0 %3646, %v2976
    %v3648 = vpop.permute.xlu0 %3647
    %3649 = vset.pattern.permute.xlu0 0
    %3650 = vperm.xlu0 %3649, %v2977
    %v3651 = vpop.permute.xlu0 %3650
    %3652 = vset.pattern.permute.xlu0 0
    %3653 = vperm.xlu0 %3652, %v2978
    %v3654 = vpop.permute.xlu0 %3653
    %3655 = vset.pattern.permute.xlu0 0
    %3656 = vperm.xlu0 %3655, %v2979
    %v3657 = vpop.permute.xlu0 %3656
    %3658 = vset.pattern.permute.xlu0 0
    %3659 = vperm.xlu0 %3658, %v2980
    %v3660 = vpop.permute.xlu0 %3659
    %3661 = vset.pattern.permute.xlu0 0
    %3662 = vperm.xlu0 %3661, %v2981
    %v3663 = vpop.permute.xlu0 %3662
    %3664 = vset.pattern.permute.xlu0 0
    %3665 = vperm.xlu0 %3664, %v2982
    %v3666 = vpop.permute.xlu0 %3665
    %3667 = vset.pattern.permute.xlu0 0
    %3668 = vperm.xlu0 %3667, %v2983
    %v3669 = vpop.permute.xlu0 %3668
    %3670 = vset.pattern.permute.xlu0 0
    %3671 = vperm.xlu0 %3670, %v2984
    %v3672 = vpop.permute.xlu0 %3671
    %3673 = vset.pattern.permute.xlu0 0
    %3674 = vperm.xlu0 %3673, %v2985
    %v3675 = vpop.permute.xlu0 %3674
    %3676 = vset.pattern.permute.xlu0 0
    %3677 = vperm.xlu0 %3676, %v2986
    %v3678 = vpop.permute.xlu0 %3677
    %3679 = vset.pattern.permute.xlu0 0
    %3680 = vperm.xlu0 %3679, %v2987
    %v3681 = vpop.permute.xlu0 %3680
    %3682 = vset.pattern.permute.xlu0 0
    %3683 = vperm.xlu0 %3682, %v2988
    %v3684 = vpop.permute.xlu0 %3683
    %3685 = vset.pattern.permute.xlu0 0
    %3686 = vperm.xlu0 %3685, %v2989
    %v3687 = vpop.permute.xlu0 %3686
    %3688 = vset.pattern.permute.xlu0 0
    %3689 = vperm.xlu0 %3688, %v2990
    %v3690 = vpop.permute.xlu0 %3689
    %3691 = vset.pattern.permute.xlu0 0
    %3692 = vperm.xlu0 %3691, %v2991
    %v3693 = vpop.permute.xlu0 %3692
    %3694 = vset.pattern.permute.xlu0 0
    %3695 = vperm.xlu0 %3694, %v2992
    %v3696 = vpop.permute.xlu0 %3695
    %3697 = vset.pattern.permute.xlu0 0
    %3698 = vperm.xlu0 %3697, %v2993
    %v3699 = vpop.permute.xlu0 %3698
    %3700 = vset.pattern.permute.xlu0 0
    %3701 = vperm.xlu0 %3700, %v2994
    %v3702 = vpop.permute.xlu0 %3701
    %3703 = vset.pattern.permute.xlu0 0
    %3704 = vperm.xlu0 %3703, %v2995
    %v3705 = vpop.permute.xlu0 %3704
    %3706 = vset.pattern.permute.xlu0 0
    %3707 = vperm.xlu0 %3706, %v2996
    %v3708 = vpop.permute.xlu0 %3707
    %3709 = vset.pattern.permute.xlu0 0
    %3710 = vperm.xlu0 %3709, %v2997
    %v3711 = vpop.permute.xlu0 %3710
    %3712 = vset.pattern.permute.xlu0 0
    %3713 = vperm.xlu0 %3712, %v2998
    %v3714 = vpop.permute.xlu0 %3713
    %3715 = vset.pattern.permute.xlu0 0
    %3716 = vperm.xlu0 %3715, %v2999
    %v3717 = vpop.permute.xlu0 %3716
    %3718 = vset.pattern.permute.xlu0 0
    %3719 = vperm.xlu0 %3718, %v3000
    %v3720 = vpop.permute.xlu0 %3719
    %3721 = vset.pattern.permute.xlu0 0
    %3722 = vperm.xlu0 %3721, %v3001
    %v3723 = vpop.permute.xlu0 %3722
    %3724 = vset.pattern.permute.xlu0 0
    %3725 = vperm.xlu0 %3724, %v3002
    %v3726 = vpop.permute.xlu0 %3725
    %3727 = vset.pattern.permute.xlu0 0
    %3728 = vperm.xlu0 %3727, %v3003
    %v3729 = vpop.permute.xlu0 %3728
    %3730 = vset.pattern.permute.xlu0 0
    %3731 = vperm.xlu0 %3730, %v3004
    %v3732 = vpop.permute.xlu0 %3731
    %3733 = vset.pattern.permute.xlu0 0
    %3734 = vperm.xlu0 %3733, %v3005
    %v3735 = vpop.permute.xlu0 %3734
    %3736 = vset.pattern.permute.xlu0 0
    %3737 = vperm.xlu0 %3736, %v3006
    %v3738 = vpop.permute.xlu0 %3737
    %3739 = vset.pattern.permute.xlu0 0
    %3740 = vperm.xlu0 %3739, %v3007
    %v3741 = vpop.permute.xlu0 %3740
    %3742 = vset.pattern.permute.xlu0 0
    %3743 = vperm.xlu0 %3742, %v3008
    %v3744 = vpop.permute.xlu0 %3743
    %3745 = vset.pattern.permute.xlu0 0
    %3746 = vperm.xlu0 %3745, %v3009
    %v3747 = vpop.permute.xlu0 %3746
    %3748 = vset.pattern.permute.xlu0 0
    %3749 = vperm.xlu0 %3748, %v3010
    %v3750 = vpop.permute.xlu0 %3749
    %3751 = vset.pattern.permute.xlu0 0
    %3752 = vperm.xlu0 %3751, %v3011
    %v3753 = vpop.permute.xlu0 %3752
    %3754 = vset.pattern.permute.xlu0 0
    %3755 = vperm.xlu0 %3754, %v3012
    %v3756 = vpop.permute.xlu0 %3755
    %3757 = vset.pattern.permute.xlu0 0
    %3758 = vperm.xlu0 %3757, %v3013
    %v3759 = vpop.permute.xlu0 %3758
    %3760 = vset.pattern.permute.xlu0 0
    %3761 = vperm.xlu0 %3760, %v3014
    %v3762 = vpop.permute.xlu0 %3761
    %3763 = vset.pattern.permute.xlu0 0
    %3764 = vperm.xlu0 %3763, %v3015
    %v3765 = vpop.permute.xlu0 %3764
    %3766 = vset.pattern.permute.xlu0 0
    %3767 = vperm.xlu0 %3766, %v3016
    %v3768 = vpop.permute.xlu0 %3767
    %3769 = vset.pattern.permute.xlu0 0
    %3770 = vperm.xlu0 %3769, %v3017
    %v3771 = vpop.permute.xlu0 %3770
    %3772 = vset.pattern.permute.xlu0 0
    %3773 = vperm.xlu0 %3772, %v3018
    %v3774 = vpop.permute.xlu0 %3773
    %3775 = vset.pattern.permute.xlu0 0
    %3776 = vperm.xlu0 %3775, %v3019
    %v3777 = vpop.permute.xlu0 %3776
    %3778 = vset.pattern.permute.xlu0 0
    %3779 = vperm.xlu0 %3778, %v3020
    %v3780 = vpop.permute.xlu0 %3779
    %3781 = vset.pattern.permute.xlu0 0
    %3782 = vperm.xlu0 %3781, %v3021
    %v3783 = vpop.permute.xlu0 %3782
    %3784 = vset.pattern.permute.xlu0 0
    %3785 = vperm.xlu0 %3784, %v3022
    %v3786 = vpop.permute.xlu0 %3785
    %3787 = vset.pattern.permute.xlu0 0
    %3788 = vperm.xlu0 %3787, %v3023
    %v3789 = vpop.permute.xlu0 %3788
    %3790 = vset.pattern.permute.xlu0 0
    %3791 = vperm.xlu0 %3790, %v3024
    %v3792 = vpop.permute.xlu0 %3791
    %3793 = vset.pattern.permute.xlu0 0
    %3794 = vperm.xlu0 %3793, %v3025
    %v3795 = vpop.permute.xlu0 %3794
    %3796 = vset.pattern.permute.xlu0 0
    %3797 = vperm.xlu0 %3796, %v3026
    %v3798 = vpop.permute.xlu0 %3797
    %3799 = vset.pattern.permute.xlu0 0
    %3800 = vperm.xlu0 %3799, %v3027
    %v3801 = vpop.permute.xlu0 %3800
    %3802 = vset.pattern.permute.xlu0 0
    %3803 = vperm.xlu0 %3802, %v3028
    %v3804 = vpop.permute.xlu0 %3803
    %3805 = vset.pattern.permute.xlu0 0
    %3806 = vperm.xlu0 %3805, %v3029
    %v3807 = vpop.permute.xlu0 %3806
    %3808 = vset.pattern.permute.xlu0 0
    %3809 = vperm.xlu0 %3808, %v3030
    %v3810 = vpop.permute.xlu0 %3809
    %3811 = vset.pattern.permute.xlu0 0
    %3812 = vperm.xlu0 %3811, %v3031
    %v3813 = vpop.permute.xlu0 %3812
    %3814 = vset.pattern.permute.xlu0 0
    %3815 = vperm.xlu0 %3814, %v3032
    %v3816 = vpop.permute.xlu0 %3815
    %3817 = vset.pattern.permute.xlu0 0
    %3818 = vperm.xlu0 %3817, %v3033
    %v3819 = vpop.permute.xlu0 %3818
    %3820 = vset.pattern.permute.xlu0 0
    %3821 = vperm.xlu0 %3820, %v3034
    %v3822 = vpop.permute.xlu0 %3821
    %3823 = vset.pattern.permute.xlu0 0
    %3824 = vperm.xlu0 %3823, %v3035
    %v3825 = vpop.permute.xlu0 %3824
    %3826 = vset.pattern.permute.xlu0 0
    %3827 = vperm.xlu0 %3826, %v3036
    %v3828 = vpop.permute.xlu0 %3827
    %3829 = vset.pattern.permute.xlu0 0
    %3830 = vperm.xlu0 %3829, %v3037
    %v3831 = vpop.permute.xlu0 %3830
    %3832 = vset.pattern.permute.xlu0 0
    %3833 = vperm.xlu0 %3832, %v3038
    %v3834 = vpop.permute.xlu0 %3833
    %3835 = vset.pattern.permute.xlu0 0
    %3836 = vperm.xlu0 %3835, %v3039
    %v3837 = vpop.permute.xlu0 %3836
    %3838 = vset.pattern.permute.xlu0 0
    %3839 = vperm.xlu0 %3838, %v3040
    %v3840 = vpop.permute.xlu0 %3839
    %3841 = vset.pattern.permute.xlu0 0
    %3842 = vperm.xlu0 %3841, %v3041
    %v3843 = vpop.permute.xlu0 %3842
    %3844 = vset.pattern.permute.xlu0 0
    %3845 = vperm.xlu0 %3844, %v3042
    %v3846 = vpop.permute.xlu0 %3845
    %3847 = vset.pattern.permute.xlu0 0
    %3848 = vperm.xlu0 %3847, %v3043
    %v3849 = vpop.permute.xlu0 %3848
    %3850 = vset.pattern.permute.xlu0 0
    %3851 = vperm.xlu0 %3850, %v3044
    %v3852 = vpop.permute.xlu0 %3851
    %3853 = vset.pattern.permute.xlu0 0
    %3854 = vperm.xlu0 %3853, %v3045
    %v3855 = vpop.permute.xlu0 %3854
    %3856 = vset.pattern.permute.xlu0 0
    %3857 = vperm.xlu0 %3856, %v3046
    %v3858 = vpop.permute.xlu0 %3857
    %3859 = vset.pattern.permute.xlu0 0
    %3860 = vperm.xlu0 %3859, %v3047
    %v3861 = vpop.permute.xlu0 %3860
    %3862 = vset.pattern.permute.xlu0 0
    %3863 = vperm.xlu0 %3862, %v3048
    %v3864 = vpop.permute.xlu0 %3863
    %3865 = vset.pattern.permute.xlu0 0
    %3866 = vperm.xlu0 %3865, %v3049
    %v3867 = vpop.permute.xlu0 %3866
    %3868 = vset.pattern.permute.xlu0 0
    %3869 = vperm.xlu0 %3868, %v3050
    %v3870 = vpop.permute.xlu0 %3869
    %3871 = vset.pattern.permute.xlu0 0
    %3872 = vperm.xlu0 %3871, %v3051
    %v3873 = vpop.permute.xlu0 %3872
    %3874 = vset.pattern.permute.xlu0 0
    %3875 = vperm.xlu0 %3874, %v3052
    %v3876 = vpop.permute.xlu0 %3875
    %3877 = vset.pattern.permute.xlu0 0
    %3878 = vperm.xlu0 %3877, %v3053
    %v3879 = vpop.permute.xlu0 %3878
    %3880 = vset.pattern.permute.xlu0 0
    %3881 = vperm.xlu0 %3880, %v3054
    %v3882 = vpop.permute.xlu0 %3881
    %3883 = vset.pattern.permute.xlu0 0
    %3884 = vperm.xlu0 %3883, %v3055
    %v3885 = vpop.permute.xlu0 %3884
    %3886 = vset.pattern.permute.xlu0 0
    %3887 = vperm.xlu0 %3886, %v3056
    %v3888 = vpop.permute.xlu0 %3887
    %3889 = vset.pattern.permute.xlu0 0
    %3890 = vperm.xlu0 %3889, %v3057
    %v3891 = vpop.permute.xlu0 %3890
    %3892 = vset.pattern.permute.xlu0 0
    %3893 = vperm.xlu0 %3892, %v3058
    %v3894 = vpop.permute.xlu0 %3893
    %3895 = vset.pattern.permute.xlu0 0
    %3896 = vperm.xlu0 %3895, %v3059
    %v3897 = vpop.permute.xlu0 %3896
    %3898 = vset.pattern.permute.xlu0 0
    %3899 = vperm.xlu0 %3898, %v3060
    %v3900 = vpop.permute.xlu0 %3899
    %3901 = vset.pattern.permute.xlu0 0
    %3902 = vperm.xlu0 %3901, %v3061
    %v3903 = vpop.permute.xlu0 %3902
    %3904 = vset.pattern.permute.xlu0 0
    %3905 = vperm.xlu0 %3904, %v3062
    %v3906 = vpop.permute.xlu0 %3905
    %3907 = vset.pattern.permute.xlu0 0
    %3908 = vperm.xlu0 %3907, %v3063
    %v3909 = vpop.permute.xlu0 %3908
    %3910 = vset.pattern.permute.xlu0 0
    %3911 = vperm.xlu0 %3910, %v3064
    %v3912 = vpop.permute.xlu0 %3911
    %3913 = vset.pattern.permute.xlu0 0
    %3914 = vperm.xlu0 %3913, %v3065
    %v3915 = vpop.permute.xlu0 %3914
    %3916 = vset.pattern.permute.xlu0 0
    %3917 = vperm.xlu0 %3916, %v3066
    %v3918 = vpop.permute.xlu0 %3917
    %3919 = vset.pattern.permute.xlu0 0
    %3920 = vperm.xlu0 %3919, %v3067
    %v3921 = vpop.permute.xlu0 %3920
    %3922 = vset.pattern.permute.xlu0 0
    %3923 = vperm.xlu0 %3922, %v3068
    %v3924 = vpop.permute.xlu0 %3923
    %3925 = vset.pattern.permute.xlu0 0
    %3926 = vperm.xlu0 %3925, %v3069
    %v3927 = vpop.permute.xlu0 %3926
    %3928 = vset.pattern.permute.xlu0 0
    %3929 = vperm.xlu0 %3928, %v3070
    %v3930 = vpop.permute.xlu0 %3929
    %3931 = vset.pattern.permute.xlu0 0
    %3932 = vperm.xlu0 %3931, %v3071
    %v3933 = vpop.permute.xlu0 %3932
    %3934 = vset.pattern.permute.xlu0 0
    %3935 = vperm.xlu0 %3934, %v3072
    %v3936 = vpop.permute.xlu0 %3935
    %3937 = vset.pattern.permute.xlu0 0
    %3938 = vperm.xlu0 %3937, %v3073
    %v3939 = vpop.permute.xlu0 %3938
    %3940 = vset.pattern.permute.xlu0 0
    %3941 = vperm.xlu0 %3940, %v3074
    %v3942 = vpop.permute.xlu0 %3941
    %3943 = vset.pattern.permute.xlu0 0
    %3944 = vperm.xlu0 %3943, %v3075
    %v3945 = vpop.permute.xlu0 %3944
    %3946 = vset.pattern.permute.xlu0 0
    %3947 = vperm.xlu0 %3946, %v3076
    %v3948 = vpop.permute.xlu0 %3947
    %3949 = vset.pattern.permute.xlu0 0
    %3950 = vperm.xlu0 %3949, %v3077
    %v3951 = vpop.permute.xlu0 %3950
    %3952 = vset.pattern.permute.xlu0 0
    %3953 = vperm.xlu0 %3952, %v3078
    %v3954 = vpop.permute.xlu0 %3953
    %3955 = vset.pattern.permute.xlu0 0
    %3956 = vperm.xlu0 %3955, %v3079
    %v3957 = vpop.permute.xlu0 %3956
    %3958 = vset.pattern.permute.xlu0 0
    %3959 = vperm.xlu0 %3958, %v3080
    %v3960 = vpop.permute.xlu0 %3959
    %3961 = vset.pattern.permute.xlu0 0
    %3962 = vperm.xlu0 %3961, %v3081
    %v3963 = vpop.permute.xlu0 %3962
    %3964 = vset.pattern.permute.xlu0 0
    %3965 = vperm.xlu0 %3964, %v3082
    %v3966 = vpop.permute.xlu0 %3965
    %3967 = vset.pattern.permute.xlu0 0
    %3968 = vperm.xlu0 %3967, %v3083
    %v3969 = vpop.permute.xlu0 %3968
    %3970 = vset.pattern.permute.xlu0 0
    %3971 = vperm.xlu0 %3970, %v3084
    %v3972 = vpop.permute.xlu0 %3971
    %3973 = vset.pattern.permute.xlu0 0
    %3974 = vperm.xlu0 %3973, %v3085
    %v3975 = vpop.permute.xlu0 %3974
    %3976 = vset.pattern.permute.xlu0 0
    %3977 = vperm.xlu0 %3976, %v3086
    %v3978 = vpop.permute.xlu0 %3977
    %3979 = vset.pattern.permute.xlu0 0
    %3980 = vperm.xlu0 %3979, %v3087
    %v3981 = vpop.permute.xlu0 %3980
    %3982 = vset.pattern.permute.xlu0 0
    %3983 = vperm.xlu0 %3982, %v3088
    %v3984 = vpop.permute.xlu0 %3983
    %3985 = vset.pattern.permute.xlu0 0
    %3986 = vperm.xlu0 %3985, %v3089
    %v3987 = vpop.permute.xlu0 %3986
    %3988 = vset.pattern.permute.xlu0 0
    %3989 = vperm.xlu0 %3988, %v3090
    %v3990 = vpop.permute.xlu0 %3989
    %3991 = vset.pattern.permute.xlu0 0
    %3992 = vperm.xlu0 %3991, %v3091
    %v3993 = vpop.permute.xlu0 %3992
    %3994 = vset.pattern.permute.xlu0 0
    %3995 = vperm.xlu0 %3994, %v3092
    %v3996 = vpop.permute.xlu0 %3995
    %3997 = vset.pattern.permute.xlu0 0
    %3998 = vperm.xlu0 %3997, %v3093
    %v3999 = vpop.permute.xlu0 %3998
    %4000 = vset.pattern.permute.xlu0 0
    %4001 = vperm.xlu0 %4000, %v3094
    %v4002 = vpop.permute.xlu0 %4001
    %4003 = vset.pattern.permute.xlu0 0
    %4004 = vperm.xlu0 %4003, %v3095
    %v4005 = vpop.permute.xlu0 %4004
    %4006 = vset.pattern.permute.xlu0 0
    %4007 = vperm.xlu0 %4006, %v3096
    %v4008 = vpop.permute.xlu0 %4007
    %4009 = vset.pattern.permute.xlu0 0
    %4010 = vperm.xlu0 %4009, %v3097
    %v4011 = vpop.permute.xlu0 %4010
    %4012 = vset.pattern.permute.xlu0 0
    %4013 = vperm.xlu0 %4012, %v3098
    %v4014 = vpop.permute.xlu0 %4013
    %4015 = vset.pattern.permute.xlu0 0
    %4016 = vperm.xlu0 %4015, %v3099
    %v4017 = vpop.permute.xlu0 %4016
    %4018 = vset.pattern.permute.xlu0 0
    %4019 = vperm.xlu0 %4018, %v3100
    %v4020 = vpop.permute.xlu0 %4019
    %4021 = vset.pattern.permute.xlu0 0
    %4022 = vperm.xlu0 %4021, %v3101
    %v4023 = vpop.permute.xlu0 %4022
    %4024 = vset.pattern.permute.xlu0 0
    %4025 = vperm.xlu0 %4024, %v3102
    %v4026 = vpop.permute.xlu0 %4025
    %4027 = vset.pattern.permute.xlu0 0
    %4028 = vperm.xlu0 %4027, %v3103
    %v4029 = vpop.permute.xlu0 %4028
    %4030 = vset.pattern.permute.xlu0 0
    %4031 = vperm.xlu0 %4030, %v3104
    %v4032 = vpop.permute.xlu0 %4031
    %4033 = vset.pattern.permute.xlu0 0
    %4034 = vperm.xlu0 %4033, %v3105
    %v4035 = vpop.permute.xlu0 %4034
    %4036 = vset.pattern.permute.xlu0 0
    %4037 = vperm.xlu0 %4036, %v3106
    %v4038 = vpop.permute.xlu0 %4037
    %4039 = vset.pattern.permute.xlu0 0
    %4040 = vperm.xlu0 %4039, %v3107
    %v4041 = vpop.permute.xlu0 %4040
    %4042 = vset.pattern.permute.xlu0 0
    %4043 = vperm.xlu0 %4042, %v3108
    %v4044 = vpop.permute.xlu0 %4043
    %4045 = vset.pattern.permute.xlu0 0
    %4046 = vperm.xlu0 %4045, %v3109
    %v4047 = vpop.permute.xlu0 %4046
    %4048 = vset.pattern.permute.xlu0 0
    %4049 = vperm.xlu0 %4048, %v3110
    %v4050 = vpop.permute.xlu0 %4049
    %4051 = vset.pattern.permute.xlu0 0
    %4052 = vperm.xlu0 %4051, %v3111
    %v4053 = vpop.permute.xlu0 %4052
    %4054 = vset.pattern.permute.xlu0 0
    %4055 = vperm.xlu0 %4054, %v3112
    %v4056 = vpop.permute.xlu0 %4055
    %4057 = vset.pattern.permute.xlu0 0
    %4058 = vperm.xlu0 %4057, %v3113
    %v4059 = vpop.permute.xlu0 %4058
    %4060 = vset.pattern.permute.xlu0 0
    %4061 = vperm.xlu0 %4060, %v3114
    %v4062 = vpop.permute.xlu0 %4061
    %4063 = vset.pattern.permute.xlu0 0
    %4064 = vperm.xlu0 %4063, %v3115
    %v4065 = vpop.permute.xlu0 %4064
    %4066 = vset.pattern.permute.xlu0 0
    %4067 = vperm.xlu0 %4066, %v3116
    %v4068 = vpop.permute.xlu0 %4067
    %4069 = vset.pattern.permute.xlu0 0
    %4070 = vperm.xlu0 %4069, %v3117
    %v4071 = vpop.permute.xlu0 %4070
    %4072 = vset.pattern.permute.xlu0 0
    %4073 = vperm.xlu0 %4072, %v3118
    %v4074 = vpop.permute.xlu0 %4073
    %4075 = vset.pattern.permute.xlu0 0
    %4076 = vperm.xlu0 %4075, %v3119
    %v4077 = vpop.permute.xlu0 %4076
    %4078 = vset.pattern.permute.xlu0 0
    %4079 = vperm.xlu0 %4078, %v3120
    %v4080 = vpop.permute.xlu0 %4079
    %4081 = vset.pattern.permute.xlu0 0
    %4082 = vperm.xlu0 %4081, %v3121
    %v4083 = vpop.permute.xlu0 %4082
    %4084 = vset.pattern.permute.xlu0 0
    %4085 = vperm.xlu0 %4084, %v3122
    %v4086 = vpop.permute.xlu0 %4085
    %4087 = vset.pattern.permute.xlu0 0
    %4088 = vperm.xlu0 %4087, %v3123
    %v4089 = vpop.permute.xlu0 %4088
    %4090 = vset.pattern.permute.xlu0 0
    %4091 = vperm.xlu0 %4090, %v3124
    %v4092 = vpop.permute.xlu0 %4091
    %4093 = vset.pattern.permute.xlu0 0
    %4094 = vperm.xlu0 %4093, %v3125
    %v4095 = vpop.permute.xlu0 %4094
    %4096 = vset.pattern.permute.xlu0 0
    %4097 = vperm.xlu0 %4096, %v3126
    %v4098 = vpop.permute.xlu0 %4097
    %4099 = vset.pattern.permute.xlu0 0
    %4100 = vperm.xlu0 %4099, %v3127
    %v4101 = vpop.permute.xlu0 %4100
    %4102 = vset.pattern.permute.xlu0 0
    %4103 = vperm.xlu0 %4102, %v3128
    %v4104 = vpop.permute.xlu0 %4103
    %4105 = vset.pattern.permute.xlu0 0
    %4106 = vperm.xlu0 %4105, %v3129
    %v4107 = vpop.permute.xlu0 %4106
    %4108 = vset.pattern.permute.xlu0 0
    %4109 = vperm.xlu0 %4108, %v3130
    %v4110 = vpop.permute.xlu0 %4109
    %4111 = vset.pattern.permute.xlu0 0
    %4112 = vperm.xlu0 %4111, %v3131
    %v4113 = vpop.permute.xlu0 %4112
    %4114 = vset.pattern.permute.xlu0 0
    %4115 = vperm.xlu0 %4114, %v3132
    %v4116 = vpop.permute.xlu0 %4115
    %4117 = vset.pattern.permute.xlu0 0
    %4118 = vperm.xlu0 %4117, %v3133
    %v4119 = vpop.permute.xlu0 %4118
    %4120 = vset.pattern.permute.xlu0 0
    %4121 = vperm.xlu0 %4120, %v3134
    %v4122 = vpop.permute.xlu0 %4121
    %4123 = vset.pattern.permute.xlu0 0
    %4124 = vperm.xlu0 %4123, %v3135
    %v4125 = vpop.permute.xlu0 %4124
    %4126 = vset.pattern.permute.xlu0 0
    %4127 = vperm.xlu0 %4126, %v3136
    %v4128 = vpop.permute.xlu0 %4127
    %4129 = vset.pattern.permute.xlu0 0
    %4130 = vperm.xlu0 %4129, %v3137
    %v4131 = vpop.permute.xlu0 %4130
    %4132 = vset.pattern.permute.xlu0 0
    %4133 = vperm.xlu0 %4132, %v3138
    %v4134 = vpop.permute.xlu0 %4133
    %4135 = vset.pattern.permute.xlu0 0
    %4136 = vperm.xlu0 %4135, %v3139
    %v4137 = vpop.permute.xlu0 %4136
    %4138 = vset.pattern.permute.xlu0 0
    %4139 = vperm.xlu0 %4138, %v3140
    %v4140 = vpop.permute.xlu0 %4139
    %4141 = vset.pattern.permute.xlu0 0
    %4142 = vperm.xlu0 %4141, %v3141
    %v4143 = vpop.permute.xlu0 %4142
    %4144 = vset.pattern.permute.xlu0 0
    %4145 = vperm.xlu0 %4144, %v3142
    %v4146 = vpop.permute.xlu0 %4145
    %4147 = vset.pattern.permute.xlu0 0
    %4148 = vperm.xlu0 %4147, %v3143
    %v4149 = vpop.permute.xlu0 %4148
    %4150 = vset.pattern.permute.xlu0 0
    %4151 = vperm.xlu0 %4150, %v3144
    %v4152 = vpop.permute.xlu0 %4151
    %4153 = vset.pattern.permute.xlu0 0
    %4154 = vperm.xlu0 %4153, %v3145
    %v4155 = vpop.permute.xlu0 %4154
    %4156 = vset.pattern.permute.xlu0 0
    %4157 = vperm.xlu0 %4156, %v3146
    %v4158 = vpop.permute.xlu0 %4157
    %4159 = vset.pattern.permute.xlu0 0
    %4160 = vperm.xlu0 %4159, %v3147
    %v4161 = vpop.permute.xlu0 %4160
    %4162 = vset.pattern.permute.xlu0 0
    %4163 = vperm.xlu0 %4162, %v3148
    %v4164 = vpop.permute.xlu0 %4163
    %4165 = vset.pattern.permute.xlu0 0
    %4166 = vperm.xlu0 %4165, %v3149
    %v4167 = vpop.permute.xlu0 %4166
    %4168 = vset.pattern.permute.xlu0 0
    %4169 = vperm.xlu0 %4168, %v3150
    %v4170 = vpop.permute.xlu0 %4169
    %4171 = vset.pattern.permute.xlu0 0
    %4172 = vperm.xlu0 %4171, %v3151
    %v4173 = vpop.permute.xlu0 %4172
    %4174 = vset.pattern.permute.xlu0 0
    %4175 = vperm.xlu0 %4174, %v3152
    %v4176 = vpop.permute.xlu0 %4175
    %v4177 = vlaneseq
    %v4178 = vshrl.u32 %v4177, 7
    %v4179 = vsub.s32 %v1429, %v4178
    %v4180 = vrot.slane %v3411, %v4179
    %v4181 = vadd.s32 %v1429, 4294967288
    %v4182 = vlaneseq
    %v4183 = vshrl.u32 %v4182, 7
    %v4184 = vsub.s32 %v4181, %v4183
    %v4185 = vrot.slane %v3414, %v4184
    %vm4186 = vcmask 130112
    %v4187 = vsel %vm4186, %v4185, %v4180
    %v4188 = vadd.s32 %v1429, 4294967280
    %v4189 = vlaneseq
    %v4190 = vshrl.u32 %v4189, 7
    %v4191 = vsub.s32 %v4188, %v4190
    %v4192 = vrot.slane %v3417, %v4191
    %vm4193 = vcmask 195712
    %v4194 = vsel %vm4193, %v4192, %v4187
    %v4195 = vadd.s32 %v1429, 4294967272
    %v4196 = vlaneseq
    %v4197 = vshrl.u32 %v4196, 7
    %v4198 = vsub.s32 %v4195, %v4197
    %v4199 = vrot.slane %v3420, %v4198
    %vm4200 = vcmask 261312
    %v4201 = vsel %vm4200, %v4199, %v4194
    %v4202 = vadd.s32 %v1429, 4294967264
    %v4203 = vlaneseq
    %v4204 = vshrl.u32 %v4203, 7
    %v4205 = vsub.s32 %v4202, %v4204
    %v4206 = vrot.slane %v3423, %v4205
    %vm4207 = vcmask 326912
    %v4208 = vsel %vm4207, %v4206, %v4201
    %v4209 = vadd.s32 %v1429, 4294967256
    %v4210 = vlaneseq
    %v4211 = vshrl.u32 %v4210, 7
    %v4212 = vsub.s32 %v4209, %v4211
    %v4213 = vrot.slane %v3426, %v4212
    %vm4214 = vcmask 392512
    %v4215 = vsel %vm4214, %v4213, %v4208
    %v4216 = vadd.s32 %v1429, 4294967248
    %v4217 = vlaneseq
    %v4218 = vshrl.u32 %v4217, 7
    %v4219 = vsub.s32 %v4216, %v4218
    %v4220 = vrot.slane %v3429, %v4219
    %vm4221 = vcmask 458112
    %v4222 = vsel %vm4221, %v4220, %v4215
    %v4223 = vadd.s32 %v1429, 4294967240
    %v4224 = vlaneseq
    %v4225 = vshrl.u32 %v4224, 7
    %v4226 = vsub.s32 %v4223, %v4225
    %v4227 = vrot.slane %v3432, %v4226
    %vm4228 = vcmask 523712
    %v4229 = vsel %vm4228, %v4227, %v4222
    %v4230 = vadd.s32 %v1429, 4294967232
    %v4231 = vlaneseq
    %v4232 = vshrl.u32 %v4231, 7
    %v4233 = vsub.s32 %v4230, %v4232
    %v4234 = vrot.slane %v3435, %v4233
    %vm4235 = vcmask 589312
    %v4236 = vsel %vm4235, %v4234, %v4229
    %v4237 = vadd.s32 %v1429, 4294967224
    %v4238 = vlaneseq
    %v4239 = vshrl.u32 %v4238, 7
    %v4240 = vsub.s32 %v4237, %v4239
    %v4241 = vrot.slane %v3438, %v4240
    %vm4242 = vcmask 654912
    %v4243 = vsel %vm4242, %v4241, %v4236
    %v4244 = vadd.s32 %v1429, 4294967216
    %v4245 = vlaneseq
    %v4246 = vshrl.u32 %v4245, 7
    %v4247 = vsub.s32 %v4244, %v4246
    %v4248 = vrot.slane %v3441, %v4247
    %vm4249 = vcmask 720512
    %v4250 = vsel %vm4249, %v4248, %v4243
    %v4251 = vadd.s32 %v1429, 4294967208
    %v4252 = vlaneseq
    %v4253 = vshrl.u32 %v4252, 7
    %v4254 = vsub.s32 %v4251, %v4253
    %v4255 = vrot.slane %v3444, %v4254
    %vm4256 = vcmask 786112
    %v4257 = vsel %vm4256, %v4255, %v4250
    %v4258 = vadd.s32 %v1429, 4294967200
    %v4259 = vlaneseq
    %v4260 = vshrl.u32 %v4259, 7
    %v4261 = vsub.s32 %v4258, %v4260
    %v4262 = vrot.slane %v3447, %v4261
    %vm4263 = vcmask 851712
    %v4264 = vsel %vm4263, %v4262, %v4257
    %v4265 = vadd.s32 %v1429, 4294967192
    %v4266 = vlaneseq
    %v4267 = vshrl.u32 %v4266, 7
    %v4268 = vsub.s32 %v4265, %v4267
    %v4269 = vrot.slane %v3450, %v4268
    %vm4270 = vcmask 917312
    %v4271 = vsel %vm4270, %v4269, %v4264
    %v4272 = vadd.s32 %v1429, 4294967184
    %v4273 = vlaneseq
    %v4274 = vshrl.u32 %v4273, 7
    %v4275 = vsub.s32 %v4272, %v4274
    %v4276 = vrot.slane %v3453, %v4275
    %vm4277 = vcmask 982912
    %v4278 = vsel %vm4277, %v4276, %v4271
    %v4279 = vadd.s32 %v1429, 4294967176
    %v4280 = vlaneseq
    %v4281 = vshrl.u32 %v4280, 7
    %v4282 = vsub.s32 %v4279, %v4281
    %v4283 = vrot.slane %v3456, %v4282
    %vm4284 = vcmask 1048512
    %v4285 = vsel %vm4284, %v4283, %v4278
    %v4286 = vlaneseq
    %v4287 = vshrl.u32 %v4286, 7
    %v4288 = vsub.s32 %v1429, %v4287
    %v4289 = vrot.slane %v3459, %v4288
    %v4290 = vlaneseq
    %v4291 = vshrl.u32 %v4290, 7
    %v4292 = vsub.s32 %v4181, %v4291
    %v4293 = vrot.slane %v3462, %v4292
    %v4294 = vsel %vm4186, %v4293, %v4289
    %v4295 = vlaneseq
    %v4296 = vshrl.u32 %v4295, 7
    %v4297 = vsub.s32 %v4188, %v4296
    %v4298 = vrot.slane %v3465, %v4297
    %v4299 = vsel %vm4193, %v4298, %v4294
    %v4300 = vlaneseq
    %v4301 = vshrl.u32 %v4300, 7
    %v4302 = vsub.s32 %v4195, %v4301
    %v4303 = vrot.slane %v3468, %v4302
    %v4304 = vsel %vm4200, %v4303, %v4299
    %v4305 = vlaneseq
    %v4306 = vshrl.u32 %v4305, 7
    %v4307 = vsub.s32 %v4202, %v4306
    %v4308 = vrot.slane %v3471, %v4307
    %v4309 = vsel %vm4207, %v4308, %v4304
    %v4310 = vlaneseq
    %v4311 = vshrl.u32 %v4310, 7
    %v4312 = vsub.s32 %v4209, %v4311
    %v4313 = vrot.slane %v3474, %v4312
    %v4314 = vsel %vm4214, %v4313, %v4309
    %v4315 = vlaneseq
    %v4316 = vshrl.u32 %v4315, 7
    %v4317 = vsub.s32 %v4216, %v4316
    %v4318 = vrot.slane %v3477, %v4317
    %v4319 = vsel %vm4221, %v4318, %v4314
    %v4320 = vlaneseq
    %v4321 = vshrl.u32 %v4320, 7
    %v4322 = vsub.s32 %v4223, %v4321
    %v4323 = vrot.slane %v3480, %v4322
    %v4324 = vsel %vm4228, %v4323, %v4319
    %v4325 = vlaneseq
    %v4326 = vshrl.u32 %v4325, 7
    %v4327 = vsub.s32 %v4230, %v4326
    %v4328 = vrot.slane %v3483, %v4327
    %v4329 = vsel %vm4235, %v4328, %v4324
    %v4330 = vlaneseq
    %v4331 = vshrl.u32 %v4330, 7
    %v4332 = vsub.s32 %v4237, %v4331
    %v4333 = vrot.slane %v3486, %v4332
    %v4334 = vsel %vm4242, %v4333, %v4329
    %v4335 = vlaneseq
    %v4336 = vshrl.u32 %v4335, 7
    %v4337 = vsub.s32 %v4244, %v4336
    %v4338 = vrot.slane %v3489, %v4337
    %v4339 = vsel %vm4249, %v4338, %v4334
    %v4340 = vlaneseq
    %v4341 = vshrl.u32 %v4340, 7
    %v4342 = vsub.s32 %v4251, %v4341
    %v4343 = vrot.slane %v3492, %v4342
    %v4344 = vsel %vm4256, %v4343, %v4339
    %v4345 = vlaneseq
    %v4346 = vshrl.u32 %v4345, 7
    %v4347 = vsub.s32 %v4258, %v4346
    %v4348 = vrot.slane %v3495, %v4347
    %v4349 = vsel %vm4263, %v4348, %v4344
    %v4350 = vlaneseq
    %v4351 = vshrl.u32 %v4350, 7
    %v4352 = vsub.s32 %v4265, %v4351
    %v4353 = vrot.slane %v3498, %v4352
    %v4354 = vsel %vm4270, %v4353, %v4349
    %v4355 = vlaneseq
    %v4356 = vshrl.u32 %v4355, 7
    %v4357 = vsub.s32 %v4272, %v4356
    %v4358 = vrot.slane %v3501, %v4357
    %v4359 = vsel %vm4277, %v4358, %v4354
    %v4360 = vlaneseq
    %v4361 = vshrl.u32 %v4360, 7
    %v4362 = vsub.s32 %v4279, %v4361
    %v4363 = vrot.slane %v3504, %v4362
    %v4364 = vsel %vm4284, %v4363, %v4359
    %v4365 = vlaneseq
    %v4366 = vshrl.u32 %v4365, 7
    %v4367 = vsub.s32 %v1429, %v4366
    %v4368 = vrot.slane %v3507, %v4367
    %v4369 = vlaneseq
    %v4370 = vshrl.u32 %v4369, 7
    %v4371 = vsub.s32 %v4181, %v4370
    %v4372 = vrot.slane %v3510, %v4371
    %v4373 = vsel %vm4186, %v4372, %v4368
    %v4374 = vlaneseq
    %v4375 = vshrl.u32 %v4374, 7
    %v4376 = vsub.s32 %v4188, %v4375
    %v4377 = vrot.slane %v3513, %v4376
    %v4378 = vsel %vm4193, %v4377, %v4373
    %v4379 = vlaneseq
    %v4380 = vshrl.u32 %v4379, 7
    %v4381 = vsub.s32 %v4195, %v4380
    %v4382 = vrot.slane %v3516, %v4381
    %v4383 = vsel %vm4200, %v4382, %v4378
    %v4384 = vlaneseq
    %v4385 = vshrl.u32 %v4384, 7
    %v4386 = vsub.s32 %v4202, %v4385
    %v4387 = vrot.slane %v3519, %v4386
    %v4388 = vsel %vm4207, %v4387, %v4383
    %v4389 = vlaneseq
    %v4390 = vshrl.u32 %v4389, 7
    %v4391 = vsub.s32 %v4209, %v4390
    %v4392 = vrot.slane %v3522, %v4391
    %v4393 = vsel %vm4214, %v4392, %v4388
    %v4394 = vlaneseq
    %v4395 = vshrl.u32 %v4394, 7
    %v4396 = vsub.s32 %v4216, %v4395
    %v4397 = vrot.slane %v3525, %v4396
    %v4398 = vsel %vm4221, %v4397, %v4393
    %v4399 = vlaneseq
    %v4400 = vshrl.u32 %v4399, 7
    %v4401 = vsub.s32 %v4223, %v4400
    %v4402 = vrot.slane %v3528, %v4401
    %v4403 = vsel %vm4228, %v4402, %v4398
    %v4404 = vlaneseq
    %v4405 = vshrl.u32 %v4404, 7
    %v4406 = vsub.s32 %v4230, %v4405
    %v4407 = vrot.slane %v3531, %v4406
    %v4408 = vsel %vm4235, %v4407, %v4403
    %v4409 = vlaneseq
    %v4410 = vshrl.u32 %v4409, 7
    %v4411 = vsub.s32 %v4237, %v4410
    %v4412 = vrot.slane %v3534, %v4411
    %v4413 = vsel %vm4242, %v4412, %v4408
    %v4414 = vlaneseq
    %v4415 = vshrl.u32 %v4414, 7
    %v4416 = vsub.s32 %v4244, %v4415
    %v4417 = vrot.slane %v3537, %v4416
    %v4418 = vsel %vm4249, %v4417, %v4413
    %v4419 = vlaneseq
    %v4420 = vshrl.u32 %v4419, 7
    %v4421 = vsub.s32 %v4251, %v4420
    %v4422 = vrot.slane %v3540, %v4421
    %v4423 = vsel %vm4256, %v4422, %v4418
    %v4424 = vlaneseq
    %v4425 = vshrl.u32 %v4424, 7
    %v4426 = vsub.s32 %v4258, %v4425
    %v4427 = vrot.slane %v3543, %v4426
    %v4428 = vsel %vm4263, %v4427, %v4423
    %v4429 = vlaneseq
    %v4430 = vshrl.u32 %v4429, 7
    %v4431 = vsub.s32 %v4265, %v4430
    %v4432 = vrot.slane %v3546, %v4431
    %v4433 = vsel %vm4270, %v4432, %v4428
    %v4434 = vlaneseq
    %v4435 = vshrl.u32 %v4434, 7
    %v4436 = vsub.s32 %v4272, %v4435
    %v4437 = vrot.slane %v3549, %v4436
    %v4438 = vsel %vm4277, %v4437, %v4433
    %v4439 = vlaneseq
    %v4440 = vshrl.u32 %v4439, 7
    %v4441 = vsub.s32 %v4279, %v4440
    %v4442 = vrot.slane %v3552, %v4441
    %v4443 = vsel %vm4284, %v4442, %v4438
    %v4444 = vlaneseq
    %v4445 = vshrl.u32 %v4444, 7
    %v4446 = vsub.s32 %v1429, %v4445
    %v4447 = vrot.slane %v3555, %v4446
    %v4448 = vlaneseq
    %v4449 = vshrl.u32 %v4448, 7
    %v4450 = vsub.s32 %v4181, %v4449
    %v4451 = vrot.slane %v3558, %v4450
    %v4452 = vsel %vm4186, %v4451, %v4447
    %v4453 = vlaneseq
    %v4454 = vshrl.u32 %v4453, 7
    %v4455 = vsub.s32 %v4188, %v4454
    %v4456 = vrot.slane %v3561, %v4455
    %v4457 = vsel %vm4193, %v4456, %v4452
    %v4458 = vlaneseq
    %v4459 = vshrl.u32 %v4458, 7
    %v4460 = vsub.s32 %v4195, %v4459
    %v4461 = vrot.slane %v3564, %v4460
    %v4462 = vsel %vm4200, %v4461, %v4457
    %v4463 = vlaneseq
    %v4464 = vshrl.u32 %v4463, 7
    %v4465 = vsub.s32 %v4202, %v4464
    %v4466 = vrot.slane %v3567, %v4465
    %v4467 = vsel %vm4207, %v4466, %v4462
    %v4468 = vlaneseq
    %v4469 = vshrl.u32 %v4468, 7
    %v4470 = vsub.s32 %v4209, %v4469
    %v4471 = vrot.slane %v3570, %v4470
    %v4472 = vsel %vm4214, %v4471, %v4467
    %v4473 = vlaneseq
    %v4474 = vshrl.u32 %v4473, 7
    %v4475 = vsub.s32 %v4216, %v4474
    %v4476 = vrot.slane %v3573, %v4475
    %v4477 = vsel %vm4221, %v4476, %v4472
    %v4478 = vlaneseq
    %v4479 = vshrl.u32 %v4478, 7
    %v4480 = vsub.s32 %v4223, %v4479
    %v4481 = vrot.slane %v3576, %v4480
    %v4482 = vsel %vm4228, %v4481, %v4477
    %v4483 = vlaneseq
    %v4484 = vshrl.u32 %v4483, 7
    %v4485 = vsub.s32 %v4230, %v4484
    %v4486 = vrot.slane %v3579, %v4485
    %v4487 = vsel %vm4235, %v4486, %v4482
    %v4488 = vlaneseq
    %v4489 = vshrl.u32 %v4488, 7
    %v4490 = vsub.s32 %v4237, %v4489
    %v4491 = vrot.slane %v3582, %v4490
    %v4492 = vsel %vm4242, %v4491, %v4487
    %v4493 = vlaneseq
    %v4494 = vshrl.u32 %v4493, 7
    %v4495 = vsub.s32 %v4244, %v4494
    %v4496 = vrot.slane %v3585, %v4495
    %v4497 = vsel %vm4249, %v4496, %v4492
    %v4498 = vlaneseq
    %v4499 = vshrl.u32 %v4498, 7
    %v4500 = vsub.s32 %v4251, %v4499
    %v4501 = vrot.slane %v3588, %v4500
    %v4502 = vsel %vm4256, %v4501, %v4497
    %v4503 = vlaneseq
    %v4504 = vshrl.u32 %v4503, 7
    %v4505 = vsub.s32 %v4258, %v4504
    %v4506 = vrot.slane %v3591, %v4505
    %v4507 = vsel %vm4263, %v4506, %v4502
    %v4508 = vlaneseq
    %v4509 = vshrl.u32 %v4508, 7
    %v4510 = vsub.s32 %v4265, %v4509
    %v4511 = vrot.slane %v3594, %v4510
    %v4512 = vsel %vm4270, %v4511, %v4507
    %v4513 = vlaneseq
    %v4514 = vshrl.u32 %v4513, 7
    %v4515 = vsub.s32 %v4272, %v4514
    %v4516 = vrot.slane %v3597, %v4515
    %v4517 = vsel %vm4277, %v4516, %v4512
    %v4518 = vlaneseq
    %v4519 = vshrl.u32 %v4518, 7
    %v4520 = vsub.s32 %v4279, %v4519
    %v4521 = vrot.slane %v3600, %v4520
    %v4522 = vsel %vm4284, %v4521, %v4517
    %v4523 = vlaneseq
    %v4524 = vshrl.u32 %v4523, 7
    %v4525 = vsub.s32 %v1429, %v4524
    %v4526 = vrot.slane %v3603, %v4525
    %v4527 = vlaneseq
    %v4528 = vshrl.u32 %v4527, 7
    %v4529 = vsub.s32 %v4181, %v4528
    %v4530 = vrot.slane %v3606, %v4529
    %v4531 = vsel %vm4186, %v4530, %v4526
    %v4532 = vlaneseq
    %v4533 = vshrl.u32 %v4532, 7
    %v4534 = vsub.s32 %v4188, %v4533
    %v4535 = vrot.slane %v3609, %v4534
    %v4536 = vsel %vm4193, %v4535, %v4531
    %v4537 = vlaneseq
    %v4538 = vshrl.u32 %v4537, 7
    %v4539 = vsub.s32 %v4195, %v4538
    %v4540 = vrot.slane %v3612, %v4539
    %v4541 = vsel %vm4200, %v4540, %v4536
    %v4542 = vlaneseq
    %v4543 = vshrl.u32 %v4542, 7
    %v4544 = vsub.s32 %v4202, %v4543
    %v4545 = vrot.slane %v3615, %v4544
    %v4546 = vsel %vm4207, %v4545, %v4541
    %v4547 = vlaneseq
    %v4548 = vshrl.u32 %v4547, 7
    %v4549 = vsub.s32 %v4209, %v4548
    %v4550 = vrot.slane %v3618, %v4549
    %v4551 = vsel %vm4214, %v4550, %v4546
    %v4552 = vlaneseq
    %v4553 = vshrl.u32 %v4552, 7
    %v4554 = vsub.s32 %v4216, %v4553
    %v4555 = vrot.slane %v3621, %v4554
    %v4556 = vsel %vm4221, %v4555, %v4551
    %v4557 = vlaneseq
    %v4558 = vshrl.u32 %v4557, 7
    %v4559 = vsub.s32 %v4223, %v4558
    %v4560 = vrot.slane %v3624, %v4559
    %v4561 = vsel %vm4228, %v4560, %v4556
    %v4562 = vlaneseq
    %v4563 = vshrl.u32 %v4562, 7
    %v4564 = vsub.s32 %v4230, %v4563
    %v4565 = vrot.slane %v3627, %v4564
    %v4566 = vsel %vm4235, %v4565, %v4561
    %v4567 = vlaneseq
    %v4568 = vshrl.u32 %v4567, 7
    %v4569 = vsub.s32 %v4237, %v4568
    %v4570 = vrot.slane %v3630, %v4569
    %v4571 = vsel %vm4242, %v4570, %v4566
    %v4572 = vlaneseq
    %v4573 = vshrl.u32 %v4572, 7
    %v4574 = vsub.s32 %v4244, %v4573
    %v4575 = vrot.slane %v3633, %v4574
    %v4576 = vsel %vm4249, %v4575, %v4571
    %v4577 = vlaneseq
    %v4578 = vshrl.u32 %v4577, 7
    %v4579 = vsub.s32 %v4251, %v4578
    %v4580 = vrot.slane %v3636, %v4579
    %v4581 = vsel %vm4256, %v4580, %v4576
    %v4582 = vlaneseq
    %v4583 = vshrl.u32 %v4582, 7
    %v4584 = vsub.s32 %v4258, %v4583
    %v4585 = vrot.slane %v3639, %v4584
    %v4586 = vsel %vm4263, %v4585, %v4581
    %v4587 = vlaneseq
    %v4588 = vshrl.u32 %v4587, 7
    %v4589 = vsub.s32 %v4265, %v4588
    %v4590 = vrot.slane %v3642, %v4589
    %v4591 = vsel %vm4270, %v4590, %v4586
    %v4592 = vlaneseq
    %v4593 = vshrl.u32 %v4592, 7
    %v4594 = vsub.s32 %v4272, %v4593
    %v4595 = vrot.slane %v3645, %v4594
    %v4596 = vsel %vm4277, %v4595, %v4591
    %v4597 = vlaneseq
    %v4598 = vshrl.u32 %v4597, 7
    %v4599 = vsub.s32 %v4279, %v4598
    %v4600 = vrot.slane %v3648, %v4599
    %v4601 = vsel %vm4284, %v4600, %v4596
    %v4602 = vlaneseq
    %v4603 = vshrl.u32 %v4602, 7
    %v4604 = vsub.s32 %v1429, %v4603
    %v4605 = vrot.slane %v3651, %v4604
    %v4606 = vlaneseq
    %v4607 = vshrl.u32 %v4606, 7
    %v4608 = vsub.s32 %v4181, %v4607
    %v4609 = vrot.slane %v3654, %v4608
    %v4610 = vsel %vm4186, %v4609, %v4605
    %v4611 = vlaneseq
    %v4612 = vshrl.u32 %v4611, 7
    %v4613 = vsub.s32 %v4188, %v4612
    %v4614 = vrot.slane %v3657, %v4613
    %v4615 = vsel %vm4193, %v4614, %v4610
    %v4616 = vlaneseq
    %v4617 = vshrl.u32 %v4616, 7
    %v4618 = vsub.s32 %v4195, %v4617
    %v4619 = vrot.slane %v3660, %v4618
    %v4620 = vsel %vm4200, %v4619, %v4615
    %v4621 = vlaneseq
    %v4622 = vshrl.u32 %v4621, 7
    %v4623 = vsub.s32 %v4202, %v4622
    %v4624 = vrot.slane %v3663, %v4623
    %v4625 = vsel %vm4207, %v4624, %v4620
    %v4626 = vlaneseq
    %v4627 = vshrl.u32 %v4626, 7
    %v4628 = vsub.s32 %v4209, %v4627
    %v4629 = vrot.slane %v3666, %v4628
    %v4630 = vsel %vm4214, %v4629, %v4625
    %v4631 = vlaneseq
    %v4632 = vshrl.u32 %v4631, 7
    %v4633 = vsub.s32 %v4216, %v4632
    %v4634 = vrot.slane %v3669, %v4633
    %v4635 = vsel %vm4221, %v4634, %v4630
    %v4636 = vlaneseq
    %v4637 = vshrl.u32 %v4636, 7
    %v4638 = vsub.s32 %v4223, %v4637
    %v4639 = vrot.slane %v3672, %v4638
    %v4640 = vsel %vm4228, %v4639, %v4635
    %v4641 = vlaneseq
    %v4642 = vshrl.u32 %v4641, 7
    %v4643 = vsub.s32 %v4230, %v4642
    %v4644 = vrot.slane %v3675, %v4643
    %v4645 = vsel %vm4235, %v4644, %v4640
    %v4646 = vlaneseq
    %v4647 = vshrl.u32 %v4646, 7
    %v4648 = vsub.s32 %v4237, %v4647
    %v4649 = vrot.slane %v3678, %v4648
    %v4650 = vsel %vm4242, %v4649, %v4645
    %v4651 = vlaneseq
    %v4652 = vshrl.u32 %v4651, 7
    %v4653 = vsub.s32 %v4244, %v4652
    %v4654 = vrot.slane %v3681, %v4653
    %v4655 = vsel %vm4249, %v4654, %v4650
    %v4656 = vlaneseq
    %v4657 = vshrl.u32 %v4656, 7
    %v4658 = vsub.s32 %v4251, %v4657
    %v4659 = vrot.slane %v3684, %v4658
    %v4660 = vsel %vm4256, %v4659, %v4655
    %v4661 = vlaneseq
    %v4662 = vshrl.u32 %v4661, 7
    %v4663 = vsub.s32 %v4258, %v4662
    %v4664 = vrot.slane %v3687, %v4663
    %v4665 = vsel %vm4263, %v4664, %v4660
    %v4666 = vlaneseq
    %v4667 = vshrl.u32 %v4666, 7
    %v4668 = vsub.s32 %v4265, %v4667
    %v4669 = vrot.slane %v3690, %v4668
    %v4670 = vsel %vm4270, %v4669, %v4665
    %v4671 = vlaneseq
    %v4672 = vshrl.u32 %v4671, 7
    %v4673 = vsub.s32 %v4272, %v4672
    %v4674 = vrot.slane %v3693, %v4673
    %v4675 = vsel %vm4277, %v4674, %v4670
    %v4676 = vlaneseq
    %v4677 = vshrl.u32 %v4676, 7
    %v4678 = vsub.s32 %v4279, %v4677
    %v4679 = vrot.slane %v3696, %v4678
    %v4680 = vsel %vm4284, %v4679, %v4675
    %v4681 = vlaneseq
    %v4682 = vshrl.u32 %v4681, 7
    %v4683 = vsub.s32 %v1429, %v4682
    %v4684 = vrot.slane %v3699, %v4683
    %v4685 = vlaneseq
    %v4686 = vshrl.u32 %v4685, 7
    %v4687 = vsub.s32 %v4181, %v4686
    %v4688 = vrot.slane %v3702, %v4687
    %v4689 = vsel %vm4186, %v4688, %v4684
    %v4690 = vlaneseq
    %v4691 = vshrl.u32 %v4690, 7
    %v4692 = vsub.s32 %v4188, %v4691
    %v4693 = vrot.slane %v3705, %v4692
    %v4694 = vsel %vm4193, %v4693, %v4689
    %v4695 = vlaneseq
    %v4696 = vshrl.u32 %v4695, 7
    %v4697 = vsub.s32 %v4195, %v4696
    %v4698 = vrot.slane %v3708, %v4697
    %v4699 = vsel %vm4200, %v4698, %v4694
    %v4700 = vlaneseq
    %v4701 = vshrl.u32 %v4700, 7
    %v4702 = vsub.s32 %v4202, %v4701
    %v4703 = vrot.slane %v3711, %v4702
    %v4704 = vsel %vm4207, %v4703, %v4699
    %v4705 = vlaneseq
    %v4706 = vshrl.u32 %v4705, 7
    %v4707 = vsub.s32 %v4209, %v4706
    %v4708 = vrot.slane %v3714, %v4707
    %v4709 = vsel %vm4214, %v4708, %v4704
    %v4710 = vlaneseq
    %v4711 = vshrl.u32 %v4710, 7
    %v4712 = vsub.s32 %v4216, %v4711
    %v4713 = vrot.slane %v3717, %v4712
    %v4714 = vsel %vm4221, %v4713, %v4709
    %v4715 = vlaneseq
    %v4716 = vshrl.u32 %v4715, 7
    %v4717 = vsub.s32 %v4223, %v4716
    %v4718 = vrot.slane %v3720, %v4717
    %v4719 = vsel %vm4228, %v4718, %v4714
    %v4720 = vlaneseq
    %v4721 = vshrl.u32 %v4720, 7
    %v4722 = vsub.s32 %v4230, %v4721
    %v4723 = vrot.slane %v3723, %v4722
    %v4724 = vsel %vm4235, %v4723, %v4719
    %v4725 = vlaneseq
    %v4726 = vshrl.u32 %v4725, 7
    %v4727 = vsub.s32 %v4237, %v4726
    %v4728 = vrot.slane %v3726, %v4727
    %v4729 = vsel %vm4242, %v4728, %v4724
    %v4730 = vlaneseq
    %v4731 = vshrl.u32 %v4730, 7
    %v4732 = vsub.s32 %v4244, %v4731
    %v4733 = vrot.slane %v3729, %v4732
    %v4734 = vsel %vm4249, %v4733, %v4729
    %v4735 = vlaneseq
    %v4736 = vshrl.u32 %v4735, 7
    %v4737 = vsub.s32 %v4251, %v4736
    %v4738 = vrot.slane %v3732, %v4737
    %v4739 = vsel %vm4256, %v4738, %v4734
    %v4740 = vlaneseq
    %v4741 = vshrl.u32 %v4740, 7
    %v4742 = vsub.s32 %v4258, %v4741
    %v4743 = vrot.slane %v3735, %v4742
    %v4744 = vsel %vm4263, %v4743, %v4739
    %v4745 = vlaneseq
    %v4746 = vshrl.u32 %v4745, 7
    %v4747 = vsub.s32 %v4265, %v4746
    %v4748 = vrot.slane %v3738, %v4747
    %v4749 = vsel %vm4270, %v4748, %v4744
    %v4750 = vlaneseq
    %v4751 = vshrl.u32 %v4750, 7
    %v4752 = vsub.s32 %v4272, %v4751
    %v4753 = vrot.slane %v3741, %v4752
    %v4754 = vsel %vm4277, %v4753, %v4749
    %v4755 = vlaneseq
    %v4756 = vshrl.u32 %v4755, 7
    %v4757 = vsub.s32 %v4279, %v4756
    %v4758 = vrot.slane %v3744, %v4757
    %v4759 = vsel %vm4284, %v4758, %v4754
    %v4760 = vlaneseq
    %v4761 = vshrl.u32 %v4760, 7
    %v4762 = vsub.s32 %v1429, %v4761
    %v4763 = vrot.slane %v3747, %v4762
    %v4764 = vlaneseq
    %v4765 = vshrl.u32 %v4764, 7
    %v4766 = vsub.s32 %v4181, %v4765
    %v4767 = vrot.slane %v3750, %v4766
    %v4768 = vsel %vm4186, %v4767, %v4763
    %v4769 = vlaneseq
    %v4770 = vshrl.u32 %v4769, 7
    %v4771 = vsub.s32 %v4188, %v4770
    %v4772 = vrot.slane %v3753, %v4771
    %v4773 = vsel %vm4193, %v4772, %v4768
    %v4774 = vlaneseq
    %v4775 = vshrl.u32 %v4774, 7
    %v4776 = vsub.s32 %v4195, %v4775
    %v4777 = vrot.slane %v3756, %v4776
    %v4778 = vsel %vm4200, %v4777, %v4773
    %v4779 = vlaneseq
    %v4780 = vshrl.u32 %v4779, 7
    %v4781 = vsub.s32 %v4202, %v4780
    %v4782 = vrot.slane %v3759, %v4781
    %v4783 = vsel %vm4207, %v4782, %v4778
    %v4784 = vlaneseq
    %v4785 = vshrl.u32 %v4784, 7
    %v4786 = vsub.s32 %v4209, %v4785
    %v4787 = vrot.slane %v3762, %v4786
    %v4788 = vsel %vm4214, %v4787, %v4783
    %v4789 = vlaneseq
    %v4790 = vshrl.u32 %v4789, 7
    %v4791 = vsub.s32 %v4216, %v4790
    %v4792 = vrot.slane %v3765, %v4791
    %v4793 = vsel %vm4221, %v4792, %v4788
    %v4794 = vlaneseq
    %v4795 = vshrl.u32 %v4794, 7
    %v4796 = vsub.s32 %v4223, %v4795
    %v4797 = vrot.slane %v3768, %v4796
    %v4798 = vsel %vm4228, %v4797, %v4793
    %v4799 = vlaneseq
    %v4800 = vshrl.u32 %v4799, 7
    %v4801 = vsub.s32 %v4230, %v4800
    %v4802 = vrot.slane %v3771, %v4801
    %v4803 = vsel %vm4235, %v4802, %v4798
    %v4804 = vlaneseq
    %v4805 = vshrl.u32 %v4804, 7
    %v4806 = vsub.s32 %v4237, %v4805
    %v4807 = vrot.slane %v3774, %v4806
    %v4808 = vsel %vm4242, %v4807, %v4803
    %v4809 = vlaneseq
    %v4810 = vshrl.u32 %v4809, 7
    %v4811 = vsub.s32 %v4244, %v4810
    %v4812 = vrot.slane %v3777, %v4811
    %v4813 = vsel %vm4249, %v4812, %v4808
    %v4814 = vlaneseq
    %v4815 = vshrl.u32 %v4814, 7
    %v4816 = vsub.s32 %v4251, %v4815
    %v4817 = vrot.slane %v3780, %v4816
    %v4818 = vsel %vm4256, %v4817, %v4813
    %v4819 = vlaneseq
    %v4820 = vshrl.u32 %v4819, 7
    %v4821 = vsub.s32 %v4258, %v4820
    %v4822 = vrot.slane %v3783, %v4821
    %v4823 = vsel %vm4263, %v4822, %v4818
    %v4824 = vlaneseq
    %v4825 = vshrl.u32 %v4824, 7
    %v4826 = vsub.s32 %v4265, %v4825
    %v4827 = vrot.slane %v3786, %v4826
    %v4828 = vsel %vm4270, %v4827, %v4823
    %v4829 = vlaneseq
    %v4830 = vshrl.u32 %v4829, 7
    %v4831 = vsub.s32 %v4272, %v4830
    %v4832 = vrot.slane %v3789, %v4831
    %v4833 = vsel %vm4277, %v4832, %v4828
    %v4834 = vlaneseq
    %v4835 = vshrl.u32 %v4834, 7
    %v4836 = vsub.s32 %v4279, %v4835
    %v4837 = vrot.slane %v3792, %v4836
    %v4838 = vsel %vm4284, %v4837, %v4833
    %v4839 = vlaneseq
    %v4840 = vshrl.u32 %v4839, 7
    %v4841 = vsub.s32 %v1429, %v4840
    %v4842 = vrot.slane %v3795, %v4841
    %v4843 = vlaneseq
    %v4844 = vshrl.u32 %v4843, 7
    %v4845 = vsub.s32 %v4181, %v4844
    %v4846 = vrot.slane %v3798, %v4845
    %v4847 = vsel %vm4186, %v4846, %v4842
    %v4848 = vlaneseq
    %v4849 = vshrl.u32 %v4848, 7
    %v4850 = vsub.s32 %v4188, %v4849
    %v4851 = vrot.slane %v3801, %v4850
    %v4852 = vsel %vm4193, %v4851, %v4847
    %v4853 = vlaneseq
    %v4854 = vshrl.u32 %v4853, 7
    %v4855 = vsub.s32 %v4195, %v4854
    %v4856 = vrot.slane %v3804, %v4855
    %v4857 = vsel %vm4200, %v4856, %v4852
    %v4858 = vlaneseq
    %v4859 = vshrl.u32 %v4858, 7
    %v4860 = vsub.s32 %v4202, %v4859
    %v4861 = vrot.slane %v3807, %v4860
    %v4862 = vsel %vm4207, %v4861, %v4857
    %v4863 = vlaneseq
    %v4864 = vshrl.u32 %v4863, 7
    %v4865 = vsub.s32 %v4209, %v4864
    %v4866 = vrot.slane %v3810, %v4865
    %v4867 = vsel %vm4214, %v4866, %v4862
    %v4868 = vlaneseq
    %v4869 = vshrl.u32 %v4868, 7
    %v4870 = vsub.s32 %v4216, %v4869
    %v4871 = vrot.slane %v3813, %v4870
    %v4872 = vsel %vm4221, %v4871, %v4867
    %v4873 = vlaneseq
    %v4874 = vshrl.u32 %v4873, 7
    %v4875 = vsub.s32 %v4223, %v4874
    %v4876 = vrot.slane %v3816, %v4875
    %v4877 = vsel %vm4228, %v4876, %v4872
    %v4878 = vlaneseq
    %v4879 = vshrl.u32 %v4878, 7
    %v4880 = vsub.s32 %v4230, %v4879
    %v4881 = vrot.slane %v3819, %v4880
    %v4882 = vsel %vm4235, %v4881, %v4877
    %v4883 = vlaneseq
    %v4884 = vshrl.u32 %v4883, 7
    %v4885 = vsub.s32 %v4237, %v4884
    %v4886 = vrot.slane %v3822, %v4885
    %v4887 = vsel %vm4242, %v4886, %v4882
    %v4888 = vlaneseq
    %v4889 = vshrl.u32 %v4888, 7
    %v4890 = vsub.s32 %v4244, %v4889
    %v4891 = vrot.slane %v3825, %v4890
    %v4892 = vsel %vm4249, %v4891, %v4887
    %v4893 = vlaneseq
    %v4894 = vshrl.u32 %v4893, 7
    %v4895 = vsub.s32 %v4251, %v4894
    %v4896 = vrot.slane %v3828, %v4895
    %v4897 = vsel %vm4256, %v4896, %v4892
    %v4898 = vlaneseq
    %v4899 = vshrl.u32 %v4898, 7
    %v4900 = vsub.s32 %v4258, %v4899
    %v4901 = vrot.slane %v3831, %v4900
    %v4902 = vsel %vm4263, %v4901, %v4897
    %v4903 = vlaneseq
    %v4904 = vshrl.u32 %v4903, 7
    %v4905 = vsub.s32 %v4265, %v4904
    %v4906 = vrot.slane %v3834, %v4905
    %v4907 = vsel %vm4270, %v4906, %v4902
    %v4908 = vlaneseq
    %v4909 = vshrl.u32 %v4908, 7
    %v4910 = vsub.s32 %v4272, %v4909
    %v4911 = vrot.slane %v3837, %v4910
    %v4912 = vsel %vm4277, %v4911, %v4907
    %v4913 = vlaneseq
    %v4914 = vshrl.u32 %v4913, 7
    %v4915 = vsub.s32 %v4279, %v4914
    %v4916 = vrot.slane %v3840, %v4915
    %v4917 = vsel %vm4284, %v4916, %v4912
    %v4918 = vlaneseq
    %v4919 = vshrl.u32 %v4918, 7
    %v4920 = vsub.s32 %v1429, %v4919
    %v4921 = vrot.slane %v3843, %v4920
    %v4922 = vlaneseq
    %v4923 = vshrl.u32 %v4922, 7
    %v4924 = vsub.s32 %v4181, %v4923
    %v4925 = vrot.slane %v3846, %v4924
    %v4926 = vsel %vm4186, %v4925, %v4921
    %v4927 = vlaneseq
    %v4928 = vshrl.u32 %v4927, 7
    %v4929 = vsub.s32 %v4188, %v4928
    %v4930 = vrot.slane %v3849, %v4929
    %v4931 = vsel %vm4193, %v4930, %v4926
    %v4932 = vlaneseq
    %v4933 = vshrl.u32 %v4932, 7
    %v4934 = vsub.s32 %v4195, %v4933
    %v4935 = vrot.slane %v3852, %v4934
    %v4936 = vsel %vm4200, %v4935, %v4931
    %v4937 = vlaneseq
    %v4938 = vshrl.u32 %v4937, 7
    %v4939 = vsub.s32 %v4202, %v4938
    %v4940 = vrot.slane %v3855, %v4939
    %v4941 = vsel %vm4207, %v4940, %v4936
    %v4942 = vlaneseq
    %v4943 = vshrl.u32 %v4942, 7
    %v4944 = vsub.s32 %v4209, %v4943
    %v4945 = vrot.slane %v3858, %v4944
    %v4946 = vsel %vm4214, %v4945, %v4941
    %v4947 = vlaneseq
    %v4948 = vshrl.u32 %v4947, 7
    %v4949 = vsub.s32 %v4216, %v4948
    %v4950 = vrot.slane %v3861, %v4949
    %v4951 = vsel %vm4221, %v4950, %v4946
    %v4952 = vlaneseq
    %v4953 = vshrl.u32 %v4952, 7
    %v4954 = vsub.s32 %v4223, %v4953
    %v4955 = vrot.slane %v3864, %v4954
    %v4956 = vsel %vm4228, %v4955, %v4951
    %v4957 = vlaneseq
    %v4958 = vshrl.u32 %v4957, 7
    %v4959 = vsub.s32 %v4230, %v4958
    %v4960 = vrot.slane %v3867, %v4959
    %v4961 = vsel %vm4235, %v4960, %v4956
    %v4962 = vlaneseq
    %v4963 = vshrl.u32 %v4962, 7
    %v4964 = vsub.s32 %v4237, %v4963
    %v4965 = vrot.slane %v3870, %v4964
    %v4966 = vsel %vm4242, %v4965, %v4961
    %v4967 = vlaneseq
    %v4968 = vshrl.u32 %v4967, 7
    %v4969 = vsub.s32 %v4244, %v4968
    %v4970 = vrot.slane %v3873, %v4969
    %v4971 = vsel %vm4249, %v4970, %v4966
    %v4972 = vlaneseq
    %v4973 = vshrl.u32 %v4972, 7
    %v4974 = vsub.s32 %v4251, %v4973
    %v4975 = vrot.slane %v3876, %v4974
    %v4976 = vsel %vm4256, %v4975, %v4971
    %v4977 = vlaneseq
    %v4978 = vshrl.u32 %v4977, 7
    %v4979 = vsub.s32 %v4258, %v4978
    %v4980 = vrot.slane %v3879, %v4979
    %v4981 = vsel %vm4263, %v4980, %v4976
    %v4982 = vlaneseq
    %v4983 = vshrl.u32 %v4982, 7
    %v4984 = vsub.s32 %v4265, %v4983
    %v4985 = vrot.slane %v3882, %v4984
    %v4986 = vsel %vm4270, %v4985, %v4981
    %v4987 = vlaneseq
    %v4988 = vshrl.u32 %v4987, 7
    %v4989 = vsub.s32 %v4272, %v4988
    %v4990 = vrot.slane %v3885, %v4989
    %v4991 = vsel %vm4277, %v4990, %v4986
    %v4992 = vlaneseq
    %v4993 = vshrl.u32 %v4992, 7
    %v4994 = vsub.s32 %v4279, %v4993
    %v4995 = vrot.slane %v3888, %v4994
    %v4996 = vsel %vm4284, %v4995, %v4991
    %v4997 = vlaneseq
    %v4998 = vshrl.u32 %v4997, 7
    %v4999 = vsub.s32 %v1429, %v4998
    %v5000 = vrot.slane %v3891, %v4999
    %v5001 = vlaneseq
    %v5002 = vshrl.u32 %v5001, 7
    %v5003 = vsub.s32 %v4181, %v5002
    %v5004 = vrot.slane %v3894, %v5003
    %v5005 = vsel %vm4186, %v5004, %v5000
    %v5006 = vlaneseq
    %v5007 = vshrl.u32 %v5006, 7
    %v5008 = vsub.s32 %v4188, %v5007
    %v5009 = vrot.slane %v3897, %v5008
    %v5010 = vsel %vm4193, %v5009, %v5005
    %v5011 = vlaneseq
    %v5012 = vshrl.u32 %v5011, 7
    %v5013 = vsub.s32 %v4195, %v5012
    %v5014 = vrot.slane %v3900, %v5013
    %v5015 = vsel %vm4200, %v5014, %v5010
    %v5016 = vlaneseq
    %v5017 = vshrl.u32 %v5016, 7
    %v5018 = vsub.s32 %v4202, %v5017
    %v5019 = vrot.slane %v3903, %v5018
    %v5020 = vsel %vm4207, %v5019, %v5015
    %v5021 = vlaneseq
    %v5022 = vshrl.u32 %v5021, 7
    %v5023 = vsub.s32 %v4209, %v5022
    %v5024 = vrot.slane %v3906, %v5023
    %v5025 = vsel %vm4214, %v5024, %v5020
    %v5026 = vlaneseq
    %v5027 = vshrl.u32 %v5026, 7
    %v5028 = vsub.s32 %v4216, %v5027
    %v5029 = vrot.slane %v3909, %v5028
    %v5030 = vsel %vm4221, %v5029, %v5025
    %v5031 = vlaneseq
    %v5032 = vshrl.u32 %v5031, 7
    %v5033 = vsub.s32 %v4223, %v5032
    %v5034 = vrot.slane %v3912, %v5033
    %v5035 = vsel %vm4228, %v5034, %v5030
    %v5036 = vlaneseq
    %v5037 = vshrl.u32 %v5036, 7
    %v5038 = vsub.s32 %v4230, %v5037
    %v5039 = vrot.slane %v3915, %v5038
    %v5040 = vsel %vm4235, %v5039, %v5035
    %v5041 = vlaneseq
    %v5042 = vshrl.u32 %v5041, 7
    %v5043 = vsub.s32 %v4237, %v5042
    %v5044 = vrot.slane %v3918, %v5043
    %v5045 = vsel %vm4242, %v5044, %v5040
    %v5046 = vlaneseq
    %v5047 = vshrl.u32 %v5046, 7
    %v5048 = vsub.s32 %v4244, %v5047
    %v5049 = vrot.slane %v3921, %v5048
    %v5050 = vsel %vm4249, %v5049, %v5045
    %v5051 = vlaneseq
    %v5052 = vshrl.u32 %v5051, 7
    %v5053 = vsub.s32 %v4251, %v5052
    %v5054 = vrot.slane %v3924, %v5053
    %v5055 = vsel %vm4256, %v5054, %v5050
    %v5056 = vlaneseq
    %v5057 = vshrl.u32 %v5056, 7
    %v5058 = vsub.s32 %v4258, %v5057
    %v5059 = vrot.slane %v3927, %v5058
    %v5060 = vsel %vm4263, %v5059, %v5055
    %v5061 = vlaneseq
    %v5062 = vshrl.u32 %v5061, 7
    %v5063 = vsub.s32 %v4265, %v5062
    %v5064 = vrot.slane %v3930, %v5063
    %v5065 = vsel %vm4270, %v5064, %v5060
    %v5066 = vlaneseq
    %v5067 = vshrl.u32 %v5066, 7
    %v5068 = vsub.s32 %v4272, %v5067
    %v5069 = vrot.slane %v3933, %v5068
    %v5070 = vsel %vm4277, %v5069, %v5065
    %v5071 = vlaneseq
    %v5072 = vshrl.u32 %v5071, 7
    %v5073 = vsub.s32 %v4279, %v5072
    %v5074 = vrot.slane %v3936, %v5073
    %v5075 = vsel %vm4284, %v5074, %v5070
    %v5076 = vlaneseq
    %v5077 = vshrl.u32 %v5076, 7
    %v5078 = vsub.s32 %v1429, %v5077
    %v5079 = vrot.slane %v3939, %v5078
    %v5080 = vlaneseq
    %v5081 = vshrl.u32 %v5080, 7
    %v5082 = vsub.s32 %v4181, %v5081
    %v5083 = vrot.slane %v3942, %v5082
    %v5084 = vsel %vm4186, %v5083, %v5079
    %v5085 = vlaneseq
    %v5086 = vshrl.u32 %v5085, 7
    %v5087 = vsub.s32 %v4188, %v5086
    %v5088 = vrot.slane %v3945, %v5087
    %v5089 = vsel %vm4193, %v5088, %v5084
    %v5090 = vlaneseq
    %v5091 = vshrl.u32 %v5090, 7
    %v5092 = vsub.s32 %v4195, %v5091
    %v5093 = vrot.slane %v3948, %v5092
    %v5094 = vsel %vm4200, %v5093, %v5089
    %v5095 = vlaneseq
    %v5096 = vshrl.u32 %v5095, 7
    %v5097 = vsub.s32 %v4202, %v5096
    %v5098 = vrot.slane %v3951, %v5097
    %v5099 = vsel %vm4207, %v5098, %v5094
    %v5100 = vlaneseq
    %v5101 = vshrl.u32 %v5100, 7
    %v5102 = vsub.s32 %v4209, %v5101
    %v5103 = vrot.slane %v3954, %v5102
    %v5104 = vsel %vm4214, %v5103, %v5099
    %v5105 = vlaneseq
    %v5106 = vshrl.u32 %v5105, 7
    %v5107 = vsub.s32 %v4216, %v5106
    %v5108 = vrot.slane %v3957, %v5107
    %v5109 = vsel %vm4221, %v5108, %v5104
    %v5110 = vlaneseq
    %v5111 = vshrl.u32 %v5110, 7
    %v5112 = vsub.s32 %v4223, %v5111
    %v5113 = vrot.slane %v3960, %v5112
    %v5114 = vsel %vm4228, %v5113, %v5109
    %v5115 = vlaneseq
    %v5116 = vshrl.u32 %v5115, 7
    %v5117 = vsub.s32 %v4230, %v5116
    %v5118 = vrot.slane %v3963, %v5117
    %v5119 = vsel %vm4235, %v5118, %v5114
    %v5120 = vlaneseq
    %v5121 = vshrl.u32 %v5120, 7
    %v5122 = vsub.s32 %v4237, %v5121
    %v5123 = vrot.slane %v3966, %v5122
    %v5124 = vsel %vm4242, %v5123, %v5119
    %v5125 = vlaneseq
    %v5126 = vshrl.u32 %v5125, 7
    %v5127 = vsub.s32 %v4244, %v5126
    %v5128 = vrot.slane %v3969, %v5127
    %v5129 = vsel %vm4249, %v5128, %v5124
    %v5130 = vlaneseq
    %v5131 = vshrl.u32 %v5130, 7
    %v5132 = vsub.s32 %v4251, %v5131
    %v5133 = vrot.slane %v3972, %v5132
    %v5134 = vsel %vm4256, %v5133, %v5129
    %v5135 = vlaneseq
    %v5136 = vshrl.u32 %v5135, 7
    %v5137 = vsub.s32 %v4258, %v5136
    %v5138 = vrot.slane %v3975, %v5137
    %v5139 = vsel %vm4263, %v5138, %v5134
    %v5140 = vlaneseq
    %v5141 = vshrl.u32 %v5140, 7
    %v5142 = vsub.s32 %v4265, %v5141
    %v5143 = vrot.slane %v3978, %v5142
    %v5144 = vsel %vm4270, %v5143, %v5139
    %v5145 = vlaneseq
    %v5146 = vshrl.u32 %v5145, 7
    %v5147 = vsub.s32 %v4272, %v5146
    %v5148 = vrot.slane %v3981, %v5147
    %v5149 = vsel %vm4277, %v5148, %v5144
    %v5150 = vlaneseq
    %v5151 = vshrl.u32 %v5150, 7
    %v5152 = vsub.s32 %v4279, %v5151
    %v5153 = vrot.slane %v3984, %v5152
    %v5154 = vsel %vm4284, %v5153, %v5149
    %v5155 = vlaneseq
    %v5156 = vshrl.u32 %v5155, 7
    %v5157 = vsub.s32 %v1429, %v5156
    %v5158 = vrot.slane %v3987, %v5157
    %v5159 = vlaneseq
    %v5160 = vshrl.u32 %v5159, 7
    %v5161 = vsub.s32 %v4181, %v5160
    %v5162 = vrot.slane %v3990, %v5161
    %v5163 = vsel %vm4186, %v5162, %v5158
    %v5164 = vlaneseq
    %v5165 = vshrl.u32 %v5164, 7
    %v5166 = vsub.s32 %v4188, %v5165
    %v5167 = vrot.slane %v3993, %v5166
    %v5168 = vsel %vm4193, %v5167, %v5163
    %v5169 = vlaneseq
    %v5170 = vshrl.u32 %v5169, 7
    %v5171 = vsub.s32 %v4195, %v5170
    %v5172 = vrot.slane %v3996, %v5171
    %v5173 = vsel %vm4200, %v5172, %v5168
    %v5174 = vlaneseq
    %v5175 = vshrl.u32 %v5174, 7
    %v5176 = vsub.s32 %v4202, %v5175
    %v5177 = vrot.slane %v3999, %v5176
    %v5178 = vsel %vm4207, %v5177, %v5173
    %v5179 = vlaneseq
    %v5180 = vshrl.u32 %v5179, 7
    %v5181 = vsub.s32 %v4209, %v5180
    %v5182 = vrot.slane %v4002, %v5181
    %v5183 = vsel %vm4214, %v5182, %v5178
    %v5184 = vlaneseq
    %v5185 = vshrl.u32 %v5184, 7
    %v5186 = vsub.s32 %v4216, %v5185
    %v5187 = vrot.slane %v4005, %v5186
    %v5188 = vsel %vm4221, %v5187, %v5183
    %v5189 = vlaneseq
    %v5190 = vshrl.u32 %v5189, 7
    %v5191 = vsub.s32 %v4223, %v5190
    %v5192 = vrot.slane %v4008, %v5191
    %v5193 = vsel %vm4228, %v5192, %v5188
    %v5194 = vlaneseq
    %v5195 = vshrl.u32 %v5194, 7
    %v5196 = vsub.s32 %v4230, %v5195
    %v5197 = vrot.slane %v4011, %v5196
    %v5198 = vsel %vm4235, %v5197, %v5193
    %v5199 = vlaneseq
    %v5200 = vshrl.u32 %v5199, 7
    %v5201 = vsub.s32 %v4237, %v5200
    %v5202 = vrot.slane %v4014, %v5201
    %v5203 = vsel %vm4242, %v5202, %v5198
    %v5204 = vlaneseq
    %v5205 = vshrl.u32 %v5204, 7
    %v5206 = vsub.s32 %v4244, %v5205
    %v5207 = vrot.slane %v4017, %v5206
    %v5208 = vsel %vm4249, %v5207, %v5203
    %v5209 = vlaneseq
    %v5210 = vshrl.u32 %v5209, 7
    %v5211 = vsub.s32 %v4251, %v5210
    %v5212 = vrot.slane %v4020, %v5211
    %v5213 = vsel %vm4256, %v5212, %v5208
    %v5214 = vlaneseq
    %v5215 = vshrl.u32 %v5214, 7
    %v5216 = vsub.s32 %v4258, %v5215
    %v5217 = vrot.slane %v4023, %v5216
    %v5218 = vsel %vm4263, %v5217, %v5213
    %v5219 = vlaneseq
    %v5220 = vshrl.u32 %v5219, 7
    %v5221 = vsub.s32 %v4265, %v5220
    %v5222 = vrot.slane %v4026, %v5221
    %v5223 = vsel %vm4270, %v5222, %v5218
    %v5224 = vlaneseq
    %v5225 = vshrl.u32 %v5224, 7
    %v5226 = vsub.s32 %v4272, %v5225
    %v5227 = vrot.slane %v4029, %v5226
    %v5228 = vsel %vm4277, %v5227, %v5223
    %v5229 = vlaneseq
    %v5230 = vshrl.u32 %v5229, 7
    %v5231 = vsub.s32 %v4279, %v5230
    %v5232 = vrot.slane %v4032, %v5231
    %v5233 = vsel %vm4284, %v5232, %v5228
    %v5234 = vlaneseq
    %v5235 = vshrl.u32 %v5234, 7
    %v5236 = vsub.s32 %v1429, %v5235
    %v5237 = vrot.slane %v4035, %v5236
    %v5238 = vlaneseq
    %v5239 = vshrl.u32 %v5238, 7
    %v5240 = vsub.s32 %v4181, %v5239
    %v5241 = vrot.slane %v4038, %v5240
    %v5242 = vsel %vm4186, %v5241, %v5237
    %v5243 = vlaneseq
    %v5244 = vshrl.u32 %v5243, 7
    %v5245 = vsub.s32 %v4188, %v5244
    %v5246 = vrot.slane %v4041, %v5245
    %v5247 = vsel %vm4193, %v5246, %v5242
    %v5248 = vlaneseq
    %v5249 = vshrl.u32 %v5248, 7
    %v5250 = vsub.s32 %v4195, %v5249
    %v5251 = vrot.slane %v4044, %v5250
    %v5252 = vsel %vm4200, %v5251, %v5247
    %v5253 = vlaneseq
    %v5254 = vshrl.u32 %v5253, 7
    %v5255 = vsub.s32 %v4202, %v5254
    %v5256 = vrot.slane %v4047, %v5255
    %v5257 = vsel %vm4207, %v5256, %v5252
    %v5258 = vlaneseq
    %v5259 = vshrl.u32 %v5258, 7
    %v5260 = vsub.s32 %v4209, %v5259
    %v5261 = vrot.slane %v4050, %v5260
    %v5262 = vsel %vm4214, %v5261, %v5257
    %v5263 = vlaneseq
    %v5264 = vshrl.u32 %v5263, 7
    %v5265 = vsub.s32 %v4216, %v5264
    %v5266 = vrot.slane %v4053, %v5265
    %v5267 = vsel %vm4221, %v5266, %v5262
    %v5268 = vlaneseq
    %v5269 = vshrl.u32 %v5268, 7
    %v5270 = vsub.s32 %v4223, %v5269
    %v5271 = vrot.slane %v4056, %v5270
    %v5272 = vsel %vm4228, %v5271, %v5267
    %v5273 = vlaneseq
    %v5274 = vshrl.u32 %v5273, 7
    %v5275 = vsub.s32 %v4230, %v5274
    %v5276 = vrot.slane %v4059, %v5275
    %v5277 = vsel %vm4235, %v5276, %v5272
    %v5278 = vlaneseq
    %v5279 = vshrl.u32 %v5278, 7
    %v5280 = vsub.s32 %v4237, %v5279
    %v5281 = vrot.slane %v4062, %v5280
    %v5282 = vsel %vm4242, %v5281, %v5277
    %v5283 = vlaneseq
    %v5284 = vshrl.u32 %v5283, 7
    %v5285 = vsub.s32 %v4244, %v5284
    %v5286 = vrot.slane %v4065, %v5285
    %v5287 = vsel %vm4249, %v5286, %v5282
    %v5288 = vlaneseq
    %v5289 = vshrl.u32 %v5288, 7
    %v5290 = vsub.s32 %v4251, %v5289
    %v5291 = vrot.slane %v4068, %v5290
    %v5292 = vsel %vm4256, %v5291, %v5287
    %v5293 = vlaneseq
    %v5294 = vshrl.u32 %v5293, 7
    %v5295 = vsub.s32 %v4258, %v5294
    %v5296 = vrot.slane %v4071, %v5295
    %v5297 = vsel %vm4263, %v5296, %v5292
    %v5298 = vlaneseq
    %v5299 = vshrl.u32 %v5298, 7
    %v5300 = vsub.s32 %v4265, %v5299
    %v5301 = vrot.slane %v4074, %v5300
    %v5302 = vsel %vm4270, %v5301, %v5297
    %v5303 = vlaneseq
    %v5304 = vshrl.u32 %v5303, 7
    %v5305 = vsub.s32 %v4272, %v5304
    %v5306 = vrot.slane %v4077, %v5305
    %v5307 = vsel %vm4277, %v5306, %v5302
    %v5308 = vlaneseq
    %v5309 = vshrl.u32 %v5308, 7
    %v5310 = vsub.s32 %v4279, %v5309
    %v5311 = vrot.slane %v4080, %v5310
    %v5312 = vsel %vm4284, %v5311, %v5307
    %v5313 = vlaneseq
    %v5314 = vshrl.u32 %v5313, 7
    %v5315 = vsub.s32 %v1429, %v5314
    %v5316 = vrot.slane %v4083, %v5315
    %v5317 = vlaneseq
    %v5318 = vshrl.u32 %v5317, 7
    %v5319 = vsub.s32 %v4181, %v5318
    %v5320 = vrot.slane %v4086, %v5319
    %v5321 = vsel %vm4186, %v5320, %v5316
    %v5322 = vlaneseq
    %v5323 = vshrl.u32 %v5322, 7
    %v5324 = vsub.s32 %v4188, %v5323
    %v5325 = vrot.slane %v4089, %v5324
    %v5326 = vsel %vm4193, %v5325, %v5321
    %v5327 = vlaneseq
    %v5328 = vshrl.u32 %v5327, 7
    %v5329 = vsub.s32 %v4195, %v5328
    %v5330 = vrot.slane %v4092, %v5329
    %v5331 = vsel %vm4200, %v5330, %v5326
    %v5332 = vlaneseq
    %v5333 = vshrl.u32 %v5332, 7
    %v5334 = vsub.s32 %v4202, %v5333
    %v5335 = vrot.slane %v4095, %v5334
    %v5336 = vsel %vm4207, %v5335, %v5331
    %v5337 = vlaneseq
    %v5338 = vshrl.u32 %v5337, 7
    %v5339 = vsub.s32 %v4209, %v5338
    %v5340 = vrot.slane %v4098, %v5339
    %v5341 = vsel %vm4214, %v5340, %v5336
    %v5342 = vlaneseq
    %v5343 = vshrl.u32 %v5342, 7
    %v5344 = vsub.s32 %v4216, %v5343
    %v5345 = vrot.slane %v4101, %v5344
    %v5346 = vsel %vm4221, %v5345, %v5341
    %v5347 = vlaneseq
    %v5348 = vshrl.u32 %v5347, 7
    %v5349 = vsub.s32 %v4223, %v5348
    %v5350 = vrot.slane %v4104, %v5349
    %v5351 = vsel %vm4228, %v5350, %v5346
    %v5352 = vlaneseq
    %v5353 = vshrl.u32 %v5352, 7
    %v5354 = vsub.s32 %v4230, %v5353
    %v5355 = vrot.slane %v4107, %v5354
    %v5356 = vsel %vm4235, %v5355, %v5351
    %v5357 = vlaneseq
    %v5358 = vshrl.u32 %v5357, 7
    %v5359 = vsub.s32 %v4237, %v5358
    %v5360 = vrot.slane %v4110, %v5359
    %v5361 = vsel %vm4242, %v5360, %v5356
    %v5362 = vlaneseq
    %v5363 = vshrl.u32 %v5362, 7
    %v5364 = vsub.s32 %v4244, %v5363
    %v5365 = vrot.slane %v4113, %v5364
    %v5366 = vsel %vm4249, %v5365, %v5361
    %v5367 = vlaneseq
    %v5368 = vshrl.u32 %v5367, 7
    %v5369 = vsub.s32 %v4251, %v5368
    %v5370 = vrot.slane %v4116, %v5369
    %v5371 = vsel %vm4256, %v5370, %v5366
    %v5372 = vlaneseq
    %v5373 = vshrl.u32 %v5372, 7
    %v5374 = vsub.s32 %v4258, %v5373
    %v5375 = vrot.slane %v4119, %v5374
    %v5376 = vsel %vm4263, %v5375, %v5371
    %v5377 = vlaneseq
    %v5378 = vshrl.u32 %v5377, 7
    %v5379 = vsub.s32 %v4265, %v5378
    %v5380 = vrot.slane %v4122, %v5379
    %v5381 = vsel %vm4270, %v5380, %v5376
    %v5382 = vlaneseq
    %v5383 = vshrl.u32 %v5382, 7
    %v5384 = vsub.s32 %v4272, %v5383
    %v5385 = vrot.slane %v4125, %v5384
    %v5386 = vsel %vm4277, %v5385, %v5381
    %v5387 = vlaneseq
    %v5388 = vshrl.u32 %v5387, 7
    %v5389 = vsub.s32 %v4279, %v5388
    %v5390 = vrot.slane %v4128, %v5389
    %v5391 = vsel %vm4284, %v5390, %v5386
    %v5392 = vlaneseq
    %v5393 = vshrl.u32 %v5392, 7
    %v5394 = vsub.s32 %v1429, %v5393
    %v5395 = vrot.slane %v4131, %v5394
    %v5396 = vlaneseq
    %v5397 = vshrl.u32 %v5396, 7
    %v5398 = vsub.s32 %v4181, %v5397
    %v5399 = vrot.slane %v4134, %v5398
    %v5400 = vsel %vm4186, %v5399, %v5395
    %v5401 = vlaneseq
    %v5402 = vshrl.u32 %v5401, 7
    %v5403 = vsub.s32 %v4188, %v5402
    %v5404 = vrot.slane %v4137, %v5403
    %v5405 = vsel %vm4193, %v5404, %v5400
    %v5406 = vlaneseq
    %v5407 = vshrl.u32 %v5406, 7
    %v5408 = vsub.s32 %v4195, %v5407
    %v5409 = vrot.slane %v4140, %v5408
    %v5410 = vsel %vm4200, %v5409, %v5405
    %v5411 = vlaneseq
    %v5412 = vshrl.u32 %v5411, 7
    %v5413 = vsub.s32 %v4202, %v5412
    %v5414 = vrot.slane %v4143, %v5413
    %v5415 = vsel %vm4207, %v5414, %v5410
    %v5416 = vlaneseq
    %v5417 = vshrl.u32 %v5416, 7
    %v5418 = vsub.s32 %v4209, %v5417
    %v5419 = vrot.slane %v4146, %v5418
    %v5420 = vsel %vm4214, %v5419, %v5415
    %v5421 = vlaneseq
    %v5422 = vshrl.u32 %v5421, 7
    %v5423 = vsub.s32 %v4216, %v5422
    %v5424 = vrot.slane %v4149, %v5423
    %v5425 = vsel %vm4221, %v5424, %v5420
    %v5426 = vlaneseq
    %v5427 = vshrl.u32 %v5426, 7
    %v5428 = vsub.s32 %v4223, %v5427
    %v5429 = vrot.slane %v4152, %v5428
    %v5430 = vsel %vm4228, %v5429, %v5425
    %v5431 = vlaneseq
    %v5432 = vshrl.u32 %v5431, 7
    %v5433 = vsub.s32 %v4230, %v5432
    %v5434 = vrot.slane %v4155, %v5433
    %v5435 = vsel %vm4235, %v5434, %v5430
    %v5436 = vlaneseq
    %v5437 = vshrl.u32 %v5436, 7
    %v5438 = vsub.s32 %v4237, %v5437
    %v5439 = vrot.slane %v4158, %v5438
    %v5440 = vsel %vm4242, %v5439, %v5435
    %v5441 = vlaneseq
    %v5442 = vshrl.u32 %v5441, 7
    %v5443 = vsub.s32 %v4244, %v5442
    %v5444 = vrot.slane %v4161, %v5443
    %v5445 = vsel %vm4249, %v5444, %v5440
    %v5446 = vlaneseq
    %v5447 = vshrl.u32 %v5446, 7
    %v5448 = vsub.s32 %v4251, %v5447
    %v5449 = vrot.slane %v4164, %v5448
    %v5450 = vsel %vm4256, %v5449, %v5445
    %v5451 = vlaneseq
    %v5452 = vshrl.u32 %v5451, 7
    %v5453 = vsub.s32 %v4258, %v5452
    %v5454 = vrot.slane %v4167, %v5453
    %v5455 = vsel %vm4263, %v5454, %v5450
    %v5456 = vlaneseq
    %v5457 = vshrl.u32 %v5456, 7
    %v5458 = vsub.s32 %v4265, %v5457
    %v5459 = vrot.slane %v4170, %v5458
    %v5460 = vsel %vm4270, %v5459, %v5455
    %v5461 = vlaneseq
    %v5462 = vshrl.u32 %v5461, 7
    %v5463 = vsub.s32 %v4272, %v5462
    %v5464 = vrot.slane %v4173, %v5463
    %v5465 = vsel %vm4277, %v5464, %v5460
    %v5466 = vlaneseq
    %v5467 = vshrl.u32 %v5466, 7
    %v5468 = vsub.s32 %v4279, %v5467
    %v5469 = vrot.slane %v4176, %v5468
    %v5470 = vsel %vm4284, %v5469, %v5465
    %vm5471 = vcmask 1041409
    %v5472 = vsel %vm5471, %v4443, %v4285
    %vm5473 = vcmask 1042434
    %v5474 = vsel %vm5473, %v4601, %v5472
    %vm5475 = vcmask 1043459
    %v5476 = vsel %vm5475, %v4759, %v5474
    %vm5477 = vcmask 1044484
    %v5478 = vsel %vm5477, %v4917, %v5476
    %vm5479 = vcmask 1045509
    %v5480 = vsel %vm5479, %v5075, %v5478
    %vm5481 = vcmask 1046534
    %v5482 = vsel %vm5481, %v5233, %v5480
    %vm5483 = vcmask 1047559
    %v5484 = vsel %vm5483, %v5391, %v5482
    %v5485 = vsel %vm5471, %v4522, %v4364
    %v5486 = vsel %vm5473, %v4680, %v5485
    %v5487 = vsel %vm5475, %v4838, %v5486
    %v5488 = vsel %vm5477, %v4996, %v5487
    %v5489 = vsel %vm5479, %v5154, %v5488
    %v5490 = vsel %vm5481, %v5312, %v5489
    %v5491 = vsel %vm5483, %v5470, %v5490
    %v5494 = vadd.f32 %v5484, %v5491
    %5495 = vadd.xlane.f32.xlu0 %v5494
    %v5496 = vpop.xlane.xlu0 %5495
    %v5497 = vlog2.pop %v5496
    %v5498 = vmul.f32 %v5497, 0.6931472
    %v5499 = vadd.f32 %v1560, %v5498
    %v5500 = vmul.f32 %v1438, %v1554
    %v5501 = vmul.f32 %v1439, %v1555
    %v5502 = vadd.f32 %v5500, %v5501
    %5503 = vadd.xlane.f32.xlu0 %v5502
    %v5504 = vpop.xlane.xlu0 %5503
    %v5505 = vsub.f32 %v5499, %v5504
    %v5506 = vmax.f32 %v1556, %v1557
    %5507 = vmax.xlane.f32.xlu0 %v5506
    %v5508 = vpop.xlane.xlu0 %5507
    %v5509 = vsub.f32 %v1556, %v5508
    %v5510 = vsub.f32 %v1557, %v5508
    %v5511 = vmul.f32 %v5509, 1.442695
    %v5512 = vpow.pop %v5511
    %v5513 = vmul.f32 %v5510, 1.442695
    %v5514 = vpow.pop %v5513
    %v5517 = vlaneseq
    %v5518 = vshrl.u32 %v5517, 7
    %v5519 = vsub.s32 0, %v5518
    %v5520 = vrot.slane %v5512, %v5519
    %5522 = vbcast.lane.b32.xlu0 %v5520, 256
    %v5523 = vpop.permute.xlu0 %5522
    %s5525 = sor.u32 256, 8
    %5526 = vbcast.lane.b32.xlu0 %v5520, %s5525
    %v5527 = vpop.permute.xlu0 %5526
    %s5529 = sor.u32 256, 16
    %5530 = vbcast.lane.b32.xlu0 %v5520, %s5529
    %v5531 = vpop.permute.xlu0 %5530
    %s5533 = sor.u32 256, 24
    %5534 = vbcast.lane.b32.xlu0 %v5520, %s5533
    %v5535 = vpop.permute.xlu0 %5534
    %s5537 = sor.u32 256, 32
    %5538 = vbcast.lane.b32.xlu0 %v5520, %s5537
    %v5539 = vpop.permute.xlu0 %5538
    %s5541 = sor.u32 256, 40
    %5542 = vbcast.lane.b32.xlu0 %v5520, %s5541
    %v5543 = vpop.permute.xlu0 %5542
    %s5545 = sor.u32 256, 48
    %5546 = vbcast.lane.b32.xlu0 %v5520, %s5545
    %v5547 = vpop.permute.xlu0 %5546
    %s5549 = sor.u32 256, 56
    %5550 = vbcast.lane.b32.xlu0 %v5520, %s5549
    %v5551 = vpop.permute.xlu0 %5550
    %s5553 = sor.u32 256, 64
    %5554 = vbcast.lane.b32.xlu0 %v5520, %s5553
    %v5555 = vpop.permute.xlu0 %5554
    %s5557 = sor.u32 256, 72
    %5558 = vbcast.lane.b32.xlu0 %v5520, %s5557
    %v5559 = vpop.permute.xlu0 %5558
    %s5561 = sor.u32 256, 80
    %5562 = vbcast.lane.b32.xlu0 %v5520, %s5561
    %v5563 = vpop.permute.xlu0 %5562
    %s5565 = sor.u32 256, 88
    %5566 = vbcast.lane.b32.xlu0 %v5520, %s5565
    %v5567 = vpop.permute.xlu0 %5566
    %s5569 = sor.u32 256, 96
    %5570 = vbcast.lane.b32.xlu0 %v5520, %s5569
    %v5571 = vpop.permute.xlu0 %5570
    %s5573 = sor.u32 256, 104
    %5574 = vbcast.lane.b32.xlu0 %v5520, %s5573
    %v5575 = vpop.permute.xlu0 %5574
    %s5577 = sor.u32 256, 112
    %5578 = vbcast.lane.b32.xlu0 %v5520, %s5577
    %v5579 = vpop.permute.xlu0 %5578
    %s5581 = sor.u32 256, 120
    %5582 = vbcast.lane.b32.xlu0 %v5520, %s5581
    %v5583 = vpop.permute.xlu0 %5582
    %v5584 = vlaneseq
    %v5585 = vshrl.u32 %v5584, 7
    %v5586 = vsub.s32 0, %v5585
    %v5587 = vrot.slane %v5514, %v5586
    %5589 = vbcast.lane.b32.xlu0 %v5587, 256
    %v5590 = vpop.permute.xlu0 %5589
    %s5592 = sor.u32 256, 8
    %5593 = vbcast.lane.b32.xlu0 %v5587, %s5592
    %v5594 = vpop.permute.xlu0 %5593
    %s5596 = sor.u32 256, 16
    %5597 = vbcast.lane.b32.xlu0 %v5587, %s5596
    %v5598 = vpop.permute.xlu0 %5597
    %s5600 = sor.u32 256, 24
    %5601 = vbcast.lane.b32.xlu0 %v5587, %s5600
    %v5602 = vpop.permute.xlu0 %5601
    %s5604 = sor.u32 256, 32
    %5605 = vbcast.lane.b32.xlu0 %v5587, %s5604
    %v5606 = vpop.permute.xlu0 %5605
    %s5608 = sor.u32 256, 40
    %5609 = vbcast.lane.b32.xlu0 %v5587, %s5608
    %v5610 = vpop.permute.xlu0 %5609
    %s5612 = sor.u32 256, 48
    %5613 = vbcast.lane.b32.xlu0 %v5587, %s5612
    %v5614 = vpop.permute.xlu0 %5613
    %s5616 = sor.u32 256, 56
    %5617 = vbcast.lane.b32.xlu0 %v5587, %s5616
    %v5618 = vpop.permute.xlu0 %5617
    %s5620 = sor.u32 256, 64
    %5621 = vbcast.lane.b32.xlu0 %v5587, %s5620
    %v5622 = vpop.permute.xlu0 %5621
    %s5624 = sor.u32 256, 72
    %5625 = vbcast.lane.b32.xlu0 %v5587, %s5624
    %v5626 = vpop.permute.xlu0 %5625
    %s5628 = sor.u32 256, 80
    %5629 = vbcast.lane.b32.xlu0 %v5587, %s5628
    %v5630 = vpop.permute.xlu0 %5629
    %s5632 = sor.u32 256, 88
    %5633 = vbcast.lane.b32.xlu0 %v5587, %s5632
    %v5634 = vpop.permute.xlu0 %5633
    %s5636 = sor.u32 256, 96
    %5637 = vbcast.lane.b32.xlu0 %v5587, %s5636
    %v5638 = vpop.permute.xlu0 %5637
    %s5640 = sor.u32 256, 104
    %5641 = vbcast.lane.b32.xlu0 %v5587, %s5640
    %v5642 = vpop.permute.xlu0 %5641
    %s5644 = sor.u32 256, 112
    %5645 = vbcast.lane.b32.xlu0 %v5587, %s5644
    %v5646 = vpop.permute.xlu0 %5645
    %s5648 = sor.u32 256, 120
    %5649 = vbcast.lane.b32.xlu0 %v5587, %s5648
    %v5650 = vpop.permute.xlu0 %5649
    %v5651 = vlaneseq
    %v5652 = vshrl.u32 %v5651, 7
    %v5653 = vsub.s32 1, %v5652
    %v5654 = vrot.slane %v5512, %v5653
    %5656 = vbcast.lane.b32.xlu0 %v5654, 256
    %v5657 = vpop.permute.xlu0 %5656
    %s5659 = sor.u32 256, 8
    %5660 = vbcast.lane.b32.xlu0 %v5654, %s5659
    %v5661 = vpop.permute.xlu0 %5660
    %s5663 = sor.u32 256, 16
    %5664 = vbcast.lane.b32.xlu0 %v5654, %s5663
    %v5665 = vpop.permute.xlu0 %5664
    %s5667 = sor.u32 256, 24
    %5668 = vbcast.lane.b32.xlu0 %v5654, %s5667
    %v5669 = vpop.permute.xlu0 %5668
    %s5671 = sor.u32 256, 32
    %5672 = vbcast.lane.b32.xlu0 %v5654, %s5671
    %v5673 = vpop.permute.xlu0 %5672
    %s5675 = sor.u32 256, 40
    %5676 = vbcast.lane.b32.xlu0 %v5654, %s5675
    %v5677 = vpop.permute.xlu0 %5676
    %s5679 = sor.u32 256, 48
    %5680 = vbcast.lane.b32.xlu0 %v5654, %s5679
    %v5681 = vpop.permute.xlu0 %5680
    %s5683 = sor.u32 256, 56
    %5684 = vbcast.lane.b32.xlu0 %v5654, %s5683
    %v5685 = vpop.permute.xlu0 %5684
    %s5687 = sor.u32 256, 64
    %5688 = vbcast.lane.b32.xlu0 %v5654, %s5687
    %v5689 = vpop.permute.xlu0 %5688
    %s5691 = sor.u32 256, 72
    %5692 = vbcast.lane.b32.xlu0 %v5654, %s5691
    %v5693 = vpop.permute.xlu0 %5692
    %s5695 = sor.u32 256, 80
    %5696 = vbcast.lane.b32.xlu0 %v5654, %s5695
    %v5697 = vpop.permute.xlu0 %5696
    %s5699 = sor.u32 256, 88
    %5700 = vbcast.lane.b32.xlu0 %v5654, %s5699
    %v5701 = vpop.permute.xlu0 %5700
    %s5703 = sor.u32 256, 96
    %5704 = vbcast.lane.b32.xlu0 %v5654, %s5703
    %v5705 = vpop.permute.xlu0 %5704
    %s5707 = sor.u32 256, 104
    %5708 = vbcast.lane.b32.xlu0 %v5654, %s5707
    %v5709 = vpop.permute.xlu0 %5708
    %s5711 = sor.u32 256, 112
    %5712 = vbcast.lane.b32.xlu0 %v5654, %s5711
    %v5713 = vpop.permute.xlu0 %5712
    %s5715 = sor.u32 256, 120
    %5716 = vbcast.lane.b32.xlu0 %v5654, %s5715
    %v5717 = vpop.permute.xlu0 %5716
    %v5718 = vlaneseq
    %v5719 = vshrl.u32 %v5718, 7
    %v5720 = vsub.s32 1, %v5719
    %v5721 = vrot.slane %v5514, %v5720
    %5723 = vbcast.lane.b32.xlu0 %v5721, 256
    %v5724 = vpop.permute.xlu0 %5723
    %s5726 = sor.u32 256, 8
    %5727 = vbcast.lane.b32.xlu0 %v5721, %s5726
    %v5728 = vpop.permute.xlu0 %5727
    %s5730 = sor.u32 256, 16
    %5731 = vbcast.lane.b32.xlu0 %v5721, %s5730
    %v5732 = vpop.permute.xlu0 %5731
    %s5734 = sor.u32 256, 24
    %5735 = vbcast.lane.b32.xlu0 %v5721, %s5734
    %v5736 = vpop.permute.xlu0 %5735
    %s5738 = sor.u32 256, 32
    %5739 = vbcast.lane.b32.xlu0 %v5721, %s5738
    %v5740 = vpop.permute.xlu0 %5739
    %s5742 = sor.u32 256, 40
    %5743 = vbcast.lane.b32.xlu0 %v5721, %s5742
    %v5744 = vpop.permute.xlu0 %5743
    %s5746 = sor.u32 256, 48
    %5747 = vbcast.lane.b32.xlu0 %v5721, %s5746
    %v5748 = vpop.permute.xlu0 %5747
    %s5750 = sor.u32 256, 56
    %5751 = vbcast.lane.b32.xlu0 %v5721, %s5750
    %v5752 = vpop.permute.xlu0 %5751
    %s5754 = sor.u32 256, 64
    %5755 = vbcast.lane.b32.xlu0 %v5721, %s5754
    %v5756 = vpop.permute.xlu0 %5755
    %s5758 = sor.u32 256, 72
    %5759 = vbcast.lane.b32.xlu0 %v5721, %s5758
    %v5760 = vpop.permute.xlu0 %5759
    %s5762 = sor.u32 256, 80
    %5763 = vbcast.lane.b32.xlu0 %v5721, %s5762
    %v5764 = vpop.permute.xlu0 %5763
    %s5766 = sor.u32 256, 88
    %5767 = vbcast.lane.b32.xlu0 %v5721, %s5766
    %v5768 = vpop.permute.xlu0 %5767
    %s5770 = sor.u32 256, 96
    %5771 = vbcast.lane.b32.xlu0 %v5721, %s5770
    %v5772 = vpop.permute.xlu0 %5771
    %s5774 = sor.u32 256, 104
    %5775 = vbcast.lane.b32.xlu0 %v5721, %s5774
    %v5776 = vpop.permute.xlu0 %5775
    %s5778 = sor.u32 256, 112
    %5779 = vbcast.lane.b32.xlu0 %v5721, %s5778
    %v5780 = vpop.permute.xlu0 %5779
    %s5782 = sor.u32 256, 120
    %5783 = vbcast.lane.b32.xlu0 %v5721, %s5782
    %v5784 = vpop.permute.xlu0 %5783
    %v5785 = vlaneseq
    %v5786 = vshrl.u32 %v5785, 7
    %v5787 = vsub.s32 2, %v5786
    %v5788 = vrot.slane %v5512, %v5787
    %5790 = vbcast.lane.b32.xlu0 %v5788, 256
    %v5791 = vpop.permute.xlu0 %5790
    %s5793 = sor.u32 256, 8
    %5794 = vbcast.lane.b32.xlu0 %v5788, %s5793
    %v5795 = vpop.permute.xlu0 %5794
    %s5797 = sor.u32 256, 16
    %5798 = vbcast.lane.b32.xlu0 %v5788, %s5797
    %v5799 = vpop.permute.xlu0 %5798
    %s5801 = sor.u32 256, 24
    %5802 = vbcast.lane.b32.xlu0 %v5788, %s5801
    %v5803 = vpop.permute.xlu0 %5802
    %s5805 = sor.u32 256, 32
    %5806 = vbcast.lane.b32.xlu0 %v5788, %s5805
    %v5807 = vpop.permute.xlu0 %5806
    %s5809 = sor.u32 256, 40
    %5810 = vbcast.lane.b32.xlu0 %v5788, %s5809
    %v5811 = vpop.permute.xlu0 %5810
    %s5813 = sor.u32 256, 48
    %5814 = vbcast.lane.b32.xlu0 %v5788, %s5813
    %v5815 = vpop.permute.xlu0 %5814
    %s5817 = sor.u32 256, 56
    %5818 = vbcast.lane.b32.xlu0 %v5788, %s5817
    %v5819 = vpop.permute.xlu0 %5818
    %s5821 = sor.u32 256, 64
    %5822 = vbcast.lane.b32.xlu0 %v5788, %s5821
    %v5823 = vpop.permute.xlu0 %5822
    %s5825 = sor.u32 256, 72
    %5826 = vbcast.lane.b32.xlu0 %v5788, %s5825
    %v5827 = vpop.permute.xlu0 %5826
    %s5829 = sor.u32 256, 80
    %5830 = vbcast.lane.b32.xlu0 %v5788, %s5829
    %v5831 = vpop.permute.xlu0 %5830
    %s5833 = sor.u32 256, 88
    %5834 = vbcast.lane.b32.xlu0 %v5788, %s5833
    %v5835 = vpop.permute.xlu0 %5834
    %s5837 = sor.u32 256, 96
    %5838 = vbcast.lane.b32.xlu0 %v5788, %s5837
    %v5839 = vpop.permute.xlu0 %5838
    %s5841 = sor.u32 256, 104
    %5842 = vbcast.lane.b32.xlu0 %v5788, %s5841
    %v5843 = vpop.permute.xlu0 %5842
    %s5845 = sor.u32 256, 112
    %5846 = vbcast.lane.b32.xlu0 %v5788, %s5845
    %v5847 = vpop.permute.xlu0 %5846
    %s5849 = sor.u32 256, 120
    %5850 = vbcast.lane.b32.xlu0 %v5788, %s5849
    %v5851 = vpop.permute.xlu0 %5850
    %v5852 = vlaneseq
    %v5853 = vshrl.u32 %v5852, 7
    %v5854 = vsub.s32 2, %v5853
    %v5855 = vrot.slane %v5514, %v5854
    %5857 = vbcast.lane.b32.xlu0 %v5855, 256
    %v5858 = vpop.permute.xlu0 %5857
    %s5860 = sor.u32 256, 8
    %5861 = vbcast.lane.b32.xlu0 %v5855, %s5860
    %v5862 = vpop.permute.xlu0 %5861
    %s5864 = sor.u32 256, 16
    %5865 = vbcast.lane.b32.xlu0 %v5855, %s5864
    %v5866 = vpop.permute.xlu0 %5865
    %s5868 = sor.u32 256, 24
    %5869 = vbcast.lane.b32.xlu0 %v5855, %s5868
    %v5870 = vpop.permute.xlu0 %5869
    %s5872 = sor.u32 256, 32
    %5873 = vbcast.lane.b32.xlu0 %v5855, %s5872
    %v5874 = vpop.permute.xlu0 %5873
    %s5876 = sor.u32 256, 40
    %5877 = vbcast.lane.b32.xlu0 %v5855, %s5876
    %v5878 = vpop.permute.xlu0 %5877
    %s5880 = sor.u32 256, 48
    %5881 = vbcast.lane.b32.xlu0 %v5855, %s5880
    %v5882 = vpop.permute.xlu0 %5881
    %s5884 = sor.u32 256, 56
    %5885 = vbcast.lane.b32.xlu0 %v5855, %s5884
    %v5886 = vpop.permute.xlu0 %5885
    %s5888 = sor.u32 256, 64
    %5889 = vbcast.lane.b32.xlu0 %v5855, %s5888
    %v5890 = vpop.permute.xlu0 %5889
    %s5892 = sor.u32 256, 72
    %5893 = vbcast.lane.b32.xlu0 %v5855, %s5892
    %v5894 = vpop.permute.xlu0 %5893
    %s5896 = sor.u32 256, 80
    %5897 = vbcast.lane.b32.xlu0 %v5855, %s5896
    %v5898 = vpop.permute.xlu0 %5897
    %s5900 = sor.u32 256, 88
    %5901 = vbcast.lane.b32.xlu0 %v5855, %s5900
    %v5902 = vpop.permute.xlu0 %5901
    %s5904 = sor.u32 256, 96
    %5905 = vbcast.lane.b32.xlu0 %v5855, %s5904
    %v5906 = vpop.permute.xlu0 %5905
    %s5908 = sor.u32 256, 104
    %5909 = vbcast.lane.b32.xlu0 %v5855, %s5908
    %v5910 = vpop.permute.xlu0 %5909
    %s5912 = sor.u32 256, 112
    %5913 = vbcast.lane.b32.xlu0 %v5855, %s5912
    %v5914 = vpop.permute.xlu0 %5913
    %s5916 = sor.u32 256, 120
    %5917 = vbcast.lane.b32.xlu0 %v5855, %s5916
    %v5918 = vpop.permute.xlu0 %5917
    %v5919 = vlaneseq
    %v5920 = vshrl.u32 %v5919, 7
    %v5921 = vsub.s32 3, %v5920
    %v5922 = vrot.slane %v5512, %v5921
    %5924 = vbcast.lane.b32.xlu0 %v5922, 256
    %v5925 = vpop.permute.xlu0 %5924
    %s5927 = sor.u32 256, 8
    %5928 = vbcast.lane.b32.xlu0 %v5922, %s5927
    %v5929 = vpop.permute.xlu0 %5928
    %s5931 = sor.u32 256, 16
    %5932 = vbcast.lane.b32.xlu0 %v5922, %s5931
    %v5933 = vpop.permute.xlu0 %5932
    %s5935 = sor.u32 256, 24
    %5936 = vbcast.lane.b32.xlu0 %v5922, %s5935
    %v5937 = vpop.permute.xlu0 %5936
    %s5939 = sor.u32 256, 32
    %5940 = vbcast.lane.b32.xlu0 %v5922, %s5939
    %v5941 = vpop.permute.xlu0 %5940
    %s5943 = sor.u32 256, 40
    %5944 = vbcast.lane.b32.xlu0 %v5922, %s5943
    %v5945 = vpop.permute.xlu0 %5944
    %s5947 = sor.u32 256, 48
    %5948 = vbcast.lane.b32.xlu0 %v5922, %s5947
    %v5949 = vpop.permute.xlu0 %5948
    %s5951 = sor.u32 256, 56
    %5952 = vbcast.lane.b32.xlu0 %v5922, %s5951
    %v5953 = vpop.permute.xlu0 %5952
    %s5955 = sor.u32 256, 64
    %5956 = vbcast.lane.b32.xlu0 %v5922, %s5955
    %v5957 = vpop.permute.xlu0 %5956
    %s5959 = sor.u32 256, 72
    %5960 = vbcast.lane.b32.xlu0 %v5922, %s5959
    %v5961 = vpop.permute.xlu0 %5960
    %s5963 = sor.u32 256, 80
    %5964 = vbcast.lane.b32.xlu0 %v5922, %s5963
    %v5965 = vpop.permute.xlu0 %5964
    %s5967 = sor.u32 256, 88
    %5968 = vbcast.lane.b32.xlu0 %v5922, %s5967
    %v5969 = vpop.permute.xlu0 %5968
    %s5971 = sor.u32 256, 96
    %5972 = vbcast.lane.b32.xlu0 %v5922, %s5971
    %v5973 = vpop.permute.xlu0 %5972
    %s5975 = sor.u32 256, 104
    %5976 = vbcast.lane.b32.xlu0 %v5922, %s5975
    %v5977 = vpop.permute.xlu0 %5976
    %s5979 = sor.u32 256, 112
    %5980 = vbcast.lane.b32.xlu0 %v5922, %s5979
    %v5981 = vpop.permute.xlu0 %5980
    %s5983 = sor.u32 256, 120
    %5984 = vbcast.lane.b32.xlu0 %v5922, %s5983
    %v5985 = vpop.permute.xlu0 %5984
    %v5986 = vlaneseq
    %v5987 = vshrl.u32 %v5986, 7
    %v5988 = vsub.s32 3, %v5987
    %v5989 = vrot.slane %v5514, %v5988
    %5991 = vbcast.lane.b32.xlu0 %v5989, 256
    %v5992 = vpop.permute.xlu0 %5991
    %s5994 = sor.u32 256, 8
    %5995 = vbcast.lane.b32.xlu0 %v5989, %s5994
    %v5996 = vpop.permute.xlu0 %5995
    %s5998 = sor.u32 256, 16
    %5999 = vbcast.lane.b32.xlu0 %v5989, %s5998
    %v6000 = vpop.permute.xlu0 %5999
    %s6002 = sor.u32 256, 24
    %6003 = vbcast.lane.b32.xlu0 %v5989, %s6002
    %v6004 = vpop.permute.xlu0 %6003
    %s6006 = sor.u32 256, 32
    %6007 = vbcast.lane.b32.xlu0 %v5989, %s6006
    %v6008 = vpop.permute.xlu0 %6007
    %s6010 = sor.u32 256, 40
    %6011 = vbcast.lane.b32.xlu0 %v5989, %s6010
    %v6012 = vpop.permute.xlu0 %6011
    %s6014 = sor.u32 256, 48
    %6015 = vbcast.lane.b32.xlu0 %v5989, %s6014
    %v6016 = vpop.permute.xlu0 %6015
    %s6018 = sor.u32 256, 56
    %6019 = vbcast.lane.b32.xlu0 %v5989, %s6018
    %v6020 = vpop.permute.xlu0 %6019
    %s6022 = sor.u32 256, 64
    %6023 = vbcast.lane.b32.xlu0 %v5989, %s6022
    %v6024 = vpop.permute.xlu0 %6023
    %s6026 = sor.u32 256, 72
    %6027 = vbcast.lane.b32.xlu0 %v5989, %s6026
    %v6028 = vpop.permute.xlu0 %6027
    %s6030 = sor.u32 256, 80
    %6031 = vbcast.lane.b32.xlu0 %v5989, %s6030
    %v6032 = vpop.permute.xlu0 %6031
    %s6034 = sor.u32 256, 88
    %6035 = vbcast.lane.b32.xlu0 %v5989, %s6034
    %v6036 = vpop.permute.xlu0 %6035
    %s6038 = sor.u32 256, 96
    %6039 = vbcast.lane.b32.xlu0 %v5989, %s6038
    %v6040 = vpop.permute.xlu0 %6039
    %s6042 = sor.u32 256, 104
    %6043 = vbcast.lane.b32.xlu0 %v5989, %s6042
    %v6044 = vpop.permute.xlu0 %6043
    %s6046 = sor.u32 256, 112
    %6047 = vbcast.lane.b32.xlu0 %v5989, %s6046
    %v6048 = vpop.permute.xlu0 %6047
    %s6050 = sor.u32 256, 120
    %6051 = vbcast.lane.b32.xlu0 %v5989, %s6050
    %v6052 = vpop.permute.xlu0 %6051
    %v6053 = vlaneseq
    %v6054 = vshrl.u32 %v6053, 7
    %v6055 = vsub.s32 4, %v6054
    %v6056 = vrot.slane %v5512, %v6055
    %6058 = vbcast.lane.b32.xlu0 %v6056, 256
    %v6059 = vpop.permute.xlu0 %6058
    %s6061 = sor.u32 256, 8
    %6062 = vbcast.lane.b32.xlu0 %v6056, %s6061
    %v6063 = vpop.permute.xlu0 %6062
    %s6065 = sor.u32 256, 16
    %6066 = vbcast.lane.b32.xlu0 %v6056, %s6065
    %v6067 = vpop.permute.xlu0 %6066
    %s6069 = sor.u32 256, 24
    %6070 = vbcast.lane.b32.xlu0 %v6056, %s6069
    %v6071 = vpop.permute.xlu0 %6070
    %s6073 = sor.u32 256, 32
    %6074 = vbcast.lane.b32.xlu0 %v6056, %s6073
    %v6075 = vpop.permute.xlu0 %6074
    %s6077 = sor.u32 256, 40
    %6078 = vbcast.lane.b32.xlu0 %v6056, %s6077
    %v6079 = vpop.permute.xlu0 %6078
    %s6081 = sor.u32 256, 48
    %6082 = vbcast.lane.b32.xlu0 %v6056, %s6081
    %v6083 = vpop.permute.xlu0 %6082
    %s6085 = sor.u32 256, 56
    %6086 = vbcast.lane.b32.xlu0 %v6056, %s6085
    %v6087 = vpop.permute.xlu0 %6086
    %s6089 = sor.u32 256, 64
    %6090 = vbcast.lane.b32.xlu0 %v6056, %s6089
    %v6091 = vpop.permute.xlu0 %6090
    %s6093 = sor.u32 256, 72
    %6094 = vbcast.lane.b32.xlu0 %v6056, %s6093
    %v6095 = vpop.permute.xlu0 %6094
    %s6097 = sor.u32 256, 80
    %6098 = vbcast.lane.b32.xlu0 %v6056, %s6097
    %v6099 = vpop.permute.xlu0 %6098
    %s6101 = sor.u32 256, 88
    %6102 = vbcast.lane.b32.xlu0 %v6056, %s6101
    %v6103 = vpop.permute.xlu0 %6102
    %s6105 = sor.u32 256, 96
    %6106 = vbcast.lane.b32.xlu0 %v6056, %s6105
    %v6107 = vpop.permute.xlu0 %6106
    %s6109 = sor.u32 256, 104
    %6110 = vbcast.lane.b32.xlu0 %v6056, %s6109
    %v6111 = vpop.permute.xlu0 %6110
    %s6113 = sor.u32 256, 112
    %6114 = vbcast.lane.b32.xlu0 %v6056, %s6113
    %v6115 = vpop.permute.xlu0 %6114
    %s6117 = sor.u32 256, 120
    %6118 = vbcast.lane.b32.xlu0 %v6056, %s6117
    %v6119 = vpop.permute.xlu0 %6118
    %v6120 = vlaneseq
    %v6121 = vshrl.u32 %v6120, 7
    %v6122 = vsub.s32 4, %v6121
    %v6123 = vrot.slane %v5514, %v6122
    %6125 = vbcast.lane.b32.xlu0 %v6123, 256
    %v6126 = vpop.permute.xlu0 %6125
    %s6128 = sor.u32 256, 8
    %6129 = vbcast.lane.b32.xlu0 %v6123, %s6128
    %v6130 = vpop.permute.xlu0 %6129
    %s6132 = sor.u32 256, 16
    %6133 = vbcast.lane.b32.xlu0 %v6123, %s6132
    %v6134 = vpop.permute.xlu0 %6133
    %s6136 = sor.u32 256, 24
    %6137 = vbcast.lane.b32.xlu0 %v6123, %s6136
    %v6138 = vpop.permute.xlu0 %6137
    %s6140 = sor.u32 256, 32
    %6141 = vbcast.lane.b32.xlu0 %v6123, %s6140
    %v6142 = vpop.permute.xlu0 %6141
    %s6144 = sor.u32 256, 40
    %6145 = vbcast.lane.b32.xlu0 %v6123, %s6144
    %v6146 = vpop.permute.xlu0 %6145
    %s6148 = sor.u32 256, 48
    %6149 = vbcast.lane.b32.xlu0 %v6123, %s6148
    %v6150 = vpop.permute.xlu0 %6149
    %s6152 = sor.u32 256, 56
    %6153 = vbcast.lane.b32.xlu0 %v6123, %s6152
    %v6154 = vpop.permute.xlu0 %6153
    %s6156 = sor.u32 256, 64
    %6157 = vbcast.lane.b32.xlu0 %v6123, %s6156
    %v6158 = vpop.permute.xlu0 %6157
    %s6160 = sor.u32 256, 72
    %6161 = vbcast.lane.b32.xlu0 %v6123, %s6160
    %v6162 = vpop.permute.xlu0 %6161
    %s6164 = sor.u32 256, 80
    %6165 = vbcast.lane.b32.xlu0 %v6123, %s6164
    %v6166 = vpop.permute.xlu0 %6165
    %s6168 = sor.u32 256, 88
    %6169 = vbcast.lane.b32.xlu0 %v6123, %s6168
    %v6170 = vpop.permute.xlu0 %6169
    %s6172 = sor.u32 256, 96
    %6173 = vbcast.lane.b32.xlu0 %v6123, %s6172
    %v6174 = vpop.permute.xlu0 %6173
    %s6176 = sor.u32 256, 104
    %6177 = vbcast.lane.b32.xlu0 %v6123, %s6176
    %v6178 = vpop.permute.xlu0 %6177
    %s6180 = sor.u32 256, 112
    %6181 = vbcast.lane.b32.xlu0 %v6123, %s6180
    %v6182 = vpop.permute.xlu0 %6181
    %s6184 = sor.u32 256, 120
    %6185 = vbcast.lane.b32.xlu0 %v6123, %s6184
    %v6186 = vpop.permute.xlu0 %6185
    %v6187 = vlaneseq
    %v6188 = vshrl.u32 %v6187, 7
    %v6189 = vsub.s32 5, %v6188
    %v6190 = vrot.slane %v5512, %v6189
    %6192 = vbcast.lane.b32.xlu0 %v6190, 256
    %v6193 = vpop.permute.xlu0 %6192
    %s6195 = sor.u32 256, 8
    %6196 = vbcast.lane.b32.xlu0 %v6190, %s6195
    %v6197 = vpop.permute.xlu0 %6196
    %s6199 = sor.u32 256, 16
    %6200 = vbcast.lane.b32.xlu0 %v6190, %s6199
    %v6201 = vpop.permute.xlu0 %6200
    %s6203 = sor.u32 256, 24
    %6204 = vbcast.lane.b32.xlu0 %v6190, %s6203
    %v6205 = vpop.permute.xlu0 %6204
    %s6207 = sor.u32 256, 32
    %6208 = vbcast.lane.b32.xlu0 %v6190, %s6207
    %v6209 = vpop.permute.xlu0 %6208
    %s6211 = sor.u32 256, 40
    %6212 = vbcast.lane.b32.xlu0 %v6190, %s6211
    %v6213 = vpop.permute.xlu0 %6212
    %s6215 = sor.u32 256, 48
    %6216 = vbcast.lane.b32.xlu0 %v6190, %s6215
    %v6217 = vpop.permute.xlu0 %6216
    %s6219 = sor.u32 256, 56
    %6220 = vbcast.lane.b32.xlu0 %v6190, %s6219
    %v6221 = vpop.permute.xlu0 %6220
    %s6223 = sor.u32 256, 64
    %6224 = vbcast.lane.b32.xlu0 %v6190, %s6223
    %v6225 = vpop.permute.xlu0 %6224
    %s6227 = sor.u32 256, 72
    %6228 = vbcast.lane.b32.xlu0 %v6190, %s6227
    %v6229 = vpop.permute.xlu0 %6228
    %s6231 = sor.u32 256, 80
    %6232 = vbcast.lane.b32.xlu0 %v6190, %s6231
    %v6233 = vpop.permute.xlu0 %6232
    %s6235 = sor.u32 256, 88
    %6236 = vbcast.lane.b32.xlu0 %v6190, %s6235
    %v6237 = vpop.permute.xlu0 %6236
    %s6239 = sor.u32 256, 96
    %6240 = vbcast.lane.b32.xlu0 %v6190, %s6239
    %v6241 = vpop.permute.xlu0 %6240
    %s6243 = sor.u32 256, 104
    %6244 = vbcast.lane.b32.xlu0 %v6190, %s6243
    %v6245 = vpop.permute.xlu0 %6244
    %s6247 = sor.u32 256, 112
    %6248 = vbcast.lane.b32.xlu0 %v6190, %s6247
    %v6249 = vpop.permute.xlu0 %6248
    %s6251 = sor.u32 256, 120
    %6252 = vbcast.lane.b32.xlu0 %v6190, %s6251
    %v6253 = vpop.permute.xlu0 %6252
    %v6254 = vlaneseq
    %v6255 = vshrl.u32 %v6254, 7
    %v6256 = vsub.s32 5, %v6255
    %v6257 = vrot.slane %v5514, %v6256
    %6259 = vbcast.lane.b32.xlu0 %v6257, 256
    %v6260 = vpop.permute.xlu0 %6259
    %s6262 = sor.u32 256, 8
    %6263 = vbcast.lane.b32.xlu0 %v6257, %s6262
    %v6264 = vpop.permute.xlu0 %6263
    %s6266 = sor.u32 256, 16
    %6267 = vbcast.lane.b32.xlu0 %v6257, %s6266
    %v6268 = vpop.permute.xlu0 %6267
    %s6270 = sor.u32 256, 24
    %6271 = vbcast.lane.b32.xlu0 %v6257, %s6270
    %v6272 = vpop.permute.xlu0 %6271
    %s6274 = sor.u32 256, 32
    %6275 = vbcast.lane.b32.xlu0 %v6257, %s6274
    %v6276 = vpop.permute.xlu0 %6275
    %s6278 = sor.u32 256, 40
    %6279 = vbcast.lane.b32.xlu0 %v6257, %s6278
    %v6280 = vpop.permute.xlu0 %6279
    %s6282 = sor.u32 256, 48
    %6283 = vbcast.lane.b32.xlu0 %v6257, %s6282
    %v6284 = vpop.permute.xlu0 %6283
    %s6286 = sor.u32 256, 56
    %6287 = vbcast.lane.b32.xlu0 %v6257, %s6286
    %v6288 = vpop.permute.xlu0 %6287
    %s6290 = sor.u32 256, 64
    %6291 = vbcast.lane.b32.xlu0 %v6257, %s6290
    %v6292 = vpop.permute.xlu0 %6291
    %s6294 = sor.u32 256, 72
    %6295 = vbcast.lane.b32.xlu0 %v6257, %s6294
    %v6296 = vpop.permute.xlu0 %6295
    %s6298 = sor.u32 256, 80
    %6299 = vbcast.lane.b32.xlu0 %v6257, %s6298
    %v6300 = vpop.permute.xlu0 %6299
    %s6302 = sor.u32 256, 88
    %6303 = vbcast.lane.b32.xlu0 %v6257, %s6302
    %v6304 = vpop.permute.xlu0 %6303
    %s6306 = sor.u32 256, 96
    %6307 = vbcast.lane.b32.xlu0 %v6257, %s6306
    %v6308 = vpop.permute.xlu0 %6307
    %s6310 = sor.u32 256, 104
    %6311 = vbcast.lane.b32.xlu0 %v6257, %s6310
    %v6312 = vpop.permute.xlu0 %6311
    %s6314 = sor.u32 256, 112
    %6315 = vbcast.lane.b32.xlu0 %v6257, %s6314
    %v6316 = vpop.permute.xlu0 %6315
    %s6318 = sor.u32 256, 120
    %6319 = vbcast.lane.b32.xlu0 %v6257, %s6318
    %v6320 = vpop.permute.xlu0 %6319
    %v6321 = vlaneseq
    %v6322 = vshrl.u32 %v6321, 7
    %v6323 = vsub.s32 6, %v6322
    %v6324 = vrot.slane %v5512, %v6323
    %6326 = vbcast.lane.b32.xlu0 %v6324, 256
    %v6327 = vpop.permute.xlu0 %6326
    %s6329 = sor.u32 256, 8
    %6330 = vbcast.lane.b32.xlu0 %v6324, %s6329
    %v6331 = vpop.permute.xlu0 %6330
    %s6333 = sor.u32 256, 16
    %6334 = vbcast.lane.b32.xlu0 %v6324, %s6333
    %v6335 = vpop.permute.xlu0 %6334
    %s6337 = sor.u32 256, 24
    %6338 = vbcast.lane.b32.xlu0 %v6324, %s6337
    %v6339 = vpop.permute.xlu0 %6338
    %s6341 = sor.u32 256, 32
    %6342 = vbcast.lane.b32.xlu0 %v6324, %s6341
    %v6343 = vpop.permute.xlu0 %6342
    %s6345 = sor.u32 256, 40
    %6346 = vbcast.lane.b32.xlu0 %v6324, %s6345
    %v6347 = vpop.permute.xlu0 %6346
    %s6349 = sor.u32 256, 48
    %6350 = vbcast.lane.b32.xlu0 %v6324, %s6349
    %v6351 = vpop.permute.xlu0 %6350
    %s6353 = sor.u32 256, 56
    %6354 = vbcast.lane.b32.xlu0 %v6324, %s6353
    %v6355 = vpop.permute.xlu0 %6354
    %s6357 = sor.u32 256, 64
    %6358 = vbcast.lane.b32.xlu0 %v6324, %s6357
    %v6359 = vpop.permute.xlu0 %6358
    %s6361 = sor.u32 256, 72
    %6362 = vbcast.lane.b32.xlu0 %v6324, %s6361
    %v6363 = vpop.permute.xlu0 %6362
    %s6365 = sor.u32 256, 80
    %6366 = vbcast.lane.b32.xlu0 %v6324, %s6365
    %v6367 = vpop.permute.xlu0 %6366
    %s6369 = sor.u32 256, 88
    %6370 = vbcast.lane.b32.xlu0 %v6324, %s6369
    %v6371 = vpop.permute.xlu0 %6370
    %s6373 = sor.u32 256, 96
    %6374 = vbcast.lane.b32.xlu0 %v6324, %s6373
    %v6375 = vpop.permute.xlu0 %6374
    %s6377 = sor.u32 256, 104
    %6378 = vbcast.lane.b32.xlu0 %v6324, %s6377
    %v6379 = vpop.permute.xlu0 %6378
    %s6381 = sor.u32 256, 112
    %6382 = vbcast.lane.b32.xlu0 %v6324, %s6381
    %v6383 = vpop.permute.xlu0 %6382
    %s6385 = sor.u32 256, 120
    %6386 = vbcast.lane.b32.xlu0 %v6324, %s6385
    %v6387 = vpop.permute.xlu0 %6386
    %v6388 = vlaneseq
    %v6389 = vshrl.u32 %v6388, 7
    %v6390 = vsub.s32 6, %v6389
    %v6391 = vrot.slane %v5514, %v6390
    %6393 = vbcast.lane.b32.xlu0 %v6391, 256
    %v6394 = vpop.permute.xlu0 %6393
    %s6396 = sor.u32 256, 8
    %6397 = vbcast.lane.b32.xlu0 %v6391, %s6396
    %v6398 = vpop.permute.xlu0 %6397
    %s6400 = sor.u32 256, 16
    %6401 = vbcast.lane.b32.xlu0 %v6391, %s6400
    %v6402 = vpop.permute.xlu0 %6401
    %s6404 = sor.u32 256, 24
    %6405 = vbcast.lane.b32.xlu0 %v6391, %s6404
    %v6406 = vpop.permute.xlu0 %6405
    %s6408 = sor.u32 256, 32
    %6409 = vbcast.lane.b32.xlu0 %v6391, %s6408
    %v6410 = vpop.permute.xlu0 %6409
    %s6412 = sor.u32 256, 40
    %6413 = vbcast.lane.b32.xlu0 %v6391, %s6412
    %v6414 = vpop.permute.xlu0 %6413
    %s6416 = sor.u32 256, 48
    %6417 = vbcast.lane.b32.xlu0 %v6391, %s6416
    %v6418 = vpop.permute.xlu0 %6417
    %s6420 = sor.u32 256, 56
    %6421 = vbcast.lane.b32.xlu0 %v6391, %s6420
    %v6422 = vpop.permute.xlu0 %6421
    %s6424 = sor.u32 256, 64
    %6425 = vbcast.lane.b32.xlu0 %v6391, %s6424
    %v6426 = vpop.permute.xlu0 %6425
    %s6428 = sor.u32 256, 72
    %6429 = vbcast.lane.b32.xlu0 %v6391, %s6428
    %v6430 = vpop.permute.xlu0 %6429
    %s6432 = sor.u32 256, 80
    %6433 = vbcast.lane.b32.xlu0 %v6391, %s6432
    %v6434 = vpop.permute.xlu0 %6433
    %s6436 = sor.u32 256, 88
    %6437 = vbcast.lane.b32.xlu0 %v6391, %s6436
    %v6438 = vpop.permute.xlu0 %6437
    %s6440 = sor.u32 256, 96
    %6441 = vbcast.lane.b32.xlu0 %v6391, %s6440
    %v6442 = vpop.permute.xlu0 %6441
    %s6444 = sor.u32 256, 104
    %6445 = vbcast.lane.b32.xlu0 %v6391, %s6444
    %v6446 = vpop.permute.xlu0 %6445
    %s6448 = sor.u32 256, 112
    %6449 = vbcast.lane.b32.xlu0 %v6391, %s6448
    %v6450 = vpop.permute.xlu0 %6449
    %s6452 = sor.u32 256, 120
    %6453 = vbcast.lane.b32.xlu0 %v6391, %s6452
    %v6454 = vpop.permute.xlu0 %6453
    %v6455 = vlaneseq
    %v6456 = vshrl.u32 %v6455, 7
    %v6457 = vsub.s32 7, %v6456
    %v6458 = vrot.slane %v5512, %v6457
    %6460 = vbcast.lane.b32.xlu0 %v6458, 256
    %v6461 = vpop.permute.xlu0 %6460
    %s6463 = sor.u32 256, 8
    %6464 = vbcast.lane.b32.xlu0 %v6458, %s6463
    %v6465 = vpop.permute.xlu0 %6464
    %s6467 = sor.u32 256, 16
    %6468 = vbcast.lane.b32.xlu0 %v6458, %s6467
    %v6469 = vpop.permute.xlu0 %6468
    %s6471 = sor.u32 256, 24
    %6472 = vbcast.lane.b32.xlu0 %v6458, %s6471
    %v6473 = vpop.permute.xlu0 %6472
    %s6475 = sor.u32 256, 32
    %6476 = vbcast.lane.b32.xlu0 %v6458, %s6475
    %v6477 = vpop.permute.xlu0 %6476
    %s6479 = sor.u32 256, 40
    %6480 = vbcast.lane.b32.xlu0 %v6458, %s6479
    %v6481 = vpop.permute.xlu0 %6480
    %s6483 = sor.u32 256, 48
    %6484 = vbcast.lane.b32.xlu0 %v6458, %s6483
    %v6485 = vpop.permute.xlu0 %6484
    %s6487 = sor.u32 256, 56
    %6488 = vbcast.lane.b32.xlu0 %v6458, %s6487
    %v6489 = vpop.permute.xlu0 %6488
    %s6491 = sor.u32 256, 64
    %6492 = vbcast.lane.b32.xlu0 %v6458, %s6491
    %v6493 = vpop.permute.xlu0 %6492
    %s6495 = sor.u32 256, 72
    %6496 = vbcast.lane.b32.xlu0 %v6458, %s6495
    %v6497 = vpop.permute.xlu0 %6496
    %s6499 = sor.u32 256, 80
    %6500 = vbcast.lane.b32.xlu0 %v6458, %s6499
    %v6501 = vpop.permute.xlu0 %6500
    %s6503 = sor.u32 256, 88
    %6504 = vbcast.lane.b32.xlu0 %v6458, %s6503
    %v6505 = vpop.permute.xlu0 %6504
    %s6507 = sor.u32 256, 96
    %6508 = vbcast.lane.b32.xlu0 %v6458, %s6507
    %v6509 = vpop.permute.xlu0 %6508
    %s6511 = sor.u32 256, 104
    %6512 = vbcast.lane.b32.xlu0 %v6458, %s6511
    %v6513 = vpop.permute.xlu0 %6512
    %s6515 = sor.u32 256, 112
    %6516 = vbcast.lane.b32.xlu0 %v6458, %s6515
    %v6517 = vpop.permute.xlu0 %6516
    %s6519 = sor.u32 256, 120
    %6520 = vbcast.lane.b32.xlu0 %v6458, %s6519
    %v6521 = vpop.permute.xlu0 %6520
    %v6522 = vlaneseq
    %v6523 = vshrl.u32 %v6522, 7
    %v6524 = vsub.s32 7, %v6523
    %v6525 = vrot.slane %v5514, %v6524
    %6527 = vbcast.lane.b32.xlu0 %v6525, 256
    %v6528 = vpop.permute.xlu0 %6527
    %s6530 = sor.u32 256, 8
    %6531 = vbcast.lane.b32.xlu0 %v6525, %s6530
    %v6532 = vpop.permute.xlu0 %6531
    %s6534 = sor.u32 256, 16
    %6535 = vbcast.lane.b32.xlu0 %v6525, %s6534
    %v6536 = vpop.permute.xlu0 %6535
    %s6538 = sor.u32 256, 24
    %6539 = vbcast.lane.b32.xlu0 %v6525, %s6538
    %v6540 = vpop.permute.xlu0 %6539
    %s6542 = sor.u32 256, 32
    %6543 = vbcast.lane.b32.xlu0 %v6525, %s6542
    %v6544 = vpop.permute.xlu0 %6543
    %s6546 = sor.u32 256, 40
    %6547 = vbcast.lane.b32.xlu0 %v6525, %s6546
    %v6548 = vpop.permute.xlu0 %6547
    %s6550 = sor.u32 256, 48
    %6551 = vbcast.lane.b32.xlu0 %v6525, %s6550
    %v6552 = vpop.permute.xlu0 %6551
    %s6554 = sor.u32 256, 56
    %6555 = vbcast.lane.b32.xlu0 %v6525, %s6554
    %v6556 = vpop.permute.xlu0 %6555
    %s6558 = sor.u32 256, 64
    %6559 = vbcast.lane.b32.xlu0 %v6525, %s6558
    %v6560 = vpop.permute.xlu0 %6559
    %s6562 = sor.u32 256, 72
    %6563 = vbcast.lane.b32.xlu0 %v6525, %s6562
    %v6564 = vpop.permute.xlu0 %6563
    %s6566 = sor.u32 256, 80
    %6567 = vbcast.lane.b32.xlu0 %v6525, %s6566
    %v6568 = vpop.permute.xlu0 %6567
    %s6570 = sor.u32 256, 88
    %6571 = vbcast.lane.b32.xlu0 %v6525, %s6570
    %v6572 = vpop.permute.xlu0 %6571
    %s6574 = sor.u32 256, 96
    %6575 = vbcast.lane.b32.xlu0 %v6525, %s6574
    %v6576 = vpop.permute.xlu0 %6575
    %s6578 = sor.u32 256, 104
    %6579 = vbcast.lane.b32.xlu0 %v6525, %s6578
    %v6580 = vpop.permute.xlu0 %6579
    %s6582 = sor.u32 256, 112
    %6583 = vbcast.lane.b32.xlu0 %v6525, %s6582
    %v6584 = vpop.permute.xlu0 %6583
    %s6586 = sor.u32 256, 120
    %6587 = vbcast.lane.b32.xlu0 %v6525, %s6586
    %v6588 = vpop.permute.xlu0 %6587
    %v6845 = vmul.f32 %v917, %v5523
    %v6846 = vmul.f32 %v919, %v5527
    %v6847 = vmul.f32 %v921, %v5531
    %v6848 = vmul.f32 %v923, %v5535
    %v6849 = vmul.f32 %v925, %v5539
    %v6850 = vmul.f32 %v927, %v5543
    %v6851 = vmul.f32 %v929, %v5547
    %v6852 = vmul.f32 %v931, %v5551
    %v6853 = vmul.f32 %v933, %v5555
    %v6854 = vmul.f32 %v935, %v5559
    %v6855 = vmul.f32 %v937, %v5563
    %v6856 = vmul.f32 %v939, %v5567
    %v6857 = vmul.f32 %v941, %v5571
    %v6858 = vmul.f32 %v943, %v5575
    %v6859 = vmul.f32 %v945, %v5579
    %v6860 = vmul.f32 %v947, %v5583
    %v6861 = vmul.f32 %v949, %v5590
    %v6862 = vmul.f32 %v951, %v5594
    %v6863 = vmul.f32 %v953, %v5598
    %v6864 = vmul.f32 %v955, %v5602
    %v6865 = vmul.f32 %v957, %v5606
    %v6866 = vmul.f32 %v959, %v5610
    %v6867 = vmul.f32 %v961, %v5614
    %v6868 = vmul.f32 %v963, %v5618
    %v6869 = vmul.f32 %v965, %v5622
    %v6870 = vmul.f32 %v967, %v5626
    %v6871 = vmul.f32 %v969, %v5630
    %v6872 = vmul.f32 %v971, %v5634
    %v6873 = vmul.f32 %v973, %v5638
    %v6874 = vmul.f32 %v975, %v5642
    %v6875 = vmul.f32 %v977, %v5646
    %v6876 = vmul.f32 %v979, %v5650
    %v6877 = vmul.f32 %v981, %v5657
    %v6878 = vmul.f32 %v983, %v5661
    %v6879 = vmul.f32 %v985, %v5665
    %v6880 = vmul.f32 %v987, %v5669
    %v6881 = vmul.f32 %v989, %v5673
    %v6882 = vmul.f32 %v991, %v5677
    %v6883 = vmul.f32 %v993, %v5681
    %v6884 = vmul.f32 %v995, %v5685
    %v6885 = vmul.f32 %v997, %v5689
    %v6886 = vmul.f32 %v999, %v5693
    %v6887 = vmul.f32 %v1001, %v5697
    %v6888 = vmul.f32 %v1003, %v5701
    %v6889 = vmul.f32 %v1005, %v5705
    %v6890 = vmul.f32 %v1007, %v5709
    %v6891 = vmul.f32 %v1009, %v5713
    %v6892 = vmul.f32 %v1011, %v5717
    %v6893 = vmul.f32 %v1013, %v5724
    %v6894 = vmul.f32 %v1015, %v5728
    %v6895 = vmul.f32 %v1017, %v5732
    %v6896 = vmul.f32 %v1019, %v5736
    %v6897 = vmul.f32 %v1021, %v5740
    %v6898 = vmul.f32 %v1023, %v5744
    %v6899 = vmul.f32 %v1025, %v5748
    %v6900 = vmul.f32 %v1027, %v5752
    %v6901 = vmul.f32 %v1029, %v5756
    %v6902 = vmul.f32 %v1031, %v5760
    %v6903 = vmul.f32 %v1033, %v5764
    %v6904 = vmul.f32 %v1035, %v5768
    %v6905 = vmul.f32 %v1037, %v5772
    %v6906 = vmul.f32 %v1039, %v5776
    %v6907 = vmul.f32 %v1041, %v5780
    %v6908 = vmul.f32 %v1043, %v5784
    %v6909 = vmul.f32 %v1045, %v5791
    %v6910 = vmul.f32 %v1047, %v5795
    %v6911 = vmul.f32 %v1049, %v5799
    %v6912 = vmul.f32 %v1051, %v5803
    %v6913 = vmul.f32 %v1053, %v5807
    %v6914 = vmul.f32 %v1055, %v5811
    %v6915 = vmul.f32 %v1057, %v5815
    %v6916 = vmul.f32 %v1059, %v5819
    %v6917 = vmul.f32 %v1061, %v5823
    %v6918 = vmul.f32 %v1063, %v5827
    %v6919 = vmul.f32 %v1065, %v5831
    %v6920 = vmul.f32 %v1067, %v5835
    %v6921 = vmul.f32 %v1069, %v5839
    %v6922 = vmul.f32 %v1071, %v5843
    %v6923 = vmul.f32 %v1073, %v5847
    %v6924 = vmul.f32 %v1075, %v5851
    %v6925 = vmul.f32 %v1077, %v5858
    %v6926 = vmul.f32 %v1079, %v5862
    %v6927 = vmul.f32 %v1081, %v5866
    %v6928 = vmul.f32 %v1083, %v5870
    %v6929 = vmul.f32 %v1085, %v5874
    %v6930 = vmul.f32 %v1087, %v5878
    %v6931 = vmul.f32 %v1089, %v5882
    %v6932 = vmul.f32 %v1091, %v5886
    %v6933 = vmul.f32 %v1093, %v5890
    %v6934 = vmul.f32 %v1095, %v5894
    %v6935 = vmul.f32 %v1097, %v5898
    %v6936 = vmul.f32 %v1099, %v5902
    %v6937 = vmul.f32 %v1101, %v5906
    %v6938 = vmul.f32 %v1103, %v5910
    %v6939 = vmul.f32 %v1105, %v5914
    %v6940 = vmul.f32 %v1107, %v5918
    %v6941 = vmul.f32 %v1109, %v5925
    %v6942 = vmul.f32 %v1111, %v5929
    %v6943 = vmul.f32 %v1113, %v5933
    %v6944 = vmul.f32 %v1115, %v5937
    %v6945 = vmul.f32 %v1117, %v5941
    %v6946 = vmul.f32 %v1119, %v5945
    %v6947 = vmul.f32 %v1121, %v5949
    %v6948 = vmul.f32 %v1123, %v5953
    %v6949 = vmul.f32 %v1125, %v5957
    %v6950 = vmul.f32 %v1127, %v5961
    %v6951 = vmul.f32 %v1129, %v5965
    %v6952 = vmul.f32 %v1131, %v5969
    %v6953 = vmul.f32 %v1133, %v5973
    %v6954 = vmul.f32 %v1135, %v5977
    %v6955 = vmul.f32 %v1137, %v5981
    %v6956 = vmul.f32 %v1139, %v5985
    %v6957 = vmul.f32 %v1141, %v5992
    %v6958 = vmul.f32 %v1143, %v5996
    %v6959 = vmul.f32 %v1145, %v6000
    %v6960 = vmul.f32 %v1147, %v6004
    %v6961 = vmul.f32 %v1149, %v6008
    %v6962 = vmul.f32 %v1151, %v6012
    %v6963 = vmul.f32 %v1153, %v6016
    %v6964 = vmul.f32 %v1155, %v6020
    %v6965 = vmul.f32 %v1157, %v6024
    %v6966 = vmul.f32 %v1159, %v6028
    %v6967 = vmul.f32 %v1161, %v6032
    %v6968 = vmul.f32 %v1163, %v6036
    %v6969 = vmul.f32 %v1165, %v6040
    %v6970 = vmul.f32 %v1167, %v6044
    %v6971 = vmul.f32 %v1169, %v6048
    %v6972 = vmul.f32 %v1171, %v6052
    %v6973 = vmul.f32 %v1173, %v6059
    %v6974 = vmul.f32 %v1175, %v6063
    %v6975 = vmul.f32 %v1177, %v6067
    %v6976 = vmul.f32 %v1179, %v6071
    %v6977 = vmul.f32 %v1181, %v6075
    %v6978 = vmul.f32 %v1183, %v6079
    %v6979 = vmul.f32 %v1185, %v6083
    %v6980 = vmul.f32 %v1187, %v6087
    %v6981 = vmul.f32 %v1189, %v6091
    %v6982 = vmul.f32 %v1191, %v6095
    %v6983 = vmul.f32 %v1193, %v6099
    %v6984 = vmul.f32 %v1195, %v6103
    %v6985 = vmul.f32 %v1197, %v6107
    %v6986 = vmul.f32 %v1199, %v6111
    %v6987 = vmul.f32 %v1201, %v6115
    %v6988 = vmul.f32 %v1203, %v6119
    %v6989 = vmul.f32 %v1205, %v6126
    %v6990 = vmul.f32 %v1207, %v6130
    %v6991 = vmul.f32 %v1209, %v6134
    %v6992 = vmul.f32 %v1211, %v6138
    %v6993 = vmul.f32 %v1213, %v6142
    %v6994 = vmul.f32 %v1215, %v6146
    %v6995 = vmul.f32 %v1217, %v6150
    %v6996 = vmul.f32 %v1219, %v6154
    %v6997 = vmul.f32 %v1221, %v6158
    %v6998 = vmul.f32 %v1223, %v6162
    %v6999 = vmul.f32 %v1225, %v6166
    %v7000 = vmul.f32 %v1227, %v6170
    %v7001 = vmul.f32 %v1229, %v6174
    %v7002 = vmul.f32 %v1231, %v6178
    %v7003 = vmul.f32 %v1233, %v6182
    %v7004 = vmul.f32 %v1235, %v6186
    %v7005 = vmul.f32 %v1237, %v6193
    %v7006 = vmul.f32 %v1239, %v6197
    %v7007 = vmul.f32 %v1241, %v6201
    %v7008 = vmul.f32 %v1243, %v6205
    %v7009 = vmul.f32 %v1245, %v6209
    %v7010 = vmul.f32 %v1247, %v6213
    %v7011 = vmul.f32 %v1249, %v6217
    %v7012 = vmul.f32 %v1251, %v6221
    %v7013 = vmul.f32 %v1253, %v6225
    %v7014 = vmul.f32 %v1255, %v6229
    %v7015 = vmul.f32 %v1257, %v6233
    %v7016 = vmul.f32 %v1259, %v6237
    %v7017 = vmul.f32 %v1261, %v6241
    %v7018 = vmul.f32 %v1263, %v6245
    %v7019 = vmul.f32 %v1265, %v6249
    %v7020 = vmul.f32 %v1267, %v6253
    %v7021 = vmul.f32 %v1269, %v6260
    %v7022 = vmul.f32 %v1271, %v6264
    %v7023 = vmul.f32 %v1273, %v6268
    %v7024 = vmul.f32 %v1275, %v6272
    %v7025 = vmul.f32 %v1277, %v6276
    %v7026 = vmul.f32 %v1279, %v6280
    %v7027 = vmul.f32 %v1281, %v6284
    %v7028 = vmul.f32 %v1283, %v6288
    %v7029 = vmul.f32 %v1285, %v6292
    %v7030 = vmul.f32 %v1287, %v6296
    %v7031 = vmul.f32 %v1289, %v6300
    %v7032 = vmul.f32 %v1291, %v6304
    %v7033 = vmul.f32 %v1293, %v6308
    %v7034 = vmul.f32 %v1295, %v6312
    %v7035 = vmul.f32 %v1297, %v6316
    %v7036 = vmul.f32 %v1299, %v6320
    %v7037 = vmul.f32 %v1301, %v6327
    %v7038 = vmul.f32 %v1303, %v6331
    %v7039 = vmul.f32 %v1305, %v6335
    %v7040 = vmul.f32 %v1307, %v6339
    %v7041 = vmul.f32 %v1309, %v6343
    %v7042 = vmul.f32 %v1311, %v6347
    %v7043 = vmul.f32 %v1313, %v6351
    %v7044 = vmul.f32 %v1315, %v6355
    %v7045 = vmul.f32 %v1317, %v6359
    %v7046 = vmul.f32 %v1319, %v6363
    %v7047 = vmul.f32 %v1321, %v6367
    %v7048 = vmul.f32 %v1323, %v6371
    %v7049 = vmul.f32 %v1325, %v6375
    %v7050 = vmul.f32 %v1327, %v6379
    %v7051 = vmul.f32 %v1329, %v6383
    %v7052 = vmul.f32 %v1331, %v6387
    %v7053 = vmul.f32 %v1333, %v6394
    %v7054 = vmul.f32 %v1335, %v6398
    %v7055 = vmul.f32 %v1337, %v6402
    %v7056 = vmul.f32 %v1339, %v6406
    %v7057 = vmul.f32 %v1341, %v6410
    %v7058 = vmul.f32 %v1343, %v6414
    %v7059 = vmul.f32 %v1345, %v6418
    %v7060 = vmul.f32 %v1347, %v6422
    %v7061 = vmul.f32 %v1349, %v6426
    %v7062 = vmul.f32 %v1351, %v6430
    %v7063 = vmul.f32 %v1353, %v6434
    %v7064 = vmul.f32 %v1355, %v6438
    %v7065 = vmul.f32 %v1357, %v6442
    %v7066 = vmul.f32 %v1359, %v6446
    %v7067 = vmul.f32 %v1361, %v6450
    %v7068 = vmul.f32 %v1363, %v6454
    %v7069 = vmul.f32 %v1365, %v6461
    %v7070 = vmul.f32 %v1367, %v6465
    %v7071 = vmul.f32 %v1369, %v6469
    %v7072 = vmul.f32 %v1371, %v6473
    %v7073 = vmul.f32 %v1373, %v6477
    %v7074 = vmul.f32 %v1375, %v6481
    %v7075 = vmul.f32 %v1377, %v6485
    %v7076 = vmul.f32 %v1379, %v6489
    %v7077 = vmul.f32 %v1381, %v6493
    %v7078 = vmul.f32 %v1383, %v6497
    %v7079 = vmul.f32 %v1385, %v6501
    %v7080 = vmul.f32 %v1387, %v6505
    %v7081 = vmul.f32 %v1389, %v6509
    %v7082 = vmul.f32 %v1391, %v6513
    %v7083 = vmul.f32 %v1393, %v6517
    %v7084 = vmul.f32 %v1395, %v6521
    %v7085 = vmul.f32 %v1397, %v6528
    %v7086 = vmul.f32 %v1399, %v6532
    %v7087 = vmul.f32 %v1401, %v6536
    %v7088 = vmul.f32 %v1403, %v6540
    %v7089 = vmul.f32 %v1405, %v6544
    %v7090 = vmul.f32 %v1407, %v6548
    %v7091 = vmul.f32 %v1409, %v6552
    %v7092 = vmul.f32 %v1411, %v6556
    %v7093 = vmul.f32 %v1413, %v6560
    %v7094 = vmul.f32 %v1415, %v6564
    %v7095 = vmul.f32 %v1417, %v6568
    %v7096 = vmul.f32 %v1419, %v6572
    %v7097 = vmul.f32 %v1421, %v6576
    %v7098 = vmul.f32 %v1423, %v6580
    %v7099 = vmul.f32 %v1425, %v6584
    %v7100 = vmul.f32 %v1427, %v6588
    %7357 = vset.pattern.permute.xlu0 0
    %7358 = vperm.xlu0 %7357, %v6845
    %v7359 = vpop.permute.xlu0 %7358
    %7360 = vset.pattern.permute.xlu0 0
    %7361 = vperm.xlu0 %7360, %v6846
    %v7362 = vpop.permute.xlu0 %7361
    %7363 = vset.pattern.permute.xlu0 0
    %7364 = vperm.xlu0 %7363, %v6847
    %v7365 = vpop.permute.xlu0 %7364
    %7366 = vset.pattern.permute.xlu0 0
    %7367 = vperm.xlu0 %7366, %v6848
    %v7368 = vpop.permute.xlu0 %7367
    %7369 = vset.pattern.permute.xlu0 0
    %7370 = vperm.xlu0 %7369, %v6849
    %v7371 = vpop.permute.xlu0 %7370
    %7372 = vset.pattern.permute.xlu0 0
    %7373 = vperm.xlu0 %7372, %v6850
    %v7374 = vpop.permute.xlu0 %7373
    %7375 = vset.pattern.permute.xlu0 0
    %7376 = vperm.xlu0 %7375, %v6851
    %v7377 = vpop.permute.xlu0 %7376
    %7378 = vset.pattern.permute.xlu0 0
    %7379 = vperm.xlu0 %7378, %v6852
    %v7380 = vpop.permute.xlu0 %7379
    %7381 = vset.pattern.permute.xlu0 0
    %7382 = vperm.xlu0 %7381, %v6853
    %v7383 = vpop.permute.xlu0 %7382
    %7384 = vset.pattern.permute.xlu0 0
    %7385 = vperm.xlu0 %7384, %v6854
    %v7386 = vpop.permute.xlu0 %7385
    %7387 = vset.pattern.permute.xlu0 0
    %7388 = vperm.xlu0 %7387, %v6855
    %v7389 = vpop.permute.xlu0 %7388
    %7390 = vset.pattern.permute.xlu0 0
    %7391 = vperm.xlu0 %7390, %v6856
    %v7392 = vpop.permute.xlu0 %7391
    %7393 = vset.pattern.permute.xlu0 0
    %7394 = vperm.xlu0 %7393, %v6857
    %v7395 = vpop.permute.xlu0 %7394
    %7396 = vset.pattern.permute.xlu0 0
    %7397 = vperm.xlu0 %7396, %v6858
    %v7398 = vpop.permute.xlu0 %7397
    %7399 = vset.pattern.permute.xlu0 0
    %7400 = vperm.xlu0 %7399, %v6859
    %v7401 = vpop.permute.xlu0 %7400
    %7402 = vset.pattern.permute.xlu0 0
    %7403 = vperm.xlu0 %7402, %v6860
    %v7404 = vpop.permute.xlu0 %7403
    %7405 = vset.pattern.permute.xlu0 0
    %7406 = vperm.xlu0 %7405, %v6861
    %v7407 = vpop.permute.xlu0 %7406
    %7408 = vset.pattern.permute.xlu0 0
    %7409 = vperm.xlu0 %7408, %v6862
    %v7410 = vpop.permute.xlu0 %7409
    %7411 = vset.pattern.permute.xlu0 0
    %7412 = vperm.xlu0 %7411, %v6863
    %v7413 = vpop.permute.xlu0 %7412
    %7414 = vset.pattern.permute.xlu0 0
    %7415 = vperm.xlu0 %7414, %v6864
    %v7416 = vpop.permute.xlu0 %7415
    %7417 = vset.pattern.permute.xlu0 0
    %7418 = vperm.xlu0 %7417, %v6865
    %v7419 = vpop.permute.xlu0 %7418
    %7420 = vset.pattern.permute.xlu0 0
    %7421 = vperm.xlu0 %7420, %v6866
    %v7422 = vpop.permute.xlu0 %7421
    %7423 = vset.pattern.permute.xlu0 0
    %7424 = vperm.xlu0 %7423, %v6867
    %v7425 = vpop.permute.xlu0 %7424
    %7426 = vset.pattern.permute.xlu0 0
    %7427 = vperm.xlu0 %7426, %v6868
    %v7428 = vpop.permute.xlu0 %7427
    %7429 = vset.pattern.permute.xlu0 0
    %7430 = vperm.xlu0 %7429, %v6869
    %v7431 = vpop.permute.xlu0 %7430
    %7432 = vset.pattern.permute.xlu0 0
    %7433 = vperm.xlu0 %7432, %v6870
    %v7434 = vpop.permute.xlu0 %7433
    %7435 = vset.pattern.permute.xlu0 0
    %7436 = vperm.xlu0 %7435, %v6871
    %v7437 = vpop.permute.xlu0 %7436
    %7438 = vset.pattern.permute.xlu0 0
    %7439 = vperm.xlu0 %7438, %v6872
    %v7440 = vpop.permute.xlu0 %7439
    %7441 = vset.pattern.permute.xlu0 0
    %7442 = vperm.xlu0 %7441, %v6873
    %v7443 = vpop.permute.xlu0 %7442
    %7444 = vset.pattern.permute.xlu0 0
    %7445 = vperm.xlu0 %7444, %v6874
    %v7446 = vpop.permute.xlu0 %7445
    %7447 = vset.pattern.permute.xlu0 0
    %7448 = vperm.xlu0 %7447, %v6875
    %v7449 = vpop.permute.xlu0 %7448
    %7450 = vset.pattern.permute.xlu0 0
    %7451 = vperm.xlu0 %7450, %v6876
    %v7452 = vpop.permute.xlu0 %7451
    %7453 = vset.pattern.permute.xlu0 0
    %7454 = vperm.xlu0 %7453, %v6877
    %v7455 = vpop.permute.xlu0 %7454
    %7456 = vset.pattern.permute.xlu0 0
    %7457 = vperm.xlu0 %7456, %v6878
    %v7458 = vpop.permute.xlu0 %7457
    %7459 = vset.pattern.permute.xlu0 0
    %7460 = vperm.xlu0 %7459, %v6879
    %v7461 = vpop.permute.xlu0 %7460
    %7462 = vset.pattern.permute.xlu0 0
    %7463 = vperm.xlu0 %7462, %v6880
    %v7464 = vpop.permute.xlu0 %7463
    %7465 = vset.pattern.permute.xlu0 0
    %7466 = vperm.xlu0 %7465, %v6881
    %v7467 = vpop.permute.xlu0 %7466
    %7468 = vset.pattern.permute.xlu0 0
    %7469 = vperm.xlu0 %7468, %v6882
    %v7470 = vpop.permute.xlu0 %7469
    %7471 = vset.pattern.permute.xlu0 0
    %7472 = vperm.xlu0 %7471, %v6883
    %v7473 = vpop.permute.xlu0 %7472
    %7474 = vset.pattern.permute.xlu0 0
    %7475 = vperm.xlu0 %7474, %v6884
    %v7476 = vpop.permute.xlu0 %7475
    %7477 = vset.pattern.permute.xlu0 0
    %7478 = vperm.xlu0 %7477, %v6885
    %v7479 = vpop.permute.xlu0 %7478
    %7480 = vset.pattern.permute.xlu0 0
    %7481 = vperm.xlu0 %7480, %v6886
    %v7482 = vpop.permute.xlu0 %7481
    %7483 = vset.pattern.permute.xlu0 0
    %7484 = vperm.xlu0 %7483, %v6887
    %v7485 = vpop.permute.xlu0 %7484
    %7486 = vset.pattern.permute.xlu0 0
    %7487 = vperm.xlu0 %7486, %v6888
    %v7488 = vpop.permute.xlu0 %7487
    %7489 = vset.pattern.permute.xlu0 0
    %7490 = vperm.xlu0 %7489, %v6889
    %v7491 = vpop.permute.xlu0 %7490
    %7492 = vset.pattern.permute.xlu0 0
    %7493 = vperm.xlu0 %7492, %v6890
    %v7494 = vpop.permute.xlu0 %7493
    %7495 = vset.pattern.permute.xlu0 0
    %7496 = vperm.xlu0 %7495, %v6891
    %v7497 = vpop.permute.xlu0 %7496
    %7498 = vset.pattern.permute.xlu0 0
    %7499 = vperm.xlu0 %7498, %v6892
    %v7500 = vpop.permute.xlu0 %7499
    %7501 = vset.pattern.permute.xlu0 0
    %7502 = vperm.xlu0 %7501, %v6893
    %v7503 = vpop.permute.xlu0 %7502
    %7504 = vset.pattern.permute.xlu0 0
    %7505 = vperm.xlu0 %7504, %v6894
    %v7506 = vpop.permute.xlu0 %7505
    %7507 = vset.pattern.permute.xlu0 0
    %7508 = vperm.xlu0 %7507, %v6895
    %v7509 = vpop.permute.xlu0 %7508
    %7510 = vset.pattern.permute.xlu0 0
    %7511 = vperm.xlu0 %7510, %v6896
    %v7512 = vpop.permute.xlu0 %7511
    %7513 = vset.pattern.permute.xlu0 0
    %7514 = vperm.xlu0 %7513, %v6897
    %v7515 = vpop.permute.xlu0 %7514
    %7516 = vset.pattern.permute.xlu0 0
    %7517 = vperm.xlu0 %7516, %v6898
    %v7518 = vpop.permute.xlu0 %7517
    %7519 = vset.pattern.permute.xlu0 0
    %7520 = vperm.xlu0 %7519, %v6899
    %v7521 = vpop.permute.xlu0 %7520
    %7522 = vset.pattern.permute.xlu0 0
    %7523 = vperm.xlu0 %7522, %v6900
    %v7524 = vpop.permute.xlu0 %7523
    %7525 = vset.pattern.permute.xlu0 0
    %7526 = vperm.xlu0 %7525, %v6901
    %v7527 = vpop.permute.xlu0 %7526
    %7528 = vset.pattern.permute.xlu0 0
    %7529 = vperm.xlu0 %7528, %v6902
    %v7530 = vpop.permute.xlu0 %7529
    %7531 = vset.pattern.permute.xlu0 0
    %7532 = vperm.xlu0 %7531, %v6903
    %v7533 = vpop.permute.xlu0 %7532
    %7534 = vset.pattern.permute.xlu0 0
    %7535 = vperm.xlu0 %7534, %v6904
    %v7536 = vpop.permute.xlu0 %7535
    %7537 = vset.pattern.permute.xlu0 0
    %7538 = vperm.xlu0 %7537, %v6905
    %v7539 = vpop.permute.xlu0 %7538
    %7540 = vset.pattern.permute.xlu0 0
    %7541 = vperm.xlu0 %7540, %v6906
    %v7542 = vpop.permute.xlu0 %7541
    %7543 = vset.pattern.permute.xlu0 0
    %7544 = vperm.xlu0 %7543, %v6907
    %v7545 = vpop.permute.xlu0 %7544
    %7546 = vset.pattern.permute.xlu0 0
    %7547 = vperm.xlu0 %7546, %v6908
    %v7548 = vpop.permute.xlu0 %7547
    %7549 = vset.pattern.permute.xlu0 0
    %7550 = vperm.xlu0 %7549, %v6909
    %v7551 = vpop.permute.xlu0 %7550
    %7552 = vset.pattern.permute.xlu0 0
    %7553 = vperm.xlu0 %7552, %v6910
    %v7554 = vpop.permute.xlu0 %7553
    %7555 = vset.pattern.permute.xlu0 0
    %7556 = vperm.xlu0 %7555, %v6911
    %v7557 = vpop.permute.xlu0 %7556
    %7558 = vset.pattern.permute.xlu0 0
    %7559 = vperm.xlu0 %7558, %v6912
    %v7560 = vpop.permute.xlu0 %7559
    %7561 = vset.pattern.permute.xlu0 0
    %7562 = vperm.xlu0 %7561, %v6913
    %v7563 = vpop.permute.xlu0 %7562
    %7564 = vset.pattern.permute.xlu0 0
    %7565 = vperm.xlu0 %7564, %v6914
    %v7566 = vpop.permute.xlu0 %7565
    %7567 = vset.pattern.permute.xlu0 0
    %7568 = vperm.xlu0 %7567, %v6915
    %v7569 = vpop.permute.xlu0 %7568
    %7570 = vset.pattern.permute.xlu0 0
    %7571 = vperm.xlu0 %7570, %v6916
    %v7572 = vpop.permute.xlu0 %7571
    %7573 = vset.pattern.permute.xlu0 0
    %7574 = vperm.xlu0 %7573, %v6917
    %v7575 = vpop.permute.xlu0 %7574
    %7576 = vset.pattern.permute.xlu0 0
    %7577 = vperm.xlu0 %7576, %v6918
    %v7578 = vpop.permute.xlu0 %7577
    %7579 = vset.pattern.permute.xlu0 0
    %7580 = vperm.xlu0 %7579, %v6919
    %v7581 = vpop.permute.xlu0 %7580
    %7582 = vset.pattern.permute.xlu0 0
    %7583 = vperm.xlu0 %7582, %v6920
    %v7584 = vpop.permute.xlu0 %7583
    %7585 = vset.pattern.permute.xlu0 0
    %7586 = vperm.xlu0 %7585, %v6921
    %v7587 = vpop.permute.xlu0 %7586
    %7588 = vset.pattern.permute.xlu0 0
    %7589 = vperm.xlu0 %7588, %v6922
    %v7590 = vpop.permute.xlu0 %7589
    %7591 = vset.pattern.permute.xlu0 0
    %7592 = vperm.xlu0 %7591, %v6923
    %v7593 = vpop.permute.xlu0 %7592
    %7594 = vset.pattern.permute.xlu0 0
    %7595 = vperm.xlu0 %7594, %v6924
    %v7596 = vpop.permute.xlu0 %7595
    %7597 = vset.pattern.permute.xlu0 0
    %7598 = vperm.xlu0 %7597, %v6925
    %v7599 = vpop.permute.xlu0 %7598
    %7600 = vset.pattern.permute.xlu0 0
    %7601 = vperm.xlu0 %7600, %v6926
    %v7602 = vpop.permute.xlu0 %7601
    %7603 = vset.pattern.permute.xlu0 0
    %7604 = vperm.xlu0 %7603, %v6927
    %v7605 = vpop.permute.xlu0 %7604
    %7606 = vset.pattern.permute.xlu0 0
    %7607 = vperm.xlu0 %7606, %v6928
    %v7608 = vpop.permute.xlu0 %7607
    %7609 = vset.pattern.permute.xlu0 0
    %7610 = vperm.xlu0 %7609, %v6929
    %v7611 = vpop.permute.xlu0 %7610
    %7612 = vset.pattern.permute.xlu0 0
    %7613 = vperm.xlu0 %7612, %v6930
    %v7614 = vpop.permute.xlu0 %7613
    %7615 = vset.pattern.permute.xlu0 0
    %7616 = vperm.xlu0 %7615, %v6931
    %v7617 = vpop.permute.xlu0 %7616
    %7618 = vset.pattern.permute.xlu0 0
    %7619 = vperm.xlu0 %7618, %v6932
    %v7620 = vpop.permute.xlu0 %7619
    %7621 = vset.pattern.permute.xlu0 0
    %7622 = vperm.xlu0 %7621, %v6933
    %v7623 = vpop.permute.xlu0 %7622
    %7624 = vset.pattern.permute.xlu0 0
    %7625 = vperm.xlu0 %7624, %v6934
    %v7626 = vpop.permute.xlu0 %7625
    %7627 = vset.pattern.permute.xlu0 0
    %7628 = vperm.xlu0 %7627, %v6935
    %v7629 = vpop.permute.xlu0 %7628
    %7630 = vset.pattern.permute.xlu0 0
    %7631 = vperm.xlu0 %7630, %v6936
    %v7632 = vpop.permute.xlu0 %7631
    %7633 = vset.pattern.permute.xlu0 0
    %7634 = vperm.xlu0 %7633, %v6937
    %v7635 = vpop.permute.xlu0 %7634
    %7636 = vset.pattern.permute.xlu0 0
    %7637 = vperm.xlu0 %7636, %v6938
    %v7638 = vpop.permute.xlu0 %7637
    %7639 = vset.pattern.permute.xlu0 0
    %7640 = vperm.xlu0 %7639, %v6939
    %v7641 = vpop.permute.xlu0 %7640
    %7642 = vset.pattern.permute.xlu0 0
    %7643 = vperm.xlu0 %7642, %v6940
    %v7644 = vpop.permute.xlu0 %7643
    %7645 = vset.pattern.permute.xlu0 0
    %7646 = vperm.xlu0 %7645, %v6941
    %v7647 = vpop.permute.xlu0 %7646
    %7648 = vset.pattern.permute.xlu0 0
    %7649 = vperm.xlu0 %7648, %v6942
    %v7650 = vpop.permute.xlu0 %7649
    %7651 = vset.pattern.permute.xlu0 0
    %7652 = vperm.xlu0 %7651, %v6943
    %v7653 = vpop.permute.xlu0 %7652
    %7654 = vset.pattern.permute.xlu0 0
    %7655 = vperm.xlu0 %7654, %v6944
    %v7656 = vpop.permute.xlu0 %7655
    %7657 = vset.pattern.permute.xlu0 0
    %7658 = vperm.xlu0 %7657, %v6945
    %v7659 = vpop.permute.xlu0 %7658
    %7660 = vset.pattern.permute.xlu0 0
    %7661 = vperm.xlu0 %7660, %v6946
    %v7662 = vpop.permute.xlu0 %7661
    %7663 = vset.pattern.permute.xlu0 0
    %7664 = vperm.xlu0 %7663, %v6947
    %v7665 = vpop.permute.xlu0 %7664
    %7666 = vset.pattern.permute.xlu0 0
    %7667 = vperm.xlu0 %7666, %v6948
    %v7668 = vpop.permute.xlu0 %7667
    %7669 = vset.pattern.permute.xlu0 0
    %7670 = vperm.xlu0 %7669, %v6949
    %v7671 = vpop.permute.xlu0 %7670
    %7672 = vset.pattern.permute.xlu0 0
    %7673 = vperm.xlu0 %7672, %v6950
    %v7674 = vpop.permute.xlu0 %7673
    %7675 = vset.pattern.permute.xlu0 0
    %7676 = vperm.xlu0 %7675, %v6951
    %v7677 = vpop.permute.xlu0 %7676
    %7678 = vset.pattern.permute.xlu0 0
    %7679 = vperm.xlu0 %7678, %v6952
    %v7680 = vpop.permute.xlu0 %7679
    %7681 = vset.pattern.permute.xlu0 0
    %7682 = vperm.xlu0 %7681, %v6953
    %v7683 = vpop.permute.xlu0 %7682
    %7684 = vset.pattern.permute.xlu0 0
    %7685 = vperm.xlu0 %7684, %v6954
    %v7686 = vpop.permute.xlu0 %7685
    %7687 = vset.pattern.permute.xlu0 0
    %7688 = vperm.xlu0 %7687, %v6955
    %v7689 = vpop.permute.xlu0 %7688
    %7690 = vset.pattern.permute.xlu0 0
    %7691 = vperm.xlu0 %7690, %v6956
    %v7692 = vpop.permute.xlu0 %7691
    %7693 = vset.pattern.permute.xlu0 0
    %7694 = vperm.xlu0 %7693, %v6957
    %v7695 = vpop.permute.xlu0 %7694
    %7696 = vset.pattern.permute.xlu0 0
    %7697 = vperm.xlu0 %7696, %v6958
    %v7698 = vpop.permute.xlu0 %7697
    %7699 = vset.pattern.permute.xlu0 0
    %7700 = vperm.xlu0 %7699, %v6959
    %v7701 = vpop.permute.xlu0 %7700
    %7702 = vset.pattern.permute.xlu0 0
    %7703 = vperm.xlu0 %7702, %v6960
    %v7704 = vpop.permute.xlu0 %7703
    %7705 = vset.pattern.permute.xlu0 0
    %7706 = vperm.xlu0 %7705, %v6961
    %v7707 = vpop.permute.xlu0 %7706
    %7708 = vset.pattern.permute.xlu0 0
    %7709 = vperm.xlu0 %7708, %v6962
    %v7710 = vpop.permute.xlu0 %7709
    %7711 = vset.pattern.permute.xlu0 0
    %7712 = vperm.xlu0 %7711, %v6963
    %v7713 = vpop.permute.xlu0 %7712
    %7714 = vset.pattern.permute.xlu0 0
    %7715 = vperm.xlu0 %7714, %v6964
    %v7716 = vpop.permute.xlu0 %7715
    %7717 = vset.pattern.permute.xlu0 0
    %7718 = vperm.xlu0 %7717, %v6965
    %v7719 = vpop.permute.xlu0 %7718
    %7720 = vset.pattern.permute.xlu0 0
    %7721 = vperm.xlu0 %7720, %v6966
    %v7722 = vpop.permute.xlu0 %7721
    %7723 = vset.pattern.permute.xlu0 0
    %7724 = vperm.xlu0 %7723, %v6967
    %v7725 = vpop.permute.xlu0 %7724
    %7726 = vset.pattern.permute.xlu0 0
    %7727 = vperm.xlu0 %7726, %v6968
    %v7728 = vpop.permute.xlu0 %7727
    %7729 = vset.pattern.permute.xlu0 0
    %7730 = vperm.xlu0 %7729, %v6969
    %v7731 = vpop.permute.xlu0 %7730
    %7732 = vset.pattern.permute.xlu0 0
    %7733 = vperm.xlu0 %7732, %v6970
    %v7734 = vpop.permute.xlu0 %7733
    %7735 = vset.pattern.permute.xlu0 0
    %7736 = vperm.xlu0 %7735, %v6971
    %v7737 = vpop.permute.xlu0 %7736
    %7738 = vset.pattern.permute.xlu0 0
    %7739 = vperm.xlu0 %7738, %v6972
    %v7740 = vpop.permute.xlu0 %7739
    %7741 = vset.pattern.permute.xlu0 0
    %7742 = vperm.xlu0 %7741, %v6973
    %v7743 = vpop.permute.xlu0 %7742
    %7744 = vset.pattern.permute.xlu0 0
    %7745 = vperm.xlu0 %7744, %v6974
    %v7746 = vpop.permute.xlu0 %7745
    %7747 = vset.pattern.permute.xlu0 0
    %7748 = vperm.xlu0 %7747, %v6975
    %v7749 = vpop.permute.xlu0 %7748
    %7750 = vset.pattern.permute.xlu0 0
    %7751 = vperm.xlu0 %7750, %v6976
    %v7752 = vpop.permute.xlu0 %7751
    %7753 = vset.pattern.permute.xlu0 0
    %7754 = vperm.xlu0 %7753, %v6977
    %v7755 = vpop.permute.xlu0 %7754
    %7756 = vset.pattern.permute.xlu0 0
    %7757 = vperm.xlu0 %7756, %v6978
    %v7758 = vpop.permute.xlu0 %7757
    %7759 = vset.pattern.permute.xlu0 0
    %7760 = vperm.xlu0 %7759, %v6979
    %v7761 = vpop.permute.xlu0 %7760
    %7762 = vset.pattern.permute.xlu0 0
    %7763 = vperm.xlu0 %7762, %v6980
    %v7764 = vpop.permute.xlu0 %7763
    %7765 = vset.pattern.permute.xlu0 0
    %7766 = vperm.xlu0 %7765, %v6981
    %v7767 = vpop.permute.xlu0 %7766
    %7768 = vset.pattern.permute.xlu0 0
    %7769 = vperm.xlu0 %7768, %v6982
    %v7770 = vpop.permute.xlu0 %7769
    %7771 = vset.pattern.permute.xlu0 0
    %7772 = vperm.xlu0 %7771, %v6983
    %v7773 = vpop.permute.xlu0 %7772
    %7774 = vset.pattern.permute.xlu0 0
    %7775 = vperm.xlu0 %7774, %v6984
    %v7776 = vpop.permute.xlu0 %7775
    %7777 = vset.pattern.permute.xlu0 0
    %7778 = vperm.xlu0 %7777, %v6985
    %v7779 = vpop.permute.xlu0 %7778
    %7780 = vset.pattern.permute.xlu0 0
    %7781 = vperm.xlu0 %7780, %v6986
    %v7782 = vpop.permute.xlu0 %7781
    %7783 = vset.pattern.permute.xlu0 0
    %7784 = vperm.xlu0 %7783, %v6987
    %v7785 = vpop.permute.xlu0 %7784
    %7786 = vset.pattern.permute.xlu0 0
    %7787 = vperm.xlu0 %7786, %v6988
    %v7788 = vpop.permute.xlu0 %7787
    %7789 = vset.pattern.permute.xlu0 0
    %7790 = vperm.xlu0 %7789, %v6989
    %v7791 = vpop.permute.xlu0 %7790
    %7792 = vset.pattern.permute.xlu0 0
    %7793 = vperm.xlu0 %7792, %v6990
    %v7794 = vpop.permute.xlu0 %7793
    %7795 = vset.pattern.permute.xlu0 0
    %7796 = vperm.xlu0 %7795, %v6991
    %v7797 = vpop.permute.xlu0 %7796
    %7798 = vset.pattern.permute.xlu0 0
    %7799 = vperm.xlu0 %7798, %v6992
    %v7800 = vpop.permute.xlu0 %7799
    %7801 = vset.pattern.permute.xlu0 0
    %7802 = vperm.xlu0 %7801, %v6993
    %v7803 = vpop.permute.xlu0 %7802
    %7804 = vset.pattern.permute.xlu0 0
    %7805 = vperm.xlu0 %7804, %v6994
    %v7806 = vpop.permute.xlu0 %7805
    %7807 = vset.pattern.permute.xlu0 0
    %7808 = vperm.xlu0 %7807, %v6995
    %v7809 = vpop.permute.xlu0 %7808
    %7810 = vset.pattern.permute.xlu0 0
    %7811 = vperm.xlu0 %7810, %v6996
    %v7812 = vpop.permute.xlu0 %7811
    %7813 = vset.pattern.permute.xlu0 0
    %7814 = vperm.xlu0 %7813, %v6997
    %v7815 = vpop.permute.xlu0 %7814
    %7816 = vset.pattern.permute.xlu0 0
    %7817 = vperm.xlu0 %7816, %v6998
    %v7818 = vpop.permute.xlu0 %7817
    %7819 = vset.pattern.permute.xlu0 0
    %7820 = vperm.xlu0 %7819, %v6999
    %v7821 = vpop.permute.xlu0 %7820
    %7822 = vset.pattern.permute.xlu0 0
    %7823 = vperm.xlu0 %7822, %v7000
    %v7824 = vpop.permute.xlu0 %7823
    %7825 = vset.pattern.permute.xlu0 0
    %7826 = vperm.xlu0 %7825, %v7001
    %v7827 = vpop.permute.xlu0 %7826
    %7828 = vset.pattern.permute.xlu0 0
    %7829 = vperm.xlu0 %7828, %v7002
    %v7830 = vpop.permute.xlu0 %7829
    %7831 = vset.pattern.permute.xlu0 0
    %7832 = vperm.xlu0 %7831, %v7003
    %v7833 = vpop.permute.xlu0 %7832
    %7834 = vset.pattern.permute.xlu0 0
    %7835 = vperm.xlu0 %7834, %v7004
    %v7836 = vpop.permute.xlu0 %7835
    %7837 = vset.pattern.permute.xlu0 0
    %7838 = vperm.xlu0 %7837, %v7005
    %v7839 = vpop.permute.xlu0 %7838
    %7840 = vset.pattern.permute.xlu0 0
    %7841 = vperm.xlu0 %7840, %v7006
    %v7842 = vpop.permute.xlu0 %7841
    %7843 = vset.pattern.permute.xlu0 0
    %7844 = vperm.xlu0 %7843, %v7007
    %v7845 = vpop.permute.xlu0 %7844
    %7846 = vset.pattern.permute.xlu0 0
    %7847 = vperm.xlu0 %7846, %v7008
    %v7848 = vpop.permute.xlu0 %7847
    %7849 = vset.pattern.permute.xlu0 0
    %7850 = vperm.xlu0 %7849, %v7009
    %v7851 = vpop.permute.xlu0 %7850
    %7852 = vset.pattern.permute.xlu0 0
    %7853 = vperm.xlu0 %7852, %v7010
    %v7854 = vpop.permute.xlu0 %7853
    %7855 = vset.pattern.permute.xlu0 0
    %7856 = vperm.xlu0 %7855, %v7011
    %v7857 = vpop.permute.xlu0 %7856
    %7858 = vset.pattern.permute.xlu0 0
    %7859 = vperm.xlu0 %7858, %v7012
    %v7860 = vpop.permute.xlu0 %7859
    %7861 = vset.pattern.permute.xlu0 0
    %7862 = vperm.xlu0 %7861, %v7013
    %v7863 = vpop.permute.xlu0 %7862
    %7864 = vset.pattern.permute.xlu0 0
    %7865 = vperm.xlu0 %7864, %v7014
    %v7866 = vpop.permute.xlu0 %7865
    %7867 = vset.pattern.permute.xlu0 0
    %7868 = vperm.xlu0 %7867, %v7015
    %v7869 = vpop.permute.xlu0 %7868
    %7870 = vset.pattern.permute.xlu0 0
    %7871 = vperm.xlu0 %7870, %v7016
    %v7872 = vpop.permute.xlu0 %7871
    %7873 = vset.pattern.permute.xlu0 0
    %7874 = vperm.xlu0 %7873, %v7017
    %v7875 = vpop.permute.xlu0 %7874
    %7876 = vset.pattern.permute.xlu0 0
    %7877 = vperm.xlu0 %7876, %v7018
    %v7878 = vpop.permute.xlu0 %7877
    %7879 = vset.pattern.permute.xlu0 0
    %7880 = vperm.xlu0 %7879, %v7019
    %v7881 = vpop.permute.xlu0 %7880
    %7882 = vset.pattern.permute.xlu0 0
    %7883 = vperm.xlu0 %7882, %v7020
    %v7884 = vpop.permute.xlu0 %7883
    %7885 = vset.pattern.permute.xlu0 0
    %7886 = vperm.xlu0 %7885, %v7021
    %v7887 = vpop.permute.xlu0 %7886
    %7888 = vset.pattern.permute.xlu0 0
    %7889 = vperm.xlu0 %7888, %v7022
    %v7890 = vpop.permute.xlu0 %7889
    %7891 = vset.pattern.permute.xlu0 0
    %7892 = vperm.xlu0 %7891, %v7023
    %v7893 = vpop.permute.xlu0 %7892
    %7894 = vset.pattern.permute.xlu0 0
    %7895 = vperm.xlu0 %7894, %v7024
    %v7896 = vpop.permute.xlu0 %7895
    %7897 = vset.pattern.permute.xlu0 0
    %7898 = vperm.xlu0 %7897, %v7025
    %v7899 = vpop.permute.xlu0 %7898
    %7900 = vset.pattern.permute.xlu0 0
    %7901 = vperm.xlu0 %7900, %v7026
    %v7902 = vpop.permute.xlu0 %7901
    %7903 = vset.pattern.permute.xlu0 0
    %7904 = vperm.xlu0 %7903, %v7027
    %v7905 = vpop.permute.xlu0 %7904
    %7906 = vset.pattern.permute.xlu0 0
    %7907 = vperm.xlu0 %7906, %v7028
    %v7908 = vpop.permute.xlu0 %7907
    %7909 = vset.pattern.permute.xlu0 0
    %7910 = vperm.xlu0 %7909, %v7029
    %v7911 = vpop.permute.xlu0 %7910
    %7912 = vset.pattern.permute.xlu0 0
    %7913 = vperm.xlu0 %7912, %v7030
    %v7914 = vpop.permute.xlu0 %7913
    %7915 = vset.pattern.permute.xlu0 0
    %7916 = vperm.xlu0 %7915, %v7031
    %v7917 = vpop.permute.xlu0 %7916
    %7918 = vset.pattern.permute.xlu0 0
    %7919 = vperm.xlu0 %7918, %v7032
    %v7920 = vpop.permute.xlu0 %7919
    %7921 = vset.pattern.permute.xlu0 0
    %7922 = vperm.xlu0 %7921, %v7033
    %v7923 = vpop.permute.xlu0 %7922
    %7924 = vset.pattern.permute.xlu0 0
    %7925 = vperm.xlu0 %7924, %v7034
    %v7926 = vpop.permute.xlu0 %7925
    %7927 = vset.pattern.permute.xlu0 0
    %7928 = vperm.xlu0 %7927, %v7035
    %v7929 = vpop.permute.xlu0 %7928
    %7930 = vset.pattern.permute.xlu0 0
    %7931 = vperm.xlu0 %7930, %v7036
    %v7932 = vpop.permute.xlu0 %7931
    %7933 = vset.pattern.permute.xlu0 0
    %7934 = vperm.xlu0 %7933, %v7037
    %v7935 = vpop.permute.xlu0 %7934
    %7936 = vset.pattern.permute.xlu0 0
    %7937 = vperm.xlu0 %7936, %v7038
    %v7938 = vpop.permute.xlu0 %7937
    %7939 = vset.pattern.permute.xlu0 0
    %7940 = vperm.xlu0 %7939, %v7039
    %v7941 = vpop.permute.xlu0 %7940
    %7942 = vset.pattern.permute.xlu0 0
    %7943 = vperm.xlu0 %7942, %v7040
    %v7944 = vpop.permute.xlu0 %7943
    %7945 = vset.pattern.permute.xlu0 0
    %7946 = vperm.xlu0 %7945, %v7041
    %v7947 = vpop.permute.xlu0 %7946
    %7948 = vset.pattern.permute.xlu0 0
    %7949 = vperm.xlu0 %7948, %v7042
    %v7950 = vpop.permute.xlu0 %7949
    %7951 = vset.pattern.permute.xlu0 0
    %7952 = vperm.xlu0 %7951, %v7043
    %v7953 = vpop.permute.xlu0 %7952
    %7954 = vset.pattern.permute.xlu0 0
    %7955 = vperm.xlu0 %7954, %v7044
    %v7956 = vpop.permute.xlu0 %7955
    %7957 = vset.pattern.permute.xlu0 0
    %7958 = vperm.xlu0 %7957, %v7045
    %v7959 = vpop.permute.xlu0 %7958
    %7960 = vset.pattern.permute.xlu0 0
    %7961 = vperm.xlu0 %7960, %v7046
    %v7962 = vpop.permute.xlu0 %7961
    %7963 = vset.pattern.permute.xlu0 0
    %7964 = vperm.xlu0 %7963, %v7047
    %v7965 = vpop.permute.xlu0 %7964
    %7966 = vset.pattern.permute.xlu0 0
    %7967 = vperm.xlu0 %7966, %v7048
    %v7968 = vpop.permute.xlu0 %7967
    %7969 = vset.pattern.permute.xlu0 0
    %7970 = vperm.xlu0 %7969, %v7049
    %v7971 = vpop.permute.xlu0 %7970
    %7972 = vset.pattern.permute.xlu0 0
    %7973 = vperm.xlu0 %7972, %v7050
    %v7974 = vpop.permute.xlu0 %7973
    %7975 = vset.pattern.permute.xlu0 0
    %7976 = vperm.xlu0 %7975, %v7051
    %v7977 = vpop.permute.xlu0 %7976
    %7978 = vset.pattern.permute.xlu0 0
    %7979 = vperm.xlu0 %7978, %v7052
    %v7980 = vpop.permute.xlu0 %7979
    %7981 = vset.pattern.permute.xlu0 0
    %7982 = vperm.xlu0 %7981, %v7053
    %v7983 = vpop.permute.xlu0 %7982
    %7984 = vset.pattern.permute.xlu0 0
    %7985 = vperm.xlu0 %7984, %v7054
    %v7986 = vpop.permute.xlu0 %7985
    %7987 = vset.pattern.permute.xlu0 0
    %7988 = vperm.xlu0 %7987, %v7055
    %v7989 = vpop.permute.xlu0 %7988
    %7990 = vset.pattern.permute.xlu0 0
    %7991 = vperm.xlu0 %7990, %v7056
    %v7992 = vpop.permute.xlu0 %7991
    %7993 = vset.pattern.permute.xlu0 0
    %7994 = vperm.xlu0 %7993, %v7057
    %v7995 = vpop.permute.xlu0 %7994
    %7996 = vset.pattern.permute.xlu0 0
    %7997 = vperm.xlu0 %7996, %v7058
    %v7998 = vpop.permute.xlu0 %7997
    %7999 = vset.pattern.permute.xlu0 0
    %8000 = vperm.xlu0 %7999, %v7059
    %v8001 = vpop.permute.xlu0 %8000
    %8002 = vset.pattern.permute.xlu0 0
    %8003 = vperm.xlu0 %8002, %v7060
    %v8004 = vpop.permute.xlu0 %8003
    %8005 = vset.pattern.permute.xlu0 0
    %8006 = vperm.xlu0 %8005, %v7061
    %v8007 = vpop.permute.xlu0 %8006
    %8008 = vset.pattern.permute.xlu0 0
    %8009 = vperm.xlu0 %8008, %v7062
    %v8010 = vpop.permute.xlu0 %8009
    %8011 = vset.pattern.permute.xlu0 0
    %8012 = vperm.xlu0 %8011, %v7063
    %v8013 = vpop.permute.xlu0 %8012
    %8014 = vset.pattern.permute.xlu0 0
    %8015 = vperm.xlu0 %8014, %v7064
    %v8016 = vpop.permute.xlu0 %8015
    %8017 = vset.pattern.permute.xlu0 0
    %8018 = vperm.xlu0 %8017, %v7065
    %v8019 = vpop.permute.xlu0 %8018
    %8020 = vset.pattern.permute.xlu0 0
    %8021 = vperm.xlu0 %8020, %v7066
    %v8022 = vpop.permute.xlu0 %8021
    %8023 = vset.pattern.permute.xlu0 0
    %8024 = vperm.xlu0 %8023, %v7067
    %v8025 = vpop.permute.xlu0 %8024
    %8026 = vset.pattern.permute.xlu0 0
    %8027 = vperm.xlu0 %8026, %v7068
    %v8028 = vpop.permute.xlu0 %8027
    %8029 = vset.pattern.permute.xlu0 0
    %8030 = vperm.xlu0 %8029, %v7069
    %v8031 = vpop.permute.xlu0 %8030
    %8032 = vset.pattern.permute.xlu0 0
    %8033 = vperm.xlu0 %8032, %v7070
    %v8034 = vpop.permute.xlu0 %8033
    %8035 = vset.pattern.permute.xlu0 0
    %8036 = vperm.xlu0 %8035, %v7071
    %v8037 = vpop.permute.xlu0 %8036
    %8038 = vset.pattern.permute.xlu0 0
    %8039 = vperm.xlu0 %8038, %v7072
    %v8040 = vpop.permute.xlu0 %8039
    %8041 = vset.pattern.permute.xlu0 0
    %8042 = vperm.xlu0 %8041, %v7073
    %v8043 = vpop.permute.xlu0 %8042
    %8044 = vset.pattern.permute.xlu0 0
    %8045 = vperm.xlu0 %8044, %v7074
    %v8046 = vpop.permute.xlu0 %8045
    %8047 = vset.pattern.permute.xlu0 0
    %8048 = vperm.xlu0 %8047, %v7075
    %v8049 = vpop.permute.xlu0 %8048
    %8050 = vset.pattern.permute.xlu0 0
    %8051 = vperm.xlu0 %8050, %v7076
    %v8052 = vpop.permute.xlu0 %8051
    %8053 = vset.pattern.permute.xlu0 0
    %8054 = vperm.xlu0 %8053, %v7077
    %v8055 = vpop.permute.xlu0 %8054
    %8056 = vset.pattern.permute.xlu0 0
    %8057 = vperm.xlu0 %8056, %v7078
    %v8058 = vpop.permute.xlu0 %8057
    %8059 = vset.pattern.permute.xlu0 0
    %8060 = vperm.xlu0 %8059, %v7079
    %v8061 = vpop.permute.xlu0 %8060
    %8062 = vset.pattern.permute.xlu0 0
    %8063 = vperm.xlu0 %8062, %v7080
    %v8064 = vpop.permute.xlu0 %8063
    %8065 = vset.pattern.permute.xlu0 0
    %8066 = vperm.xlu0 %8065, %v7081
    %v8067 = vpop.permute.xlu0 %8066
    %8068 = vset.pattern.permute.xlu0 0
    %8069 = vperm.xlu0 %8068, %v7082
    %v8070 = vpop.permute.xlu0 %8069
    %8071 = vset.pattern.permute.xlu0 0
    %8072 = vperm.xlu0 %8071, %v7083
    %v8073 = vpop.permute.xlu0 %8072
    %8074 = vset.pattern.permute.xlu0 0
    %8075 = vperm.xlu0 %8074, %v7084
    %v8076 = vpop.permute.xlu0 %8075
    %8077 = vset.pattern.permute.xlu0 0
    %8078 = vperm.xlu0 %8077, %v7085
    %v8079 = vpop.permute.xlu0 %8078
    %8080 = vset.pattern.permute.xlu0 0
    %8081 = vperm.xlu0 %8080, %v7086
    %v8082 = vpop.permute.xlu0 %8081
    %8083 = vset.pattern.permute.xlu0 0
    %8084 = vperm.xlu0 %8083, %v7087
    %v8085 = vpop.permute.xlu0 %8084
    %8086 = vset.pattern.permute.xlu0 0
    %8087 = vperm.xlu0 %8086, %v7088
    %v8088 = vpop.permute.xlu0 %8087
    %8089 = vset.pattern.permute.xlu0 0
    %8090 = vperm.xlu0 %8089, %v7089
    %v8091 = vpop.permute.xlu0 %8090
    %8092 = vset.pattern.permute.xlu0 0
    %8093 = vperm.xlu0 %8092, %v7090
    %v8094 = vpop.permute.xlu0 %8093
    %8095 = vset.pattern.permute.xlu0 0
    %8096 = vperm.xlu0 %8095, %v7091
    %v8097 = vpop.permute.xlu0 %8096
    %8098 = vset.pattern.permute.xlu0 0
    %8099 = vperm.xlu0 %8098, %v7092
    %v8100 = vpop.permute.xlu0 %8099
    %8101 = vset.pattern.permute.xlu0 0
    %8102 = vperm.xlu0 %8101, %v7093
    %v8103 = vpop.permute.xlu0 %8102
    %8104 = vset.pattern.permute.xlu0 0
    %8105 = vperm.xlu0 %8104, %v7094
    %v8106 = vpop.permute.xlu0 %8105
    %8107 = vset.pattern.permute.xlu0 0
    %8108 = vperm.xlu0 %8107, %v7095
    %v8109 = vpop.permute.xlu0 %8108
    %8110 = vset.pattern.permute.xlu0 0
    %8111 = vperm.xlu0 %8110, %v7096
    %v8112 = vpop.permute.xlu0 %8111
    %8113 = vset.pattern.permute.xlu0 0
    %8114 = vperm.xlu0 %8113, %v7097
    %v8115 = vpop.permute.xlu0 %8114
    %8116 = vset.pattern.permute.xlu0 0
    %8117 = vperm.xlu0 %8116, %v7098
    %v8118 = vpop.permute.xlu0 %8117
    %8119 = vset.pattern.permute.xlu0 0
    %8120 = vperm.xlu0 %8119, %v7099
    %v8121 = vpop.permute.xlu0 %8120
    %8122 = vset.pattern.permute.xlu0 0
    %8123 = vperm.xlu0 %8122, %v7100
    %v8124 = vpop.permute.xlu0 %8123
    %v8125 = vlaneseq
    %v8126 = vshrl.u32 %v8125, 7
    %v8127 = vsub.s32 %v1429, %v8126
    %v8128 = vrot.slane %v7359, %v8127
    %v8129 = vlaneseq
    %v8130 = vshrl.u32 %v8129, 7
    %v8131 = vsub.s32 %v4181, %v8130
    %v8132 = vrot.slane %v7362, %v8131
    %v8133 = vsel %vm4186, %v8132, %v8128
    %v8134 = vlaneseq
    %v8135 = vshrl.u32 %v8134, 7
    %v8136 = vsub.s32 %v4188, %v8135
    %v8137 = vrot.slane %v7365, %v8136
    %v8138 = vsel %vm4193, %v8137, %v8133
    %v8139 = vlaneseq
    %v8140 = vshrl.u32 %v8139, 7
    %v8141 = vsub.s32 %v4195, %v8140
    %v8142 = vrot.slane %v7368, %v8141
    %v8143 = vsel %vm4200, %v8142, %v8138
    %v8144 = vlaneseq
    %v8145 = vshrl.u32 %v8144, 7
    %v8146 = vsub.s32 %v4202, %v8145
    %v8147 = vrot.slane %v7371, %v8146
    %v8148 = vsel %vm4207, %v8147, %v8143
    %v8149 = vlaneseq
    %v8150 = vshrl.u32 %v8149, 7
    %v8151 = vsub.s32 %v4209, %v8150
    %v8152 = vrot.slane %v7374, %v8151
    %v8153 = vsel %vm4214, %v8152, %v8148
    %v8154 = vlaneseq
    %v8155 = vshrl.u32 %v8154, 7
    %v8156 = vsub.s32 %v4216, %v8155
    %v8157 = vrot.slane %v7377, %v8156
    %v8158 = vsel %vm4221, %v8157, %v8153
    %v8159 = vlaneseq
    %v8160 = vshrl.u32 %v8159, 7
    %v8161 = vsub.s32 %v4223, %v8160
    %v8162 = vrot.slane %v7380, %v8161
    %v8163 = vsel %vm4228, %v8162, %v8158
    %v8164 = vlaneseq
    %v8165 = vshrl.u32 %v8164, 7
    %v8166 = vsub.s32 %v4230, %v8165
    %v8167 = vrot.slane %v7383, %v8166
    %v8168 = vsel %vm4235, %v8167, %v8163
    %v8169 = vlaneseq
    %v8170 = vshrl.u32 %v8169, 7
    %v8171 = vsub.s32 %v4237, %v8170
    %v8172 = vrot.slane %v7386, %v8171
    %v8173 = vsel %vm4242, %v8172, %v8168
    %v8174 = vlaneseq
    %v8175 = vshrl.u32 %v8174, 7
    %v8176 = vsub.s32 %v4244, %v8175
    %v8177 = vrot.slane %v7389, %v8176
    %v8178 = vsel %vm4249, %v8177, %v8173
    %v8179 = vlaneseq
    %v8180 = vshrl.u32 %v8179, 7
    %v8181 = vsub.s32 %v4251, %v8180
    %v8182 = vrot.slane %v7392, %v8181
    %v8183 = vsel %vm4256, %v8182, %v8178
    %v8184 = vlaneseq
    %v8185 = vshrl.u32 %v8184, 7
    %v8186 = vsub.s32 %v4258, %v8185
    %v8187 = vrot.slane %v7395, %v8186
    %v8188 = vsel %vm4263, %v8187, %v8183
    %v8189 = vlaneseq
    %v8190 = vshrl.u32 %v8189, 7
    %v8191 = vsub.s32 %v4265, %v8190
    %v8192 = vrot.slane %v7398, %v8191
    %v8193 = vsel %vm4270, %v8192, %v8188
    %v8194 = vlaneseq
    %v8195 = vshrl.u32 %v8194, 7
    %v8196 = vsub.s32 %v4272, %v8195
    %v8197 = vrot.slane %v7401, %v8196
    %v8198 = vsel %vm4277, %v8197, %v8193
    %v8199 = vlaneseq
    %v8200 = vshrl.u32 %v8199, 7
    %v8201 = vsub.s32 %v4279, %v8200
    %v8202 = vrot.slane %v7404, %v8201
    %v8203 = vsel %vm4284, %v8202, %v8198
    %v8204 = vlaneseq
    %v8205 = vshrl.u32 %v8204, 7
    %v8206 = vsub.s32 %v1429, %v8205
    %v8207 = vrot.slane %v7407, %v8206
    %v8208 = vlaneseq
    %v8209 = vshrl.u32 %v8208, 7
    %v8210 = vsub.s32 %v4181, %v8209
    %v8211 = vrot.slane %v7410, %v8210
    %v8212 = vsel %vm4186, %v8211, %v8207
    %v8213 = vlaneseq
    %v8214 = vshrl.u32 %v8213, 7
    %v8215 = vsub.s32 %v4188, %v8214
    %v8216 = vrot.slane %v7413, %v8215
    %v8217 = vsel %vm4193, %v8216, %v8212
    %v8218 = vlaneseq
    %v8219 = vshrl.u32 %v8218, 7
    %v8220 = vsub.s32 %v4195, %v8219
    %v8221 = vrot.slane %v7416, %v8220
    %v8222 = vsel %vm4200, %v8221, %v8217
    %v8223 = vlaneseq
    %v8224 = vshrl.u32 %v8223, 7
    %v8225 = vsub.s32 %v4202, %v8224
    %v8226 = vrot.slane %v7419, %v8225
    %v8227 = vsel %vm4207, %v8226, %v8222
    %v8228 = vlaneseq
    %v8229 = vshrl.u32 %v8228, 7
    %v8230 = vsub.s32 %v4209, %v8229
    %v8231 = vrot.slane %v7422, %v8230
    %v8232 = vsel %vm4214, %v8231, %v8227
    %v8233 = vlaneseq
    %v8234 = vshrl.u32 %v8233, 7
    %v8235 = vsub.s32 %v4216, %v8234
    %v8236 = vrot.slane %v7425, %v8235
    %v8237 = vsel %vm4221, %v8236, %v8232
    %v8238 = vlaneseq
    %v8239 = vshrl.u32 %v8238, 7
    %v8240 = vsub.s32 %v4223, %v8239
    %v8241 = vrot.slane %v7428, %v8240
    %v8242 = vsel %vm4228, %v8241, %v8237
    %v8243 = vlaneseq
    %v8244 = vshrl.u32 %v8243, 7
    %v8245 = vsub.s32 %v4230, %v8244
    %v8246 = vrot.slane %v7431, %v8245
    %v8247 = vsel %vm4235, %v8246, %v8242
    %v8248 = vlaneseq
    %v8249 = vshrl.u32 %v8248, 7
    %v8250 = vsub.s32 %v4237, %v8249
    %v8251 = vrot.slane %v7434, %v8250
    %v8252 = vsel %vm4242, %v8251, %v8247
    %v8253 = vlaneseq
    %v8254 = vshrl.u32 %v8253, 7
    %v8255 = vsub.s32 %v4244, %v8254
    %v8256 = vrot.slane %v7437, %v8255
    %v8257 = vsel %vm4249, %v8256, %v8252
    %v8258 = vlaneseq
    %v8259 = vshrl.u32 %v8258, 7
    %v8260 = vsub.s32 %v4251, %v8259
    %v8261 = vrot.slane %v7440, %v8260
    %v8262 = vsel %vm4256, %v8261, %v8257
    %v8263 = vlaneseq
    %v8264 = vshrl.u32 %v8263, 7
    %v8265 = vsub.s32 %v4258, %v8264
    %v8266 = vrot.slane %v7443, %v8265
    %v8267 = vsel %vm4263, %v8266, %v8262
    %v8268 = vlaneseq
    %v8269 = vshrl.u32 %v8268, 7
    %v8270 = vsub.s32 %v4265, %v8269
    %v8271 = vrot.slane %v7446, %v8270
    %v8272 = vsel %vm4270, %v8271, %v8267
    %v8273 = vlaneseq
    %v8274 = vshrl.u32 %v8273, 7
    %v8275 = vsub.s32 %v4272, %v8274
    %v8276 = vrot.slane %v7449, %v8275
    %v8277 = vsel %vm4277, %v8276, %v8272
    %v8278 = vlaneseq
    %v8279 = vshrl.u32 %v8278, 7
    %v8280 = vsub.s32 %v4279, %v8279
    %v8281 = vrot.slane %v7452, %v8280
    %v8282 = vsel %vm4284, %v8281, %v8277
    %v8283 = vlaneseq
    %v8284 = vshrl.u32 %v8283, 7
    %v8285 = vsub.s32 %v1429, %v8284
    %v8286 = vrot.slane %v7455, %v8285
    %v8287 = vlaneseq
    %v8288 = vshrl.u32 %v8287, 7
    %v8289 = vsub.s32 %v4181, %v8288
    %v8290 = vrot.slane %v7458, %v8289
    %v8291 = vsel %vm4186, %v8290, %v8286
    %v8292 = vlaneseq
    %v8293 = vshrl.u32 %v8292, 7
    %v8294 = vsub.s32 %v4188, %v8293
    %v8295 = vrot.slane %v7461, %v8294
    %v8296 = vsel %vm4193, %v8295, %v8291
    %v8297 = vlaneseq
    %v8298 = vshrl.u32 %v8297, 7
    %v8299 = vsub.s32 %v4195, %v8298
    %v8300 = vrot.slane %v7464, %v8299
    %v8301 = vsel %vm4200, %v8300, %v8296
    %v8302 = vlaneseq
    %v8303 = vshrl.u32 %v8302, 7
    %v8304 = vsub.s32 %v4202, %v8303
    %v8305 = vrot.slane %v7467, %v8304
    %v8306 = vsel %vm4207, %v8305, %v8301
    %v8307 = vlaneseq
    %v8308 = vshrl.u32 %v8307, 7
    %v8309 = vsub.s32 %v4209, %v8308
    %v8310 = vrot.slane %v7470, %v8309
    %v8311 = vsel %vm4214, %v8310, %v8306
    %v8312 = vlaneseq
    %v8313 = vshrl.u32 %v8312, 7
    %v8314 = vsub.s32 %v4216, %v8313
    %v8315 = vrot.slane %v7473, %v8314
    %v8316 = vsel %vm4221, %v8315, %v8311
    %v8317 = vlaneseq
    %v8318 = vshrl.u32 %v8317, 7
    %v8319 = vsub.s32 %v4223, %v8318
    %v8320 = vrot.slane %v7476, %v8319
    %v8321 = vsel %vm4228, %v8320, %v8316
    %v8322 = vlaneseq
    %v8323 = vshrl.u32 %v8322, 7
    %v8324 = vsub.s32 %v4230, %v8323
    %v8325 = vrot.slane %v7479, %v8324
    %v8326 = vsel %vm4235, %v8325, %v8321
    %v8327 = vlaneseq
    %v8328 = vshrl.u32 %v8327, 7
    %v8329 = vsub.s32 %v4237, %v8328
    %v8330 = vrot.slane %v7482, %v8329
    %v8331 = vsel %vm4242, %v8330, %v8326
    %v8332 = vlaneseq
    %v8333 = vshrl.u32 %v8332, 7
    %v8334 = vsub.s32 %v4244, %v8333
    %v8335 = vrot.slane %v7485, %v8334
    %v8336 = vsel %vm4249, %v8335, %v8331
    %v8337 = vlaneseq
    %v8338 = vshrl.u32 %v8337, 7
    %v8339 = vsub.s32 %v4251, %v8338
    %v8340 = vrot.slane %v7488, %v8339
    %v8341 = vsel %vm4256, %v8340, %v8336
    %v8342 = vlaneseq
    %v8343 = vshrl.u32 %v8342, 7
    %v8344 = vsub.s32 %v4258, %v8343
    %v8345 = vrot.slane %v7491, %v8344
    %v8346 = vsel %vm4263, %v8345, %v8341
    %v8347 = vlaneseq
    %v8348 = vshrl.u32 %v8347, 7
    %v8349 = vsub.s32 %v4265, %v8348
    %v8350 = vrot.slane %v7494, %v8349
    %v8351 = vsel %vm4270, %v8350, %v8346
    %v8352 = vlaneseq
    %v8353 = vshrl.u32 %v8352, 7
    %v8354 = vsub.s32 %v4272, %v8353
    %v8355 = vrot.slane %v7497, %v8354
    %v8356 = vsel %vm4277, %v8355, %v8351
    %v8357 = vlaneseq
    %v8358 = vshrl.u32 %v8357, 7
    %v8359 = vsub.s32 %v4279, %v8358
    %v8360 = vrot.slane %v7500, %v8359
    %v8361 = vsel %vm4284, %v8360, %v8356
    %v8362 = vlaneseq
    %v8363 = vshrl.u32 %v8362, 7
    %v8364 = vsub.s32 %v1429, %v8363
    %v8365 = vrot.slane %v7503, %v8364
    %v8366 = vlaneseq
    %v8367 = vshrl.u32 %v8366, 7
    %v8368 = vsub.s32 %v4181, %v8367
    %v8369 = vrot.slane %v7506, %v8368
    %v8370 = vsel %vm4186, %v8369, %v8365
    %v8371 = vlaneseq
    %v8372 = vshrl.u32 %v8371, 7
    %v8373 = vsub.s32 %v4188, %v8372
    %v8374 = vrot.slane %v7509, %v8373
    %v8375 = vsel %vm4193, %v8374, %v8370
    %v8376 = vlaneseq
    %v8377 = vshrl.u32 %v8376, 7
    %v8378 = vsub.s32 %v4195, %v8377
    %v8379 = vrot.slane %v7512, %v8378
    %v8380 = vsel %vm4200, %v8379, %v8375
    %v8381 = vlaneseq
    %v8382 = vshrl.u32 %v8381, 7
    %v8383 = vsub.s32 %v4202, %v8382
    %v8384 = vrot.slane %v7515, %v8383
    %v8385 = vsel %vm4207, %v8384, %v8380
    %v8386 = vlaneseq
    %v8387 = vshrl.u32 %v8386, 7
    %v8388 = vsub.s32 %v4209, %v8387
    %v8389 = vrot.slane %v7518, %v8388
    %v8390 = vsel %vm4214, %v8389, %v8385
    %v8391 = vlaneseq
    %v8392 = vshrl.u32 %v8391, 7
    %v8393 = vsub.s32 %v4216, %v8392
    %v8394 = vrot.slane %v7521, %v8393
    %v8395 = vsel %vm4221, %v8394, %v8390
    %v8396 = vlaneseq
    %v8397 = vshrl.u32 %v8396, 7
    %v8398 = vsub.s32 %v4223, %v8397
    %v8399 = vrot.slane %v7524, %v8398
    %v8400 = vsel %vm4228, %v8399, %v8395
    %v8401 = vlaneseq
    %v8402 = vshrl.u32 %v8401, 7
    %v8403 = vsub.s32 %v4230, %v8402
    %v8404 = vrot.slane %v7527, %v8403
    %v8405 = vsel %vm4235, %v8404, %v8400
    %v8406 = vlaneseq
    %v8407 = vshrl.u32 %v8406, 7
    %v8408 = vsub.s32 %v4237, %v8407
    %v8409 = vrot.slane %v7530, %v8408
    %v8410 = vsel %vm4242, %v8409, %v8405
    %v8411 = vlaneseq
    %v8412 = vshrl.u32 %v8411, 7
    %v8413 = vsub.s32 %v4244, %v8412
    %v8414 = vrot.slane %v7533, %v8413
    %v8415 = vsel %vm4249, %v8414, %v8410
    %v8416 = vlaneseq
    %v8417 = vshrl.u32 %v8416, 7
    %v8418 = vsub.s32 %v4251, %v8417
    %v8419 = vrot.slane %v7536, %v8418
    %v8420 = vsel %vm4256, %v8419, %v8415
    %v8421 = vlaneseq
    %v8422 = vshrl.u32 %v8421, 7
    %v8423 = vsub.s32 %v4258, %v8422
    %v8424 = vrot.slane %v7539, %v8423
    %v8425 = vsel %vm4263, %v8424, %v8420
    %v8426 = vlaneseq
    %v8427 = vshrl.u32 %v8426, 7
    %v8428 = vsub.s32 %v4265, %v8427
    %v8429 = vrot.slane %v7542, %v8428
    %v8430 = vsel %vm4270, %v8429, %v8425
    %v8431 = vlaneseq
    %v8432 = vshrl.u32 %v8431, 7
    %v8433 = vsub.s32 %v4272, %v8432
    %v8434 = vrot.slane %v7545, %v8433
    %v8435 = vsel %vm4277, %v8434, %v8430
    %v8436 = vlaneseq
    %v8437 = vshrl.u32 %v8436, 7
    %v8438 = vsub.s32 %v4279, %v8437
    %v8439 = vrot.slane %v7548, %v8438
    %v8440 = vsel %vm4284, %v8439, %v8435
    %v8441 = vlaneseq
    %v8442 = vshrl.u32 %v8441, 7
    %v8443 = vsub.s32 %v1429, %v8442
    %v8444 = vrot.slane %v7551, %v8443
    %v8445 = vlaneseq
    %v8446 = vshrl.u32 %v8445, 7
    %v8447 = vsub.s32 %v4181, %v8446
    %v8448 = vrot.slane %v7554, %v8447
    %v8449 = vsel %vm4186, %v8448, %v8444
    %v8450 = vlaneseq
    %v8451 = vshrl.u32 %v8450, 7
    %v8452 = vsub.s32 %v4188, %v8451
    %v8453 = vrot.slane %v7557, %v8452
    %v8454 = vsel %vm4193, %v8453, %v8449
    %v8455 = vlaneseq
    %v8456 = vshrl.u32 %v8455, 7
    %v8457 = vsub.s32 %v4195, %v8456
    %v8458 = vrot.slane %v7560, %v8457
    %v8459 = vsel %vm4200, %v8458, %v8454
    %v8460 = vlaneseq
    %v8461 = vshrl.u32 %v8460, 7
    %v8462 = vsub.s32 %v4202, %v8461
    %v8463 = vrot.slane %v7563, %v8462
    %v8464 = vsel %vm4207, %v8463, %v8459
    %v8465 = vlaneseq
    %v8466 = vshrl.u32 %v8465, 7
    %v8467 = vsub.s32 %v4209, %v8466
    %v8468 = vrot.slane %v7566, %v8467
    %v8469 = vsel %vm4214, %v8468, %v8464
    %v8470 = vlaneseq
    %v8471 = vshrl.u32 %v8470, 7
    %v8472 = vsub.s32 %v4216, %v8471
    %v8473 = vrot.slane %v7569, %v8472
    %v8474 = vsel %vm4221, %v8473, %v8469
    %v8475 = vlaneseq
    %v8476 = vshrl.u32 %v8475, 7
    %v8477 = vsub.s32 %v4223, %v8476
    %v8478 = vrot.slane %v7572, %v8477
    %v8479 = vsel %vm4228, %v8478, %v8474
    %v8480 = vlaneseq
    %v8481 = vshrl.u32 %v8480, 7
    %v8482 = vsub.s32 %v4230, %v8481
    %v8483 = vrot.slane %v7575, %v8482
    %v8484 = vsel %vm4235, %v8483, %v8479
    %v8485 = vlaneseq
    %v8486 = vshrl.u32 %v8485, 7
    %v8487 = vsub.s32 %v4237, %v8486
    %v8488 = vrot.slane %v7578, %v8487
    %v8489 = vsel %vm4242, %v8488, %v8484
    %v8490 = vlaneseq
    %v8491 = vshrl.u32 %v8490, 7
    %v8492 = vsub.s32 %v4244, %v8491
    %v8493 = vrot.slane %v7581, %v8492
    %v8494 = vsel %vm4249, %v8493, %v8489
    %v8495 = vlaneseq
    %v8496 = vshrl.u32 %v8495, 7
    %v8497 = vsub.s32 %v4251, %v8496
    %v8498 = vrot.slane %v7584, %v8497
    %v8499 = vsel %vm4256, %v8498, %v8494
    %v8500 = vlaneseq
    %v8501 = vshrl.u32 %v8500, 7
    %v8502 = vsub.s32 %v4258, %v8501
    %v8503 = vrot.slane %v7587, %v8502
    %v8504 = vsel %vm4263, %v8503, %v8499
    %v8505 = vlaneseq
    %v8506 = vshrl.u32 %v8505, 7
    %v8507 = vsub.s32 %v4265, %v8506
    %v8508 = vrot.slane %v7590, %v8507
    %v8509 = vsel %vm4270, %v8508, %v8504
    %v8510 = vlaneseq
    %v8511 = vshrl.u32 %v8510, 7
    %v8512 = vsub.s32 %v4272, %v8511
    %v8513 = vrot.slane %v7593, %v8512
    %v8514 = vsel %vm4277, %v8513, %v8509
    %v8515 = vlaneseq
    %v8516 = vshrl.u32 %v8515, 7
    %v8517 = vsub.s32 %v4279, %v8516
    %v8518 = vrot.slane %v7596, %v8517
    %v8519 = vsel %vm4284, %v8518, %v8514
    %v8520 = vlaneseq
    %v8521 = vshrl.u32 %v8520, 7
    %v8522 = vsub.s32 %v1429, %v8521
    %v8523 = vrot.slane %v7599, %v8522
    %v8524 = vlaneseq
    %v8525 = vshrl.u32 %v8524, 7
    %v8526 = vsub.s32 %v4181, %v8525
    %v8527 = vrot.slane %v7602, %v8526
    %v8528 = vsel %vm4186, %v8527, %v8523
    %v8529 = vlaneseq
    %v8530 = vshrl.u32 %v8529, 7
    %v8531 = vsub.s32 %v4188, %v8530
    %v8532 = vrot.slane %v7605, %v8531
    %v8533 = vsel %vm4193, %v8532, %v8528
    %v8534 = vlaneseq
    %v8535 = vshrl.u32 %v8534, 7
    %v8536 = vsub.s32 %v4195, %v8535
    %v8537 = vrot.slane %v7608, %v8536
    %v8538 = vsel %vm4200, %v8537, %v8533
    %v8539 = vlaneseq
    %v8540 = vshrl.u32 %v8539, 7
    %v8541 = vsub.s32 %v4202, %v8540
    %v8542 = vrot.slane %v7611, %v8541
    %v8543 = vsel %vm4207, %v8542, %v8538
    %v8544 = vlaneseq
    %v8545 = vshrl.u32 %v8544, 7
    %v8546 = vsub.s32 %v4209, %v8545
    %v8547 = vrot.slane %v7614, %v8546
    %v8548 = vsel %vm4214, %v8547, %v8543
    %v8549 = vlaneseq
    %v8550 = vshrl.u32 %v8549, 7
    %v8551 = vsub.s32 %v4216, %v8550
    %v8552 = vrot.slane %v7617, %v8551
    %v8553 = vsel %vm4221, %v8552, %v8548
    %v8554 = vlaneseq
    %v8555 = vshrl.u32 %v8554, 7
    %v8556 = vsub.s32 %v4223, %v8555
    %v8557 = vrot.slane %v7620, %v8556
    %v8558 = vsel %vm4228, %v8557, %v8553
    %v8559 = vlaneseq
    %v8560 = vshrl.u32 %v8559, 7
    %v8561 = vsub.s32 %v4230, %v8560
    %v8562 = vrot.slane %v7623, %v8561
    %v8563 = vsel %vm4235, %v8562, %v8558
    %v8564 = vlaneseq
    %v8565 = vshrl.u32 %v8564, 7
    %v8566 = vsub.s32 %v4237, %v8565
    %v8567 = vrot.slane %v7626, %v8566
    %v8568 = vsel %vm4242, %v8567, %v8563
    %v8569 = vlaneseq
    %v8570 = vshrl.u32 %v8569, 7
    %v8571 = vsub.s32 %v4244, %v8570
    %v8572 = vrot.slane %v7629, %v8571
    %v8573 = vsel %vm4249, %v8572, %v8568
    %v8574 = vlaneseq
    %v8575 = vshrl.u32 %v8574, 7
    %v8576 = vsub.s32 %v4251, %v8575
    %v8577 = vrot.slane %v7632, %v8576
    %v8578 = vsel %vm4256, %v8577, %v8573
    %v8579 = vlaneseq
    %v8580 = vshrl.u32 %v8579, 7
    %v8581 = vsub.s32 %v4258, %v8580
    %v8582 = vrot.slane %v7635, %v8581
    %v8583 = vsel %vm4263, %v8582, %v8578
    %v8584 = vlaneseq
    %v8585 = vshrl.u32 %v8584, 7
    %v8586 = vsub.s32 %v4265, %v8585
    %v8587 = vrot.slane %v7638, %v8586
    %v8588 = vsel %vm4270, %v8587, %v8583
    %v8589 = vlaneseq
    %v8590 = vshrl.u32 %v8589, 7
    %v8591 = vsub.s32 %v4272, %v8590
    %v8592 = vrot.slane %v7641, %v8591
    %v8593 = vsel %vm4277, %v8592, %v8588
    %v8594 = vlaneseq
    %v8595 = vshrl.u32 %v8594, 7
    %v8596 = vsub.s32 %v4279, %v8595
    %v8597 = vrot.slane %v7644, %v8596
    %v8598 = vsel %vm4284, %v8597, %v8593
    %v8599 = vlaneseq
    %v8600 = vshrl.u32 %v8599, 7
    %v8601 = vsub.s32 %v1429, %v8600
    %v8602 = vrot.slane %v7647, %v8601
    %v8603 = vlaneseq
    %v8604 = vshrl.u32 %v8603, 7
    %v8605 = vsub.s32 %v4181, %v8604
    %v8606 = vrot.slane %v7650, %v8605
    %v8607 = vsel %vm4186, %v8606, %v8602
    %v8608 = vlaneseq
    %v8609 = vshrl.u32 %v8608, 7
    %v8610 = vsub.s32 %v4188, %v8609
    %v8611 = vrot.slane %v7653, %v8610
    %v8612 = vsel %vm4193, %v8611, %v8607
    %v8613 = vlaneseq
    %v8614 = vshrl.u32 %v8613, 7
    %v8615 = vsub.s32 %v4195, %v8614
    %v8616 = vrot.slane %v7656, %v8615
    %v8617 = vsel %vm4200, %v8616, %v8612
    %v8618 = vlaneseq
    %v8619 = vshrl.u32 %v8618, 7
    %v8620 = vsub.s32 %v4202, %v8619
    %v8621 = vrot.slane %v7659, %v8620
    %v8622 = vsel %vm4207, %v8621, %v8617
    %v8623 = vlaneseq
    %v8624 = vshrl.u32 %v8623, 7
    %v8625 = vsub.s32 %v4209, %v8624
    %v8626 = vrot.slane %v7662, %v8625
    %v8627 = vsel %vm4214, %v8626, %v8622
    %v8628 = vlaneseq
    %v8629 = vshrl.u32 %v8628, 7
    %v8630 = vsub.s32 %v4216, %v8629
    %v8631 = vrot.slane %v7665, %v8630
    %v8632 = vsel %vm4221, %v8631, %v8627
    %v8633 = vlaneseq
    %v8634 = vshrl.u32 %v8633, 7
    %v8635 = vsub.s32 %v4223, %v8634
    %v8636 = vrot.slane %v7668, %v8635
    %v8637 = vsel %vm4228, %v8636, %v8632
    %v8638 = vlaneseq
    %v8639 = vshrl.u32 %v8638, 7
    %v8640 = vsub.s32 %v4230, %v8639
    %v8641 = vrot.slane %v7671, %v8640
    %v8642 = vsel %vm4235, %v8641, %v8637
    %v8643 = vlaneseq
    %v8644 = vshrl.u32 %v8643, 7
    %v8645 = vsub.s32 %v4237, %v8644
    %v8646 = vrot.slane %v7674, %v8645
    %v8647 = vsel %vm4242, %v8646, %v8642
    %v8648 = vlaneseq
    %v8649 = vshrl.u32 %v8648, 7
    %v8650 = vsub.s32 %v4244, %v8649
    %v8651 = vrot.slane %v7677, %v8650
    %v8652 = vsel %vm4249, %v8651, %v8647
    %v8653 = vlaneseq
    %v8654 = vshrl.u32 %v8653, 7
    %v8655 = vsub.s32 %v4251, %v8654
    %v8656 = vrot.slane %v7680, %v8655
    %v8657 = vsel %vm4256, %v8656, %v8652
    %v8658 = vlaneseq
    %v8659 = vshrl.u32 %v8658, 7
    %v8660 = vsub.s32 %v4258, %v8659
    %v8661 = vrot.slane %v7683, %v8660
    %v8662 = vsel %vm4263, %v8661, %v8657
    %v8663 = vlaneseq
    %v8664 = vshrl.u32 %v8663, 7
    %v8665 = vsub.s32 %v4265, %v8664
    %v8666 = vrot.slane %v7686, %v8665
    %v8667 = vsel %vm4270, %v8666, %v8662
    %v8668 = vlaneseq
    %v8669 = vshrl.u32 %v8668, 7
    %v8670 = vsub.s32 %v4272, %v8669
    %v8671 = vrot.slane %v7689, %v8670
    %v8672 = vsel %vm4277, %v8671, %v8667
    %v8673 = vlaneseq
    %v8674 = vshrl.u32 %v8673, 7
    %v8675 = vsub.s32 %v4279, %v8674
    %v8676 = vrot.slane %v7692, %v8675
    %v8677 = vsel %vm4284, %v8676, %v8672
    %v8678 = vlaneseq
    %v8679 = vshrl.u32 %v8678, 7
    %v8680 = vsub.s32 %v1429, %v8679
    %v8681 = vrot.slane %v7695, %v8680
    %v8682 = vlaneseq
    %v8683 = vshrl.u32 %v8682, 7
    %v8684 = vsub.s32 %v4181, %v8683
    %v8685 = vrot.slane %v7698, %v8684
    %v8686 = vsel %vm4186, %v8685, %v8681
    %v8687 = vlaneseq
    %v8688 = vshrl.u32 %v8687, 7
    %v8689 = vsub.s32 %v4188, %v8688
    %v8690 = vrot.slane %v7701, %v8689
    %v8691 = vsel %vm4193, %v8690, %v8686
    %v8692 = vlaneseq
    %v8693 = vshrl.u32 %v8692, 7
    %v8694 = vsub.s32 %v4195, %v8693
    %v8695 = vrot.slane %v7704, %v8694
    %v8696 = vsel %vm4200, %v8695, %v8691
    %v8697 = vlaneseq
    %v8698 = vshrl.u32 %v8697, 7
    %v8699 = vsub.s32 %v4202, %v8698
    %v8700 = vrot.slane %v7707, %v8699
    %v8701 = vsel %vm4207, %v8700, %v8696
    %v8702 = vlaneseq
    %v8703 = vshrl.u32 %v8702, 7
    %v8704 = vsub.s32 %v4209, %v8703
    %v8705 = vrot.slane %v7710, %v8704
    %v8706 = vsel %vm4214, %v8705, %v8701
    %v8707 = vlaneseq
    %v8708 = vshrl.u32 %v8707, 7
    %v8709 = vsub.s32 %v4216, %v8708
    %v8710 = vrot.slane %v7713, %v8709
    %v8711 = vsel %vm4221, %v8710, %v8706
    %v8712 = vlaneseq
    %v8713 = vshrl.u32 %v8712, 7
    %v8714 = vsub.s32 %v4223, %v8713
    %v8715 = vrot.slane %v7716, %v8714
    %v8716 = vsel %vm4228, %v8715, %v8711
    %v8717 = vlaneseq
    %v8718 = vshrl.u32 %v8717, 7
    %v8719 = vsub.s32 %v4230, %v8718
    %v8720 = vrot.slane %v7719, %v8719
    %v8721 = vsel %vm4235, %v8720, %v8716
    %v8722 = vlaneseq
    %v8723 = vshrl.u32 %v8722, 7
    %v8724 = vsub.s32 %v4237, %v8723
    %v8725 = vrot.slane %v7722, %v8724
    %v8726 = vsel %vm4242, %v8725, %v8721
    %v8727 = vlaneseq
    %v8728 = vshrl.u32 %v8727, 7
    %v8729 = vsub.s32 %v4244, %v8728
    %v8730 = vrot.slane %v7725, %v8729
    %v8731 = vsel %vm4249, %v8730, %v8726
    %v8732 = vlaneseq
    %v8733 = vshrl.u32 %v8732, 7
    %v8734 = vsub.s32 %v4251, %v8733
    %v8735 = vrot.slane %v7728, %v8734
    %v8736 = vsel %vm4256, %v8735, %v8731
    %v8737 = vlaneseq
    %v8738 = vshrl.u32 %v8737, 7
    %v8739 = vsub.s32 %v4258, %v8738
    %v8740 = vrot.slane %v7731, %v8739
    %v8741 = vsel %vm4263, %v8740, %v8736
    %v8742 = vlaneseq
    %v8743 = vshrl.u32 %v8742, 7
    %v8744 = vsub.s32 %v4265, %v8743
    %v8745 = vrot.slane %v7734, %v8744
    %v8746 = vsel %vm4270, %v8745, %v8741
    %v8747 = vlaneseq
    %v8748 = vshrl.u32 %v8747, 7
    %v8749 = vsub.s32 %v4272, %v8748
    %v8750 = vrot.slane %v7737, %v8749
    %v8751 = vsel %vm4277, %v8750, %v8746
    %v8752 = vlaneseq
    %v8753 = vshrl.u32 %v8752, 7
    %v8754 = vsub.s32 %v4279, %v8753
    %v8755 = vrot.slane %v7740, %v8754
    %v8756 = vsel %vm4284, %v8755, %v8751
    %v8757 = vlaneseq
    %v8758 = vshrl.u32 %v8757, 7
    %v8759 = vsub.s32 %v1429, %v8758
    %v8760 = vrot.slane %v7743, %v8759
    %v8761 = vlaneseq
    %v8762 = vshrl.u32 %v8761, 7
    %v8763 = vsub.s32 %v4181, %v8762
    %v8764 = vrot.slane %v7746, %v8763
    %v8765 = vsel %vm4186, %v8764, %v8760
    %v8766 = vlaneseq
    %v8767 = vshrl.u32 %v8766, 7
    %v8768 = vsub.s32 %v4188, %v8767
    %v8769 = vrot.slane %v7749, %v8768
    %v8770 = vsel %vm4193, %v8769, %v8765
    %v8771 = vlaneseq
    %v8772 = vshrl.u32 %v8771, 7
    %v8773 = vsub.s32 %v4195, %v8772
    %v8774 = vrot.slane %v7752, %v8773
    %v8775 = vsel %vm4200, %v8774, %v8770
    %v8776 = vlaneseq
    %v8777 = vshrl.u32 %v8776, 7
    %v8778 = vsub.s32 %v4202, %v8777
    %v8779 = vrot.slane %v7755, %v8778
    %v8780 = vsel %vm4207, %v8779, %v8775
    %v8781 = vlaneseq
    %v8782 = vshrl.u32 %v8781, 7
    %v8783 = vsub.s32 %v4209, %v8782
    %v8784 = vrot.slane %v7758, %v8783
    %v8785 = vsel %vm4214, %v8784, %v8780
    %v8786 = vlaneseq
    %v8787 = vshrl.u32 %v8786, 7
    %v8788 = vsub.s32 %v4216, %v8787
    %v8789 = vrot.slane %v7761, %v8788
    %v8790 = vsel %vm4221, %v8789, %v8785
    %v8791 = vlaneseq
    %v8792 = vshrl.u32 %v8791, 7
    %v8793 = vsub.s32 %v4223, %v8792
    %v8794 = vrot.slane %v7764, %v8793
    %v8795 = vsel %vm4228, %v8794, %v8790
    %v8796 = vlaneseq
    %v8797 = vshrl.u32 %v8796, 7
    %v8798 = vsub.s32 %v4230, %v8797
    %v8799 = vrot.slane %v7767, %v8798
    %v8800 = vsel %vm4235, %v8799, %v8795
    %v8801 = vlaneseq
    %v8802 = vshrl.u32 %v8801, 7
    %v8803 = vsub.s32 %v4237, %v8802
    %v8804 = vrot.slane %v7770, %v8803
    %v8805 = vsel %vm4242, %v8804, %v8800
    %v8806 = vlaneseq
    %v8807 = vshrl.u32 %v8806, 7
    %v8808 = vsub.s32 %v4244, %v8807
    %v8809 = vrot.slane %v7773, %v8808
    %v8810 = vsel %vm4249, %v8809, %v8805
    %v8811 = vlaneseq
    %v8812 = vshrl.u32 %v8811, 7
    %v8813 = vsub.s32 %v4251, %v8812
    %v8814 = vrot.slane %v7776, %v8813
    %v8815 = vsel %vm4256, %v8814, %v8810
    %v8816 = vlaneseq
    %v8817 = vshrl.u32 %v8816, 7
    %v8818 = vsub.s32 %v4258, %v8817
    %v8819 = vrot.slane %v7779, %v8818
    %v8820 = vsel %vm4263, %v8819, %v8815
    %v8821 = vlaneseq
    %v8822 = vshrl.u32 %v8821, 7
    %v8823 = vsub.s32 %v4265, %v8822
    %v8824 = vrot.slane %v7782, %v8823
    %v8825 = vsel %vm4270, %v8824, %v8820
    %v8826 = vlaneseq
    %v8827 = vshrl.u32 %v8826, 7
    %v8828 = vsub.s32 %v4272, %v8827
    %v8829 = vrot.slane %v7785, %v8828
    %v8830 = vsel %vm4277, %v8829, %v8825
    %v8831 = vlaneseq
    %v8832 = vshrl.u32 %v8831, 7
    %v8833 = vsub.s32 %v4279, %v8832
    %v8834 = vrot.slane %v7788, %v8833
    %v8835 = vsel %vm4284, %v8834, %v8830
    %v8836 = vlaneseq
    %v8837 = vshrl.u32 %v8836, 7
    %v8838 = vsub.s32 %v1429, %v8837
    %v8839 = vrot.slane %v7791, %v8838
    %v8840 = vlaneseq
    %v8841 = vshrl.u32 %v8840, 7
    %v8842 = vsub.s32 %v4181, %v8841
    %v8843 = vrot.slane %v7794, %v8842
    %v8844 = vsel %vm4186, %v8843, %v8839
    %v8845 = vlaneseq
    %v8846 = vshrl.u32 %v8845, 7
    %v8847 = vsub.s32 %v4188, %v8846
    %v8848 = vrot.slane %v7797, %v8847
    %v8849 = vsel %vm4193, %v8848, %v8844
    %v8850 = vlaneseq
    %v8851 = vshrl.u32 %v8850, 7
    %v8852 = vsub.s32 %v4195, %v8851
    %v8853 = vrot.slane %v7800, %v8852
    %v8854 = vsel %vm4200, %v8853, %v8849
    %v8855 = vlaneseq
    %v8856 = vshrl.u32 %v8855, 7
    %v8857 = vsub.s32 %v4202, %v8856
    %v8858 = vrot.slane %v7803, %v8857
    %v8859 = vsel %vm4207, %v8858, %v8854
    %v8860 = vlaneseq
    %v8861 = vshrl.u32 %v8860, 7
    %v8862 = vsub.s32 %v4209, %v8861
    %v8863 = vrot.slane %v7806, %v8862
    %v8864 = vsel %vm4214, %v8863, %v8859
    %v8865 = vlaneseq
    %v8866 = vshrl.u32 %v8865, 7
    %v8867 = vsub.s32 %v4216, %v8866
    %v8868 = vrot.slane %v7809, %v8867
    %v8869 = vsel %vm4221, %v8868, %v8864
    %v8870 = vlaneseq
    %v8871 = vshrl.u32 %v8870, 7
    %v8872 = vsub.s32 %v4223, %v8871
    %v8873 = vrot.slane %v7812, %v8872
    %v8874 = vsel %vm4228, %v8873, %v8869
    %v8875 = vlaneseq
    %v8876 = vshrl.u32 %v8875, 7
    %v8877 = vsub.s32 %v4230, %v8876
    %v8878 = vrot.slane %v7815, %v8877
    %v8879 = vsel %vm4235, %v8878, %v8874
    %v8880 = vlaneseq
    %v8881 = vshrl.u32 %v8880, 7
    %v8882 = vsub.s32 %v4237, %v8881
    %v8883 = vrot.slane %v7818, %v8882
    %v8884 = vsel %vm4242, %v8883, %v8879
    %v8885 = vlaneseq
    %v8886 = vshrl.u32 %v8885, 7
    %v8887 = vsub.s32 %v4244, %v8886
    %v8888 = vrot.slane %v7821, %v8887
    %v8889 = vsel %vm4249, %v8888, %v8884
    %v8890 = vlaneseq
    %v8891 = vshrl.u32 %v8890, 7
    %v8892 = vsub.s32 %v4251, %v8891
    %v8893 = vrot.slane %v7824, %v8892
    %v8894 = vsel %vm4256, %v8893, %v8889
    %v8895 = vlaneseq
    %v8896 = vshrl.u32 %v8895, 7
    %v8897 = vsub.s32 %v4258, %v8896
    %v8898 = vrot.slane %v7827, %v8897
    %v8899 = vsel %vm4263, %v8898, %v8894
    %v8900 = vlaneseq
    %v8901 = vshrl.u32 %v8900, 7
    %v8902 = vsub.s32 %v4265, %v8901
    %v8903 = vrot.slane %v7830, %v8902
    %v8904 = vsel %vm4270, %v8903, %v8899
    %v8905 = vlaneseq
    %v8906 = vshrl.u32 %v8905, 7
    %v8907 = vsub.s32 %v4272, %v8906
    %v8908 = vrot.slane %v7833, %v8907
    %v8909 = vsel %vm4277, %v8908, %v8904
    %v8910 = vlaneseq
    %v8911 = vshrl.u32 %v8910, 7
    %v8912 = vsub.s32 %v4279, %v8911
    %v8913 = vrot.slane %v7836, %v8912
    %v8914 = vsel %vm4284, %v8913, %v8909
    %v8915 = vlaneseq
    %v8916 = vshrl.u32 %v8915, 7
    %v8917 = vsub.s32 %v1429, %v8916
    %v8918 = vrot.slane %v7839, %v8917
    %v8919 = vlaneseq
    %v8920 = vshrl.u32 %v8919, 7
    %v8921 = vsub.s32 %v4181, %v8920
    %v8922 = vrot.slane %v7842, %v8921
    %v8923 = vsel %vm4186, %v8922, %v8918
    %v8924 = vlaneseq
    %v8925 = vshrl.u32 %v8924, 7
    %v8926 = vsub.s32 %v4188, %v8925
    %v8927 = vrot.slane %v7845, %v8926
    %v8928 = vsel %vm4193, %v8927, %v8923
    %v8929 = vlaneseq
    %v8930 = vshrl.u32 %v8929, 7
    %v8931 = vsub.s32 %v4195, %v8930
    %v8932 = vrot.slane %v7848, %v8931
    %v8933 = vsel %vm4200, %v8932, %v8928
    %v8934 = vlaneseq
    %v8935 = vshrl.u32 %v8934, 7
    %v8936 = vsub.s32 %v4202, %v8935
    %v8937 = vrot.slane %v7851, %v8936
    %v8938 = vsel %vm4207, %v8937, %v8933
    %v8939 = vlaneseq
    %v8940 = vshrl.u32 %v8939, 7
    %v8941 = vsub.s32 %v4209, %v8940
    %v8942 = vrot.slane %v7854, %v8941
    %v8943 = vsel %vm4214, %v8942, %v8938
    %v8944 = vlaneseq
    %v8945 = vshrl.u32 %v8944, 7
    %v8946 = vsub.s32 %v4216, %v8945
    %v8947 = vrot.slane %v7857, %v8946
    %v8948 = vsel %vm4221, %v8947, %v8943
    %v8949 = vlaneseq
    %v8950 = vshrl.u32 %v8949, 7
    %v8951 = vsub.s32 %v4223, %v8950
    %v8952 = vrot.slane %v7860, %v8951
    %v8953 = vsel %vm4228, %v8952, %v8948
    %v8954 = vlaneseq
    %v8955 = vshrl.u32 %v8954, 7
    %v8956 = vsub.s32 %v4230, %v8955
    %v8957 = vrot.slane %v7863, %v8956
    %v8958 = vsel %vm4235, %v8957, %v8953
    %v8959 = vlaneseq
    %v8960 = vshrl.u32 %v8959, 7
    %v8961 = vsub.s32 %v4237, %v8960
    %v8962 = vrot.slane %v7866, %v8961
    %v8963 = vsel %vm4242, %v8962, %v8958
    %v8964 = vlaneseq
    %v8965 = vshrl.u32 %v8964, 7
    %v8966 = vsub.s32 %v4244, %v8965
    %v8967 = vrot.slane %v7869, %v8966
    %v8968 = vsel %vm4249, %v8967, %v8963
    %v8969 = vlaneseq
    %v8970 = vshrl.u32 %v8969, 7
    %v8971 = vsub.s32 %v4251, %v8970
    %v8972 = vrot.slane %v7872, %v8971
    %v8973 = vsel %vm4256, %v8972, %v8968
    %v8974 = vlaneseq
    %v8975 = vshrl.u32 %v8974, 7
    %v8976 = vsub.s32 %v4258, %v8975
    %v8977 = vrot.slane %v7875, %v8976
    %v8978 = vsel %vm4263, %v8977, %v8973
    %v8979 = vlaneseq
    %v8980 = vshrl.u32 %v8979, 7
    %v8981 = vsub.s32 %v4265, %v8980
    %v8982 = vrot.slane %v7878, %v8981
    %v8983 = vsel %vm4270, %v8982, %v8978
    %v8984 = vlaneseq
    %v8985 = vshrl.u32 %v8984, 7
    %v8986 = vsub.s32 %v4272, %v8985
    %v8987 = vrot.slane %v7881, %v8986
    %v8988 = vsel %vm4277, %v8987, %v8983
    %v8989 = vlaneseq
    %v8990 = vshrl.u32 %v8989, 7
    %v8991 = vsub.s32 %v4279, %v8990
    %v8992 = vrot.slane %v7884, %v8991
    %v8993 = vsel %vm4284, %v8992, %v8988
    %v8994 = vlaneseq
    %v8995 = vshrl.u32 %v8994, 7
    %v8996 = vsub.s32 %v1429, %v8995
    %v8997 = vrot.slane %v7887, %v8996
    %v8998 = vlaneseq
    %v8999 = vshrl.u32 %v8998, 7
    %v9000 = vsub.s32 %v4181, %v8999
    %v9001 = vrot.slane %v7890, %v9000
    %v9002 = vsel %vm4186, %v9001, %v8997
    %v9003 = vlaneseq
    %v9004 = vshrl.u32 %v9003, 7
    %v9005 = vsub.s32 %v4188, %v9004
    %v9006 = vrot.slane %v7893, %v9005
    %v9007 = vsel %vm4193, %v9006, %v9002
    %v9008 = vlaneseq
    %v9009 = vshrl.u32 %v9008, 7
    %v9010 = vsub.s32 %v4195, %v9009
    %v9011 = vrot.slane %v7896, %v9010
    %v9012 = vsel %vm4200, %v9011, %v9007
    %v9013 = vlaneseq
    %v9014 = vshrl.u32 %v9013, 7
    %v9015 = vsub.s32 %v4202, %v9014
    %v9016 = vrot.slane %v7899, %v9015
    %v9017 = vsel %vm4207, %v9016, %v9012
    %v9018 = vlaneseq
    %v9019 = vshrl.u32 %v9018, 7
    %v9020 = vsub.s32 %v4209, %v9019
    %v9021 = vrot.slane %v7902, %v9020
    %v9022 = vsel %vm4214, %v9021, %v9017
    %v9023 = vlaneseq
    %v9024 = vshrl.u32 %v9023, 7
    %v9025 = vsub.s32 %v4216, %v9024
    %v9026 = vrot.slane %v7905, %v9025
    %v9027 = vsel %vm4221, %v9026, %v9022
    %v9028 = vlaneseq
    %v9029 = vshrl.u32 %v9028, 7
    %v9030 = vsub.s32 %v4223, %v9029
    %v9031 = vrot.slane %v7908, %v9030
    %v9032 = vsel %vm4228, %v9031, %v9027
    %v9033 = vlaneseq
    %v9034 = vshrl.u32 %v9033, 7
    %v9035 = vsub.s32 %v4230, %v9034
    %v9036 = vrot.slane %v7911, %v9035
    %v9037 = vsel %vm4235, %v9036, %v9032
    %v9038 = vlaneseq
    %v9039 = vshrl.u32 %v9038, 7
    %v9040 = vsub.s32 %v4237, %v9039
    %v9041 = vrot.slane %v7914, %v9040
    %v9042 = vsel %vm4242, %v9041, %v9037
    %v9043 = vlaneseq
    %v9044 = vshrl.u32 %v9043, 7
    %v9045 = vsub.s32 %v4244, %v9044
    %v9046 = vrot.slane %v7917, %v9045
    %v9047 = vsel %vm4249, %v9046, %v9042
    %v9048 = vlaneseq
    %v9049 = vshrl.u32 %v9048, 7
    %v9050 = vsub.s32 %v4251, %v9049
    %v9051 = vrot.slane %v7920, %v9050
    %v9052 = vsel %vm4256, %v9051, %v9047
    %v9053 = vlaneseq
    %v9054 = vshrl.u32 %v9053, 7
    %v9055 = vsub.s32 %v4258, %v9054
    %v9056 = vrot.slane %v7923, %v9055
    %v9057 = vsel %vm4263, %v9056, %v9052
    %v9058 = vlaneseq
    %v9059 = vshrl.u32 %v9058, 7
    %v9060 = vsub.s32 %v4265, %v9059
    %v9061 = vrot.slane %v7926, %v9060
    %v9062 = vsel %vm4270, %v9061, %v9057
    %v9063 = vlaneseq
    %v9064 = vshrl.u32 %v9063, 7
    %v9065 = vsub.s32 %v4272, %v9064
    %v9066 = vrot.slane %v7929, %v9065
    %v9067 = vsel %vm4277, %v9066, %v9062
    %v9068 = vlaneseq
    %v9069 = vshrl.u32 %v9068, 7
    %v9070 = vsub.s32 %v4279, %v9069
    %v9071 = vrot.slane %v7932, %v9070
    %v9072 = vsel %vm4284, %v9071, %v9067
    %v9073 = vlaneseq
    %v9074 = vshrl.u32 %v9073, 7
    %v9075 = vsub.s32 %v1429, %v9074
    %v9076 = vrot.slane %v7935, %v9075
    %v9077 = vlaneseq
    %v9078 = vshrl.u32 %v9077, 7
    %v9079 = vsub.s32 %v4181, %v9078
    %v9080 = vrot.slane %v7938, %v9079
    %v9081 = vsel %vm4186, %v9080, %v9076
    %v9082 = vlaneseq
    %v9083 = vshrl.u32 %v9082, 7
    %v9084 = vsub.s32 %v4188, %v9083
    %v9085 = vrot.slane %v7941, %v9084
    %v9086 = vsel %vm4193, %v9085, %v9081
    %v9087 = vlaneseq
    %v9088 = vshrl.u32 %v9087, 7
    %v9089 = vsub.s32 %v4195, %v9088
    %v9090 = vrot.slane %v7944, %v9089
    %v9091 = vsel %vm4200, %v9090, %v9086
    %v9092 = vlaneseq
    %v9093 = vshrl.u32 %v9092, 7
    %v9094 = vsub.s32 %v4202, %v9093
    %v9095 = vrot.slane %v7947, %v9094
    %v9096 = vsel %vm4207, %v9095, %v9091
    %v9097 = vlaneseq
    %v9098 = vshrl.u32 %v9097, 7
    %v9099 = vsub.s32 %v4209, %v9098
    %v9100 = vrot.slane %v7950, %v9099
    %v9101 = vsel %vm4214, %v9100, %v9096
    %v9102 = vlaneseq
    %v9103 = vshrl.u32 %v9102, 7
    %v9104 = vsub.s32 %v4216, %v9103
    %v9105 = vrot.slane %v7953, %v9104
    %v9106 = vsel %vm4221, %v9105, %v9101
    %v9107 = vlaneseq
    %v9108 = vshrl.u32 %v9107, 7
    %v9109 = vsub.s32 %v4223, %v9108
    %v9110 = vrot.slane %v7956, %v9109
    %v9111 = vsel %vm4228, %v9110, %v9106
    %v9112 = vlaneseq
    %v9113 = vshrl.u32 %v9112, 7
    %v9114 = vsub.s32 %v4230, %v9113
    %v9115 = vrot.slane %v7959, %v9114
    %v9116 = vsel %vm4235, %v9115, %v9111
    %v9117 = vlaneseq
    %v9118 = vshrl.u32 %v9117, 7
    %v9119 = vsub.s32 %v4237, %v9118
    %v9120 = vrot.slane %v7962, %v9119
    %v9121 = vsel %vm4242, %v9120, %v9116
    %v9122 = vlaneseq
    %v9123 = vshrl.u32 %v9122, 7
    %v9124 = vsub.s32 %v4244, %v9123
    %v9125 = vrot.slane %v7965, %v9124
    %v9126 = vsel %vm4249, %v9125, %v9121
    %v9127 = vlaneseq
    %v9128 = vshrl.u32 %v9127, 7
    %v9129 = vsub.s32 %v4251, %v9128
    %v9130 = vrot.slane %v7968, %v9129
    %v9131 = vsel %vm4256, %v9130, %v9126
    %v9132 = vlaneseq
    %v9133 = vshrl.u32 %v9132, 7
    %v9134 = vsub.s32 %v4258, %v9133
    %v9135 = vrot.slane %v7971, %v9134
    %v9136 = vsel %vm4263, %v9135, %v9131
    %v9137 = vlaneseq
    %v9138 = vshrl.u32 %v9137, 7
    %v9139 = vsub.s32 %v4265, %v9138
    %v9140 = vrot.slane %v7974, %v9139
    %v9141 = vsel %vm4270, %v9140, %v9136
    %v9142 = vlaneseq
    %v9143 = vshrl.u32 %v9142, 7
    %v9144 = vsub.s32 %v4272, %v9143
    %v9145 = vrot.slane %v7977, %v9144
    %v9146 = vsel %vm4277, %v9145, %v9141
    %v9147 = vlaneseq
    %v9148 = vshrl.u32 %v9147, 7
    %v9149 = vsub.s32 %v4279, %v9148
    %v9150 = vrot.slane %v7980, %v9149
    %v9151 = vsel %vm4284, %v9150, %v9146
    %v9152 = vlaneseq
    %v9153 = vshrl.u32 %v9152, 7
    %v9154 = vsub.s32 %v1429, %v9153
    %v9155 = vrot.slane %v7983, %v9154
    %v9156 = vlaneseq
    %v9157 = vshrl.u32 %v9156, 7
    %v9158 = vsub.s32 %v4181, %v9157
    %v9159 = vrot.slane %v7986, %v9158
    %v9160 = vsel %vm4186, %v9159, %v9155
    %v9161 = vlaneseq
    %v9162 = vshrl.u32 %v9161, 7
    %v9163 = vsub.s32 %v4188, %v9162
    %v9164 = vrot.slane %v7989, %v9163
    %v9165 = vsel %vm4193, %v9164, %v9160
    %v9166 = vlaneseq
    %v9167 = vshrl.u32 %v9166, 7
    %v9168 = vsub.s32 %v4195, %v9167
    %v9169 = vrot.slane %v7992, %v9168
    %v9170 = vsel %vm4200, %v9169, %v9165
    %v9171 = vlaneseq
    %v9172 = vshrl.u32 %v9171, 7
    %v9173 = vsub.s32 %v4202, %v9172
    %v9174 = vrot.slane %v7995, %v9173
    %v9175 = vsel %vm4207, %v9174, %v9170
    %v9176 = vlaneseq
    %v9177 = vshrl.u32 %v9176, 7
    %v9178 = vsub.s32 %v4209, %v9177
    %v9179 = vrot.slane %v7998, %v9178
    %v9180 = vsel %vm4214, %v9179, %v9175
    %v9181 = vlaneseq
    %v9182 = vshrl.u32 %v9181, 7
    %v9183 = vsub.s32 %v4216, %v9182
    %v9184 = vrot.slane %v8001, %v9183
    %v9185 = vsel %vm4221, %v9184, %v9180
    %v9186 = vlaneseq
    %v9187 = vshrl.u32 %v9186, 7
    %v9188 = vsub.s32 %v4223, %v9187
    %v9189 = vrot.slane %v8004, %v9188
    %v9190 = vsel %vm4228, %v9189, %v9185
    %v9191 = vlaneseq
    %v9192 = vshrl.u32 %v9191, 7
    %v9193 = vsub.s32 %v4230, %v9192
    %v9194 = vrot.slane %v8007, %v9193
    %v9195 = vsel %vm4235, %v9194, %v9190
    %v9196 = vlaneseq
    %v9197 = vshrl.u32 %v9196, 7
    %v9198 = vsub.s32 %v4237, %v9197
    %v9199 = vrot.slane %v8010, %v9198
    %v9200 = vsel %vm4242, %v9199, %v9195
    %v9201 = vlaneseq
    %v9202 = vshrl.u32 %v9201, 7
    %v9203 = vsub.s32 %v4244, %v9202
    %v9204 = vrot.slane %v8013, %v9203
    %v9205 = vsel %vm4249, %v9204, %v9200
    %v9206 = vlaneseq
    %v9207 = vshrl.u32 %v9206, 7
    %v9208 = vsub.s32 %v4251, %v9207
    %v9209 = vrot.slane %v8016, %v9208
    %v9210 = vsel %vm4256, %v9209, %v9205
    %v9211 = vlaneseq
    %v9212 = vshrl.u32 %v9211, 7
    %v9213 = vsub.s32 %v4258, %v9212
    %v9214 = vrot.slane %v8019, %v9213
    %v9215 = vsel %vm4263, %v9214, %v9210
    %v9216 = vlaneseq
    %v9217 = vshrl.u32 %v9216, 7
    %v9218 = vsub.s32 %v4265, %v9217
    %v9219 = vrot.slane %v8022, %v9218
    %v9220 = vsel %vm4270, %v9219, %v9215
    %v9221 = vlaneseq
    %v9222 = vshrl.u32 %v9221, 7
    %v9223 = vsub.s32 %v4272, %v9222
    %v9224 = vrot.slane %v8025, %v9223
    %v9225 = vsel %vm4277, %v9224, %v9220
    %v9226 = vlaneseq
    %v9227 = vshrl.u32 %v9226, 7
    %v9228 = vsub.s32 %v4279, %v9227
    %v9229 = vrot.slane %v8028, %v9228
    %v9230 = vsel %vm4284, %v9229, %v9225
    %v9231 = vlaneseq
    %v9232 = vshrl.u32 %v9231, 7
    %v9233 = vsub.s32 %v1429, %v9232
    %v9234 = vrot.slane %v8031, %v9233
    %v9235 = vlaneseq
    %v9236 = vshrl.u32 %v9235, 7
    %v9237 = vsub.s32 %v4181, %v9236
    %v9238 = vrot.slane %v8034, %v9237
    %v9239 = vsel %vm4186, %v9238, %v9234
    %v9240 = vlaneseq
    %v9241 = vshrl.u32 %v9240, 7
    %v9242 = vsub.s32 %v4188, %v9241
    %v9243 = vrot.slane %v8037, %v9242
    %v9244 = vsel %vm4193, %v9243, %v9239
    %v9245 = vlaneseq
    %v9246 = vshrl.u32 %v9245, 7
    %v9247 = vsub.s32 %v4195, %v9246
    %v9248 = vrot.slane %v8040, %v9247
    %v9249 = vsel %vm4200, %v9248, %v9244
    %v9250 = vlaneseq
    %v9251 = vshrl.u32 %v9250, 7
    %v9252 = vsub.s32 %v4202, %v9251
    %v9253 = vrot.slane %v8043, %v9252
    %v9254 = vsel %vm4207, %v9253, %v9249
    %v9255 = vlaneseq
    %v9256 = vshrl.u32 %v9255, 7
    %v9257 = vsub.s32 %v4209, %v9256
    %v9258 = vrot.slane %v8046, %v9257
    %v9259 = vsel %vm4214, %v9258, %v9254
    %v9260 = vlaneseq
    %v9261 = vshrl.u32 %v9260, 7
    %v9262 = vsub.s32 %v4216, %v9261
    %v9263 = vrot.slane %v8049, %v9262
    %v9264 = vsel %vm4221, %v9263, %v9259
    %v9265 = vlaneseq
    %v9266 = vshrl.u32 %v9265, 7
    %v9267 = vsub.s32 %v4223, %v9266
    %v9268 = vrot.slane %v8052, %v9267
    %v9269 = vsel %vm4228, %v9268, %v9264
    %v9270 = vlaneseq
    %v9271 = vshrl.u32 %v9270, 7
    %v9272 = vsub.s32 %v4230, %v9271
    %v9273 = vrot.slane %v8055, %v9272
    %v9274 = vsel %vm4235, %v9273, %v9269
    %v9275 = vlaneseq
    %v9276 = vshrl.u32 %v9275, 7
    %v9277 = vsub.s32 %v4237, %v9276
    %v9278 = vrot.slane %v8058, %v9277
    %v9279 = vsel %vm4242, %v9278, %v9274
    %v9280 = vlaneseq
    %v9281 = vshrl.u32 %v9280, 7
    %v9282 = vsub.s32 %v4244, %v9281
    %v9283 = vrot.slane %v8061, %v9282
    %v9284 = vsel %vm4249, %v9283, %v9279
    %v9285 = vlaneseq
    %v9286 = vshrl.u32 %v9285, 7
    %v9287 = vsub.s32 %v4251, %v9286
    %v9288 = vrot.slane %v8064, %v9287
    %v9289 = vsel %vm4256, %v9288, %v9284
    %v9290 = vlaneseq
    %v9291 = vshrl.u32 %v9290, 7
    %v9292 = vsub.s32 %v4258, %v9291
    %v9293 = vrot.slane %v8067, %v9292
    %v9294 = vsel %vm4263, %v9293, %v9289
    %v9295 = vlaneseq
    %v9296 = vshrl.u32 %v9295, 7
    %v9297 = vsub.s32 %v4265, %v9296
    %v9298 = vrot.slane %v8070, %v9297
    %v9299 = vsel %vm4270, %v9298, %v9294
    %v9300 = vlaneseq
    %v9301 = vshrl.u32 %v9300, 7
    %v9302 = vsub.s32 %v4272, %v9301
    %v9303 = vrot.slane %v8073, %v9302
    %v9304 = vsel %vm4277, %v9303, %v9299
    %v9305 = vlaneseq
    %v9306 = vshrl.u32 %v9305, 7
    %v9307 = vsub.s32 %v4279, %v9306
    %v9308 = vrot.slane %v8076, %v9307
    %v9309 = vsel %vm4284, %v9308, %v9304
    %v9310 = vlaneseq
    %v9311 = vshrl.u32 %v9310, 7
    %v9312 = vsub.s32 %v1429, %v9311
    %v9313 = vrot.slane %v8079, %v9312
    %v9314 = vlaneseq
    %v9315 = vshrl.u32 %v9314, 7
    %v9316 = vsub.s32 %v4181, %v9315
    %v9317 = vrot.slane %v8082, %v9316
    %v9318 = vsel %vm4186, %v9317, %v9313
    %v9319 = vlaneseq
    %v9320 = vshrl.u32 %v9319, 7
    %v9321 = vsub.s32 %v4188, %v9320
    %v9322 = vrot.slane %v8085, %v9321
    %v9323 = vsel %vm4193, %v9322, %v9318
    %v9324 = vlaneseq
    %v9325 = vshrl.u32 %v9324, 7
    %v9326 = vsub.s32 %v4195, %v9325
    %v9327 = vrot.slane %v8088, %v9326
    %v9328 = vsel %vm4200, %v9327, %v9323
    %v9329 = vlaneseq
    %v9330 = vshrl.u32 %v9329, 7
    %v9331 = vsub.s32 %v4202, %v9330
    %v9332 = vrot.slane %v8091, %v9331
    %v9333 = vsel %vm4207, %v9332, %v9328
    %v9334 = vlaneseq
    %v9335 = vshrl.u32 %v9334, 7
    %v9336 = vsub.s32 %v4209, %v9335
    %v9337 = vrot.slane %v8094, %v9336
    %v9338 = vsel %vm4214, %v9337, %v9333
    %v9339 = vlaneseq
    %v9340 = vshrl.u32 %v9339, 7
    %v9341 = vsub.s32 %v4216, %v9340
    %v9342 = vrot.slane %v8097, %v9341
    %v9343 = vsel %vm4221, %v9342, %v9338
    %v9344 = vlaneseq
    %v9345 = vshrl.u32 %v9344, 7
    %v9346 = vsub.s32 %v4223, %v9345
    %v9347 = vrot.slane %v8100, %v9346
    %v9348 = vsel %vm4228, %v9347, %v9343
    %v9349 = vlaneseq
    %v9350 = vshrl.u32 %v9349, 7
    %v9351 = vsub.s32 %v4230, %v9350
    %v9352 = vrot.slane %v8103, %v9351
    %v9353 = vsel %vm4235, %v9352, %v9348
    %v9354 = vlaneseq
    %v9355 = vshrl.u32 %v9354, 7
    %v9356 = vsub.s32 %v4237, %v9355
    %v9357 = vrot.slane %v8106, %v9356
    %v9358 = vsel %vm4242, %v9357, %v9353
    %v9359 = vlaneseq
    %v9360 = vshrl.u32 %v9359, 7
    %v9361 = vsub.s32 %v4244, %v9360
    %v9362 = vrot.slane %v8109, %v9361
    %v9363 = vsel %vm4249, %v9362, %v9358
    %v9364 = vlaneseq
    %v9365 = vshrl.u32 %v9364, 7
    %v9366 = vsub.s32 %v4251, %v9365
    %v9367 = vrot.slane %v8112, %v9366
    %v9368 = vsel %vm4256, %v9367, %v9363
    %v9369 = vlaneseq
    %v9370 = vshrl.u32 %v9369, 7
    %v9371 = vsub.s32 %v4258, %v9370
    %v9372 = vrot.slane %v8115, %v9371
    %v9373 = vsel %vm4263, %v9372, %v9368
    %v9374 = vlaneseq
    %v9375 = vshrl.u32 %v9374, 7
    %v9376 = vsub.s32 %v4265, %v9375
    %v9377 = vrot.slane %v8118, %v9376
    %v9378 = vsel %vm4270, %v9377, %v9373
    %v9379 = vlaneseq
    %v9380 = vshrl.u32 %v9379, 7
    %v9381 = vsub.s32 %v4272, %v9380
    %v9382 = vrot.slane %v8121, %v9381
    %v9383 = vsel %vm4277, %v9382, %v9378
    %v9384 = vlaneseq
    %v9385 = vshrl.u32 %v9384, 7
    %v9386 = vsub.s32 %v4279, %v9385
    %v9387 = vrot.slane %v8124, %v9386
    %v9388 = vsel %vm4284, %v9387, %v9383
    %v9389 = vsel %vm5471, %v8361, %v8203
    %v9390 = vsel %vm5473, %v8519, %v9389
    %v9391 = vsel %vm5475, %v8677, %v9390
    %v9392 = vsel %vm5477, %v8835, %v9391
    %v9393 = vsel %vm5479, %v8993, %v9392
    %v9394 = vsel %vm5481, %v9151, %v9393
    %v9395 = vsel %vm5483, %v9309, %v9394
    %v9396 = vsel %vm5471, %v8440, %v8282
    %v9397 = vsel %vm5473, %v8598, %v9396
    %v9398 = vsel %vm5475, %v8756, %v9397
    %v9399 = vsel %vm5477, %v8914, %v9398
    %v9400 = vsel %vm5479, %v9072, %v9399
    %v9401 = vsel %vm5481, %v9230, %v9400
    %v9402 = vsel %vm5483, %v9388, %v9401
    %v9405 = vadd.f32 %v9395, %v9402
    %9406 = vadd.xlane.f32.xlu0 %v9405
    %v9407 = vpop.xlane.xlu0 %9406
    %v9408 = vlog2.pop %v9407
    %v9409 = vmul.f32 %v9408, 0.6931472
    %v9410 = vadd.f32 %v5508, %v9409
    %v9411 = vmul.f32 %v1438, %v1556
    %v9412 = vmul.f32 %v1439, %v1557
    %v9413 = vadd.f32 %v9411, %v9412
    %9414 = vadd.xlane.f32.xlu0 %v9413
    %v9415 = vpop.xlane.xlu0 %9414
    %v9416 = vsub.f32 %v9410, %v9415
    %v9417 = vadd.f32 %v5505, %v9416
    %9418 = vmatprep.subr.mxu0 0.0
    %9419 = vmatpush1.msra.mxu0 %v1443
    %9420 = vmatprep.subr.mxu0 0.0
    %9421 = vmatpush1.msra.mxu0 %v1444
    %9422 = vmatprep.subr.mxu0 0.0
    %9423 = vmatpush1.msra.mxu0 %v1445
    %9424 = vmatprep.subr.mxu0 0.0
    %9425 = vmatpush1.msra.mxu0 %v1446
    %9426 = vmatprep.subr.mxu0 0.0
    %9427 = vmatpush1.msra.mxu0 %v1447
    %9428 = vmatprep.subr.mxu0 0.0
    %9429 = vmatpush1.msra.mxu0 %v1448
    %9430 = vmatprep.subr.mxu0 0.0
    %9431 = vmatpush1.msra.mxu0 %v1449
    %9432 = vmatprep.subr.mxu0 0.0
    %9433 = vmatpush1.msra.mxu0 %v1450
    %9434 = vmatprep.subr.mxu0 0.0
    %9435 = vmatpush1.msra.mxu0 %v1451
    %9436 = vmatprep.subr.mxu0 0.0
    %9437 = vmatpush1.msra.mxu0 %v1452
    %9438 = vmatprep.subr.mxu0 0.0
    %9439 = vmatpush1.msra.mxu0 %v1453
    %9440 = vmatprep.subr.mxu0 0.0
    %9441 = vmatpush1.msra.mxu0 %v1454
    %9442 = vmatprep.subr.mxu0 0.0
    %9443 = vmatpush1.msra.mxu0 %v1455
    %9444 = vmatprep.subr.mxu0 0.0
    %9445 = vmatpush1.msra.mxu0 %v1456
    %9446 = vmatprep.subr.mxu0 0.0
    %9447 = vmatpush1.msra.mxu0 %v1457
    %9448 = vmatprep.subr.mxu0 0.0
    %9449 = vmatpush1.msra.mxu0 %v1458
    %9450 = vmatprep.subr.mxu0 0.0
    %9451 = vmatpush1.msra.mxu0 %v1459
    %9452 = vmatprep.subr.mxu0 0.0
    %9453 = vmatpush1.msra.mxu0 %v1460
    %9454 = vmatprep.subr.mxu0 0.0
    %9455 = vmatpush1.msra.mxu0 %v1461
    %9456 = vmatprep.subr.mxu0 0.0
    %9457 = vmatpush1.msra.mxu0 %v1462
    %9458 = vmatprep.subr.mxu0 0.0
    %9459 = vmatpush1.msra.mxu0 %v1463
    %9460 = vmatprep.subr.mxu0 0.0
    %9461 = vmatpush1.msra.mxu0 %v1464
    %9462 = vmatprep.subr.mxu0 0.0
    %9463 = vmatpush1.msra.mxu0 %v1465
    %9464 = vmatprep.subr.mxu0 0.0
    %9465 = vmatpush1.msra.mxu0 %v1466
    %9466 = vmatprep.subr.mxu0 0.0
    %9467 = vmatpush1.msra.mxu0 %v1467
    %9468 = vmatprep.subr.mxu0 0.0
    %9469 = vmatpush1.msra.mxu0 %v1468
    %9470 = vmatprep.subr.mxu0 0.0
    %9471 = vmatpush1.msra.mxu0 %v1469
    %9472 = vmatprep.subr.mxu0 0.0
    %9473 = vmatpush1.msra.mxu0 %v1470
    %9474 = vmatprep.subr.mxu0 0.0
    %9475 = vmatpush1.msra.mxu0 %v1471
    %9476 = vmatprep.subr.mxu0 0.0
    %9477 = vmatpush1.msra.mxu0 %v1472
    %9478 = vmatprep.subr.mxu0 0.0
    %9479 = vmatpush1.msra.mxu0 %v1473
    %9480 = vmatprep.subr.mxu0 0.0
    %9481 = vmatpush1.msra.mxu0 %v1474
    %9482 = vmatprep.mubr.f32.mxu0 %v1439
    %9483 = vmatmul.mubr.f32.gmra.mrb[0].mxu0 %v1438
    %v9484 = vpop.f32.mrb[0].mxu0
    %v9485 = vadd.f32 0.0, %v9484
    %v9486 = vpop.f32.mrb[0].mxu0
    %9487 = vdwg.mxu0
    %v9488 = vmul.f32 %v9485, 0.5
    %v9489 = vmul.f32 %v1475, 0.5
    %v9490 = vadd.f32 %v9488, %v9489
    %v9491 = vmul.f32 %v9490, %v9490
    %9492 = vadd.xlane.f32.xlu0 %v9491
    %v9493 = vpop.xlane.xlu0 %9492
    %v9494 = vmax.f32 %v9493, 1e-24
    %v9495 = vrsqrt.pop %v9494
    %v9496 = vmul.f32 %v9490, %v9495
    %9497 = vst [vmem:[#allocation3] sm:$0xff] %v9496
    %s9498 = sld [smem:[#allocation7]]
    %s9499 = smul.addr %s9498, 16
    %s9500 = scalar_lea.hbm %s5, %s9499
    // Predicated region
    $region14: #{_pirl_forward.1} parent=1 // pred_check
      _
    $region15: #{_pirl_forward.1} parent=1 // pred_check_branch
      %9502 = sbr.rel target = $region17
    $region16: #{_pirl_forward.1} parent=1 // pred_region
      %9503 = sst [smem:[#allocation12]] [#allocation15]
      %9504 = sst [smem:[#allocation13]] [#allocation14]
    $region17: #{_pirl_forward.1} parent=1 // pred_fallthru
      _
    %9506 = shalt.err (0)
    %s9508 = sshll.u32 [#allocation3], 4
    %s9509 = int_to_ptr.vmem [resolvable:$true] %s9508
    %9511 = dma.vmem_to_hbm [thread:$0]  %s9509, 16, %s9500, [#allocation5]
    %s9512 = sld [smem:[#allocation7 + $0x1]]
    %s9513 = scalar_lea.vmem [#allocation3], 1
    %s9514 = smul.addr %s9512, 16
    %s9515 = scalar_lea.hbm %s5, %s9514
    // Predicated region
    $region18: #{_pirl_forward.1} parent=1 // pred_check
      _
    $region19: #{_pirl_forward.1} parent=1 // pred_check_branch
      %9517 = sbr.rel target = $region21
    $region20: #{_pirl_forward.1} parent=1 // pred_region
      %9518 = sst [smem:[#allocation12]] [#allocation17]
      %9519 = sst [smem:[#allocation13]] [#allocation16]
    $region21: #{_pirl_forward.1} parent=1 // pred_fallthru
      _
    %9521 = shalt.err (0)
    %s9523 = sshll.u32 %s9513, 4
    %s9524 = int_to_ptr.vmem [resolvable:$true] %s9523
    %9526 = dma.vmem_to_hbm [thread:$0]  %s9524, 16, %s9515, [#allocation5]
    %s9527 = sld [smem:[#allocation7 + $0x2]]
    %s9528 = scalar_lea.vmem [#allocation3], 2
    %s9529 = smul.addr %s9527, 16
    %s9530 = scalar_lea.hbm %s5, %s9529
    // Predicated region
    $region22: #{_pirl_forward.1} parent=1 // pred_check
      _
    $region23: #{_pirl_forward.1} parent=1 // pred_check_branch
      %9532 = sbr.rel target = $region25
    $region24: #{_pirl_forward.1} parent=1 // pred_region
      %9533 = sst [smem:[#allocation12]] [#allocation19]
      %9534 = sst [smem:[#allocation13]] [#allocation18]
    $region25: #{_pirl_forward.1} parent=1 // pred_fallthru
      _
    %9536 = shalt.err (0)
    %s9538 = sshll.u32 %s9528, 4
    %s9539 = int_to_ptr.vmem [resolvable:$true] %s9538
    %9541 = dma.vmem_to_hbm [thread:$0]  %s9539, 16, %s9530, [#allocation5]
    %s9542 = sld [smem:[#allocation7 + $0x3]]
    %s9543 = scalar_lea.vmem [#allocation3], 3
    %s9544 = smul.addr %s9542, 16
    %s9545 = scalar_lea.hbm %s5, %s9544
    // Predicated region
    $region26: #{_pirl_forward.1} parent=1 // pred_check
      _
    $region27: #{_pirl_forward.1} parent=1 // pred_check_branch
      %9547 = sbr.rel target = $region29
    $region28: #{_pirl_forward.1} parent=1 // pred_region
      %9548 = sst [smem:[#allocation12]] [#allocation21]
      %9549 = sst [smem:[#allocation13]] [#allocation20]
    $region29: #{_pirl_forward.1} parent=1 // pred_fallthru
      _
    %9551 = shalt.err (0)
    %s9553 = sshll.u32 %s9543, 4
    %s9554 = int_to_ptr.vmem [resolvable:$true] %s9553
    %9556 = dma.vmem_to_hbm [thread:$0]  %s9554, 16, %s9545, [#allocation5]
    %s9557 = sld [smem:[#allocation7 + $0x4]]
    %s9558 = scalar_lea.vmem [#allocation3], 4
    %s9559 = smul.addr %s9557, 16
    %s9560 = scalar_lea.hbm %s5, %s9559
    // Predicated region
    $region30: #{_pirl_forward.1} parent=1 // pred_check
      _
    $region31: #{_pirl_forward.1} parent=1 // pred_check_branch
      %9562 = sbr.rel target = $region33
    $region32: #{_pirl_forward.1} parent=1 // pred_region
      %9563 = sst [smem:[#allocation12]] [#allocation23]
      %9564 = sst [smem:[#allocation13]] [#allocation22]
    $region33: #{_pirl_forward.1} parent=1 // pred_fallthru
      _
    %9566 = shalt.err (0)
    %s9568 = sshll.u32 %s9558, 4
    %s9569 = int_to_ptr.vmem [resolvable:$true] %s9568
    %9571 = dma.vmem_to_hbm [thread:$0]  %s9569, 16, %s9560, [#allocation5]
    %s9572 = sld [smem:[#allocation7 + $0x5]]
    %s9573 = scalar_lea.vmem [#allocation3], 5
    %s9574 = smul.addr %s9572, 16
    %s9575 = scalar_lea.hbm %s5, %s9574
    // Predicated region
    $region34: #{_pirl_forward.1} parent=1 // pred_check
      _
    $region35: #{_pirl_forward.1} parent=1 // pred_check_branch
      %9577 = sbr.rel target = $region37
    $region36: #{_pirl_forward.1} parent=1 // pred_region
      %9578 = sst [smem:[#allocation12]] [#allocation25]
      %9579 = sst [smem:[#allocation13]] [#allocation24]
    $region37: #{_pirl_forward.1} parent=1 // pred_fallthru
      _
    %9581 = shalt.err (0)
    %s9583 = sshll.u32 %s9573, 4
    %s9584 = int_to_ptr.vmem [resolvable:$true] %s9583
    %9586 = dma.vmem_to_hbm [thread:$0]  %s9584, 16, %s9575, [#allocation5]
    %s9587 = sld [smem:[#allocation7 + $0x6]]
    %s9588 = scalar_lea.vmem [#allocation3], 6
    %s9589 = smul.addr %s9587, 16
    %s9590 = scalar_lea.hbm %s5, %s9589
    // Predicated region
    $region38: #{_pirl_forward.1} parent=1 // pred_check
      _
    $region39: #{_pirl_forward.1} parent=1 // pred_check_branch
      %9592 = sbr.rel target = $region41
    $region40: #{_pirl_forward.1} parent=1 // pred_region
      %9593 = sst [smem:[#allocation12]] [#allocation27]
      %9594 = sst [smem:[#allocation13]] [#allocation26]
    $region41: #{_pirl_forward.1} parent=1 // pred_fallthru
      _
    %9596 = shalt.err (0)
    %s9598 = sshll.u32 %s9588, 4
    %s9599 = int_to_ptr.vmem [resolvable:$true] %s9598
    %9601 = dma.vmem_to_hbm [thread:$0]  %s9599, 16, %s9590, [#allocation5]
    %s9602 = sld [smem:[#allocation7 + $0x7]]
    %s9603 = scalar_lea.vmem [#allocation3], 7
    %s9604 = smul.addr %s9602, 16
    %s9605 = scalar_lea.hbm %s5, %s9604
    // Predicated region
    $region42: #{_pirl_forward.1} parent=1 // pred_check
      _
    $region43: #{_pirl_forward.1} parent=1 // pred_check_branch
      %9607 = sbr.rel target = $region45
    $region44: #{_pirl_forward.1} parent=1 // pred_region
      %9608 = sst [smem:[#allocation12]] [#allocation29]
      %9609 = sst [smem:[#allocation13]] [#allocation28]
    $region45: #{_pirl_forward.1} parent=1 // pred_fallthru
      _
    %9611 = shalt.err (0)
    %s9613 = sshll.u32 %s9603, 4
    %s9614 = int_to_ptr.vmem [resolvable:$true] %s9613
    %9616 = dma.vmem_to_hbm [thread:$0]  %s9614, 16, %s9605, [#allocation5]
    %vm9617 = vcmask 7168
    %v9618 = vsel %vm9617, %v9417, 0.0
    %9619 = vadd.xlane.f32.xlu0 %v9618
    %v9620 = vpop.xlane.xlu0 %9619
    %v9621 = vrot.slane %v9620, 4
    %v9622 = vadd.f32 %v9620, %v9621
    %v9623 = vrot.slane %v9622, 2
    %v9624 = vadd.f32 %v9622, %v9623
    %v9625 = vrot.slane %v9624, 1
    %v9626 = vadd.f32 %v9624, %v9625
    %s9627 = vtos %v9626
    %v9628 = vstv %s9627
    %v9629 = vmul.f32 %v9628, 0.0625
    %vm9630 = vcmask 0
    %9631 = vst.msk [vmem:[#allocation8] sm:$0x1] %vm9630, %v9629
    %s9632 = smul.u32 1, 1
    %s9633 = sshll.u32 %s9632, 4
    %9634 = dma.done [#allocation5], %s9633
    %s9635 = sshll.u32 %s9632, 4
    %9636 = dma.done [#allocation5], %s9635
    %s9637 = sshll.u32 %s9632, 4
    %9638 = dma.done [#allocation5], %s9637
    %s9639 = sshll.u32 %s9632, 4
    %9640 = dma.done [#allocation5], %s9639
    %s9641 = sshll.u32 %s9632, 4
    %9642 = dma.done [#allocation5], %s9641
    %s9643 = sshll.u32 %s9632, 4
    %9644 = dma.done [#allocation5], %s9643
    %s9645 = sshll.u32 %s9632, 4
    %9646 = dma.done [#allocation5], %s9645
    %s9647 = sshll.u32 %s9632, 4
    %9648 = dma.done [#allocation5], %s9647
    // Predicated region
    $region46: #{_pirl_forward.1} parent=1 // pred_check
      _
    $region47: #{_pirl_forward.1} parent=1 // pred_check_branch
      %9650 = sbr.rel (0) target = $region49
    $region48: #{_pirl_forward.1} parent=1 // pred_region
      %s9652 = ssub.s32 16, 16
      %9653 = vsyncadd [#allocation9], %s9652
      %s9655 = sshll.u32 [#allocation8], 4
      %s9656 = int_to_ptr.vmem [resolvable:$true] %s9655
      %9658 = dma.vmem_to_hbm [thread:$0]  %s9656, 16, %s4, [#allocation9]
    $region49: #{_pirl_forward.1} parent=1 // pred_fallthru
      _
    // Predicated region
    $region50: #{_pirl_forward.1} parent=1 // pred_check
      _
    $region51: #{_pirl_forward.1} parent=1 // pred_check_branch
      %9660 = sbr.rel (0) target = $region53
    $region52: #{_pirl_forward.1} parent=1 // pred_region
      %9661 = dma.done [#allocation9], 16
    $region53: #{_pirl_forward.1} parent=1 // pred_fallthru
      _
    %9662 = vsyncpa [#allocation9], 1
  %9663 = vsyncmov [#allocation4]
  %s9664 = vpop.sfrf %9663
  %p9665 = scmp.eq.s32.totalorder %s9664, 0
  %p9666 = pneg %p9665
  %9668 = shalt.err (%p9666)
  %9669 = vsyncmov [#allocation5]
  %s9670 = vpop.sfrf %9669
  %p9671 = scmp.eq.s32.totalorder %s9670, 0
  %p9672 = pneg %p9671
  %9674 = shalt.err (%p9672)

</llo_original>
